<compile_context>
chip_gen: v7x
topology: tpu7x:2x2x1
jax: 0.10.0
libtpu: 0.0.40
codegen_flags: <defaults>
</compile_context>

<pallas_src>
import functools

import jax
import jax.numpy as jnp
from jax.experimental import pallas as pl
from jax.experimental.pallas import tpu as pltpu

H, W = 7, 8
P = H * W              # 56 spatial positions
C1, C2 = 32, 64        # conv channel counts
FC1 = 128              # fc1 width


# ----------------------------------------------------------------------------
# The fused forward kernel
# ----------------------------------------------------------------------------
def _generator_kernel(p1_ref, mask_ref, w1_ref, b1_ref, w2_ref, b2_ref,
                      wfc1_ref, bfc1_ref, wfc2_ref, bfc2_ref, out_ref, *,
                      batch):
    B = batch
    PB = p1_ref.shape[0]                     # 56 * B rows, row = (h*8+w)*B + b

    # ---- conv1 (1 -> 32): one im2col matmul on the MXU ----------------------
    h1 = jnp.dot(p1_ref[...], w1_ref[...], preferred_element_type=jnp.float32)
    h1 = jnp.maximum(h1 + b1_ref[...], 0.0)                       # (PB, 32)

    # ---- conv2 (32 -> 64): 9 shifted-tap matmuls accumulated in f32 ---------
    mask = mask_ref[...]                                          # (PB, 9)
    acc2 = jnp.zeros((PB, C2), jnp.float32)
    for t in range(9):
        kh, kw = t // 3, t % 3
        if (kh, kw) == (1, 1):
            tap = h1                                              # center tap
        else:
            s = ((kh - 1) * W + (kw - 1)) * B                     # row shift
            shifted = pltpu.roll(h1, (-s) % PB, axis=0)           # shifted[r] = h1[r+s]
            tap = shifted * mask[:, t:t + 1]                      # zero padding
        acc2 = acc2 + jnp.dot(tap, w2_ref[t],
                              preferred_element_type=jnp.float32)
    h2 = jnp.maximum(acc2 + b2_ref[...], 0.0)                     # (PB, 64)

    # ---- fc1: torch.flatten(NCHW) order is baked into wfc1's (p, c, o) layout
    #      -> per-position matmuls, no in-kernel transpose/reshape ------------
    acc3 = jnp.zeros((B, FC1), jnp.float32)
    for p in range(P):
        acc3 = acc3 + jnp.dot(h2[p * B:(p + 1) * B, :], wfc1_ref[p],
                              preferred_element_type=jnp.float32)
    h3 = jnp.maximum(acc3 + bfc1_ref[...], 0.0)                   # (B, 128)

    # ---- fc2 -----------------------------------------------------------------
    out = jnp.dot(h3, wfc2_ref[...],
                  preferred_element_type=jnp.float32) + bfc2_ref[...]
    out_ref[...] = out.astype(out_ref.dtype)
    # TODO(synk): self.tanh is defined in __init__ but never used in forward(),
    # so it is intentionally not applied here.


# ----------------------------------------------------------------------------
# One-time weight re-layout (PyTorch layout -> kernel layout), outside jit
# ----------------------------------------------------------------------------
def prepare_params(torch_params):
    p = torch_params
    w1 = jnp.transpose(p["conv1_w"], (2, 3, 1, 0)).reshape(9, C1)
    w2 = jnp.transpose(p["conv2_w"], (2, 3, 1, 0)).reshape(9, C1, C2)
    # fc1_w is (128, 64*7*8) with NCHW flatten order (c, h, w); permute its
    # input axis to (p=(h,w), c) so the kernel reads h2 rows directly.
    wfc1 = jnp.transpose(p["fc1_w"].reshape(FC1, C2, H, W),
                         (2, 3, 1, 0)).reshape(P, C2, FC1)
    return {
        "w1": w1, "b1": p["conv1_b"].reshape(1, C1),
        "w2": w2, "b2": p["conv2_b"].reshape(1, C2),
        "wfc1": wfc1, "bfc1": p["fc1_b"].reshape(1, FC1),
        "wfc2": jnp.transpose(p["fc2_w"]),          # (128, output_size)
        "bfc2": p["fc2_b"].reshape(1, -1),
    }


# ----------------------------------------------------------------------------
# Tiny wrapper glue (conv1 im2col ~4 KiB; mask is shape-only / const-folded)
# ----------------------------------------------------------------------------
def _conv1_patches(x_img):
    B = x_img.shape[0]
    xp = jnp.pad(x_img, ((0, 0), (1, 1), (1, 1)))
    cols = [xp[:, kh:kh + H, kw:kw + W] for kh in range(3) for kw in range(3)]
    pt = jnp.stack(cols, axis=-1).reshape(B, P, 9)        # (B, 56, 9)
    return jnp.transpose(pt, (1, 0, 2)).reshape(P * B, 9)  # rows = (p, b)


def _tap_mask(B):
    hh = jnp.arange(H)
    ww = jnp.arange(W)
    cols = []
    for kh in range(3):
        for kw in range(3):
            vh = (hh + kh - 1 >= 0) & (hh + kh - 1 < H)
            vw = (ww + kw - 1 >= 0) & (ww + kw - 1 < W)
            cols.append((vh[:, None] & vw[None, :]).reshape(P))
    m = jnp.stack(cols, axis=-1).astype(jnp.float32)       # (56, 9)
    return jnp.repeat(m, B, axis=0)                        # (56*B, 9)


# ----------------------------------------------------------------------------
# Fused forward pass
# ----------------------------------------------------------------------------
def generator_forward(params, x):
    x = x.reshape(-1, H * W)              # == torch x.reshape([-1, 1, 7, 8])
    B = x.shape[0]
    PB = P * B
    nout = params["wfc2"].shape[1]

    patches1 = _conv1_patches(x.reshape(B, H, W))          # (PB, 9)
    mask = _tap_mask(B)                                    # (PB, 9)

    operands = (patches1, mask, params["w1"], params["b1"], params["w2"],
                params["b2"], params["wfc1"], params["bfc1"], params["wfc2"],
                params["bfc2"])
    in_specs = [
        pl.BlockSpec((PB, 9), lambda i: (0, 0)),
        pl.BlockSpec((PB, 9), lambda i: (0, 0)),
        pl.BlockSpec((9, C1), lambda i: (0, 0)),
        pl.BlockSpec((1, C1), lambda i: (0, 0)),
        pl.BlockSpec((9, C1, C2), lambda i: (0, 0, 0)),
        pl.BlockSpec((1, C2), lambda i: (0, 0)),
        pl.BlockSpec((P, C2, FC1), lambda i: (0, 0, 0)),
        pl.BlockSpec((1, FC1), lambda i: (0, 0)),
        pl.BlockSpec((FC1, nout), lambda i: (0, 0)),
        pl.BlockSpec((1, nout), lambda i: (0, 0)),
    ]

    flops = (2 * PB * 9 * C1 + 2 * PB * 9 * C1 * C2
             + 2 * B * P * C2 * FC1 + 2 * B * FC1 * nout)
    bytes_accessed = sum(int(op.size) * op.dtype.itemsize for op in operands)
    bytes_accessed += B * nout * 4

    kern = functools.partial(_generator_kernel, batch=B)
    return pl.pallas_call(
        kern,
        out_shape=jax.ShapeDtypeStruct((B, nout), jnp.float32),
        grid=(1,),
        in_specs=in_specs,
        out_specs=pl.BlockSpec((B, nout), lambda i: (0, 0)),
        compiler_params=pltpu.CompilerParams(
            dimension_semantics=("arbitrary",)),
        cost_estimate=pl.CostEstimate(
            flops=int(flops), transcendentals=0,
            bytes_accessed=int(bytes_accessed)),
    )(*operands)


# ----------------------------------------------------------------------------
# Deterministic PyTorch-layout parameter init + pure-JAX reference
# ----------------------------------------------------------------------------
def init_params(key, output_size):
    ks = jax.random.split(key, 8)

    def norm(k, shape, scale=0.05):
        return scale * jax.random.normal(k, shape, dtype=jnp.float32)

    return {
        "conv1_w": norm(ks[0], (C1, 1, 3, 3)),          # (Cout, Cin, kH, kW)
        "conv1_b": norm(ks[1], (C1,)),
        "conv2_w": norm(ks[2], (C2, C1, 3, 3)),
        "conv2_b": norm(ks[3], (C2,)),
        "fc1_w": norm(ks[4], (FC1, C2 * H * W)),        # PyTorch Linear (out, in)
        "fc1_b": norm(ks[5], (FC1,)),
        "fc2_w": norm(ks[6], (output_size, FC1)),
        "fc2_b": norm(ks[7], (output_size,)),
    }


def _reference_forward(torch_params, x):
    p = torch_params
    B = x.reshape(-1, H * W).shape[0]
    h = x.reshape(B, 1, H, W)
    for wn, bn, cout in (("conv1_w", "conv1_b", C1), ("conv2_w", "conv2_b", C2)):
        h = jax.lax.conv_general_dilated(
            h, p[wn], window_strides=(1, 1), padding=((1, 1), (1, 1)),
            dimension_numbers=("NCHW", "OIHW", "NCHW"),
            precision=jax.lax.Precision.HIGHEST)
        h = jax.nn.relu(h + p[bn].reshape(1, cout, 1, 1))
    flat = h.reshape(B, C2 * H * W)                      # torch.flatten(NCHW)
    h = jax.nn.relu(jnp.dot(flat, p["fc1_w"].T,
                            precision=jax.lax.Precision.HIGHEST) + p["fc1_b"])
    return jnp.dot(h, p["fc2_w"].T,
                   precision=jax.lax.Precision.HIGHEST) + p["fc2_b"]


if __name__ == "__main__":
    key = jax.random.PRNGKey(0)
    k_param, k_x = jax.random.split(key)

    output_size = 56                                   # e.g. a 7x8 grid
    torch_params = init_params(k_param, output_size)
    params = prepare_params(torch_params)              # one-time re-layout

    # Input: batch=2 flat vectors of size 7*8=56 (forward reshapes internally)
    x = jax.random.normal(k_x, (2, H * W), dtype=jnp.float32)

    fwd = jax.jit(generator_forward)
    out = fwd(params, x)
    jax.block_until_ready(out)

    assert out.shape == (2, output_size)
    assert out.dtype == jnp.float32
    assert bool(jnp.all(jnp.isfinite(out)))

    ref = _reference_forward(torch_params, x)
    max_err = float(jnp.max(jnp.abs(out - ref)))
    assert max_err < 5e-3, f"kernel vs reference mismatch: {max_err}"

    print("KERNEL_OK")
</pallas_src>

<mosaic_0001>
module attributes {stable_mosaic.version = 11 : i64} {
  func.func @_generator_kernel(%arg0: i32, %arg1: memref<112x9xf32, #tpu.memory_space<vmem>>, %arg2: memref<112x9xf32, #tpu.memory_space<vmem>>, %arg3: memref<9x32xf32, #tpu.memory_space<vmem>>, %arg4: memref<1x32xf32, #tpu.memory_space<vmem>>, %arg5: memref<9x32x64xf32, #tpu.memory_space<vmem>>, %arg6: memref<1x64xf32, #tpu.memory_space<vmem>>, %arg7: memref<56x64x128xf32, #tpu.memory_space<vmem>>, %arg8: memref<1x128xf32, #tpu.memory_space<vmem>>, %arg9: memref<128x56xf32, #tpu.memory_space<vmem>>, %arg10: memref<1x56xf32, #tpu.memory_space<vmem>>, %arg11: memref<2x56xf32, #tpu.memory_space<vmem>>) attributes {dimension_semantics = [#tpu.dimension_semantics<arbitrary>], iteration_bounds = array<i64: 1>, scalar_prefetch = 0 : i64, scratch_operands = 0 : i64, tpu.core_type = #tpu.core_type<tc>, window_params = [{pipeline_mode = #tpu.pipeline_mode<synchronous>, transform_indices = @transform_0, window_bounds = array<i64: 112, 9>}, {pipeline_mode = #tpu.pipeline_mode<synchronous>, transform_indices = @transform_1, window_bounds = array<i64: 112, 9>}, {pipeline_mode = #tpu.pipeline_mode<synchronous>, transform_indices = @transform_2, window_bounds = array<i64: 9, 32>}, {pipeline_mode = #tpu.pipeline_mode<synchronous>, transform_indices = @transform_3, window_bounds = array<i64: 1, 32>}, {pipeline_mode = #tpu.pipeline_mode<synchronous>, transform_indices = @transform_4, window_bounds = array<i64: 9, 32, 64>}, {pipeline_mode = #tpu.pipeline_mode<synchronous>, transform_indices = @transform_5, window_bounds = array<i64: 1, 64>}, {pipeline_mode = #tpu.pipeline_mode<synchronous>, transform_indices = @transform_6, window_bounds = array<i64: 56, 64, 128>}, {pipeline_mode = #tpu.pipeline_mode<synchronous>, transform_indices = @transform_7, window_bounds = array<i64: 1, 128>}, {pipeline_mode = #tpu.pipeline_mode<synchronous>, transform_indices = @transform_8, window_bounds = array<i64: 128, 56>}, {pipeline_mode = #tpu.pipeline_mode<synchronous>, transform_indices = @transform_9, window_bounds = array<i64: 1, 56>}, {pipeline_mode = #tpu.pipeline_mode<synchronous>, transform_indices = @transform_10, window_bounds = array<i64: 2, 56>}]} {
    %c0 = arith.constant 0 : index
    %c0_0 = arith.constant 0 : index
    %0 = vector.load %arg1[%c0, %c0_0] : memref<112x9xf32, #tpu.memory_space<vmem>>, vector<112x9xf32>
    %c0_1 = arith.constant 0 : index
    %c0_2 = arith.constant 0 : index
    %1 = vector.load %arg3[%c0_1, %c0_2] : memref<9x32xf32, #tpu.memory_space<vmem>>, vector<9x32xf32>
    %cst = arith.constant dense<0.000000e+00> : vector<112x32xf32>
    %2 = tpu.matmul %0, %1, %cst {dimension_numbers = #tpu.dot_dimension_numbers<[1], [0], [0], [1], [0, 0, 1, 1], [], []>} : vector<112x9xf32>, vector<9x32xf32>, vector<112x32xf32> -> vector<112x32xf32>
    %c0_3 = arith.constant 0 : index
    %c0_4 = arith.constant 0 : index
    %3 = vector.load %arg4[%c0_3, %c0_4] : memref<1x32xf32, #tpu.memory_space<vmem>>, vector<1x32xf32>
    %4 = vector.broadcast %3 : vector<1x32xf32> to vector<112x32xf32>
    %5 = arith.addf %2, %4 : vector<112x32xf32>
    %cst_5 = arith.constant 0.000000e+00 : f32
    %6 = vector.broadcast %cst_5 : f32 to vector<112x32xf32>
    %7 = arith.maximumf %5, %6 : vector<112x32xf32>
    %c0_6 = arith.constant 0 : index
    %c0_7 = arith.constant 0 : index
    %8 = vector.load %arg2[%c0_6, %c0_7] : memref<112x9xf32, #tpu.memory_space<vmem>>, vector<112x9xf32>
    %cst_8 = arith.constant 0.000000e+00 : f32
    %9 = vector.broadcast %cst_8 : f32 to vector<112x64xf32>
    %c18_i32 = arith.constant 18 : i32
    %10 = tpu.dynamic_rotate %7 by %c18_i32 dim 0 : vector<112x32xf32>, i32 -> vector<112x32xf32>
    %11 = vector.extract_strided_slice %8 {offsets = [0, 0], sizes = [112, 1], strides = [1, 1]} : vector<112x9xf32> to vector<112x1xf32>
    %12 = vector.broadcast %11 : vector<112x1xf32> to vector<112x32xf32>
    %13 = arith.mulf %10, %12 : vector<112x32xf32>
    %c0_9 = arith.constant 0 : index
    %c0_10 = arith.constant 0 : index
    %c0_11 = arith.constant 0 : index
    %14 = vector.load %arg5[%c0_9, %c0_10, %c0_11] : memref<9x32x64xf32, #tpu.memory_space<vmem>>, vector<1x32x64xf32>
    %15 = vector.shape_cast %14 : vector<1x32x64xf32> to vector<32x64xf32>
    %cst_12 = arith.constant dense<0.000000e+00> : vector<112x64xf32>
    %16 = tpu.matmul %13, %15, %cst_12 {dimension_numbers = #tpu.dot_dimension_numbers<[1], [0], [0], [1], [0, 0, 1, 1], [], []>} : vector<112x32xf32>, vector<32x64xf32>, vector<112x64xf32> -> vector<112x64xf32>
    %17 = arith.addf %9, %16 : vector<112x64xf32>
    %c16_i32 = arith.constant 16 : i32
    %18 = tpu.dynamic_rotate %7 by %c16_i32 dim 0 : vector<112x32xf32>, i32 -> vector<112x32xf32>
    %19 = vector.extract_strided_slice %8 {offsets = [0, 1], sizes = [112, 1], strides = [1, 1]} : vector<112x9xf32> to vector<112x1xf32>
    %20 = vector.broadcast %19 : vector<112x1xf32> to vector<112x32xf32>
    %21 = arith.mulf %18, %20 : vector<112x32xf32>
    %c1 = arith.constant 1 : index
    %c0_13 = arith.constant 0 : index
    %c0_14 = arith.constant 0 : index
    %22 = vector.load %arg5[%c1, %c0_13, %c0_14] : memref<9x32x64xf32, #tpu.memory_space<vmem>>, vector<1x32x64xf32>
    %23 = vector.shape_cast %22 : vector<1x32x64xf32> to vector<32x64xf32>
    %cst_15 = arith.constant dense<0.000000e+00> : vector<112x64xf32>
    %24 = tpu.matmul %21, %23, %cst_15 {dimension_numbers = #tpu.dot_dimension_numbers<[1], [0], [0], [1], [0, 0, 1, 1], [], []>} : vector<112x32xf32>, vector<32x64xf32>, vector<112x64xf32> -> vector<112x64xf32>
    %25 = arith.addf %17, %24 : vector<112x64xf32>
    %c14_i32 = arith.constant 14 : i32
    %26 = tpu.dynamic_rotate %7 by %c14_i32 dim 0 : vector<112x32xf32>, i32 -> vector<112x32xf32>
    %27 = vector.extract_strided_slice %8 {offsets = [0, 2], sizes = [112, 1], strides = [1, 1]} : vector<112x9xf32> to vector<112x1xf32>
    %28 = vector.broadcast %27 : vector<112x1xf32> to vector<112x32xf32>
    %29 = arith.mulf %26, %28 : vector<112x32xf32>
    %c2 = arith.constant 2 : index
    %c0_16 = arith.constant 0 : index
    %c0_17 = arith.constant 0 : index
    %30 = vector.load %arg5[%c2, %c0_16, %c0_17] : memref<9x32x64xf32, #tpu.memory_space<vmem>>, vector<1x32x64xf32>
    %31 = vector.shape_cast %30 : vector<1x32x64xf32> to vector<32x64xf32>
    %cst_18 = arith.constant dense<0.000000e+00> : vector<112x64xf32>
    %32 = tpu.matmul %29, %31, %cst_18 {dimension_numbers = #tpu.dot_dimension_numbers<[1], [0], [0], [1], [0, 0, 1, 1], [], []>} : vector<112x32xf32>, vector<32x64xf32>, vector<112x64xf32> -> vector<112x64xf32>
    %33 = arith.addf %25, %32 : vector<112x64xf32>
    %c2_i32 = arith.constant 2 : i32
    %34 = tpu.dynamic_rotate %7 by %c2_i32 dim 0 : vector<112x32xf32>, i32 -> vector<112x32xf32>
    %35 = vector.extract_strided_slice %8 {offsets = [0, 3], sizes = [112, 1], strides = [1, 1]} : vector<112x9xf32> to vector<112x1xf32>
    %36 = vector.broadcast %35 : vector<112x1xf32> to vector<112x32xf32>
    %37 = arith.mulf %34, %36 : vector<112x32xf32>
    %c3 = arith.constant 3 : index
    %c0_19 = arith.constant 0 : index
    %c0_20 = arith.constant 0 : index
    %38 = vector.load %arg5[%c3, %c0_19, %c0_20] : memref<9x32x64xf32, #tpu.memory_space<vmem>>, vector<1x32x64xf32>
    %39 = vector.shape_cast %38 : vector<1x32x64xf32> to vector<32x64xf32>
    %cst_21 = arith.constant dense<0.000000e+00> : vector<112x64xf32>
    %40 = tpu.matmul %37, %39, %cst_21 {dimension_numbers = #tpu.dot_dimension_numbers<[1], [0], [0], [1], [0, 0, 1, 1], [], []>} : vector<112x32xf32>, vector<32x64xf32>, vector<112x64xf32> -> vector<112x64xf32>
    %41 = arith.addf %33, %40 : vector<112x64xf32>
    %c4 = arith.constant 4 : index
    %c0_22 = arith.constant 0 : index
    %c0_23 = arith.constant 0 : index
    %42 = vector.load %arg5[%c4, %c0_22, %c0_23] : memref<9x32x64xf32, #tpu.memory_space<vmem>>, vector<1x32x64xf32>
    %43 = vector.shape_cast %42 : vector<1x32x64xf32> to vector<32x64xf32>
    %cst_24 = arith.constant dense<0.000000e+00> : vector<112x64xf32>
    %44 = tpu.matmul %7, %43, %cst_24 {dimension_numbers = #tpu.dot_dimension_numbers<[1], [0], [0], [1], [0, 0, 1, 1], [], []>} : vector<112x32xf32>, vector<32x64xf32>, vector<112x64xf32> -> vector<112x64xf32>
    %45 = arith.addf %41, %44 : vector<112x64xf32>
    %c110_i32 = arith.constant 110 : i32
    %46 = tpu.dynamic_rotate %7 by %c110_i32 dim 0 : vector<112x32xf32>, i32 -> vector<112x32xf32>
    %47 = vector.extract_strided_slice %8 {offsets = [0, 5], sizes = [112, 1], strides = [1, 1]} : vector<112x9xf32> to vector<112x1xf32>
    %48 = vector.broadcast %47 : vector<112x1xf32> to vector<112x32xf32>
    %49 = arith.mulf %46, %48 : vector<112x32xf32>
    %c5 = arith.constant 5 : index
    %c0_25 = arith.constant 0 : index
    %c0_26 = arith.constant 0 : index
    %50 = vector.load %arg5[%c5, %c0_25, %c0_26] : memref<9x32x64xf32, #tpu.memory_space<vmem>>, vector<1x32x64xf32>
    %51 = vector.shape_cast %50 : vector<1x32x64xf32> to vector<32x64xf32>
    %cst_27 = arith.constant dense<0.000000e+00> : vector<112x64xf32>
    %52 = tpu.matmul %49, %51, %cst_27 {dimension_numbers = #tpu.dot_dimension_numbers<[1], [0], [0], [1], [0, 0, 1, 1], [], []>} : vector<112x32xf32>, vector<32x64xf32>, vector<112x64xf32> -> vector<112x64xf32>
    %53 = arith.addf %45, %52 : vector<112x64xf32>
    %c98_i32 = arith.constant 98 : i32
    %54 = tpu.dynamic_rotate %7 by %c98_i32 dim 0 : vector<112x32xf32>, i32 -> vector<112x32xf32>
    %55 = vector.extract_strided_slice %8 {offsets = [0, 6], sizes = [112, 1], strides = [1, 1]} : vector<112x9xf32> to vector<112x1xf32>
    %56 = vector.broadcast %55 : vector<112x1xf32> to vector<112x32xf32>
    %57 = arith.mulf %54, %56 : vector<112x32xf32>
    %c6 = arith.constant 6 : index
    %c0_28 = arith.constant 0 : index
    %c0_29 = arith.constant 0 : index
    %58 = vector.load %arg5[%c6, %c0_28, %c0_29] : memref<9x32x64xf32, #tpu.memory_space<vmem>>, vector<1x32x64xf32>
    %59 = vector.shape_cast %58 : vector<1x32x64xf32> to vector<32x64xf32>
    %cst_30 = arith.constant dense<0.000000e+00> : vector<112x64xf32>
    %60 = tpu.matmul %57, %59, %cst_30 {dimension_numbers = #tpu.dot_dimension_numbers<[1], [0], [0], [1], [0, 0, 1, 1], [], []>} : vector<112x32xf32>, vector<32x64xf32>, vector<112x64xf32> -> vector<112x64xf32>
    %61 = arith.addf %53, %60 : vector<112x64xf32>
    %c96_i32 = arith.constant 96 : i32
    %62 = tpu.dynamic_rotate %7 by %c96_i32 dim 0 : vector<112x32xf32>, i32 -> vector<112x32xf32>
    %63 = vector.extract_strided_slice %8 {offsets = [0, 7], sizes = [112, 1], strides = [1, 1]} : vector<112x9xf32> to vector<112x1xf32>
    %64 = vector.broadcast %63 : vector<112x1xf32> to vector<112x32xf32>
    %65 = arith.mulf %62, %64 : vector<112x32xf32>
    %c7 = arith.constant 7 : index
    %c0_31 = arith.constant 0 : index
    %c0_32 = arith.constant 0 : index
    %66 = vector.load %arg5[%c7, %c0_31, %c0_32] : memref<9x32x64xf32, #tpu.memory_space<vmem>>, vector<1x32x64xf32>
    %67 = vector.shape_cast %66 : vector<1x32x64xf32> to vector<32x64xf32>
    %cst_33 = arith.constant dense<0.000000e+00> : vector<112x64xf32>
    %68 = tpu.matmul %65, %67, %cst_33 {dimension_numbers = #tpu.dot_dimension_numbers<[1], [0], [0], [1], [0, 0, 1, 1], [], []>} : vector<112x32xf32>, vector<32x64xf32>, vector<112x64xf32> -> vector<112x64xf32>
    %69 = arith.addf %61, %68 : vector<112x64xf32>
    %c94_i32 = arith.constant 94 : i32
    %70 = tpu.dynamic_rotate %7 by %c94_i32 dim 0 : vector<112x32xf32>, i32 -> vector<112x32xf32>
    %71 = vector.extract_strided_slice %8 {offsets = [0, 8], sizes = [112, 1], strides = [1, 1]} : vector<112x9xf32> to vector<112x1xf32>
    %72 = vector.broadcast %71 : vector<112x1xf32> to vector<112x32xf32>
    %73 = arith.mulf %70, %72 : vector<112x32xf32>
    %c8 = arith.constant 8 : index
    %c0_34 = arith.constant 0 : index
    %c0_35 = arith.constant 0 : index
    %74 = vector.load %arg5[%c8, %c0_34, %c0_35] : memref<9x32x64xf32, #tpu.memory_space<vmem>>, vector<1x32x64xf32>
    %75 = vector.shape_cast %74 : vector<1x32x64xf32> to vector<32x64xf32>
    %cst_36 = arith.constant dense<0.000000e+00> : vector<112x64xf32>
    %76 = tpu.matmul %73, %75, %cst_36 {dimension_numbers = #tpu.dot_dimension_numbers<[1], [0], [0], [1], [0, 0, 1, 1], [], []>} : vector<112x32xf32>, vector<32x64xf32>, vector<112x64xf32> -> vector<112x64xf32>
    %77 = arith.addf %69, %76 : vector<112x64xf32>
    %c0_37 = arith.constant 0 : index
    %c0_38 = arith.constant 0 : index
    %78 = vector.load %arg6[%c0_37, %c0_38] : memref<1x64xf32, #tpu.memory_space<vmem>>, vector<1x64xf32>
    %79 = vector.broadcast %78 : vector<1x64xf32> to vector<112x64xf32>
    %80 = arith.addf %77, %79 : vector<112x64xf32>
    %cst_39 = arith.constant 0.000000e+00 : f32
    %81 = vector.broadcast %cst_39 : f32 to vector<112x64xf32>
    %82 = arith.maximumf %80, %81 : vector<112x64xf32>
    %cst_40 = arith.constant 0.000000e+00 : f32
    %83 = vector.broadcast %cst_40 : f32 to vector<2x128xf32>
    %84 = vector.extract_strided_slice %82 {offsets = [0, 0], sizes = [2, 64], strides = [1, 1]} : vector<112x64xf32> to vector<2x64xf32>
    %c0_41 = arith.constant 0 : index
    %c0_42 = arith.constant 0 : index
    %c0_43 = arith.constant 0 : index
    %85 = vector.load %arg7[%c0_41, %c0_42, %c0_43] : memref<56x64x128xf32, #tpu.memory_space<vmem>>, vector<1x64x128xf32>
    %86 = vector.shape_cast %85 : vector<1x64x128xf32> to vector<64x128xf32>
    %cst_44 = arith.constant dense<0.000000e+00> : vector<2x128xf32>
    %87 = tpu.matmul %84, %86, %cst_44 {dimension_numbers = #tpu.dot_dimension_numbers<[1], [0], [0], [1], [0, 0, 1, 1], [], []>} : vector<2x64xf32>, vector<64x128xf32>, vector<2x128xf32> -> vector<2x128xf32>
    %88 = arith.addf %83, %87 : vector<2x128xf32>
    %89 = vector.extract_strided_slice %82 {offsets = [2, 0], sizes = [2, 64], strides = [1, 1]} : vector<112x64xf32> to vector<2x64xf32>
    %c1_45 = arith.constant 1 : index
    %c0_46 = arith.constant 0 : index
    %c0_47 = arith.constant 0 : index
    %90 = vector.load %arg7[%c1_45, %c0_46, %c0_47] : memref<56x64x128xf32, #tpu.memory_space<vmem>>, vector<1x64x128xf32>
    %91 = vector.shape_cast %90 : vector<1x64x128xf32> to vector<64x128xf32>
    %cst_48 = arith.constant dense<0.000000e+00> : vector<2x128xf32>
    %92 = tpu.matmul %89, %91, %cst_48 {dimension_numbers = #tpu.dot_dimension_numbers<[1], [0], [0], [1], [0, 0, 1, 1], [], []>} : vector<2x64xf32>, vector<64x128xf32>, vector<2x128xf32> -> vector<2x128xf32>
    %93 = arith.addf %88, %92 : vector<2x128xf32>
    %94 = vector.extract_strided_slice %82 {offsets = [4, 0], sizes = [2, 64], strides = [1, 1]} : vector<112x64xf32> to vector<2x64xf32>
    %c2_49 = arith.constant 2 : index
    %c0_50 = arith.constant 0 : index
    %c0_51 = arith.constant 0 : index
    %95 = vector.load %arg7[%c2_49, %c0_50, %c0_51] : memref<56x64x128xf32, #tpu.memory_space<vmem>>, vector<1x64x128xf32>
    %96 = vector.shape_cast %95 : vector<1x64x128xf32> to vector<64x128xf32>
    %cst_52 = arith.constant dense<0.000000e+00> : vector<2x128xf32>
    %97 = tpu.matmul %94, %96, %cst_52 {dimension_numbers = #tpu.dot_dimension_numbers<[1], [0], [0], [1], [0, 0, 1, 1], [], []>} : vector<2x64xf32>, vector<64x128xf32>, vector<2x128xf32> -> vector<2x128xf32>
    %98 = arith.addf %93, %97 : vector<2x128xf32>
    %99 = vector.extract_strided_slice %82 {offsets = [6, 0], sizes = [2, 64], strides = [1, 1]} : vector<112x64xf32> to vector<2x64xf32>
    %c3_53 = arith.constant 3 : index
    %c0_54 = arith.constant 0 : index
    %c0_55 = arith.constant 0 : index
    %100 = vector.load %arg7[%c3_53, %c0_54, %c0_55] : memref<56x64x128xf32, #tpu.memory_space<vmem>>, vector<1x64x128xf32>
    %101 = vector.shape_cast %100 : vector<1x64x128xf32> to vector<64x128xf32>
    %cst_56 = arith.constant dense<0.000000e+00> : vector<2x128xf32>
    %102 = tpu.matmul %99, %101, %cst_56 {dimension_numbers = #tpu.dot_dimension_numbers<[1], [0], [0], [1], [0, 0, 1, 1], [], []>} : vector<2x64xf32>, vector<64x128xf32>, vector<2x128xf32> -> vector<2x128xf32>
    %103 = arith.addf %98, %102 : vector<2x128xf32>
    %104 = vector.extract_strided_slice %82 {offsets = [8, 0], sizes = [2, 64], strides = [1, 1]} : vector<112x64xf32> to vector<2x64xf32>
    %c4_57 = arith.constant 4 : index
    %c0_58 = arith.constant 0 : index
    %c0_59 = arith.constant 0 : index
    %105 = vector.load %arg7[%c4_57, %c0_58, %c0_59] : memref<56x64x128xf32, #tpu.memory_space<vmem>>, vector<1x64x128xf32>
    %106 = vector.shape_cast %105 : vector<1x64x128xf32> to vector<64x128xf32>
    %cst_60 = arith.constant dense<0.000000e+00> : vector<2x128xf32>
    %107 = tpu.matmul %104, %106, %cst_60 {dimension_numbers = #tpu.dot_dimension_numbers<[1], [0], [0], [1], [0, 0, 1, 1], [], []>} : vector<2x64xf32>, vector<64x128xf32>, vector<2x128xf32> -> vector<2x128xf32>
    %108 = arith.addf %103, %107 : vector<2x128xf32>
    %109 = vector.extract_strided_slice %82 {offsets = [10, 0], sizes = [2, 64], strides = [1, 1]} : vector<112x64xf32> to vector<2x64xf32>
    %c5_61 = arith.constant 5 : index
    %c0_62 = arith.constant 0 : index
    %c0_63 = arith.constant 0 : index
    %110 = vector.load %arg7[%c5_61, %c0_62, %c0_63] : memref<56x64x128xf32, #tpu.memory_space<vmem>>, vector<1x64x128xf32>
    %111 = vector.shape_cast %110 : vector<1x64x128xf32> to vector<64x128xf32>
    %cst_64 = arith.constant dense<0.000000e+00> : vector<2x128xf32>
    %112 = tpu.matmul %109, %111, %cst_64 {dimension_numbers = #tpu.dot_dimension_numbers<[1], [0], [0], [1], [0, 0, 1, 1], [], []>} : vector<2x64xf32>, vector<64x128xf32>, vector<2x128xf32> -> vector<2x128xf32>
    %113 = arith.addf %108, %112 : vector<2x128xf32>
    %114 = vector.extract_strided_slice %82 {offsets = [12, 0], sizes = [2, 64], strides = [1, 1]} : vector<112x64xf32> to vector<2x64xf32>
    %c6_65 = arith.constant 6 : index
    %c0_66 = arith.constant 0 : index
    %c0_67 = arith.constant 0 : index
    %115 = vector.load %arg7[%c6_65, %c0_66, %c0_67] : memref<56x64x128xf32, #tpu.memory_space<vmem>>, vector<1x64x128xf32>
    %116 = vector.shape_cast %115 : vector<1x64x128xf32> to vector<64x128xf32>
    %cst_68 = arith.constant dense<0.000000e+00> : vector<2x128xf32>
    %117 = tpu.matmul %114, %116, %cst_68 {dimension_numbers = #tpu.dot_dimension_numbers<[1], [0], [0], [1], [0, 0, 1, 1], [], []>} : vector<2x64xf32>, vector<64x128xf32>, vector<2x128xf32> -> vector<2x128xf32>
    %118 = arith.addf %113, %117 : vector<2x128xf32>
    %119 = vector.extract_strided_slice %82 {offsets = [14, 0], sizes = [2, 64], strides = [1, 1]} : vector<112x64xf32> to vector<2x64xf32>
    %c7_69 = arith.constant 7 : index
    %c0_70 = arith.constant 0 : index
    %c0_71 = arith.constant 0 : index
    %120 = vector.load %arg7[%c7_69, %c0_70, %c0_71] : memref<56x64x128xf32, #tpu.memory_space<vmem>>, vector<1x64x128xf32>
    %121 = vector.shape_cast %120 : vector<1x64x128xf32> to vector<64x128xf32>
    %cst_72 = arith.constant dense<0.000000e+00> : vector<2x128xf32>
    %122 = tpu.matmul %119, %121, %cst_72 {dimension_numbers = #tpu.dot_dimension_numbers<[1], [0], [0], [1], [0, 0, 1, 1], [], []>} : vector<2x64xf32>, vector<64x128xf32>, vector<2x128xf32> -> vector<2x128xf32>
    %123 = arith.addf %118, %122 : vector<2x128xf32>
    %124 = vector.extract_strided_slice %82 {offsets = [16, 0], sizes = [2, 64], strides = [1, 1]} : vector<112x64xf32> to vector<2x64xf32>
    %c8_73 = arith.constant 8 : index
    %c0_74 = arith.constant 0 : index
    %c0_75 = arith.constant 0 : index
    %125 = vector.load %arg7[%c8_73, %c0_74, %c0_75] : memref<56x64x128xf32, #tpu.memory_space<vmem>>, vector<1x64x128xf32>
    %126 = vector.shape_cast %125 : vector<1x64x128xf32> to vector<64x128xf32>
    %cst_76 = arith.constant dense<0.000000e+00> : vector<2x128xf32>
    %127 = tpu.matmul %124, %126, %cst_76 {dimension_numbers = #tpu.dot_dimension_numbers<[1], [0], [0], [1], [0, 0, 1, 1], [], []>} : vector<2x64xf32>, vector<64x128xf32>, vector<2x128xf32> -> vector<2x128xf32>
    %128 = arith.addf %123, %127 : vector<2x128xf32>
    %129 = vector.extract_strided_slice %82 {offsets = [18, 0], sizes = [2, 64], strides = [1, 1]} : vector<112x64xf32> to vector<2x64xf32>
    %c9 = arith.constant 9 : index
    %c0_77 = arith.constant 0 : index
    %c0_78 = arith.constant 0 : index
    %130 = vector.load %arg7[%c9, %c0_77, %c0_78] : memref<56x64x128xf32, #tpu.memory_space<vmem>>, vector<1x64x128xf32>
    %131 = vector.shape_cast %130 : vector<1x64x128xf32> to vector<64x128xf32>
    %cst_79 = arith.constant dense<0.000000e+00> : vector<2x128xf32>
    %132 = tpu.matmul %129, %131, %cst_79 {dimension_numbers = #tpu.dot_dimension_numbers<[1], [0], [0], [1], [0, 0, 1, 1], [], []>} : vector<2x64xf32>, vector<64x128xf32>, vector<2x128xf32> -> vector<2x128xf32>
    %133 = arith.addf %128, %132 : vector<2x128xf32>
    %134 = vector.extract_strided_slice %82 {offsets = [20, 0], sizes = [2, 64], strides = [1, 1]} : vector<112x64xf32> to vector<2x64xf32>
    %c10 = arith.constant 10 : index
    %c0_80 = arith.constant 0 : index
    %c0_81 = arith.constant 0 : index
    %135 = vector.load %arg7[%c10, %c0_80, %c0_81] : memref<56x64x128xf32, #tpu.memory_space<vmem>>, vector<1x64x128xf32>
    %136 = vector.shape_cast %135 : vector<1x64x128xf32> to vector<64x128xf32>
    %cst_82 = arith.constant dense<0.000000e+00> : vector<2x128xf32>
    %137 = tpu.matmul %134, %136, %cst_82 {dimension_numbers = #tpu.dot_dimension_numbers<[1], [0], [0], [1], [0, 0, 1, 1], [], []>} : vector<2x64xf32>, vector<64x128xf32>, vector<2x128xf32> -> vector<2x128xf32>
    %138 = arith.addf %133, %137 : vector<2x128xf32>
    %139 = vector.extract_strided_slice %82 {offsets = [22, 0], sizes = [2, 64], strides = [1, 1]} : vector<112x64xf32> to vector<2x64xf32>
    %c11 = arith.constant 11 : index
    %c0_83 = arith.constant 0 : index
    %c0_84 = arith.constant 0 : index
    %140 = vector.load %arg7[%c11, %c0_83, %c0_84] : memref<56x64x128xf32, #tpu.memory_space<vmem>>, vector<1x64x128xf32>
    %141 = vector.shape_cast %140 : vector<1x64x128xf32> to vector<64x128xf32>
    %cst_85 = arith.constant dense<0.000000e+00> : vector<2x128xf32>
    %142 = tpu.matmul %139, %141, %cst_85 {dimension_numbers = #tpu.dot_dimension_numbers<[1], [0], [0], [1], [0, 0, 1, 1], [], []>} : vector<2x64xf32>, vector<64x128xf32>, vector<2x128xf32> -> vector<2x128xf32>
    %143 = arith.addf %138, %142 : vector<2x128xf32>
    %144 = vector.extract_strided_slice %82 {offsets = [24, 0], sizes = [2, 64], strides = [1, 1]} : vector<112x64xf32> to vector<2x64xf32>
    %c12 = arith.constant 12 : index
    %c0_86 = arith.constant 0 : index
    %c0_87 = arith.constant 0 : index
    %145 = vector.load %arg7[%c12, %c0_86, %c0_87] : memref<56x64x128xf32, #tpu.memory_space<vmem>>, vector<1x64x128xf32>
    %146 = vector.shape_cast %145 : vector<1x64x128xf32> to vector<64x128xf32>
    %cst_88 = arith.constant dense<0.000000e+00> : vector<2x128xf32>
    %147 = tpu.matmul %144, %146, %cst_88 {dimension_numbers = #tpu.dot_dimension_numbers<[1], [0], [0], [1], [0, 0, 1, 1], [], []>} : vector<2x64xf32>, vector<64x128xf32>, vector<2x128xf32> -> vector<2x128xf32>
    %148 = arith.addf %143, %147 : vector<2x128xf32>
    %149 = vector.extract_strided_slice %82 {offsets = [26, 0], sizes = [2, 64], strides = [1, 1]} : vector<112x64xf32> to vector<2x64xf32>
    %c13 = arith.constant 13 : index
    %c0_89 = arith.constant 0 : index
    %c0_90 = arith.constant 0 : index
    %150 = vector.load %arg7[%c13, %c0_89, %c0_90] : memref<56x64x128xf32, #tpu.memory_space<vmem>>, vector<1x64x128xf32>
    %151 = vector.shape_cast %150 : vector<1x64x128xf32> to vector<64x128xf32>
    %cst_91 = arith.constant dense<0.000000e+00> : vector<2x128xf32>
    %152 = tpu.matmul %149, %151, %cst_91 {dimension_numbers = #tpu.dot_dimension_numbers<[1], [0], [0], [1], [0, 0, 1, 1], [], []>} : vector<2x64xf32>, vector<64x128xf32>, vector<2x128xf32> -> vector<2x128xf32>
    %153 = arith.addf %148, %152 : vector<2x128xf32>
    %154 = vector.extract_strided_slice %82 {offsets = [28, 0], sizes = [2, 64], strides = [1, 1]} : vector<112x64xf32> to vector<2x64xf32>
    %c14 = arith.constant 14 : index
    %c0_92 = arith.constant 0 : index
    %c0_93 = arith.constant 0 : index
    %155 = vector.load %arg7[%c14, %c0_92, %c0_93] : memref<56x64x128xf32, #tpu.memory_space<vmem>>, vector<1x64x128xf32>
    %156 = vector.shape_cast %155 : vector<1x64x128xf32> to vector<64x128xf32>
    %cst_94 = arith.constant dense<0.000000e+00> : vector<2x128xf32>
    %157 = tpu.matmul %154, %156, %cst_94 {dimension_numbers = #tpu.dot_dimension_numbers<[1], [0], [0], [1], [0, 0, 1, 1], [], []>} : vector<2x64xf32>, vector<64x128xf32>, vector<2x128xf32> -> vector<2x128xf32>
    %158 = arith.addf %153, %157 : vector<2x128xf32>
    %159 = vector.extract_strided_slice %82 {offsets = [30, 0], sizes = [2, 64], strides = [1, 1]} : vector<112x64xf32> to vector<2x64xf32>
    %c15 = arith.constant 15 : index
    %c0_95 = arith.constant 0 : index
    %c0_96 = arith.constant 0 : index
    %160 = vector.load %arg7[%c15, %c0_95, %c0_96] : memref<56x64x128xf32, #tpu.memory_space<vmem>>, vector<1x64x128xf32>
    %161 = vector.shape_cast %160 : vector<1x64x128xf32> to vector<64x128xf32>
    %cst_97 = arith.constant dense<0.000000e+00> : vector<2x128xf32>
    %162 = tpu.matmul %159, %161, %cst_97 {dimension_numbers = #tpu.dot_dimension_numbers<[1], [0], [0], [1], [0, 0, 1, 1], [], []>} : vector<2x64xf32>, vector<64x128xf32>, vector<2x128xf32> -> vector<2x128xf32>
    %163 = arith.addf %158, %162 : vector<2x128xf32>
    %164 = vector.extract_strided_slice %82 {offsets = [32, 0], sizes = [2, 64], strides = [1, 1]} : vector<112x64xf32> to vector<2x64xf32>
    %c16 = arith.constant 16 : index
    %c0_98 = arith.constant 0 : index
    %c0_99 = arith.constant 0 : index
    %165 = vector.load %arg7[%c16, %c0_98, %c0_99] : memref<56x64x128xf32, #tpu.memory_space<vmem>>, vector<1x64x128xf32>
    %166 = vector.shape_cast %165 : vector<1x64x128xf32> to vector<64x128xf32>
    %cst_100 = arith.constant dense<0.000000e+00> : vector<2x128xf32>
    %167 = tpu.matmul %164, %166, %cst_100 {dimension_numbers = #tpu.dot_dimension_numbers<[1], [0], [0], [1], [0, 0, 1, 1], [], []>} : vector<2x64xf32>, vector<64x128xf32>, vector<2x128xf32> -> vector<2x128xf32>
    %168 = arith.addf %163, %167 : vector<2x128xf32>
    %169 = vector.extract_strided_slice %82 {offsets = [34, 0], sizes = [2, 64], strides = [1, 1]} : vector<112x64xf32> to vector<2x64xf32>
    %c17 = arith.constant 17 : index
    %c0_101 = arith.constant 0 : index
    %c0_102 = arith.constant 0 : index
    %170 = vector.load %arg7[%c17, %c0_101, %c0_102] : memref<56x64x128xf32, #tpu.memory_space<vmem>>, vector<1x64x128xf32>
    %171 = vector.shape_cast %170 : vector<1x64x128xf32> to vector<64x128xf32>
    %cst_103 = arith.constant dense<0.000000e+00> : vector<2x128xf32>
    %172 = tpu.matmul %169, %171, %cst_103 {dimension_numbers = #tpu.dot_dimension_numbers<[1], [0], [0], [1], [0, 0, 1, 1], [], []>} : vector<2x64xf32>, vector<64x128xf32>, vector<2x128xf32> -> vector<2x128xf32>
    %173 = arith.addf %168, %172 : vector<2x128xf32>
    %174 = vector.extract_strided_slice %82 {offsets = [36, 0], sizes = [2, 64], strides = [1, 1]} : vector<112x64xf32> to vector<2x64xf32>
    %c18 = arith.constant 18 : index
    %c0_104 = arith.constant 0 : index
    %c0_105 = arith.constant 0 : index
    %175 = vector.load %arg7[%c18, %c0_104, %c0_105] : memref<56x64x128xf32, #tpu.memory_space<vmem>>, vector<1x64x128xf32>
    %176 = vector.shape_cast %175 : vector<1x64x128xf32> to vector<64x128xf32>
    %cst_106 = arith.constant dense<0.000000e+00> : vector<2x128xf32>
    %177 = tpu.matmul %174, %176, %cst_106 {dimension_numbers = #tpu.dot_dimension_numbers<[1], [0], [0], [1], [0, 0, 1, 1], [], []>} : vector<2x64xf32>, vector<64x128xf32>, vector<2x128xf32> -> vector<2x128xf32>
    %178 = arith.addf %173, %177 : vector<2x128xf32>
    %179 = vector.extract_strided_slice %82 {offsets = [38, 0], sizes = [2, 64], strides = [1, 1]} : vector<112x64xf32> to vector<2x64xf32>
    %c19 = arith.constant 19 : index
    %c0_107 = arith.constant 0 : index
    %c0_108 = arith.constant 0 : index
    %180 = vector.load %arg7[%c19, %c0_107, %c0_108] : memref<56x64x128xf32, #tpu.memory_space<vmem>>, vector<1x64x128xf32>
    %181 = vector.shape_cast %180 : vector<1x64x128xf32> to vector<64x128xf32>
    %cst_109 = arith.constant dense<0.000000e+00> : vector<2x128xf32>
    %182 = tpu.matmul %179, %181, %cst_109 {dimension_numbers = #tpu.dot_dimension_numbers<[1], [0], [0], [1], [0, 0, 1, 1], [], []>} : vector<2x64xf32>, vector<64x128xf32>, vector<2x128xf32> -> vector<2x128xf32>
    %183 = arith.addf %178, %182 : vector<2x128xf32>
    %184 = vector.extract_strided_slice %82 {offsets = [40, 0], sizes = [2, 64], strides = [1, 1]} : vector<112x64xf32> to vector<2x64xf32>
    %c20 = arith.constant 20 : index
    %c0_110 = arith.constant 0 : index
    %c0_111 = arith.constant 0 : index
    %185 = vector.load %arg7[%c20, %c0_110, %c0_111] : memref<56x64x128xf32, #tpu.memory_space<vmem>>, vector<1x64x128xf32>
    %186 = vector.shape_cast %185 : vector<1x64x128xf32> to vector<64x128xf32>
    %cst_112 = arith.constant dense<0.000000e+00> : vector<2x128xf32>
    %187 = tpu.matmul %184, %186, %cst_112 {dimension_numbers = #tpu.dot_dimension_numbers<[1], [0], [0], [1], [0, 0, 1, 1], [], []>} : vector<2x64xf32>, vector<64x128xf32>, vector<2x128xf32> -> vector<2x128xf32>
    %188 = arith.addf %183, %187 : vector<2x128xf32>
    %189 = vector.extract_strided_slice %82 {offsets = [42, 0], sizes = [2, 64], strides = [1, 1]} : vector<112x64xf32> to vector<2x64xf32>
    %c21 = arith.constant 21 : index
    %c0_113 = arith.constant 0 : index
    %c0_114 = arith.constant 0 : index
    %190 = vector.load %arg7[%c21, %c0_113, %c0_114] : memref<56x64x128xf32, #tpu.memory_space<vmem>>, vector<1x64x128xf32>
    %191 = vector.shape_cast %190 : vector<1x64x128xf32> to vector<64x128xf32>
    %cst_115 = arith.constant dense<0.000000e+00> : vector<2x128xf32>
    %192 = tpu.matmul %189, %191, %cst_115 {dimension_numbers = #tpu.dot_dimension_numbers<[1], [0], [0], [1], [0, 0, 1, 1], [], []>} : vector<2x64xf32>, vector<64x128xf32>, vector<2x128xf32> -> vector<2x128xf32>
    %193 = arith.addf %188, %192 : vector<2x128xf32>
    %194 = vector.extract_strided_slice %82 {offsets = [44, 0], sizes = [2, 64], strides = [1, 1]} : vector<112x64xf32> to vector<2x64xf32>
    %c22 = arith.constant 22 : index
    %c0_116 = arith.constant 0 : index
    %c0_117 = arith.constant 0 : index
    %195 = vector.load %arg7[%c22, %c0_116, %c0_117] : memref<56x64x128xf32, #tpu.memory_space<vmem>>, vector<1x64x128xf32>
    %196 = vector.shape_cast %195 : vector<1x64x128xf32> to vector<64x128xf32>
    %cst_118 = arith.constant dense<0.000000e+00> : vector<2x128xf32>
    %197 = tpu.matmul %194, %196, %cst_118 {dimension_numbers = #tpu.dot_dimension_numbers<[1], [0], [0], [1], [0, 0, 1, 1], [], []>} : vector<2x64xf32>, vector<64x128xf32>, vector<2x128xf32> -> vector<2x128xf32>
    %198 = arith.addf %193, %197 : vector<2x128xf32>
    %199 = vector.extract_strided_slice %82 {offsets = [46, 0], sizes = [2, 64], strides = [1, 1]} : vector<112x64xf32> to vector<2x64xf32>
    %c23 = arith.constant 23 : index
    %c0_119 = arith.constant 0 : index
    %c0_120 = arith.constant 0 : index
    %200 = vector.load %arg7[%c23, %c0_119, %c0_120] : memref<56x64x128xf32, #tpu.memory_space<vmem>>, vector<1x64x128xf32>
    %201 = vector.shape_cast %200 : vector<1x64x128xf32> to vector<64x128xf32>
    %cst_121 = arith.constant dense<0.000000e+00> : vector<2x128xf32>
    %202 = tpu.matmul %199, %201, %cst_121 {dimension_numbers = #tpu.dot_dimension_numbers<[1], [0], [0], [1], [0, 0, 1, 1], [], []>} : vector<2x64xf32>, vector<64x128xf32>, vector<2x128xf32> -> vector<2x128xf32>
    %203 = arith.addf %198, %202 : vector<2x128xf32>
    %204 = vector.extract_strided_slice %82 {offsets = [48, 0], sizes = [2, 64], strides = [1, 1]} : vector<112x64xf32> to vector<2x64xf32>
    %c24 = arith.constant 24 : index
    %c0_122 = arith.constant 0 : index
    %c0_123 = arith.constant 0 : index
    %205 = vector.load %arg7[%c24, %c0_122, %c0_123] : memref<56x64x128xf32, #tpu.memory_space<vmem>>, vector<1x64x128xf32>
    %206 = vector.shape_cast %205 : vector<1x64x128xf32> to vector<64x128xf32>
    %cst_124 = arith.constant dense<0.000000e+00> : vector<2x128xf32>
    %207 = tpu.matmul %204, %206, %cst_124 {dimension_numbers = #tpu.dot_dimension_numbers<[1], [0], [0], [1], [0, 0, 1, 1], [], []>} : vector<2x64xf32>, vector<64x128xf32>, vector<2x128xf32> -> vector<2x128xf32>
    %208 = arith.addf %203, %207 : vector<2x128xf32>
    %209 = vector.extract_strided_slice %82 {offsets = [50, 0], sizes = [2, 64], strides = [1, 1]} : vector<112x64xf32> to vector<2x64xf32>
    %c25 = arith.constant 25 : index
    %c0_125 = arith.constant 0 : index
    %c0_126 = arith.constant 0 : index
    %210 = vector.load %arg7[%c25, %c0_125, %c0_126] : memref<56x64x128xf32, #tpu.memory_space<vmem>>, vector<1x64x128xf32>
    %211 = vector.shape_cast %210 : vector<1x64x128xf32> to vector<64x128xf32>
    %cst_127 = arith.constant dense<0.000000e+00> : vector<2x128xf32>
    %212 = tpu.matmul %209, %211, %cst_127 {dimension_numbers = #tpu.dot_dimension_numbers<[1], [0], [0], [1], [0, 0, 1, 1], [], []>} : vector<2x64xf32>, vector<64x128xf32>, vector<2x128xf32> -> vector<2x128xf32>
    %213 = arith.addf %208, %212 : vector<2x128xf32>
    %214 = vector.extract_strided_slice %82 {offsets = [52, 0], sizes = [2, 64], strides = [1, 1]} : vector<112x64xf32> to vector<2x64xf32>
    %c26 = arith.constant 26 : index
    %c0_128 = arith.constant 0 : index
    %c0_129 = arith.constant 0 : index
    %215 = vector.load %arg7[%c26, %c0_128, %c0_129] : memref<56x64x128xf32, #tpu.memory_space<vmem>>, vector<1x64x128xf32>
    %216 = vector.shape_cast %215 : vector<1x64x128xf32> to vector<64x128xf32>
    %cst_130 = arith.constant dense<0.000000e+00> : vector<2x128xf32>
    %217 = tpu.matmul %214, %216, %cst_130 {dimension_numbers = #tpu.dot_dimension_numbers<[1], [0], [0], [1], [0, 0, 1, 1], [], []>} : vector<2x64xf32>, vector<64x128xf32>, vector<2x128xf32> -> vector<2x128xf32>
    %218 = arith.addf %213, %217 : vector<2x128xf32>
    %219 = vector.extract_strided_slice %82 {offsets = [54, 0], sizes = [2, 64], strides = [1, 1]} : vector<112x64xf32> to vector<2x64xf32>
    %c27 = arith.constant 27 : index
    %c0_131 = arith.constant 0 : index
    %c0_132 = arith.constant 0 : index
    %220 = vector.load %arg7[%c27, %c0_131, %c0_132] : memref<56x64x128xf32, #tpu.memory_space<vmem>>, vector<1x64x128xf32>
    %221 = vector.shape_cast %220 : vector<1x64x128xf32> to vector<64x128xf32>
    %cst_133 = arith.constant dense<0.000000e+00> : vector<2x128xf32>
    %222 = tpu.matmul %219, %221, %cst_133 {dimension_numbers = #tpu.dot_dimension_numbers<[1], [0], [0], [1], [0, 0, 1, 1], [], []>} : vector<2x64xf32>, vector<64x128xf32>, vector<2x128xf32> -> vector<2x128xf32>
    %223 = arith.addf %218, %222 : vector<2x128xf32>
    %224 = vector.extract_strided_slice %82 {offsets = [56, 0], sizes = [2, 64], strides = [1, 1]} : vector<112x64xf32> to vector<2x64xf32>
    %c28 = arith.constant 28 : index
    %c0_134 = arith.constant 0 : index
    %c0_135 = arith.constant 0 : index
    %225 = vector.load %arg7[%c28, %c0_134, %c0_135] : memref<56x64x128xf32, #tpu.memory_space<vmem>>, vector<1x64x128xf32>
    %226 = vector.shape_cast %225 : vector<1x64x128xf32> to vector<64x128xf32>
    %cst_136 = arith.constant dense<0.000000e+00> : vector<2x128xf32>
    %227 = tpu.matmul %224, %226, %cst_136 {dimension_numbers = #tpu.dot_dimension_numbers<[1], [0], [0], [1], [0, 0, 1, 1], [], []>} : vector<2x64xf32>, vector<64x128xf32>, vector<2x128xf32> -> vector<2x128xf32>
    %228 = arith.addf %223, %227 : vector<2x128xf32>
    %229 = vector.extract_strided_slice %82 {offsets = [58, 0], sizes = [2, 64], strides = [1, 1]} : vector<112x64xf32> to vector<2x64xf32>
    %c29 = arith.constant 29 : index
    %c0_137 = arith.constant 0 : index
    %c0_138 = arith.constant 0 : index
    %230 = vector.load %arg7[%c29, %c0_137, %c0_138] : memref<56x64x128xf32, #tpu.memory_space<vmem>>, vector<1x64x128xf32>
    %231 = vector.shape_cast %230 : vector<1x64x128xf32> to vector<64x128xf32>
    %cst_139 = arith.constant dense<0.000000e+00> : vector<2x128xf32>
    %232 = tpu.matmul %229, %231, %cst_139 {dimension_numbers = #tpu.dot_dimension_numbers<[1], [0], [0], [1], [0, 0, 1, 1], [], []>} : vector<2x64xf32>, vector<64x128xf32>, vector<2x128xf32> -> vector<2x128xf32>
    %233 = arith.addf %228, %232 : vector<2x128xf32>
    %234 = vector.extract_strided_slice %82 {offsets = [60, 0], sizes = [2, 64], strides = [1, 1]} : vector<112x64xf32> to vector<2x64xf32>
    %c30 = arith.constant 30 : index
    %c0_140 = arith.constant 0 : index
    %c0_141 = arith.constant 0 : index
    %235 = vector.load %arg7[%c30, %c0_140, %c0_141] : memref<56x64x128xf32, #tpu.memory_space<vmem>>, vector<1x64x128xf32>
    %236 = vector.shape_cast %235 : vector<1x64x128xf32> to vector<64x128xf32>
    %cst_142 = arith.constant dense<0.000000e+00> : vector<2x128xf32>
    %237 = tpu.matmul %234, %236, %cst_142 {dimension_numbers = #tpu.dot_dimension_numbers<[1], [0], [0], [1], [0, 0, 1, 1], [], []>} : vector<2x64xf32>, vector<64x128xf32>, vector<2x128xf32> -> vector<2x128xf32>
    %238 = arith.addf %233, %237 : vector<2x128xf32>
    %239 = vector.extract_strided_slice %82 {offsets = [62, 0], sizes = [2, 64], strides = [1, 1]} : vector<112x64xf32> to vector<2x64xf32>
    %c31 = arith.constant 31 : index
    %c0_143 = arith.constant 0 : index
    %c0_144 = arith.constant 0 : index
    %240 = vector.load %arg7[%c31, %c0_143, %c0_144] : memref<56x64x128xf32, #tpu.memory_space<vmem>>, vector<1x64x128xf32>
    %241 = vector.shape_cast %240 : vector<1x64x128xf32> to vector<64x128xf32>
    %cst_145 = arith.constant dense<0.000000e+00> : vector<2x128xf32>
    %242 = tpu.matmul %239, %241, %cst_145 {dimension_numbers = #tpu.dot_dimension_numbers<[1], [0], [0], [1], [0, 0, 1, 1], [], []>} : vector<2x64xf32>, vector<64x128xf32>, vector<2x128xf32> -> vector<2x128xf32>
    %243 = arith.addf %238, %242 : vector<2x128xf32>
    %244 = vector.extract_strided_slice %82 {offsets = [64, 0], sizes = [2, 64], strides = [1, 1]} : vector<112x64xf32> to vector<2x64xf32>
    %c32 = arith.constant 32 : index
    %c0_146 = arith.constant 0 : index
    %c0_147 = arith.constant 0 : index
    %245 = vector.load %arg7[%c32, %c0_146, %c0_147] : memref<56x64x128xf32, #tpu.memory_space<vmem>>, vector<1x64x128xf32>
    %246 = vector.shape_cast %245 : vector<1x64x128xf32> to vector<64x128xf32>
    %cst_148 = arith.constant dense<0.000000e+00> : vector<2x128xf32>
    %247 = tpu.matmul %244, %246, %cst_148 {dimension_numbers = #tpu.dot_dimension_numbers<[1], [0], [0], [1], [0, 0, 1, 1], [], []>} : vector<2x64xf32>, vector<64x128xf32>, vector<2x128xf32> -> vector<2x128xf32>
    %248 = arith.addf %243, %247 : vector<2x128xf32>
    %249 = vector.extract_strided_slice %82 {offsets = [66, 0], sizes = [2, 64], strides = [1, 1]} : vector<112x64xf32> to vector<2x64xf32>
    %c33 = arith.constant 33 : index
    %c0_149 = arith.constant 0 : index
    %c0_150 = arith.constant 0 : index
    %250 = vector.load %arg7[%c33, %c0_149, %c0_150] : memref<56x64x128xf32, #tpu.memory_space<vmem>>, vector<1x64x128xf32>
    %251 = vector.shape_cast %250 : vector<1x64x128xf32> to vector<64x128xf32>
    %cst_151 = arith.constant dense<0.000000e+00> : vector<2x128xf32>
    %252 = tpu.matmul %249, %251, %cst_151 {dimension_numbers = #tpu.dot_dimension_numbers<[1], [0], [0], [1], [0, 0, 1, 1], [], []>} : vector<2x64xf32>, vector<64x128xf32>, vector<2x128xf32> -> vector<2x128xf32>
    %253 = arith.addf %248, %252 : vector<2x128xf32>
    %254 = vector.extract_strided_slice %82 {offsets = [68, 0], sizes = [2, 64], strides = [1, 1]} : vector<112x64xf32> to vector<2x64xf32>
    %c34 = arith.constant 34 : index
    %c0_152 = arith.constant 0 : index
    %c0_153 = arith.constant 0 : index
    %255 = vector.load %arg7[%c34, %c0_152, %c0_153] : memref<56x64x128xf32, #tpu.memory_space<vmem>>, vector<1x64x128xf32>
    %256 = vector.shape_cast %255 : vector<1x64x128xf32> to vector<64x128xf32>
    %cst_154 = arith.constant dense<0.000000e+00> : vector<2x128xf32>
    %257 = tpu.matmul %254, %256, %cst_154 {dimension_numbers = #tpu.dot_dimension_numbers<[1], [0], [0], [1], [0, 0, 1, 1], [], []>} : vector<2x64xf32>, vector<64x128xf32>, vector<2x128xf32> -> vector<2x128xf32>
    %258 = arith.addf %253, %257 : vector<2x128xf32>
    %259 = vector.extract_strided_slice %82 {offsets = [70, 0], sizes = [2, 64], strides = [1, 1]} : vector<112x64xf32> to vector<2x64xf32>
    %c35 = arith.constant 35 : index
    %c0_155 = arith.constant 0 : index
    %c0_156 = arith.constant 0 : index
    %260 = vector.load %arg7[%c35, %c0_155, %c0_156] : memref<56x64x128xf32, #tpu.memory_space<vmem>>, vector<1x64x128xf32>
    %261 = vector.shape_cast %260 : vector<1x64x128xf32> to vector<64x128xf32>
    %cst_157 = arith.constant dense<0.000000e+00> : vector<2x128xf32>
    %262 = tpu.matmul %259, %261, %cst_157 {dimension_numbers = #tpu.dot_dimension_numbers<[1], [0], [0], [1], [0, 0, 1, 1], [], []>} : vector<2x64xf32>, vector<64x128xf32>, vector<2x128xf32> -> vector<2x128xf32>
    %263 = arith.addf %258, %262 : vector<2x128xf32>
    %264 = vector.extract_strided_slice %82 {offsets = [72, 0], sizes = [2, 64], strides = [1, 1]} : vector<112x64xf32> to vector<2x64xf32>
    %c36 = arith.constant 36 : index
    %c0_158 = arith.constant 0 : index
    %c0_159 = arith.constant 0 : index
    %265 = vector.load %arg7[%c36, %c0_158, %c0_159] : memref<56x64x128xf32, #tpu.memory_space<vmem>>, vector<1x64x128xf32>
    %266 = vector.shape_cast %265 : vector<1x64x128xf32> to vector<64x128xf32>
    %cst_160 = arith.constant dense<0.000000e+00> : vector<2x128xf32>
    %267 = tpu.matmul %264, %266, %cst_160 {dimension_numbers = #tpu.dot_dimension_numbers<[1], [0], [0], [1], [0, 0, 1, 1], [], []>} : vector<2x64xf32>, vector<64x128xf32>, vector<2x128xf32> -> vector<2x128xf32>
    %268 = arith.addf %263, %267 : vector<2x128xf32>
    %269 = vector.extract_strided_slice %82 {offsets = [74, 0], sizes = [2, 64], strides = [1, 1]} : vector<112x64xf32> to vector<2x64xf32>
    %c37 = arith.constant 37 : index
    %c0_161 = arith.constant 0 : index
    %c0_162 = arith.constant 0 : index
    %270 = vector.load %arg7[%c37, %c0_161, %c0_162] : memref<56x64x128xf32, #tpu.memory_space<vmem>>, vector<1x64x128xf32>
    %271 = vector.shape_cast %270 : vector<1x64x128xf32> to vector<64x128xf32>
    %cst_163 = arith.constant dense<0.000000e+00> : vector<2x128xf32>
    %272 = tpu.matmul %269, %271, %cst_163 {dimension_numbers = #tpu.dot_dimension_numbers<[1], [0], [0], [1], [0, 0, 1, 1], [], []>} : vector<2x64xf32>, vector<64x128xf32>, vector<2x128xf32> -> vector<2x128xf32>
    %273 = arith.addf %268, %272 : vector<2x128xf32>
    %274 = vector.extract_strided_slice %82 {offsets = [76, 0], sizes = [2, 64], strides = [1, 1]} : vector<112x64xf32> to vector<2x64xf32>
    %c38 = arith.constant 38 : index
    %c0_164 = arith.constant 0 : index
    %c0_165 = arith.constant 0 : index
    %275 = vector.load %arg7[%c38, %c0_164, %c0_165] : memref<56x64x128xf32, #tpu.memory_space<vmem>>, vector<1x64x128xf32>
    %276 = vector.shape_cast %275 : vector<1x64x128xf32> to vector<64x128xf32>
    %cst_166 = arith.constant dense<0.000000e+00> : vector<2x128xf32>
    %277 = tpu.matmul %274, %276, %cst_166 {dimension_numbers = #tpu.dot_dimension_numbers<[1], [0], [0], [1], [0, 0, 1, 1], [], []>} : vector<2x64xf32>, vector<64x128xf32>, vector<2x128xf32> -> vector<2x128xf32>
    %278 = arith.addf %273, %277 : vector<2x128xf32>
    %279 = vector.extract_strided_slice %82 {offsets = [78, 0], sizes = [2, 64], strides = [1, 1]} : vector<112x64xf32> to vector<2x64xf32>
    %c39 = arith.constant 39 : index
    %c0_167 = arith.constant 0 : index
    %c0_168 = arith.constant 0 : index
    %280 = vector.load %arg7[%c39, %c0_167, %c0_168] : memref<56x64x128xf32, #tpu.memory_space<vmem>>, vector<1x64x128xf32>
    %281 = vector.shape_cast %280 : vector<1x64x128xf32> to vector<64x128xf32>
    %cst_169 = arith.constant dense<0.000000e+00> : vector<2x128xf32>
    %282 = tpu.matmul %279, %281, %cst_169 {dimension_numbers = #tpu.dot_dimension_numbers<[1], [0], [0], [1], [0, 0, 1, 1], [], []>} : vector<2x64xf32>, vector<64x128xf32>, vector<2x128xf32> -> vector<2x128xf32>
    %283 = arith.addf %278, %282 : vector<2x128xf32>
    %284 = vector.extract_strided_slice %82 {offsets = [80, 0], sizes = [2, 64], strides = [1, 1]} : vector<112x64xf32> to vector<2x64xf32>
    %c40 = arith.constant 40 : index
    %c0_170 = arith.constant 0 : index
    %c0_171 = arith.constant 0 : index
    %285 = vector.load %arg7[%c40, %c0_170, %c0_171] : memref<56x64x128xf32, #tpu.memory_space<vmem>>, vector<1x64x128xf32>
    %286 = vector.shape_cast %285 : vector<1x64x128xf32> to vector<64x128xf32>
    %cst_172 = arith.constant dense<0.000000e+00> : vector<2x128xf32>
    %287 = tpu.matmul %284, %286, %cst_172 {dimension_numbers = #tpu.dot_dimension_numbers<[1], [0], [0], [1], [0, 0, 1, 1], [], []>} : vector<2x64xf32>, vector<64x128xf32>, vector<2x128xf32> -> vector<2x128xf32>
    %288 = arith.addf %283, %287 : vector<2x128xf32>
    %289 = vector.extract_strided_slice %82 {offsets = [82, 0], sizes = [2, 64], strides = [1, 1]} : vector<112x64xf32> to vector<2x64xf32>
    %c41 = arith.constant 41 : index
    %c0_173 = arith.constant 0 : index
    %c0_174 = arith.constant 0 : index
    %290 = vector.load %arg7[%c41, %c0_173, %c0_174] : memref<56x64x128xf32, #tpu.memory_space<vmem>>, vector<1x64x128xf32>
    %291 = vector.shape_cast %290 : vector<1x64x128xf32> to vector<64x128xf32>
    %cst_175 = arith.constant dense<0.000000e+00> : vector<2x128xf32>
    %292 = tpu.matmul %289, %291, %cst_175 {dimension_numbers = #tpu.dot_dimension_numbers<[1], [0], [0], [1], [0, 0, 1, 1], [], []>} : vector<2x64xf32>, vector<64x128xf32>, vector<2x128xf32> -> vector<2x128xf32>
    %293 = arith.addf %288, %292 : vector<2x128xf32>
    %294 = vector.extract_strided_slice %82 {offsets = [84, 0], sizes = [2, 64], strides = [1, 1]} : vector<112x64xf32> to vector<2x64xf32>
    %c42 = arith.constant 42 : index
    %c0_176 = arith.constant 0 : index
    %c0_177 = arith.constant 0 : index
    %295 = vector.load %arg7[%c42, %c0_176, %c0_177] : memref<56x64x128xf32, #tpu.memory_space<vmem>>, vector<1x64x128xf32>
    %296 = vector.shape_cast %295 : vector<1x64x128xf32> to vector<64x128xf32>
    %cst_178 = arith.constant dense<0.000000e+00> : vector<2x128xf32>
    %297 = tpu.matmul %294, %296, %cst_178 {dimension_numbers = #tpu.dot_dimension_numbers<[1], [0], [0], [1], [0, 0, 1, 1], [], []>} : vector<2x64xf32>, vector<64x128xf32>, vector<2x128xf32> -> vector<2x128xf32>
    %298 = arith.addf %293, %297 : vector<2x128xf32>
    %299 = vector.extract_strided_slice %82 {offsets = [86, 0], sizes = [2, 64], strides = [1, 1]} : vector<112x64xf32> to vector<2x64xf32>
    %c43 = arith.constant 43 : index
    %c0_179 = arith.constant 0 : index
    %c0_180 = arith.constant 0 : index
    %300 = vector.load %arg7[%c43, %c0_179, %c0_180] : memref<56x64x128xf32, #tpu.memory_space<vmem>>, vector<1x64x128xf32>
    %301 = vector.shape_cast %300 : vector<1x64x128xf32> to vector<64x128xf32>
    %cst_181 = arith.constant dense<0.000000e+00> : vector<2x128xf32>
    %302 = tpu.matmul %299, %301, %cst_181 {dimension_numbers = #tpu.dot_dimension_numbers<[1], [0], [0], [1], [0, 0, 1, 1], [], []>} : vector<2x64xf32>, vector<64x128xf32>, vector<2x128xf32> -> vector<2x128xf32>
    %303 = arith.addf %298, %302 : vector<2x128xf32>
    %304 = vector.extract_strided_slice %82 {offsets = [88, 0], sizes = [2, 64], strides = [1, 1]} : vector<112x64xf32> to vector<2x64xf32>
    %c44 = arith.constant 44 : index
    %c0_182 = arith.constant 0 : index
    %c0_183 = arith.constant 0 : index
    %305 = vector.load %arg7[%c44, %c0_182, %c0_183] : memref<56x64x128xf32, #tpu.memory_space<vmem>>, vector<1x64x128xf32>
    %306 = vector.shape_cast %305 : vector<1x64x128xf32> to vector<64x128xf32>
    %cst_184 = arith.constant dense<0.000000e+00> : vector<2x128xf32>
    %307 = tpu.matmul %304, %306, %cst_184 {dimension_numbers = #tpu.dot_dimension_numbers<[1], [0], [0], [1], [0, 0, 1, 1], [], []>} : vector<2x64xf32>, vector<64x128xf32>, vector<2x128xf32> -> vector<2x128xf32>
    %308 = arith.addf %303, %307 : vector<2x128xf32>
    %309 = vector.extract_strided_slice %82 {offsets = [90, 0], sizes = [2, 64], strides = [1, 1]} : vector<112x64xf32> to vector<2x64xf32>
    %c45 = arith.constant 45 : index
    %c0_185 = arith.constant 0 : index
    %c0_186 = arith.constant 0 : index
    %310 = vector.load %arg7[%c45, %c0_185, %c0_186] : memref<56x64x128xf32, #tpu.memory_space<vmem>>, vector<1x64x128xf32>
    %311 = vector.shape_cast %310 : vector<1x64x128xf32> to vector<64x128xf32>
    %cst_187 = arith.constant dense<0.000000e+00> : vector<2x128xf32>
    %312 = tpu.matmul %309, %311, %cst_187 {dimension_numbers = #tpu.dot_dimension_numbers<[1], [0], [0], [1], [0, 0, 1, 1], [], []>} : vector<2x64xf32>, vector<64x128xf32>, vector<2x128xf32> -> vector<2x128xf32>
    %313 = arith.addf %308, %312 : vector<2x128xf32>
    %314 = vector.extract_strided_slice %82 {offsets = [92, 0], sizes = [2, 64], strides = [1, 1]} : vector<112x64xf32> to vector<2x64xf32>
    %c46 = arith.constant 46 : index
    %c0_188 = arith.constant 0 : index
    %c0_189 = arith.constant 0 : index
    %315 = vector.load %arg7[%c46, %c0_188, %c0_189] : memref<56x64x128xf32, #tpu.memory_space<vmem>>, vector<1x64x128xf32>
    %316 = vector.shape_cast %315 : vector<1x64x128xf32> to vector<64x128xf32>
    %cst_190 = arith.constant dense<0.000000e+00> : vector<2x128xf32>
    %317 = tpu.matmul %314, %316, %cst_190 {dimension_numbers = #tpu.dot_dimension_numbers<[1], [0], [0], [1], [0, 0, 1, 1], [], []>} : vector<2x64xf32>, vector<64x128xf32>, vector<2x128xf32> -> vector<2x128xf32>
    %318 = arith.addf %313, %317 : vector<2x128xf32>
    %319 = vector.extract_strided_slice %82 {offsets = [94, 0], sizes = [2, 64], strides = [1, 1]} : vector<112x64xf32> to vector<2x64xf32>
    %c47 = arith.constant 47 : index
    %c0_191 = arith.constant 0 : index
    %c0_192 = arith.constant 0 : index
    %320 = vector.load %arg7[%c47, %c0_191, %c0_192] : memref<56x64x128xf32, #tpu.memory_space<vmem>>, vector<1x64x128xf32>
    %321 = vector.shape_cast %320 : vector<1x64x128xf32> to vector<64x128xf32>
    %cst_193 = arith.constant dense<0.000000e+00> : vector<2x128xf32>
    %322 = tpu.matmul %319, %321, %cst_193 {dimension_numbers = #tpu.dot_dimension_numbers<[1], [0], [0], [1], [0, 0, 1, 1], [], []>} : vector<2x64xf32>, vector<64x128xf32>, vector<2x128xf32> -> vector<2x128xf32>
    %323 = arith.addf %318, %322 : vector<2x128xf32>
    %324 = vector.extract_strided_slice %82 {offsets = [96, 0], sizes = [2, 64], strides = [1, 1]} : vector<112x64xf32> to vector<2x64xf32>
    %c48 = arith.constant 48 : index
    %c0_194 = arith.constant 0 : index
    %c0_195 = arith.constant 0 : index
    %325 = vector.load %arg7[%c48, %c0_194, %c0_195] : memref<56x64x128xf32, #tpu.memory_space<vmem>>, vector<1x64x128xf32>
    %326 = vector.shape_cast %325 : vector<1x64x128xf32> to vector<64x128xf32>
    %cst_196 = arith.constant dense<0.000000e+00> : vector<2x128xf32>
    %327 = tpu.matmul %324, %326, %cst_196 {dimension_numbers = #tpu.dot_dimension_numbers<[1], [0], [0], [1], [0, 0, 1, 1], [], []>} : vector<2x64xf32>, vector<64x128xf32>, vector<2x128xf32> -> vector<2x128xf32>
    %328 = arith.addf %323, %327 : vector<2x128xf32>
    %329 = vector.extract_strided_slice %82 {offsets = [98, 0], sizes = [2, 64], strides = [1, 1]} : vector<112x64xf32> to vector<2x64xf32>
    %c49 = arith.constant 49 : index
    %c0_197 = arith.constant 0 : index
    %c0_198 = arith.constant 0 : index
    %330 = vector.load %arg7[%c49, %c0_197, %c0_198] : memref<56x64x128xf32, #tpu.memory_space<vmem>>, vector<1x64x128xf32>
    %331 = vector.shape_cast %330 : vector<1x64x128xf32> to vector<64x128xf32>
    %cst_199 = arith.constant dense<0.000000e+00> : vector<2x128xf32>
    %332 = tpu.matmul %329, %331, %cst_199 {dimension_numbers = #tpu.dot_dimension_numbers<[1], [0], [0], [1], [0, 0, 1, 1], [], []>} : vector<2x64xf32>, vector<64x128xf32>, vector<2x128xf32> -> vector<2x128xf32>
    %333 = arith.addf %328, %332 : vector<2x128xf32>
    %334 = vector.extract_strided_slice %82 {offsets = [100, 0], sizes = [2, 64], strides = [1, 1]} : vector<112x64xf32> to vector<2x64xf32>
    %c50 = arith.constant 50 : index
    %c0_200 = arith.constant 0 : index
    %c0_201 = arith.constant 0 : index
    %335 = vector.load %arg7[%c50, %c0_200, %c0_201] : memref<56x64x128xf32, #tpu.memory_space<vmem>>, vector<1x64x128xf32>
    %336 = vector.shape_cast %335 : vector<1x64x128xf32> to vector<64x128xf32>
    %cst_202 = arith.constant dense<0.000000e+00> : vector<2x128xf32>
    %337 = tpu.matmul %334, %336, %cst_202 {dimension_numbers = #tpu.dot_dimension_numbers<[1], [0], [0], [1], [0, 0, 1, 1], [], []>} : vector<2x64xf32>, vector<64x128xf32>, vector<2x128xf32> -> vector<2x128xf32>
    %338 = arith.addf %333, %337 : vector<2x128xf32>
    %339 = vector.extract_strided_slice %82 {offsets = [102, 0], sizes = [2, 64], strides = [1, 1]} : vector<112x64xf32> to vector<2x64xf32>
    %c51 = arith.constant 51 : index
    %c0_203 = arith.constant 0 : index
    %c0_204 = arith.constant 0 : index
    %340 = vector.load %arg7[%c51, %c0_203, %c0_204] : memref<56x64x128xf32, #tpu.memory_space<vmem>>, vector<1x64x128xf32>
    %341 = vector.shape_cast %340 : vector<1x64x128xf32> to vector<64x128xf32>
    %cst_205 = arith.constant dense<0.000000e+00> : vector<2x128xf32>
    %342 = tpu.matmul %339, %341, %cst_205 {dimension_numbers = #tpu.dot_dimension_numbers<[1], [0], [0], [1], [0, 0, 1, 1], [], []>} : vector<2x64xf32>, vector<64x128xf32>, vector<2x128xf32> -> vector<2x128xf32>
    %343 = arith.addf %338, %342 : vector<2x128xf32>
    %344 = vector.extract_strided_slice %82 {offsets = [104, 0], sizes = [2, 64], strides = [1, 1]} : vector<112x64xf32> to vector<2x64xf32>
    %c52 = arith.constant 52 : index
    %c0_206 = arith.constant 0 : index
    %c0_207 = arith.constant 0 : index
    %345 = vector.load %arg7[%c52, %c0_206, %c0_207] : memref<56x64x128xf32, #tpu.memory_space<vmem>>, vector<1x64x128xf32>
    %346 = vector.shape_cast %345 : vector<1x64x128xf32> to vector<64x128xf32>
    %cst_208 = arith.constant dense<0.000000e+00> : vector<2x128xf32>
    %347 = tpu.matmul %344, %346, %cst_208 {dimension_numbers = #tpu.dot_dimension_numbers<[1], [0], [0], [1], [0, 0, 1, 1], [], []>} : vector<2x64xf32>, vector<64x128xf32>, vector<2x128xf32> -> vector<2x128xf32>
    %348 = arith.addf %343, %347 : vector<2x128xf32>
    %349 = vector.extract_strided_slice %82 {offsets = [106, 0], sizes = [2, 64], strides = [1, 1]} : vector<112x64xf32> to vector<2x64xf32>
    %c53 = arith.constant 53 : index
    %c0_209 = arith.constant 0 : index
    %c0_210 = arith.constant 0 : index
    %350 = vector.load %arg7[%c53, %c0_209, %c0_210] : memref<56x64x128xf32, #tpu.memory_space<vmem>>, vector<1x64x128xf32>
    %351 = vector.shape_cast %350 : vector<1x64x128xf32> to vector<64x128xf32>
    %cst_211 = arith.constant dense<0.000000e+00> : vector<2x128xf32>
    %352 = tpu.matmul %349, %351, %cst_211 {dimension_numbers = #tpu.dot_dimension_numbers<[1], [0], [0], [1], [0, 0, 1, 1], [], []>} : vector<2x64xf32>, vector<64x128xf32>, vector<2x128xf32> -> vector<2x128xf32>
    %353 = arith.addf %348, %352 : vector<2x128xf32>
    %354 = vector.extract_strided_slice %82 {offsets = [108, 0], sizes = [2, 64], strides = [1, 1]} : vector<112x64xf32> to vector<2x64xf32>
    %c54 = arith.constant 54 : index
    %c0_212 = arith.constant 0 : index
    %c0_213 = arith.constant 0 : index
    %355 = vector.load %arg7[%c54, %c0_212, %c0_213] : memref<56x64x128xf32, #tpu.memory_space<vmem>>, vector<1x64x128xf32>
    %356 = vector.shape_cast %355 : vector<1x64x128xf32> to vector<64x128xf32>
    %cst_214 = arith.constant dense<0.000000e+00> : vector<2x128xf32>
    %357 = tpu.matmul %354, %356, %cst_214 {dimension_numbers = #tpu.dot_dimension_numbers<[1], [0], [0], [1], [0, 0, 1, 1], [], []>} : vector<2x64xf32>, vector<64x128xf32>, vector<2x128xf32> -> vector<2x128xf32>
    %358 = arith.addf %353, %357 : vector<2x128xf32>
    %359 = vector.extract_strided_slice %82 {offsets = [110, 0], sizes = [2, 64], strides = [1, 1]} : vector<112x64xf32> to vector<2x64xf32>
    %c55 = arith.constant 55 : index
    %c0_215 = arith.constant 0 : index
    %c0_216 = arith.constant 0 : index
    %360 = vector.load %arg7[%c55, %c0_215, %c0_216] : memref<56x64x128xf32, #tpu.memory_space<vmem>>, vector<1x64x128xf32>
    %361 = vector.shape_cast %360 : vector<1x64x128xf32> to vector<64x128xf32>
    %cst_217 = arith.constant dense<0.000000e+00> : vector<2x128xf32>
    %362 = tpu.matmul %359, %361, %cst_217 {dimension_numbers = #tpu.dot_dimension_numbers<[1], [0], [0], [1], [0, 0, 1, 1], [], []>} : vector<2x64xf32>, vector<64x128xf32>, vector<2x128xf32> -> vector<2x128xf32>
    %363 = arith.addf %358, %362 : vector<2x128xf32>
    %c0_218 = arith.constant 0 : index
    %c0_219 = arith.constant 0 : index
    %364 = vector.load %arg8[%c0_218, %c0_219] : memref<1x128xf32, #tpu.memory_space<vmem>>, vector<1x128xf32>
    %365 = vector.broadcast %364 : vector<1x128xf32> to vector<2x128xf32>
    %366 = arith.addf %363, %365 : vector<2x128xf32>
    %cst_220 = arith.constant 0.000000e+00 : f32
    %367 = vector.broadcast %cst_220 : f32 to vector<2x128xf32>
    %368 = arith.maximumf %366, %367 : vector<2x128xf32>
    %c0_221 = arith.constant 0 : index
    %c0_222 = arith.constant 0 : index
    %369 = vector.load %arg9[%c0_221, %c0_222] : memref<128x56xf32, #tpu.memory_space<vmem>>, vector<128x56xf32>
    %cst_223 = arith.constant dense<0.000000e+00> : vector<2x56xf32>
    %370 = tpu.matmul %368, %369, %cst_223 {dimension_numbers = #tpu.dot_dimension_numbers<[1], [0], [0], [1], [0, 0, 1, 1], [], []>} : vector<2x128xf32>, vector<128x56xf32>, vector<2x56xf32> -> vector<2x56xf32>
    %c0_224 = arith.constant 0 : index
    %c0_225 = arith.constant 0 : index
    %371 = vector.load %arg10[%c0_224, %c0_225] : memref<1x56xf32, #tpu.memory_space<vmem>>, vector<1x56xf32>
    %372 = vector.broadcast %371 : vector<1x56xf32> to vector<2x56xf32>
    %373 = arith.addf %370, %372 : vector<2x56xf32>
    %c0_226 = arith.constant 0 : index
    %c0_227 = arith.constant 0 : index
    %374 = vector.load %arg11[%c0_226, %c0_227] : memref<2x56xf32, #tpu.memory_space<vmem>>, vector<2x56xf32>
    tpu.vector_store %arg11[%c0_226, %c0_227], %373 {strides = array<i32>} : memref<2x56xf32, #tpu.memory_space<vmem>>, vector<2x56xf32>,
    return
  }
  func.func @transform_0(%arg0: i32) -> (i32, i32) {
    %c0_i32 = arith.constant 0 : i32
    %c0_i32_0 = arith.constant 0 : i32
    %c0_i32_1 = arith.constant 0 : i32
    return %c0_i32, %c0_i32_0 : i32, i32
  }
  func.func @transform_1(%arg0: i32) -> (i32, i32) {
    %c0_i32 = arith.constant 0 : i32
    %c0_i32_0 = arith.constant 0 : i32
    %c0_i32_1 = arith.constant 0 : i32
    return %c0_i32, %c0_i32_0 : i32, i32
  }
  func.func @transform_2(%arg0: i32) -> (i32, i32) {
    %c0_i32 = arith.constant 0 : i32
    %c0_i32_0 = arith.constant 0 : i32
    %c0_i32_1 = arith.constant 0 : i32
    return %c0_i32, %c0_i32_0 : i32, i32
  }
  func.func @transform_3(%arg0: i32) -> (i32, i32) {
    %c0_i32 = arith.constant 0 : i32
    %c0_i32_0 = arith.constant 0 : i32
    %c0_i32_1 = arith.constant 0 : i32
    return %c0_i32, %c0_i32_0 : i32, i32
  }
  func.func @transform_4(%arg0: i32) -> (i32, i32, i32) {
    %c0_i32 = arith.constant 0 : i32
    %c0_i32_0 = arith.constant 0 : i32
    %c0_i32_1 = arith.constant 0 : i32
    %c0_i32_2 = arith.constant 0 : i32
    return %c0_i32, %c0_i32_0, %c0_i32_1 : i32, i32, i32
  }
  func.func @transform_5(%arg0: i32) -> (i32, i32) {
    %c0_i32 = arith.constant 0 : i32
    %c0_i32_0 = arith.constant 0 : i32
    %c0_i32_1 = arith.constant 0 : i32
    return %c0_i32, %c0_i32_0 : i32, i32
  }
  func.func @transform_6(%arg0: i32) -> (i32, i32, i32) {
    %c0_i32 = arith.constant 0 : i32
    %c0_i32_0 = arith.constant 0 : i32
    %c0_i32_1 = arith.constant 0 : i32
    %c0_i32_2 = arith.constant 0 : i32
    return %c0_i32, %c0_i32_0, %c0_i32_1 : i32, i32, i32
  }
  func.func @transform_7(%arg0: i32) -> (i32, i32) {
    %c0_i32 = arith.constant 0 : i32
    %c0_i32_0 = arith.constant 0 : i32
    %c0_i32_1 = arith.constant 0 : i32
    return %c0_i32, %c0_i32_0 : i32, i32
  }
  func.func @transform_8(%arg0: i32) -> (i32, i32) {
    %c0_i32 = arith.constant 0 : i32
    %c0_i32_0 = arith.constant 0 : i32
    %c0_i32_1 = arith.constant 0 : i32
    return %c0_i32, %c0_i32_0 : i32, i32
  }
  func.func @transform_9(%arg0: i32) -> (i32, i32) {
    %c0_i32 = arith.constant 0 : i32
    %c0_i32_0 = arith.constant 0 : i32
    %c0_i32_1 = arith.constant 0 : i32
    return %c0_i32, %c0_i32_0 : i32, i32
  }
  func.func @transform_10(%arg0: i32) -> (i32, i32) {
    %c0_i32 = arith.constant 0 : i32
    %c0_i32_0 = arith.constant 0 : i32
    %c0_i32_1 = arith.constant 0 : i32
    return %c0_i32, %c0_i32_0 : i32, i32
  }
}

</mosaic_0001>

<llo_original>
// kernel: generator_forward.1
$region0: #{generator_forward.1}
  #allocation0 [shape = 'u32[]', space=smem, size = 0x4, offset = 0x4, fixed_abs, tag = 'smem constant byte address 0x4 - core index']
  #allocation1 [shape = 'u32[144,128]{1,0:T(1,128)}', space=vmem, size = 0x12000, scoped, tag = 'internal scratch']
  %s0 = inlined_call_operand.vmem [shape: f32[112,9], index: 0, kind: input, shape index: {}]
  %s1 = inlined_call_operand.vmem [shape: f32[112,9], index: 1, kind: input, shape index: {}]
  %s2 = inlined_call_operand.hbm [shape: f32[9,32], index: 2, kind: input, shape index: {}]
  %s3 = inlined_call_operand.hbm [shape: f32[1,32], index: 3, kind: input, shape index: {}]
  %s4 = inlined_call_operand.hbm [shape: f32[9,32,64], index: 4, kind: input, shape index: {}]
  %s5 = inlined_call_operand.hbm [shape: f32[1,64], index: 5, kind: input, shape index: {}]
  %s6 = inlined_call_operand.hbm [shape: f32[56,64,128], index: 6, kind: input, shape index: {}]
  %s7 = inlined_call_operand.hbm [shape: f32[1,128], index: 7, kind: input, shape index: {}]
  %s8 = inlined_call_operand.vmem [shape: f32[128,56], index: 8, kind: input, shape index: {}]
  %s9 = inlined_call_operand.hbm [shape: f32[1,56], index: 9, kind: input, shape index: {}]
  %s10 = inlined_call_operand.hbm [shape: f32[2,56], index: 10, kind: output, shape index: {}]
  %s11 = sld [smem:[#allocation0]]
  $region78: #{generator_forward.1} parent=0
    _
  %s13 = ssub.s32 1, %s11
  %s14 = scalar_select 0, %s13, %s11
  $region1: #{generator_forward.1} parent=0
    #allocation2 [shape = 'u8[8192]{0}', space=vmem, size = 0x2000, scoped, tag = 'input window, operand 2, single buffered']
    #allocation3 [shape = 's32[1]{0}', space=sflag, size = 0x4, scoped, tag = 'scoped memory for generator_forward.1']
    #allocation4 [shape = 's32[1]{0}', space=sflag, size = 0x4, scoped, tag = 'scoped memory for generator_forward.1']
    #allocation5 [shape = 'u8[512]{0}', space=vmem, size = 0x400, scoped, tag = 'input window, operand 3, single buffered']
    #allocation6 [shape = 's32[1]{0}', space=sflag, size = 0x4, scoped, tag = 'scoped memory for generator_forward.1']
    #allocation7 [shape = 'u8[147456]{0}', space=vmem, size = 0x24000, scoped, tag = 'input window, operand 4, single buffered']
    #allocation8 [shape = 'u8[512]{0}', space=vmem, size = 0x400, scoped, tag = 'input window, operand 5, single buffered']
    #allocation9 [shape = 's32[1]{0}', space=sflag, size = 0x4, scoped, tag = 'scoped memory for generator_forward.1']
    #allocation10 [shape = 'u8[1835008]{0}', space=vmem, size = 0x1c0000, scoped, tag = 'input window, operand 6, single buffered']
    #allocation11 [shape = 'u8[512]{0}', space=vmem, size = 0x400, scoped, tag = 'input window, operand 7, single buffered']
    #allocation12 [shape = 's32[1]{0}', space=sflag, size = 0x4, scoped, tag = 'scoped memory for generator_forward.1']
    #allocation13 [shape = 'u8[512]{0}', space=vmem, size = 0x400, scoped, tag = 'input window, operand 9, single buffered']
    #allocation14 [shape = 'u8[1024]{0}', space=vmem, size = 0x400, scoped, tag = 'output window, operand 0, single buffered']
    %15 = vsyncpa [#allocation3], 0
    %16 = vsyncpa [#allocation6], 0
    %17 = vsyncpa [#allocation9], 0
    %18 = vsyncpa [#allocation12], 0
    %19 = vsyncpa [#allocation4], 0
    // Predicated region
    $region2: #{generator_forward.1} parent=1 // pred_check
      _
    $region3: #{generator_forward.1} parent=1 // pred_check_branch
      %21 = sbr.rel (0) target = $region5
    $region4: #{generator_forward.1} parent=1 // pred_region
      _
    $region5: #{generator_forward.1} parent=1 // pred_fallthru
      _
    // Predicated region
    $region6: #{generator_forward.1} parent=1 // pred_check
      _
    $region7: #{generator_forward.1} parent=1 // pred_check_branch
      %23 = sbr.rel (0) target = $region9
    $region8: #{generator_forward.1} parent=1 // pred_region
      _
    $region9: #{generator_forward.1} parent=1 // pred_fallthru
      _
    // Predicated region
    $region10: #{generator_forward.1} parent=1 // pred_check
      _
    $region11: #{generator_forward.1} parent=1 // pred_check_branch
      %25 = sbr.rel (0) target = $region13
    $region12: #{generator_forward.1} parent=1 // pred_region
      %s27 = ssub.s32 256, 256
      %28 = vsyncadd [#allocation3], %s27
      %s29 = sshll.u32 [#allocation2], 4
      %s30 = int_to_ptr.vmem [resolvable:$true] %s29
      %35 = dma.hbm_to_vmem [thread:$0]  %s2, 256, %s30, [#allocation3], 128, 128, 8
    $region13: #{generator_forward.1} parent=1 // pred_fallthru
      _
    // Predicated region
    $region14: #{generator_forward.1} parent=1 // pred_check
      _
    $region15: #{generator_forward.1} parent=1 // pred_check_branch
      %37 = sbr.rel (0) target = $region17
    $region16: #{generator_forward.1} parent=1 // pred_region
      %s39 = ssub.s32 16, 16
      %40 = vsyncadd [#allocation6], %s39
      %s42 = sshll.u32 [#allocation5], 4
      %s43 = int_to_ptr.vmem [resolvable:$true] %s42
      %45 = dma.hbm_to_vmem [thread:$0]  %s3, 16, %s43, [#allocation6]
    $region17: #{generator_forward.1} parent=1 // pred_fallthru
      _
    // Predicated region
    $region18: #{generator_forward.1} parent=1 // pred_check
      _
    $region19: #{generator_forward.1} parent=1 // pred_check_branch
      %47 = sbr.rel (0) target = $region21
    $region20: #{generator_forward.1} parent=1 // pred_region
      %s49 = ssub.s32 4608, 4608
      %50 = vsyncadd [#allocation6], %s49
      %s51 = sshll.u32 [#allocation7], 4
      %s52 = int_to_ptr.vmem [resolvable:$true] %s51
      %57 = dma.hbm_to_vmem [thread:$0]  %s4, 4608, %s52, [#allocation6], 128, 128, 8
    $region21: #{generator_forward.1} parent=1 // pred_fallthru
      _
    // Predicated region
    $region22: #{generator_forward.1} parent=1 // pred_check
      _
    $region23: #{generator_forward.1} parent=1 // pred_check_branch
      %59 = sbr.rel (0) target = $region25
    $region24: #{generator_forward.1} parent=1 // pred_region
      %s61 = ssub.s32 16, 16
      %62 = vsyncadd [#allocation9], %s61
      %s64 = sshll.u32 [#allocation8], 4
      %s65 = int_to_ptr.vmem [resolvable:$true] %s64
      %67 = dma.hbm_to_vmem [thread:$0]  %s5, 16, %s65, [#allocation9]
    $region25: #{generator_forward.1} parent=1 // pred_fallthru
      _
    // Predicated region
    $region26: #{generator_forward.1} parent=1 // pred_check
      _
    $region27: #{generator_forward.1} parent=1 // pred_check_branch
      %69 = sbr.rel (0) target = $region29
    $region28: #{generator_forward.1} parent=1 // pred_region
      %s71 = ssub.s32 57344, 57344
      %72 = vsyncadd [#allocation9], %s71
      %s73 = sshll.u32 [#allocation10], 4
      %s74 = int_to_ptr.vmem [resolvable:$true] %s73
      %79 = dma.hbm_to_vmem [thread:$0]  %s6, 57344, %s74, [#allocation9], 128, 128, 8
    $region29: #{generator_forward.1} parent=1 // pred_fallthru
      _
    // Predicated region
    $region30: #{generator_forward.1} parent=1 // pred_check
      _
    $region31: #{generator_forward.1} parent=1 // pred_check_branch
      %81 = sbr.rel (0) target = $region33
    $region32: #{generator_forward.1} parent=1 // pred_region
      %s83 = ssub.s32 16, 16
      %84 = vsyncadd [#allocation12], %s83
      %s86 = sshll.u32 [#allocation11], 4
      %s87 = int_to_ptr.vmem [resolvable:$true] %s86
      %89 = dma.hbm_to_vmem [thread:$0]  %s7, 16, %s87, [#allocation12]
    $region33: #{generator_forward.1} parent=1 // pred_fallthru
      _
    // Predicated region
    $region34: #{generator_forward.1} parent=1 // pred_check
      _
    $region35: #{generator_forward.1} parent=1 // pred_check_branch
      %91 = sbr.rel (0) target = $region37
    $region36: #{generator_forward.1} parent=1 // pred_region
      _
    $region37: #{generator_forward.1} parent=1 // pred_fallthru
      _
    // Predicated region
    $region38: #{generator_forward.1} parent=1 // pred_check
      _
    $region39: #{generator_forward.1} parent=1 // pred_check_branch
      %93 = sbr.rel (0) target = $region41
    $region40: #{generator_forward.1} parent=1 // pred_region
      %s95 = ssub.s32 16, 16
      %96 = vsyncadd [#allocation12], %s95
      %s98 = sshll.u32 [#allocation13], 4
      %s99 = int_to_ptr.vmem [resolvable:$true] %s98
      %101 = dma.hbm_to_vmem [thread:$0]  %s9, 16, %s99, [#allocation12]
    $region41: #{generator_forward.1} parent=1 // pred_fallthru
      _
    // Predicated region
    $region42: #{generator_forward.1} parent=1 // pred_check
      _
    $region43: #{generator_forward.1} parent=1 // pred_check_branch
      %103 = sbr.rel (0) target = $region45
    $region44: #{generator_forward.1} parent=1 // pred_region
      %104 = dma.done [#allocation3], 256
    $region45: #{generator_forward.1} parent=1 // pred_fallthru
      _
    // Predicated region
    $region46: #{generator_forward.1} parent=1 // pred_check
      _
    $region47: #{generator_forward.1} parent=1 // pred_check_branch
      %106 = sbr.rel (0) target = $region49
    $region48: #{generator_forward.1} parent=1 // pred_region
      %107 = dma.done [#allocation6], 16
    $region49: #{generator_forward.1} parent=1 // pred_fallthru
      _
    // Predicated region
    $region50: #{generator_forward.1} parent=1 // pred_check
      _
    $region51: #{generator_forward.1} parent=1 // pred_check_branch
      %109 = sbr.rel (0) target = $region53
    $region52: #{generator_forward.1} parent=1 // pred_region
      %110 = dma.done [#allocation6], 4608
    $region53: #{generator_forward.1} parent=1 // pred_fallthru
      _
    // Predicated region
    $region54: #{generator_forward.1} parent=1 // pred_check
      _
    $region55: #{generator_forward.1} parent=1 // pred_check_branch
      %112 = sbr.rel (0) target = $region57
    $region56: #{generator_forward.1} parent=1 // pred_region
      %113 = dma.done [#allocation9], 16
    $region57: #{generator_forward.1} parent=1 // pred_fallthru
      _
    // Predicated region
    $region58: #{generator_forward.1} parent=1 // pred_check
      _
    $region59: #{generator_forward.1} parent=1 // pred_check_branch
      %115 = sbr.rel (0) target = $region61
    $region60: #{generator_forward.1} parent=1 // pred_region
      %116 = dma.done [#allocation9], 57344
    $region61: #{generator_forward.1} parent=1 // pred_fallthru
      _
    // Predicated region
    $region62: #{generator_forward.1} parent=1 // pred_check
      _
    $region63: #{generator_forward.1} parent=1 // pred_check_branch
      %118 = sbr.rel (0) target = $region65
    $region64: #{generator_forward.1} parent=1 // pred_region
      %119 = dma.done [#allocation12], 16
    $region65: #{generator_forward.1} parent=1 // pred_fallthru
      _
    // Predicated region
    $region66: #{generator_forward.1} parent=1 // pred_check
      _
    $region67: #{generator_forward.1} parent=1 // pred_check_branch
      %121 = sbr.rel (0) target = $region69
    $region68: #{generator_forward.1} parent=1 // pred_region
      %122 = dma.done [#allocation12], 16
    $region69: #{generator_forward.1} parent=1 // pred_fallthru
      _
    %v123 = vld [vmem:[%s0] sm:$0xff]
    %v124 = vld [vmem:[%s0 + $0x8] sm:$0xff]
    %v125 = vld [vmem:[%s0 + $0x10] sm:$0xff]
    %v126 = vld [vmem:[%s0 + $0x18] sm:$0xff]
    %v127 = vld [vmem:[%s0 + $0x20] sm:$0xff]
    %v128 = vld [vmem:[%s0 + $0x28] sm:$0xff]
    %v129 = vld [vmem:[%s0 + $0x30] sm:$0xff]
    %v130 = vld [vmem:[%s0 + $0x38] sm:$0xff]
    %v131 = vld [vmem:[%s0 + $0x40] sm:$0xff]
    %v132 = vld [vmem:[%s0 + $0x48] sm:$0xff]
    %v133 = vld [vmem:[%s0 + $0x50] sm:$0xff]
    %v134 = vld [vmem:[%s0 + $0x58] sm:$0xff]
    %v135 = vld [vmem:[%s0 + $0x60] sm:$0xff]
    %v136 = vld [vmem:[%s0 + $0x68] sm:$0xff]
    %v137 = vld [vmem:[#allocation2] sm:$0xff]
    %v138 = vld [vmem:[#allocation2 + $0x8] sm:$0x1]
    %v139 = vld [vmem:[#allocation5] sm:$0x1]
    %v141 = vlaneseq
    %v142 = vshrl.u32 %v141, 7
    %v143 = vsub.s32 0, %v142
    %v144 = vrot.slane %v139, %v143
    %vm146 = vcmask 72704
    %v148 = vsel %vm146, %v123, 0
    %v151 = vsel %vm146, %v124, 0
    %v154 = vsel %vm146, %v125, 0
    %v157 = vsel %vm146, %v126, 0
    %v160 = vsel %vm146, %v127, 0
    %v163 = vsel %vm146, %v128, 0
    %v166 = vsel %vm146, %v129, 0
    %v169 = vsel %vm146, %v130, 0
    %v172 = vsel %vm146, %v131, 0
    %v175 = vsel %vm146, %v132, 0
    %v178 = vsel %vm146, %v133, 0
    %v181 = vsel %vm146, %v134, 0
    %v184 = vsel %vm146, %v135, 0
    %v187 = vsel %vm146, %v136, 0
    %vm189 = vcmask 1040384
    %v191 = vsel %vm189, %v138, 0
    %193 = vmatprep.subr.mxu0 0.0
    %194 = vmatpush1.msra.mxu0 %v137
    %195 = vmatprep.subr.mxu0 0.0
    %196 = vmatpush1.msra.mxu0 %v191
    %197 = vmatprep.subr.mxu0 0.0
    %198 = vmatpush1.msra.mxu0 0.0
    %199 = vmatprep.subr.mxu0 0.0
    %200 = vmatpush1.msra.mxu0 0.0
    %201 = vmatprep.subr.mxu0 0.0
    %202 = vmatpush1.msra.mxu0 0.0
    %203 = vmatprep.subr.mxu0 0.0
    %204 = vmatpush1.msra.mxu0 0.0
    %205 = vmatprep.subr.mxu0 0.0
    %206 = vmatpush1.msra.mxu0 0.0
    %207 = vmatprep.subr.mxu0 0.0
    %208 = vmatpush1.msra.mxu0 0.0
    %209 = vmatprep.subr.mxu0 0.0
    %210 = vmatpush1.msra.mxu0 0.0
    %211 = vmatprep.subr.mxu0 0.0
    %212 = vmatpush1.msra.mxu0 0.0
    %213 = vmatprep.subr.mxu0 0.0
    %214 = vmatpush1.msra.mxu0 0.0
    %215 = vmatprep.subr.mxu0 0.0
    %216 = vmatpush1.msra.mxu0 0.0
    %217 = vmatprep.subr.mxu0 0.0
    %218 = vmatpush1.msra.mxu0 0.0
    %219 = vmatprep.subr.mxu0 0.0
    %220 = vmatpush1.msra.mxu0 0.0
    %221 = vmatprep.subr.mxu0 0.0
    %222 = vmatpush1.msra.mxu0 0.0
    %223 = vmatprep.subr.mxu0 0.0
    %224 = vmatpush1.msra.mxu0 0.0
    %225 = vmatprep.subr.mxu0 0.0
    %226 = vmatpush1.msra.mxu0 0.0
    %227 = vmatprep.subr.mxu0 0.0
    %228 = vmatpush1.msra.mxu0 0.0
    %229 = vmatprep.subr.mxu0 0.0
    %230 = vmatpush1.msra.mxu0 0.0
    %231 = vmatprep.subr.mxu0 0.0
    %232 = vmatpush1.msra.mxu0 0.0
    %233 = vmatprep.subr.mxu0 0.0
    %234 = vmatpush1.msra.mxu0 0.0
    %235 = vmatprep.subr.mxu0 0.0
    %236 = vmatpush1.msra.mxu0 0.0
    %237 = vmatprep.subr.mxu0 0.0
    %238 = vmatpush1.msra.mxu0 0.0
    %239 = vmatprep.subr.mxu0 0.0
    %240 = vmatpush1.msra.mxu0 0.0
    %241 = vmatprep.subr.mxu0 0.0
    %242 = vmatpush1.msra.mxu0 0.0
    %243 = vmatprep.subr.mxu0 0.0
    %244 = vmatpush1.msra.mxu0 0.0
    %245 = vmatprep.subr.mxu0 0.0
    %246 = vmatpush1.msra.mxu0 0.0
    %247 = vmatprep.subr.mxu0 0.0
    %248 = vmatpush1.msra.mxu0 0.0
    %249 = vmatprep.subr.mxu0 0.0
    %250 = vmatpush1.msra.mxu0 0.0
    %251 = vmatprep.subr.mxu0 0.0
    %252 = vmatpush1.msra.mxu0 0.0
    %253 = vmatprep.subr.mxu0 0.0
    %254 = vmatpush1.msra.mxu0 0.0
    %255 = vmatprep.subr.mxu0 0.0
    %256 = vmatpush1.msra.mxu0 0.0
    %257 = vmatprep.mubr.f32.mxu0 0.0
    %258 = vmatmul.mubr.f32.gmra.mrb[0].mxu0 %v148
    %v259 = vpop.f32.mrb[0].mxu0
    %v260 = vadd.f32 %v144, %v259
    %v261 = vpop.f32.mrb[0].mxu0
    %262 = vmatprep.mubr.f32.mxu0 0.0
    %263 = vmatmul.mubr.f32.gmra.mrb[0].mxu0 %v151
    %v264 = vpop.f32.mrb[0].mxu0
    %v265 = vadd.f32 %v144, %v264
    %v266 = vpop.f32.mrb[0].mxu0
    %267 = vmatprep.mubr.f32.mxu0 0.0
    %268 = vmatmul.mubr.f32.gmra.mrb[0].mxu0 %v154
    %v269 = vpop.f32.mrb[0].mxu0
    %v270 = vadd.f32 %v144, %v269
    %v271 = vpop.f32.mrb[0].mxu0
    %272 = vmatprep.mubr.f32.mxu0 0.0
    %273 = vmatmul.mubr.f32.gmra.mrb[0].mxu0 %v157
    %v274 = vpop.f32.mrb[0].mxu0
    %v275 = vadd.f32 %v144, %v274
    %v276 = vpop.f32.mrb[0].mxu0
    %277 = vmatprep.mubr.f32.mxu0 0.0
    %278 = vmatmul.mubr.f32.gmra.mrb[0].mxu0 %v160
    %v279 = vpop.f32.mrb[0].mxu0
    %v280 = vadd.f32 %v144, %v279
    %v281 = vpop.f32.mrb[0].mxu0
    %282 = vmatprep.mubr.f32.mxu0 0.0
    %283 = vmatmul.mubr.f32.gmra.mrb[0].mxu0 %v163
    %v284 = vpop.f32.mrb[0].mxu0
    %v285 = vadd.f32 %v144, %v284
    %v286 = vpop.f32.mrb[0].mxu0
    %287 = vmatprep.mubr.f32.mxu0 0.0
    %288 = vmatmul.mubr.f32.gmra.mrb[0].mxu0 %v166
    %v289 = vpop.f32.mrb[0].mxu0
    %v290 = vadd.f32 %v144, %v289
    %v291 = vpop.f32.mrb[0].mxu0
    %292 = vmatprep.mubr.f32.mxu0 0.0
    %293 = vmatmul.mubr.f32.gmra.mrb[0].mxu0 %v169
    %v294 = vpop.f32.mrb[0].mxu0
    %v295 = vadd.f32 %v144, %v294
    %v296 = vpop.f32.mrb[0].mxu0
    %297 = vmatprep.mubr.f32.mxu0 0.0
    %298 = vmatmul.mubr.f32.gmra.mrb[0].mxu0 %v172
    %v299 = vpop.f32.mrb[0].mxu0
    %v300 = vadd.f32 %v144, %v299
    %v301 = vpop.f32.mrb[0].mxu0
    %302 = vmatprep.mubr.f32.mxu0 0.0
    %303 = vmatmul.mubr.f32.gmra.mrb[0].mxu0 %v175
    %v304 = vpop.f32.mrb[0].mxu0
    %v305 = vadd.f32 %v144, %v304
    %v306 = vpop.f32.mrb[0].mxu0
    %307 = vmatprep.mubr.f32.mxu0 0.0
    %308 = vmatmul.mubr.f32.gmra.mrb[0].mxu0 %v178
    %v309 = vpop.f32.mrb[0].mxu0
    %v310 = vadd.f32 %v144, %v309
    %v311 = vpop.f32.mrb[0].mxu0
    %312 = vmatprep.mubr.f32.mxu0 0.0
    %313 = vmatmul.mubr.f32.gmra.mrb[0].mxu0 %v181
    %v314 = vpop.f32.mrb[0].mxu0
    %v315 = vadd.f32 %v144, %v314
    %v316 = vpop.f32.mrb[0].mxu0
    %317 = vmatprep.mubr.f32.mxu0 0.0
    %318 = vmatmul.mubr.f32.gmra.mrb[0].mxu0 %v184
    %v319 = vpop.f32.mrb[0].mxu0
    %v320 = vadd.f32 %v144, %v319
    %v321 = vpop.f32.mrb[0].mxu0
    %322 = vmatprep.mubr.f32.mxu0 0.0
    %323 = vmatmul.mubr.f32.gmra.mrb[0].mxu0 %v187
    %v324 = vpop.f32.mrb[0].mxu0
    %v325 = vadd.f32 %v144, %v324
    %v326 = vpop.f32.mrb[0].mxu0
    %327 = vdwg.mxu0
    %v328 = vmax.f32 %v260, 0.0
    %v329 = vmax.f32 %v265, 0.0
    %v330 = vmax.f32 %v270, 0.0
    %v331 = vmax.f32 %v275, 0.0
    %v332 = vmax.f32 %v280, 0.0
    %v333 = vmax.f32 %v285, 0.0
    %v334 = vmax.f32 %v290, 0.0
    %v335 = vmax.f32 %v295, 0.0
    %v336 = vmax.f32 %v300, 0.0
    %v337 = vmax.f32 %v305, 0.0
    %v338 = vmax.f32 %v310, 0.0
    %v339 = vmax.f32 %v315, 0.0
    %v340 = vmax.f32 %v320, 0.0
    %v341 = vmax.f32 %v325, 0.0
    %v342 = vld [vmem:[%s1] sm:$0xff]
    %v343 = vld [vmem:[%s1 + $0x8] sm:$0xff]
    %v344 = vld [vmem:[%s1 + $0x10] sm:$0xff]
    %v345 = vld [vmem:[%s1 + $0x18] sm:$0xff]
    %v346 = vld [vmem:[%s1 + $0x20] sm:$0xff]
    %v347 = vld [vmem:[%s1 + $0x28] sm:$0xff]
    %v348 = vld [vmem:[%s1 + $0x30] sm:$0xff]
    %v349 = vld [vmem:[%s1 + $0x38] sm:$0xff]
    %v350 = vld [vmem:[%s1 + $0x40] sm:$0xff]
    %v351 = vld [vmem:[%s1 + $0x48] sm:$0xff]
    %v352 = vld [vmem:[%s1 + $0x50] sm:$0xff]
    %v353 = vld [vmem:[%s1 + $0x58] sm:$0xff]
    %v354 = vld [vmem:[%s1 + $0x60] sm:$0xff]
    %v355 = vld [vmem:[%s1 + $0x68] sm:$0xff]
    %v356 = vrot.slane %v328, 6
    %v357 = vrot.slane %v329, 6
    %v358 = vrot.slane %v330, 6
    %v359 = vrot.slane %v331, 6
    %v360 = vrot.slane %v332, 6
    %v361 = vrot.slane %v333, 6
    %v362 = vrot.slane %v334, 6
    %v363 = vrot.slane %v335, 6
    %v364 = vrot.slane %v336, 6
    %v365 = vrot.slane %v337, 6
    %v366 = vrot.slane %v338, 6
    %v367 = vrot.slane %v339, 6
    %v368 = vrot.slane %v340, 6
    %v369 = vrot.slane %v341, 6
    %v370 = vlaneseq
    %v371 = vshrl.u32 %v370, 7
    %vm372 = vcmp.lt.s32.totalorder %v371, 2
    %v373 = vsel %vm372, %v368, %v369
    %v374 = vsel %vm372, %v367, %v368
    %v375 = vsel %vm372, %v366, %v367
    %v376 = vsel %vm372, %v365, %v366
    %v377 = vsel %vm372, %v364, %v365
    %v378 = vsel %vm372, %v363, %v364
    %v379 = vsel %vm372, %v362, %v363
    %v380 = vsel %vm372, %v361, %v362
    %v381 = vsel %vm372, %v360, %v361
    %v382 = vsel %vm372, %v359, %v360
    %v383 = vsel %vm372, %v358, %v359
    %v384 = vsel %vm372, %v357, %v358
    %v385 = vsel %vm372, %v356, %v357
    %v386 = vsel %vm372, %v369, %v356
    %388 = vset.pattern.permute.xlu0 0
    %389 = vperm.xlu0 %388, %v342
    %v390 = vpop.permute.xlu0 %389
    %393 = vset.pattern.permute.xlu0 0
    %394 = vperm.xlu0 %393, %v343
    %v395 = vpop.permute.xlu0 %394
    %398 = vset.pattern.permute.xlu0 0
    %399 = vperm.xlu0 %398, %v344
    %v400 = vpop.permute.xlu0 %399
    %403 = vset.pattern.permute.xlu0 0
    %404 = vperm.xlu0 %403, %v345
    %v405 = vpop.permute.xlu0 %404
    %408 = vset.pattern.permute.xlu0 0
    %409 = vperm.xlu0 %408, %v346
    %v410 = vpop.permute.xlu0 %409
    %413 = vset.pattern.permute.xlu0 0
    %414 = vperm.xlu0 %413, %v347
    %v415 = vpop.permute.xlu0 %414
    %418 = vset.pattern.permute.xlu0 0
    %419 = vperm.xlu0 %418, %v348
    %v420 = vpop.permute.xlu0 %419
    %423 = vset.pattern.permute.xlu0 0
    %424 = vperm.xlu0 %423, %v349
    %v425 = vpop.permute.xlu0 %424
    %428 = vset.pattern.permute.xlu0 0
    %429 = vperm.xlu0 %428, %v350
    %v430 = vpop.permute.xlu0 %429
    %433 = vset.pattern.permute.xlu0 0
    %434 = vperm.xlu0 %433, %v351
    %v435 = vpop.permute.xlu0 %434
    %438 = vset.pattern.permute.xlu0 0
    %439 = vperm.xlu0 %438, %v352
    %v440 = vpop.permute.xlu0 %439
    %443 = vset.pattern.permute.xlu0 0
    %444 = vperm.xlu0 %443, %v353
    %v445 = vpop.permute.xlu0 %444
    %448 = vset.pattern.permute.xlu0 0
    %449 = vperm.xlu0 %448, %v354
    %v450 = vpop.permute.xlu0 %449
    %453 = vset.pattern.permute.xlu0 0
    %454 = vperm.xlu0 %453, %v355
    %v455 = vpop.permute.xlu0 %454
    %v457 = vmul.f32 %v374, %v390
    %v458 = vmul.f32 %v373, %v395
    %v459 = vmul.f32 %v386, %v400
    %v460 = vmul.f32 %v385, %v405
    %v461 = vmul.f32 %v384, %v410
    %v462 = vmul.f32 %v383, %v415
    %v463 = vmul.f32 %v382, %v420
    %v464 = vmul.f32 %v381, %v425
    %v465 = vmul.f32 %v380, %v430
    %v466 = vmul.f32 %v379, %v435
    %v467 = vmul.f32 %v378, %v440
    %v468 = vmul.f32 %v377, %v445
    %v469 = vmul.f32 %v376, %v450
    %v470 = vmul.f32 %v375, %v455
    %v471 = vld [vmem:[#allocation7] sm:$0xff]
    %v472 = vld [vmem:[#allocation7 + $0x8] sm:$0xff]
    %v473 = vld [vmem:[#allocation7 + $0x10] sm:$0xff]
    %v474 = vld [vmem:[#allocation7 + $0x18] sm:$0xff]
    %475 = vset.pattern.permute.xlu0 1
    %476 = vperm.xlu0 %475, %v342
    %v477 = vpop.permute.xlu0 %476
    %479 = vset.pattern.permute.xlu0 1
    %480 = vperm.xlu0 %479, %v343
    %v481 = vpop.permute.xlu0 %480
    %483 = vset.pattern.permute.xlu0 1
    %484 = vperm.xlu0 %483, %v344
    %v485 = vpop.permute.xlu0 %484
    %487 = vset.pattern.permute.xlu0 1
    %488 = vperm.xlu0 %487, %v345
    %v489 = vpop.permute.xlu0 %488
    %491 = vset.pattern.permute.xlu0 1
    %492 = vperm.xlu0 %491, %v346
    %v493 = vpop.permute.xlu0 %492
    %495 = vset.pattern.permute.xlu0 1
    %496 = vperm.xlu0 %495, %v347
    %v497 = vpop.permute.xlu0 %496
    %499 = vset.pattern.permute.xlu0 1
    %500 = vperm.xlu0 %499, %v348
    %v501 = vpop.permute.xlu0 %500
    %503 = vset.pattern.permute.xlu0 1
    %504 = vperm.xlu0 %503, %v349
    %v505 = vpop.permute.xlu0 %504
    %507 = vset.pattern.permute.xlu0 1
    %508 = vperm.xlu0 %507, %v350
    %v509 = vpop.permute.xlu0 %508
    %511 = vset.pattern.permute.xlu0 1
    %512 = vperm.xlu0 %511, %v351
    %v513 = vpop.permute.xlu0 %512
    %515 = vset.pattern.permute.xlu0 1
    %516 = vperm.xlu0 %515, %v352
    %v517 = vpop.permute.xlu0 %516
    %519 = vset.pattern.permute.xlu0 1
    %520 = vperm.xlu0 %519, %v353
    %v521 = vpop.permute.xlu0 %520
    %523 = vset.pattern.permute.xlu0 1
    %524 = vperm.xlu0 %523, %v354
    %v525 = vpop.permute.xlu0 %524
    %527 = vset.pattern.permute.xlu0 1
    %528 = vperm.xlu0 %527, %v355
    %v529 = vpop.permute.xlu0 %528
    %v531 = vmul.f32 %v340, %v477
    %v532 = vmul.f32 %v341, %v481
    %v533 = vmul.f32 %v328, %v485
    %v534 = vmul.f32 %v329, %v489
    %v535 = vmul.f32 %v330, %v493
    %v536 = vmul.f32 %v331, %v497
    %v537 = vmul.f32 %v332, %v501
    %v538 = vmul.f32 %v333, %v505
    %v539 = vmul.f32 %v334, %v509
    %v540 = vmul.f32 %v335, %v513
    %v541 = vmul.f32 %v336, %v517
    %v542 = vmul.f32 %v337, %v521
    %v543 = vmul.f32 %v338, %v525
    %v544 = vmul.f32 %v339, %v529
    %s545 = scalar_lea.vmem [#allocation7], 32
    %v546 = vld [vmem:[%s545] sm:$0xff]
    %v547 = vld [vmem:[%s545 + $0x8] sm:$0xff]
    %v548 = vld [vmem:[%s545 + $0x10] sm:$0xff]
    %v549 = vld [vmem:[%s545 + $0x18] sm:$0xff]
    %vm550 = vcmask 261120
    %v552 = vsel %vm550, %v531, 0
    %v555 = vsel %vm550, %v532, 0
    %v558 = vsel %vm550, %v533, 0
    %v561 = vsel %vm550, %v534, 0
    %v564 = vsel %vm550, %v535, 0
    %v567 = vsel %vm550, %v536, 0
    %v570 = vsel %vm550, %v537, 0
    %v573 = vsel %vm550, %v538, 0
    %v576 = vsel %vm550, %v539, 0
    %v579 = vsel %vm550, %v540, 0
    %v582 = vsel %vm550, %v541, 0
    %v585 = vsel %vm550, %v542, 0
    %v588 = vsel %vm550, %v543, 0
    %v591 = vsel %vm550, %v544, 0
    %593 = vmatprep.subr.mxu0 0.0
    %594 = vmatpush1.msra.mxu0 %v546
    %595 = vmatprep.subr.mxu0 0.0
    %596 = vmatpush1.msra.mxu0 %v547
    %597 = vmatprep.subr.mxu0 0.0
    %598 = vmatpush1.msra.mxu0 %v548
    %599 = vmatprep.subr.mxu0 0.0
    %600 = vmatpush1.msra.mxu0 %v549
    %601 = vmatprep.subr.mxu0 0.0
    %602 = vmatpush1.msra.mxu0 0.0
    %603 = vmatprep.subr.mxu0 0.0
    %604 = vmatpush1.msra.mxu0 0.0
    %605 = vmatprep.subr.mxu0 0.0
    %606 = vmatpush1.msra.mxu0 0.0
    %607 = vmatprep.subr.mxu0 0.0
    %608 = vmatpush1.msra.mxu0 0.0
    %609 = vmatprep.subr.mxu0 0.0
    %610 = vmatpush1.msra.mxu0 0.0
    %611 = vmatprep.subr.mxu0 0.0
    %612 = vmatpush1.msra.mxu0 0.0
    %613 = vmatprep.subr.mxu0 0.0
    %614 = vmatpush1.msra.mxu0 0.0
    %615 = vmatprep.subr.mxu0 0.0
    %616 = vmatpush1.msra.mxu0 0.0
    %617 = vmatprep.subr.mxu0 0.0
    %618 = vmatpush1.msra.mxu0 0.0
    %619 = vmatprep.subr.mxu0 0.0
    %620 = vmatpush1.msra.mxu0 0.0
    %621 = vmatprep.subr.mxu0 0.0
    %622 = vmatpush1.msra.mxu0 0.0
    %623 = vmatprep.subr.mxu0 0.0
    %624 = vmatpush1.msra.mxu0 0.0
    %625 = vmatprep.subr.mxu0 0.0
    %626 = vmatpush1.msra.mxu0 0.0
    %627 = vmatprep.subr.mxu0 0.0
    %628 = vmatpush1.msra.mxu0 0.0
    %629 = vmatprep.subr.mxu0 0.0
    %630 = vmatpush1.msra.mxu0 0.0
    %631 = vmatprep.subr.mxu0 0.0
    %632 = vmatpush1.msra.mxu0 0.0
    %633 = vmatprep.subr.mxu0 0.0
    %634 = vmatpush1.msra.mxu0 0.0
    %635 = vmatprep.subr.mxu0 0.0
    %636 = vmatpush1.msra.mxu0 0.0
    %637 = vmatprep.subr.mxu0 0.0
    %638 = vmatpush1.msra.mxu0 0.0
    %639 = vmatprep.subr.mxu0 0.0
    %640 = vmatpush1.msra.mxu0 0.0
    %641 = vmatprep.subr.mxu0 0.0
    %642 = vmatpush1.msra.mxu0 0.0
    %643 = vmatprep.subr.mxu0 0.0
    %644 = vmatpush1.msra.mxu0 0.0
    %645 = vmatprep.subr.mxu0 0.0
    %646 = vmatpush1.msra.mxu0 0.0
    %647 = vmatprep.subr.mxu0 0.0
    %648 = vmatpush1.msra.mxu0 0.0
    %649 = vmatprep.subr.mxu0 0.0
    %650 = vmatpush1.msra.mxu0 0.0
    %651 = vmatprep.subr.mxu0 0.0
    %652 = vmatpush1.msra.mxu0 0.0
    %653 = vmatprep.subr.mxu0 0.0
    %654 = vmatpush1.msra.mxu0 0.0
    %655 = vmatprep.subr.mxu0 0.0
    %656 = vmatpush1.msra.mxu0 0.0
    %657 = vmatprep.mubr.f32.mxu0 0.0
    %658 = vmatmul.mubr.f32.gmra.mrb[0].mxu0 %v552
    %v659 = vpop.f32.mrb[0].mxu0
    %v660 = vadd.f32 0.0, %v659
    %v661 = vpop.f32.mrb[0].mxu0
    %662 = vmatprep.mubr.f32.mxu0 0.0
    %663 = vmatmul.mubr.f32.gmra.mrb[0].mxu0 %v555
    %v664 = vpop.f32.mrb[0].mxu0
    %v665 = vadd.f32 0.0, %v664
    %v666 = vpop.f32.mrb[0].mxu0
    %667 = vmatprep.mubr.f32.mxu0 0.0
    %668 = vmatmul.mubr.f32.gmra.mrb[0].mxu0 %v558
    %v669 = vpop.f32.mrb[0].mxu0
    %v670 = vadd.f32 0.0, %v669
    %v671 = vpop.f32.mrb[0].mxu0
    %672 = vmatprep.mubr.f32.mxu0 0.0
    %673 = vmatmul.mubr.f32.gmra.mrb[0].mxu0 %v561
    %v674 = vpop.f32.mrb[0].mxu0
    %v675 = vadd.f32 0.0, %v674
    %v676 = vpop.f32.mrb[0].mxu0
    %677 = vmatprep.mubr.f32.mxu0 0.0
    %678 = vmatmul.mubr.f32.gmra.mrb[0].mxu0 %v564
    %v679 = vpop.f32.mrb[0].mxu0
    %v680 = vadd.f32 0.0, %v679
    %v681 = vpop.f32.mrb[0].mxu0
    %682 = vmatprep.mubr.f32.mxu0 0.0
    %683 = vmatmul.mubr.f32.gmra.mrb[0].mxu0 %v567
    %v684 = vpop.f32.mrb[0].mxu0
    %v685 = vadd.f32 0.0, %v684
    %v686 = vpop.f32.mrb[0].mxu0
    %687 = vmatprep.mubr.f32.mxu0 0.0
    %688 = vmatmul.mubr.f32.gmra.mrb[0].mxu0 %v570
    %v689 = vpop.f32.mrb[0].mxu0
    %v690 = vadd.f32 0.0, %v689
    %v691 = vpop.f32.mrb[0].mxu0
    %692 = vmatprep.mubr.f32.mxu0 0.0
    %693 = vmatmul.mubr.f32.gmra.mrb[0].mxu0 %v573
    %v694 = vpop.f32.mrb[0].mxu0
    %v695 = vadd.f32 0.0, %v694
    %v696 = vpop.f32.mrb[0].mxu0
    %697 = vmatprep.mubr.f32.mxu0 0.0
    %698 = vmatmul.mubr.f32.gmra.mrb[0].mxu0 %v576
    %v699 = vpop.f32.mrb[0].mxu0
    %v700 = vadd.f32 0.0, %v699
    %v701 = vpop.f32.mrb[0].mxu0
    %702 = vmatprep.mubr.f32.mxu0 0.0
    %703 = vmatmul.mubr.f32.gmra.mrb[0].mxu0 %v579
    %v704 = vpop.f32.mrb[0].mxu0
    %v705 = vadd.f32 0.0, %v704
    %v706 = vpop.f32.mrb[0].mxu0
    %707 = vmatprep.mubr.f32.mxu0 0.0
    %708 = vmatmul.mubr.f32.gmra.mrb[0].mxu0 %v582
    %v709 = vpop.f32.mrb[0].mxu0
    %v710 = vadd.f32 0.0, %v709
    %v711 = vpop.f32.mrb[0].mxu0
    %712 = vmatprep.mubr.f32.mxu0 0.0
    %713 = vmatmul.mubr.f32.gmra.mrb[0].mxu0 %v585
    %v714 = vpop.f32.mrb[0].mxu0
    %v715 = vadd.f32 0.0, %v714
    %v716 = vpop.f32.mrb[0].mxu0
    %717 = vmatprep.mubr.f32.mxu0 0.0
    %718 = vmatmul.mubr.f32.gmra.mrb[0].mxu0 %v588
    %v719 = vpop.f32.mrb[0].mxu0
    %v720 = vadd.f32 0.0, %v719
    %v721 = vpop.f32.mrb[0].mxu0
    %722 = vmatprep.mubr.f32.mxu0 0.0
    %723 = vmatmul.mubr.f32.gmra.mrb[0].mxu0 %v591
    %v724 = vpop.f32.mrb[0].mxu0
    %v725 = vadd.f32 0.0, %v724
    %v726 = vpop.f32.mrb[0].mxu0
    %727 = vdwg.mxu0
    %v729 = vsel %vm550, %v457, 0
    %v732 = vsel %vm550, %v458, 0
    %v735 = vsel %vm550, %v459, 0
    %v738 = vsel %vm550, %v460, 0
    %v741 = vsel %vm550, %v461, 0
    %v744 = vsel %vm550, %v462, 0
    %v747 = vsel %vm550, %v463, 0
    %v750 = vsel %vm550, %v464, 0
    %v753 = vsel %vm550, %v465, 0
    %v756 = vsel %vm550, %v466, 0
    %v759 = vsel %vm550, %v467, 0
    %v762 = vsel %vm550, %v468, 0
    %v765 = vsel %vm550, %v469, 0
    %v768 = vsel %vm550, %v470, 0
    %770 = vmatprep.subr.mxu0 0.0
    %771 = vmatpush1.msra.mxu0 %v471
    %772 = vmatprep.subr.mxu0 0.0
    %773 = vmatpush1.msra.mxu0 %v472
    %774 = vmatprep.subr.mxu0 0.0
    %775 = vmatpush1.msra.mxu0 %v473
    %776 = vmatprep.subr.mxu0 0.0
    %777 = vmatpush1.msra.mxu0 %v474
    %778 = vmatprep.subr.mxu0 0.0
    %779 = vmatpush1.msra.mxu0 0.0
    %780 = vmatprep.subr.mxu0 0.0
    %781 = vmatpush1.msra.mxu0 0.0
    %782 = vmatprep.subr.mxu0 0.0
    %783 = vmatpush1.msra.mxu0 0.0
    %784 = vmatprep.subr.mxu0 0.0
    %785 = vmatpush1.msra.mxu0 0.0
    %786 = vmatprep.subr.mxu0 0.0
    %787 = vmatpush1.msra.mxu0 0.0
    %788 = vmatprep.subr.mxu0 0.0
    %789 = vmatpush1.msra.mxu0 0.0
    %790 = vmatprep.subr.mxu0 0.0
    %791 = vmatpush1.msra.mxu0 0.0
    %792 = vmatprep.subr.mxu0 0.0
    %793 = vmatpush1.msra.mxu0 0.0
    %794 = vmatprep.subr.mxu0 0.0
    %795 = vmatpush1.msra.mxu0 0.0
    %796 = vmatprep.subr.mxu0 0.0
    %797 = vmatpush1.msra.mxu0 0.0
    %798 = vmatprep.subr.mxu0 0.0
    %799 = vmatpush1.msra.mxu0 0.0
    %800 = vmatprep.subr.mxu0 0.0
    %801 = vmatpush1.msra.mxu0 0.0
    %802 = vmatprep.subr.mxu0 0.0
    %803 = vmatpush1.msra.mxu0 0.0
    %804 = vmatprep.subr.mxu0 0.0
    %805 = vmatpush1.msra.mxu0 0.0
    %806 = vmatprep.subr.mxu0 0.0
    %807 = vmatpush1.msra.mxu0 0.0
    %808 = vmatprep.subr.mxu0 0.0
    %809 = vmatpush1.msra.mxu0 0.0
    %810 = vmatprep.subr.mxu0 0.0
    %811 = vmatpush1.msra.mxu0 0.0
    %812 = vmatprep.subr.mxu0 0.0
    %813 = vmatpush1.msra.mxu0 0.0
    %814 = vmatprep.subr.mxu0 0.0
    %815 = vmatpush1.msra.mxu0 0.0
    %816 = vmatprep.subr.mxu0 0.0
    %817 = vmatpush1.msra.mxu0 0.0
    %818 = vmatprep.subr.mxu0 0.0
    %819 = vmatpush1.msra.mxu0 0.0
    %820 = vmatprep.subr.mxu0 0.0
    %821 = vmatpush1.msra.mxu0 0.0
    %822 = vmatprep.subr.mxu0 0.0
    %823 = vmatpush1.msra.mxu0 0.0
    %824 = vmatprep.subr.mxu0 0.0
    %825 = vmatpush1.msra.mxu0 0.0
    %826 = vmatprep.subr.mxu0 0.0
    %827 = vmatpush1.msra.mxu0 0.0
    %828 = vmatprep.subr.mxu0 0.0
    %829 = vmatpush1.msra.mxu0 0.0
    %830 = vmatprep.subr.mxu0 0.0
    %831 = vmatpush1.msra.mxu0 0.0
    %832 = vmatprep.subr.mxu0 0.0
    %833 = vmatpush1.msra.mxu0 0.0
    %834 = vmatprep.mubr.f32.mxu0 0.0
    %835 = vmatmul.mubr.f32.gmra.mrb[0].mxu0 %v729
    %v836 = vpop.f32.mrb[0].mxu0
    %v837 = vadd.f32 %v660, %v836
    %v838 = vpop.f32.mrb[0].mxu0
    %839 = vmatprep.mubr.f32.mxu0 0.0
    %840 = vmatmul.mubr.f32.gmra.mrb[0].mxu0 %v732
    %v841 = vpop.f32.mrb[0].mxu0
    %v842 = vadd.f32 %v665, %v841
    %v843 = vpop.f32.mrb[0].mxu0
    %844 = vmatprep.mubr.f32.mxu0 0.0
    %845 = vmatmul.mubr.f32.gmra.mrb[0].mxu0 %v735
    %v846 = vpop.f32.mrb[0].mxu0
    %v847 = vadd.f32 %v670, %v846
    %v848 = vpop.f32.mrb[0].mxu0
    %849 = vmatprep.mubr.f32.mxu0 0.0
    %850 = vmatmul.mubr.f32.gmra.mrb[0].mxu0 %v738
    %v851 = vpop.f32.mrb[0].mxu0
    %v852 = vadd.f32 %v675, %v851
    %v853 = vpop.f32.mrb[0].mxu0
    %854 = vmatprep.mubr.f32.mxu0 0.0
    %855 = vmatmul.mubr.f32.gmra.mrb[0].mxu0 %v741
    %v856 = vpop.f32.mrb[0].mxu0
    %v857 = vadd.f32 %v680, %v856
    %v858 = vpop.f32.mrb[0].mxu0
    %859 = vmatprep.mubr.f32.mxu0 0.0
    %860 = vmatmul.mubr.f32.gmra.mrb[0].mxu0 %v744
    %v861 = vpop.f32.mrb[0].mxu0
    %v862 = vadd.f32 %v685, %v861
    %v863 = vpop.f32.mrb[0].mxu0
    %864 = vmatprep.mubr.f32.mxu0 0.0
    %865 = vmatmul.mubr.f32.gmra.mrb[0].mxu0 %v747
    %v866 = vpop.f32.mrb[0].mxu0
    %v867 = vadd.f32 %v690, %v866
    %v868 = vpop.f32.mrb[0].mxu0
    %869 = vmatprep.mubr.f32.mxu0 0.0
    %870 = vmatmul.mubr.f32.gmra.mrb[0].mxu0 %v750
    %v871 = vpop.f32.mrb[0].mxu0
    %v872 = vadd.f32 %v695, %v871
    %v873 = vpop.f32.mrb[0].mxu0
    %874 = vmatprep.mubr.f32.mxu0 0.0
    %875 = vmatmul.mubr.f32.gmra.mrb[0].mxu0 %v753
    %v876 = vpop.f32.mrb[0].mxu0
    %v877 = vadd.f32 %v700, %v876
    %v878 = vpop.f32.mrb[0].mxu0
    %879 = vmatprep.mubr.f32.mxu0 0.0
    %880 = vmatmul.mubr.f32.gmra.mrb[0].mxu0 %v756
    %v881 = vpop.f32.mrb[0].mxu0
    %v882 = vadd.f32 %v705, %v881
    %v883 = vpop.f32.mrb[0].mxu0
    %884 = vmatprep.mubr.f32.mxu0 0.0
    %885 = vmatmul.mubr.f32.gmra.mrb[0].mxu0 %v759
    %v886 = vpop.f32.mrb[0].mxu0
    %v887 = vadd.f32 %v710, %v886
    %v888 = vpop.f32.mrb[0].mxu0
    %889 = vmatprep.mubr.f32.mxu0 0.0
    %890 = vmatmul.mubr.f32.gmra.mrb[0].mxu0 %v762
    %v891 = vpop.f32.mrb[0].mxu0
    %v892 = vadd.f32 %v715, %v891
    %v893 = vpop.f32.mrb[0].mxu0
    %894 = vmatprep.mubr.f32.mxu0 0.0
    %895 = vmatmul.mubr.f32.gmra.mrb[0].mxu0 %v765
    %v896 = vpop.f32.mrb[0].mxu0
    %v897 = vadd.f32 %v720, %v896
    %v898 = vpop.f32.mrb[0].mxu0
    %899 = vmatprep.mubr.f32.mxu0 0.0
    %900 = vmatmul.mubr.f32.gmra.mrb[0].mxu0 %v768
    %v901 = vpop.f32.mrb[0].mxu0
    %v902 = vadd.f32 %v725, %v901
    %v903 = vpop.f32.mrb[0].mxu0
    %904 = vdwg.mxu0
    %v905 = vrot.slane %v328, 2
    %v906 = vrot.slane %v329, 2
    %v907 = vrot.slane %v330, 2
    %v908 = vrot.slane %v331, 2
    %v909 = vrot.slane %v332, 2
    %v910 = vrot.slane %v333, 2
    %v911 = vrot.slane %v334, 2
    %v912 = vrot.slane %v335, 2
    %v913 = vrot.slane %v336, 2
    %v914 = vrot.slane %v337, 2
    %v915 = vrot.slane %v338, 2
    %v916 = vrot.slane %v339, 2
    %v917 = vrot.slane %v340, 2
    %v918 = vrot.slane %v341, 2
    %vm919 = vcmp.lt.s32.totalorder %v371, 6
    %v920 = vsel %vm919, %v917, %v918
    %v921 = vsel %vm919, %v916, %v917
    %v922 = vsel %vm919, %v915, %v916
    %v923 = vsel %vm919, %v914, %v915
    %v924 = vsel %vm919, %v913, %v914
    %v925 = vsel %vm919, %v912, %v913
    %v926 = vsel %vm919, %v911, %v912
    %v927 = vsel %vm919, %v910, %v911
    %v928 = vsel %vm919, %v909, %v910
    %v929 = vsel %vm919, %v908, %v909
    %v930 = vsel %vm919, %v907, %v908
    %v931 = vsel %vm919, %v906, %v907
    %v932 = vsel %vm919, %v905, %v906
    %v933 = vsel %vm919, %v918, %v905
    %934 = vset.pattern.permute.xlu0 2
    %935 = vperm.xlu0 %934, %v342
    %v936 = vpop.permute.xlu0 %935
    %938 = vset.pattern.permute.xlu0 2
    %939 = vperm.xlu0 %938, %v343
    %v940 = vpop.permute.xlu0 %939
    %942 = vset.pattern.permute.xlu0 2
    %943 = vperm.xlu0 %942, %v344
    %v944 = vpop.permute.xlu0 %943
    %946 = vset.pattern.permute.xlu0 2
    %947 = vperm.xlu0 %946, %v345
    %v948 = vpop.permute.xlu0 %947
    %950 = vset.pattern.permute.xlu0 2
    %951 = vperm.xlu0 %950, %v346
    %v952 = vpop.permute.xlu0 %951
    %954 = vset.pattern.permute.xlu0 2
    %955 = vperm.xlu0 %954, %v347
    %v956 = vpop.permute.xlu0 %955
    %958 = vset.pattern.permute.xlu0 2
    %959 = vperm.xlu0 %958, %v348
    %v960 = vpop.permute.xlu0 %959
    %962 = vset.pattern.permute.xlu0 2
    %963 = vperm.xlu0 %962, %v349
    %v964 = vpop.permute.xlu0 %963
    %966 = vset.pattern.permute.xlu0 2
    %967 = vperm.xlu0 %966, %v350
    %v968 = vpop.permute.xlu0 %967
    %970 = vset.pattern.permute.xlu0 2
    %971 = vperm.xlu0 %970, %v351
    %v972 = vpop.permute.xlu0 %971
    %974 = vset.pattern.permute.xlu0 2
    %975 = vperm.xlu0 %974, %v352
    %v976 = vpop.permute.xlu0 %975
    %978 = vset.pattern.permute.xlu0 2
    %979 = vperm.xlu0 %978, %v353
    %v980 = vpop.permute.xlu0 %979
    %982 = vset.pattern.permute.xlu0 2
    %983 = vperm.xlu0 %982, %v354
    %v984 = vpop.permute.xlu0 %983
    %986 = vset.pattern.permute.xlu0 2
    %987 = vperm.xlu0 %986, %v355
    %v988 = vpop.permute.xlu0 %987
    %v990 = vmul.f32 %v920, %v936
    %v991 = vmul.f32 %v933, %v940
    %v992 = vmul.f32 %v932, %v944
    %v993 = vmul.f32 %v931, %v948
    %v994 = vmul.f32 %v930, %v952
    %v995 = vmul.f32 %v929, %v956
    %v996 = vmul.f32 %v928, %v960
    %v997 = vmul.f32 %v927, %v964
    %v998 = vmul.f32 %v926, %v968
    %v999 = vmul.f32 %v925, %v972
    %v1000 = vmul.f32 %v924, %v976
    %v1001 = vmul.f32 %v923, %v980
    %v1002 = vmul.f32 %v922, %v984
    %v1003 = vmul.f32 %v921, %v988
    %s1004 = scalar_lea.vmem [#allocation7], 64
    %v1005 = vld [vmem:[%s1004] sm:$0xff]
    %v1006 = vld [vmem:[%s1004 + $0x8] sm:$0xff]
    %v1007 = vld [vmem:[%s1004 + $0x10] sm:$0xff]
    %v1008 = vld [vmem:[%s1004 + $0x18] sm:$0xff]
    %v1010 = vsel %vm550, %v990, 0
    %v1013 = vsel %vm550, %v991, 0
    %v1016 = vsel %vm550, %v992, 0
    %v1019 = vsel %vm550, %v993, 0
    %v1022 = vsel %vm550, %v994, 0
    %v1025 = vsel %vm550, %v995, 0
    %v1028 = vsel %vm550, %v996, 0
    %v1031 = vsel %vm550, %v997, 0
    %v1034 = vsel %vm550, %v998, 0
    %v1037 = vsel %vm550, %v999, 0
    %v1040 = vsel %vm550, %v1000, 0
    %v1043 = vsel %vm550, %v1001, 0
    %v1046 = vsel %vm550, %v1002, 0
    %v1049 = vsel %vm550, %v1003, 0
    %1051 = vmatprep.subr.mxu0 0.0
    %1052 = vmatpush1.msra.mxu0 %v1005
    %1053 = vmatprep.subr.mxu0 0.0
    %1054 = vmatpush1.msra.mxu0 %v1006
    %1055 = vmatprep.subr.mxu0 0.0
    %1056 = vmatpush1.msra.mxu0 %v1007
    %1057 = vmatprep.subr.mxu0 0.0
    %1058 = vmatpush1.msra.mxu0 %v1008
    %1059 = vmatprep.subr.mxu0 0.0
    %1060 = vmatpush1.msra.mxu0 0.0
    %1061 = vmatprep.subr.mxu0 0.0
    %1062 = vmatpush1.msra.mxu0 0.0
    %1063 = vmatprep.subr.mxu0 0.0
    %1064 = vmatpush1.msra.mxu0 0.0
    %1065 = vmatprep.subr.mxu0 0.0
    %1066 = vmatpush1.msra.mxu0 0.0
    %1067 = vmatprep.subr.mxu0 0.0
    %1068 = vmatpush1.msra.mxu0 0.0
    %1069 = vmatprep.subr.mxu0 0.0
    %1070 = vmatpush1.msra.mxu0 0.0
    %1071 = vmatprep.subr.mxu0 0.0
    %1072 = vmatpush1.msra.mxu0 0.0
    %1073 = vmatprep.subr.mxu0 0.0
    %1074 = vmatpush1.msra.mxu0 0.0
    %1075 = vmatprep.subr.mxu0 0.0
    %1076 = vmatpush1.msra.mxu0 0.0
    %1077 = vmatprep.subr.mxu0 0.0
    %1078 = vmatpush1.msra.mxu0 0.0
    %1079 = vmatprep.subr.mxu0 0.0
    %1080 = vmatpush1.msra.mxu0 0.0
    %1081 = vmatprep.subr.mxu0 0.0
    %1082 = vmatpush1.msra.mxu0 0.0
    %1083 = vmatprep.subr.mxu0 0.0
    %1084 = vmatpush1.msra.mxu0 0.0
    %1085 = vmatprep.subr.mxu0 0.0
    %1086 = vmatpush1.msra.mxu0 0.0
    %1087 = vmatprep.subr.mxu0 0.0
    %1088 = vmatpush1.msra.mxu0 0.0
    %1089 = vmatprep.subr.mxu0 0.0
    %1090 = vmatpush1.msra.mxu0 0.0
    %1091 = vmatprep.subr.mxu0 0.0
    %1092 = vmatpush1.msra.mxu0 0.0
    %1093 = vmatprep.subr.mxu0 0.0
    %1094 = vmatpush1.msra.mxu0 0.0
    %1095 = vmatprep.subr.mxu0 0.0
    %1096 = vmatpush1.msra.mxu0 0.0
    %1097 = vmatprep.subr.mxu0 0.0
    %1098 = vmatpush1.msra.mxu0 0.0
    %1099 = vmatprep.subr.mxu0 0.0
    %1100 = vmatpush1.msra.mxu0 0.0
    %1101 = vmatprep.subr.mxu0 0.0
    %1102 = vmatpush1.msra.mxu0 0.0
    %1103 = vmatprep.subr.mxu0 0.0
    %1104 = vmatpush1.msra.mxu0 0.0
    %1105 = vmatprep.subr.mxu0 0.0
    %1106 = vmatpush1.msra.mxu0 0.0
    %1107 = vmatprep.subr.mxu0 0.0
    %1108 = vmatpush1.msra.mxu0 0.0
    %1109 = vmatprep.subr.mxu0 0.0
    %1110 = vmatpush1.msra.mxu0 0.0
    %1111 = vmatprep.subr.mxu0 0.0
    %1112 = vmatpush1.msra.mxu0 0.0
    %1113 = vmatprep.subr.mxu0 0.0
    %1114 = vmatpush1.msra.mxu0 0.0
    %1115 = vmatprep.mubr.f32.mxu0 0.0
    %1116 = vmatmul.mubr.f32.gmra.mrb[0].mxu0 %v1010
    %v1117 = vpop.f32.mrb[0].mxu0
    %v1118 = vadd.f32 0.0, %v1117
    %v1119 = vpop.f32.mrb[0].mxu0
    %1120 = vmatprep.mubr.f32.mxu0 0.0
    %1121 = vmatmul.mubr.f32.gmra.mrb[0].mxu0 %v1013
    %v1122 = vpop.f32.mrb[0].mxu0
    %v1123 = vadd.f32 0.0, %v1122
    %v1124 = vpop.f32.mrb[0].mxu0
    %1125 = vmatprep.mubr.f32.mxu0 0.0
    %1126 = vmatmul.mubr.f32.gmra.mrb[0].mxu0 %v1016
    %v1127 = vpop.f32.mrb[0].mxu0
    %v1128 = vadd.f32 0.0, %v1127
    %v1129 = vpop.f32.mrb[0].mxu0
    %1130 = vmatprep.mubr.f32.mxu0 0.0
    %1131 = vmatmul.mubr.f32.gmra.mrb[0].mxu0 %v1019
    %v1132 = vpop.f32.mrb[0].mxu0
    %v1133 = vadd.f32 0.0, %v1132
    %v1134 = vpop.f32.mrb[0].mxu0
    %1135 = vmatprep.mubr.f32.mxu0 0.0
    %1136 = vmatmul.mubr.f32.gmra.mrb[0].mxu0 %v1022
    %v1137 = vpop.f32.mrb[0].mxu0
    %v1138 = vadd.f32 0.0, %v1137
    %v1139 = vpop.f32.mrb[0].mxu0
    %1140 = vmatprep.mubr.f32.mxu0 0.0
    %1141 = vmatmul.mubr.f32.gmra.mrb[0].mxu0 %v1025
    %v1142 = vpop.f32.mrb[0].mxu0
    %v1143 = vadd.f32 0.0, %v1142
    %v1144 = vpop.f32.mrb[0].mxu0
    %1145 = vmatprep.mubr.f32.mxu0 0.0
    %1146 = vmatmul.mubr.f32.gmra.mrb[0].mxu0 %v1028
    %v1147 = vpop.f32.mrb[0].mxu0
    %v1148 = vadd.f32 0.0, %v1147
    %v1149 = vpop.f32.mrb[0].mxu0
    %1150 = vmatprep.mubr.f32.mxu0 0.0
    %1151 = vmatmul.mubr.f32.gmra.mrb[0].mxu0 %v1031
    %v1152 = vpop.f32.mrb[0].mxu0
    %v1153 = vadd.f32 0.0, %v1152
    %v1154 = vpop.f32.mrb[0].mxu0
    %1155 = vmatprep.mubr.f32.mxu0 0.0
    %1156 = vmatmul.mubr.f32.gmra.mrb[0].mxu0 %v1034
    %v1157 = vpop.f32.mrb[0].mxu0
    %v1158 = vadd.f32 0.0, %v1157
    %v1159 = vpop.f32.mrb[0].mxu0
    %1160 = vmatprep.mubr.f32.mxu0 0.0
    %1161 = vmatmul.mubr.f32.gmra.mrb[0].mxu0 %v1037
    %v1162 = vpop.f32.mrb[0].mxu0
    %v1163 = vadd.f32 0.0, %v1162
    %v1164 = vpop.f32.mrb[0].mxu0
    %1165 = vmatprep.mubr.f32.mxu0 0.0
    %1166 = vmatmul.mubr.f32.gmra.mrb[0].mxu0 %v1040
    %v1167 = vpop.f32.mrb[0].mxu0
    %v1168 = vadd.f32 0.0, %v1167
    %v1169 = vpop.f32.mrb[0].mxu0
    %1170 = vmatprep.mubr.f32.mxu0 0.0
    %1171 = vmatmul.mubr.f32.gmra.mrb[0].mxu0 %v1043
    %v1172 = vpop.f32.mrb[0].mxu0
    %v1173 = vadd.f32 0.0, %v1172
    %v1174 = vpop.f32.mrb[0].mxu0
    %1175 = vmatprep.mubr.f32.mxu0 0.0
    %1176 = vmatmul.mubr.f32.gmra.mrb[0].mxu0 %v1046
    %v1177 = vpop.f32.mrb[0].mxu0
    %v1178 = vadd.f32 0.0, %v1177
    %v1179 = vpop.f32.mrb[0].mxu0
    %1180 = vmatprep.mubr.f32.mxu0 0.0
    %1181 = vmatmul.mubr.f32.gmra.mrb[0].mxu0 %v1049
    %v1182 = vpop.f32.mrb[0].mxu0
    %v1183 = vadd.f32 0.0, %v1182
    %v1184 = vpop.f32.mrb[0].mxu0
    %1185 = vdwg.mxu0
    %v1186 = vadd.f32 %v837, %v1118
    %v1187 = vadd.f32 %v842, %v1123
    %v1188 = vadd.f32 %v847, %v1128
    %v1189 = vadd.f32 %v852, %v1133
    %v1190 = vadd.f32 %v857, %v1138
    %v1191 = vadd.f32 %v862, %v1143
    %v1192 = vadd.f32 %v867, %v1148
    %v1193 = vadd.f32 %v872, %v1153
    %v1194 = vadd.f32 %v877, %v1158
    %v1195 = vadd.f32 %v882, %v1163
    %v1196 = vadd.f32 %v887, %v1168
    %v1197 = vadd.f32 %v892, %v1173
    %v1198 = vadd.f32 %v897, %v1178
    %v1199 = vadd.f32 %v902, %v1183
    %1200 = vset.pattern.permute.xlu0 3
    %1201 = vperm.xlu0 %1200, %v342
    %v1202 = vpop.permute.xlu0 %1201
    %1204 = vset.pattern.permute.xlu0 3
    %1205 = vperm.xlu0 %1204, %v343
    %v1206 = vpop.permute.xlu0 %1205
    %1208 = vset.pattern.permute.xlu0 3
    %1209 = vperm.xlu0 %1208, %v344
    %v1210 = vpop.permute.xlu0 %1209
    %1212 = vset.pattern.permute.xlu0 3
    %1213 = vperm.xlu0 %1212, %v345
    %v1214 = vpop.permute.xlu0 %1213
    %1216 = vset.pattern.permute.xlu0 3
    %1217 = vperm.xlu0 %1216, %v346
    %v1218 = vpop.permute.xlu0 %1217
    %1220 = vset.pattern.permute.xlu0 3
    %1221 = vperm.xlu0 %1220, %v347
    %v1222 = vpop.permute.xlu0 %1221
    %1224 = vset.pattern.permute.xlu0 3
    %1225 = vperm.xlu0 %1224, %v348
    %v1226 = vpop.permute.xlu0 %1225
    %1228 = vset.pattern.permute.xlu0 3
    %1229 = vperm.xlu0 %1228, %v349
    %v1230 = vpop.permute.xlu0 %1229
    %1232 = vset.pattern.permute.xlu0 3
    %1233 = vperm.xlu0 %1232, %v350
    %v1234 = vpop.permute.xlu0 %1233
    %1236 = vset.pattern.permute.xlu0 3
    %1237 = vperm.xlu0 %1236, %v351
    %v1238 = vpop.permute.xlu0 %1237
    %1240 = vset.pattern.permute.xlu0 3
    %1241 = vperm.xlu0 %1240, %v352
    %v1242 = vpop.permute.xlu0 %1241
    %1244 = vset.pattern.permute.xlu0 3
    %1245 = vperm.xlu0 %1244, %v353
    %v1246 = vpop.permute.xlu0 %1245
    %1248 = vset.pattern.permute.xlu0 3
    %1249 = vperm.xlu0 %1248, %v354
    %v1250 = vpop.permute.xlu0 %1249
    %1252 = vset.pattern.permute.xlu0 3
    %1253 = vperm.xlu0 %1252, %v355
    %v1254 = vpop.permute.xlu0 %1253
    %v1256 = vmul.f32 %v386, %v1202
    %v1257 = vmul.f32 %v385, %v1206
    %v1258 = vmul.f32 %v384, %v1210
    %v1259 = vmul.f32 %v383, %v1214
    %v1260 = vmul.f32 %v382, %v1218
    %v1261 = vmul.f32 %v381, %v1222
    %v1262 = vmul.f32 %v380, %v1226
    %v1263 = vmul.f32 %v379, %v1230
    %v1264 = vmul.f32 %v378, %v1234
    %v1265 = vmul.f32 %v377, %v1238
    %v1266 = vmul.f32 %v376, %v1242
    %v1267 = vmul.f32 %v375, %v1246
    %v1268 = vmul.f32 %v374, %v1250
    %v1269 = vmul.f32 %v373, %v1254
    %s1270 = scalar_lea.vmem [#allocation7], 96
    %v1271 = vld [vmem:[%s1270] sm:$0xff]
    %v1272 = vld [vmem:[%s1270 + $0x8] sm:$0xff]
    %v1273 = vld [vmem:[%s1270 + $0x10] sm:$0xff]
    %v1274 = vld [vmem:[%s1270 + $0x18] sm:$0xff]
    %v1276 = vsel %vm550, %v1256, 0
    %v1279 = vsel %vm550, %v1257, 0
    %v1282 = vsel %vm550, %v1258, 0
    %v1285 = vsel %vm550, %v1259, 0
    %v1288 = vsel %vm550, %v1260, 0
    %v1291 = vsel %vm550, %v1261, 0
    %v1294 = vsel %vm550, %v1262, 0
    %v1297 = vsel %vm550, %v1263, 0
    %v1300 = vsel %vm550, %v1264, 0
    %v1303 = vsel %vm550, %v1265, 0
    %v1306 = vsel %vm550, %v1266, 0
    %v1309 = vsel %vm550, %v1267, 0
    %v1312 = vsel %vm550, %v1268, 0
    %v1315 = vsel %vm550, %v1269, 0
    %1317 = vmatprep.subr.mxu0 0.0
    %1318 = vmatpush1.msra.mxu0 %v1271
    %1319 = vmatprep.subr.mxu0 0.0
    %1320 = vmatpush1.msra.mxu0 %v1272
    %1321 = vmatprep.subr.mxu0 0.0
    %1322 = vmatpush1.msra.mxu0 %v1273
    %1323 = vmatprep.subr.mxu0 0.0
    %1324 = vmatpush1.msra.mxu0 %v1274
    %1325 = vmatprep.subr.mxu0 0.0
    %1326 = vmatpush1.msra.mxu0 0.0
    %1327 = vmatprep.subr.mxu0 0.0
    %1328 = vmatpush1.msra.mxu0 0.0
    %1329 = vmatprep.subr.mxu0 0.0
    %1330 = vmatpush1.msra.mxu0 0.0
    %1331 = vmatprep.subr.mxu0 0.0
    %1332 = vmatpush1.msra.mxu0 0.0
    %1333 = vmatprep.subr.mxu0 0.0
    %1334 = vmatpush1.msra.mxu0 0.0
    %1335 = vmatprep.subr.mxu0 0.0
    %1336 = vmatpush1.msra.mxu0 0.0
    %1337 = vmatprep.subr.mxu0 0.0
    %1338 = vmatpush1.msra.mxu0 0.0
    %1339 = vmatprep.subr.mxu0 0.0
    %1340 = vmatpush1.msra.mxu0 0.0
    %1341 = vmatprep.subr.mxu0 0.0
    %1342 = vmatpush1.msra.mxu0 0.0
    %1343 = vmatprep.subr.mxu0 0.0
    %1344 = vmatpush1.msra.mxu0 0.0
    %1345 = vmatprep.subr.mxu0 0.0
    %1346 = vmatpush1.msra.mxu0 0.0
    %1347 = vmatprep.subr.mxu0 0.0
    %1348 = vmatpush1.msra.mxu0 0.0
    %1349 = vmatprep.subr.mxu0 0.0
    %1350 = vmatpush1.msra.mxu0 0.0
    %1351 = vmatprep.subr.mxu0 0.0
    %1352 = vmatpush1.msra.mxu0 0.0
    %1353 = vmatprep.subr.mxu0 0.0
    %1354 = vmatpush1.msra.mxu0 0.0
    %1355 = vmatprep.subr.mxu0 0.0
    %1356 = vmatpush1.msra.mxu0 0.0
    %1357 = vmatprep.subr.mxu0 0.0
    %1358 = vmatpush1.msra.mxu0 0.0
    %1359 = vmatprep.subr.mxu0 0.0
    %1360 = vmatpush1.msra.mxu0 0.0
    %1361 = vmatprep.subr.mxu0 0.0
    %1362 = vmatpush1.msra.mxu0 0.0
    %1363 = vmatprep.subr.mxu0 0.0
    %1364 = vmatpush1.msra.mxu0 0.0
    %1365 = vmatprep.subr.mxu0 0.0
    %1366 = vmatpush1.msra.mxu0 0.0
    %1367 = vmatprep.subr.mxu0 0.0
    %1368 = vmatpush1.msra.mxu0 0.0
    %1369 = vmatprep.subr.mxu0 0.0
    %1370 = vmatpush1.msra.mxu0 0.0
    %1371 = vmatprep.subr.mxu0 0.0
    %1372 = vmatpush1.msra.mxu0 0.0
    %1373 = vmatprep.subr.mxu0 0.0
    %1374 = vmatpush1.msra.mxu0 0.0
    %1375 = vmatprep.subr.mxu0 0.0
    %1376 = vmatpush1.msra.mxu0 0.0
    %1377 = vmatprep.subr.mxu0 0.0
    %1378 = vmatpush1.msra.mxu0 0.0
    %1379 = vmatprep.subr.mxu0 0.0
    %1380 = vmatpush1.msra.mxu0 0.0
    %1381 = vmatprep.mubr.f32.mxu0 0.0
    %1382 = vmatmul.mubr.f32.gmra.mrb[0].mxu0 %v1276
    %v1383 = vpop.f32.mrb[0].mxu0
    %v1384 = vadd.f32 0.0, %v1383
    %v1385 = vpop.f32.mrb[0].mxu0
    %1386 = vmatprep.mubr.f32.mxu0 0.0
    %1387 = vmatmul.mubr.f32.gmra.mrb[0].mxu0 %v1279
    %v1388 = vpop.f32.mrb[0].mxu0
    %v1389 = vadd.f32 0.0, %v1388
    %v1390 = vpop.f32.mrb[0].mxu0
    %1391 = vmatprep.mubr.f32.mxu0 0.0
    %1392 = vmatmul.mubr.f32.gmra.mrb[0].mxu0 %v1282
    %v1393 = vpop.f32.mrb[0].mxu0
    %v1394 = vadd.f32 0.0, %v1393
    %v1395 = vpop.f32.mrb[0].mxu0
    %1396 = vmatprep.mubr.f32.mxu0 0.0
    %1397 = vmatmul.mubr.f32.gmra.mrb[0].mxu0 %v1285
    %v1398 = vpop.f32.mrb[0].mxu0
    %v1399 = vadd.f32 0.0, %v1398
    %v1400 = vpop.f32.mrb[0].mxu0
    %1401 = vmatprep.mubr.f32.mxu0 0.0
    %1402 = vmatmul.mubr.f32.gmra.mrb[0].mxu0 %v1288
    %v1403 = vpop.f32.mrb[0].mxu0
    %v1404 = vadd.f32 0.0, %v1403
    %v1405 = vpop.f32.mrb[0].mxu0
    %1406 = vmatprep.mubr.f32.mxu0 0.0
    %1407 = vmatmul.mubr.f32.gmra.mrb[0].mxu0 %v1291
    %v1408 = vpop.f32.mrb[0].mxu0
    %v1409 = vadd.f32 0.0, %v1408
    %v1410 = vpop.f32.mrb[0].mxu0
    %1411 = vmatprep.mubr.f32.mxu0 0.0
    %1412 = vmatmul.mubr.f32.gmra.mrb[0].mxu0 %v1294
    %v1413 = vpop.f32.mrb[0].mxu0
    %v1414 = vadd.f32 0.0, %v1413
    %v1415 = vpop.f32.mrb[0].mxu0
    %1416 = vmatprep.mubr.f32.mxu0 0.0
    %1417 = vmatmul.mubr.f32.gmra.mrb[0].mxu0 %v1297
    %v1418 = vpop.f32.mrb[0].mxu0
    %v1419 = vadd.f32 0.0, %v1418
    %v1420 = vpop.f32.mrb[0].mxu0
    %1421 = vmatprep.mubr.f32.mxu0 0.0
    %1422 = vmatmul.mubr.f32.gmra.mrb[0].mxu0 %v1300
    %v1423 = vpop.f32.mrb[0].mxu0
    %v1424 = vadd.f32 0.0, %v1423
    %v1425 = vpop.f32.mrb[0].mxu0
    %1426 = vmatprep.mubr.f32.mxu0 0.0
    %1427 = vmatmul.mubr.f32.gmra.mrb[0].mxu0 %v1303
    %v1428 = vpop.f32.mrb[0].mxu0
    %v1429 = vadd.f32 0.0, %v1428
    %v1430 = vpop.f32.mrb[0].mxu0
    %1431 = vmatprep.mubr.f32.mxu0 0.0
    %1432 = vmatmul.mubr.f32.gmra.mrb[0].mxu0 %v1306
    %v1433 = vpop.f32.mrb[0].mxu0
    %v1434 = vadd.f32 0.0, %v1433
    %v1435 = vpop.f32.mrb[0].mxu0
    %1436 = vmatprep.mubr.f32.mxu0 0.0
    %1437 = vmatmul.mubr.f32.gmra.mrb[0].mxu0 %v1309
    %v1438 = vpop.f32.mrb[0].mxu0
    %v1439 = vadd.f32 0.0, %v1438
    %v1440 = vpop.f32.mrb[0].mxu0
    %1441 = vmatprep.mubr.f32.mxu0 0.0
    %1442 = vmatmul.mubr.f32.gmra.mrb[0].mxu0 %v1312
    %v1443 = vpop.f32.mrb[0].mxu0
    %v1444 = vadd.f32 0.0, %v1443
    %v1445 = vpop.f32.mrb[0].mxu0
    %1446 = vmatprep.mubr.f32.mxu0 0.0
    %1447 = vmatmul.mubr.f32.gmra.mrb[0].mxu0 %v1315
    %v1448 = vpop.f32.mrb[0].mxu0
    %v1449 = vadd.f32 0.0, %v1448
    %v1450 = vpop.f32.mrb[0].mxu0
    %1451 = vdwg.mxu0
    %v1452 = vadd.f32 %v1186, %v1384
    %v1453 = vadd.f32 %v1187, %v1389
    %v1454 = vadd.f32 %v1188, %v1394
    %v1455 = vadd.f32 %v1189, %v1399
    %v1456 = vadd.f32 %v1190, %v1404
    %v1457 = vadd.f32 %v1191, %v1409
    %v1458 = vadd.f32 %v1192, %v1414
    %v1459 = vadd.f32 %v1193, %v1419
    %v1460 = vadd.f32 %v1194, %v1424
    %v1461 = vadd.f32 %v1195, %v1429
    %v1462 = vadd.f32 %v1196, %v1434
    %v1463 = vadd.f32 %v1197, %v1439
    %v1464 = vadd.f32 %v1198, %v1444
    %v1465 = vadd.f32 %v1199, %v1449
    %s1466 = scalar_lea.vmem [#allocation7], 128
    %v1467 = vld [vmem:[%s1466] sm:$0xff]
    %v1468 = vld [vmem:[%s1466 + $0x8] sm:$0xff]
    %v1469 = vld [vmem:[%s1466 + $0x10] sm:$0xff]
    %v1470 = vld [vmem:[%s1466 + $0x18] sm:$0xff]
    %v1472 = vsel %vm550, %v328, 0
    %v1475 = vsel %vm550, %v329, 0
    %v1478 = vsel %vm550, %v330, 0
    %v1481 = vsel %vm550, %v331, 0
    %v1484 = vsel %vm550, %v332, 0
    %v1487 = vsel %vm550, %v333, 0
    %v1490 = vsel %vm550, %v334, 0
    %v1493 = vsel %vm550, %v335, 0
    %v1496 = vsel %vm550, %v336, 0
    %v1499 = vsel %vm550, %v337, 0
    %v1502 = vsel %vm550, %v338, 0
    %v1505 = vsel %vm550, %v339, 0
    %v1508 = vsel %vm550, %v340, 0
    %v1511 = vsel %vm550, %v341, 0
    %1513 = vmatprep.subr.mxu0 0.0
    %1514 = vmatpush1.msra.mxu0 %v1467
    %1515 = vmatprep.subr.mxu0 0.0
    %1516 = vmatpush1.msra.mxu0 %v1468
    %1517 = vmatprep.subr.mxu0 0.0
    %1518 = vmatpush1.msra.mxu0 %v1469
    %1519 = vmatprep.subr.mxu0 0.0
    %1520 = vmatpush1.msra.mxu0 %v1470
    %1521 = vmatprep.subr.mxu0 0.0
    %1522 = vmatpush1.msra.mxu0 0.0
    %1523 = vmatprep.subr.mxu0 0.0
    %1524 = vmatpush1.msra.mxu0 0.0
    %1525 = vmatprep.subr.mxu0 0.0
    %1526 = vmatpush1.msra.mxu0 0.0
    %1527 = vmatprep.subr.mxu0 0.0
    %1528 = vmatpush1.msra.mxu0 0.0
    %1529 = vmatprep.subr.mxu0 0.0
    %1530 = vmatpush1.msra.mxu0 0.0
    %1531 = vmatprep.subr.mxu0 0.0
    %1532 = vmatpush1.msra.mxu0 0.0
    %1533 = vmatprep.subr.mxu0 0.0
    %1534 = vmatpush1.msra.mxu0 0.0
    %1535 = vmatprep.subr.mxu0 0.0
    %1536 = vmatpush1.msra.mxu0 0.0
    %1537 = vmatprep.subr.mxu0 0.0
    %1538 = vmatpush1.msra.mxu0 0.0
    %1539 = vmatprep.subr.mxu0 0.0
    %1540 = vmatpush1.msra.mxu0 0.0
    %1541 = vmatprep.subr.mxu0 0.0
    %1542 = vmatpush1.msra.mxu0 0.0
    %1543 = vmatprep.subr.mxu0 0.0
    %1544 = vmatpush1.msra.mxu0 0.0
    %1545 = vmatprep.subr.mxu0 0.0
    %1546 = vmatpush1.msra.mxu0 0.0
    %1547 = vmatprep.subr.mxu0 0.0
    %1548 = vmatpush1.msra.mxu0 0.0
    %1549 = vmatprep.subr.mxu0 0.0
    %1550 = vmatpush1.msra.mxu0 0.0
    %1551 = vmatprep.subr.mxu0 0.0
    %1552 = vmatpush1.msra.mxu0 0.0
    %1553 = vmatprep.subr.mxu0 0.0
    %1554 = vmatpush1.msra.mxu0 0.0
    %1555 = vmatprep.subr.mxu0 0.0
    %1556 = vmatpush1.msra.mxu0 0.0
    %1557 = vmatprep.subr.mxu0 0.0
    %1558 = vmatpush1.msra.mxu0 0.0
    %1559 = vmatprep.subr.mxu0 0.0
    %1560 = vmatpush1.msra.mxu0 0.0
    %1561 = vmatprep.subr.mxu0 0.0
    %1562 = vmatpush1.msra.mxu0 0.0
    %1563 = vmatprep.subr.mxu0 0.0
    %1564 = vmatpush1.msra.mxu0 0.0
    %1565 = vmatprep.subr.mxu0 0.0
    %1566 = vmatpush1.msra.mxu0 0.0
    %1567 = vmatprep.subr.mxu0 0.0
    %1568 = vmatpush1.msra.mxu0 0.0
    %1569 = vmatprep.subr.mxu0 0.0
    %1570 = vmatpush1.msra.mxu0 0.0
    %1571 = vmatprep.subr.mxu0 0.0
    %1572 = vmatpush1.msra.mxu0 0.0
    %1573 = vmatprep.subr.mxu0 0.0
    %1574 = vmatpush1.msra.mxu0 0.0
    %1575 = vmatprep.subr.mxu0 0.0
    %1576 = vmatpush1.msra.mxu0 0.0
    %1577 = vmatprep.mubr.f32.mxu0 0.0
    %1578 = vmatmul.mubr.f32.gmra.mrb[0].mxu0 %v1472
    %v1579 = vpop.f32.mrb[0].mxu0
    %v1580 = vadd.f32 0.0, %v1579
    %v1581 = vpop.f32.mrb[0].mxu0
    %1582 = vmatprep.mubr.f32.mxu0 0.0
    %1583 = vmatmul.mubr.f32.gmra.mrb[0].mxu0 %v1475
    %v1584 = vpop.f32.mrb[0].mxu0
    %v1585 = vadd.f32 0.0, %v1584
    %v1586 = vpop.f32.mrb[0].mxu0
    %1587 = vmatprep.mubr.f32.mxu0 0.0
    %1588 = vmatmul.mubr.f32.gmra.mrb[0].mxu0 %v1478
    %v1589 = vpop.f32.mrb[0].mxu0
    %v1590 = vadd.f32 0.0, %v1589
    %v1591 = vpop.f32.mrb[0].mxu0
    %1592 = vmatprep.mubr.f32.mxu0 0.0
    %1593 = vmatmul.mubr.f32.gmra.mrb[0].mxu0 %v1481
    %v1594 = vpop.f32.mrb[0].mxu0
    %v1595 = vadd.f32 0.0, %v1594
    %v1596 = vpop.f32.mrb[0].mxu0
    %1597 = vmatprep.mubr.f32.mxu0 0.0
    %1598 = vmatmul.mubr.f32.gmra.mrb[0].mxu0 %v1484
    %v1599 = vpop.f32.mrb[0].mxu0
    %v1600 = vadd.f32 0.0, %v1599
    %v1601 = vpop.f32.mrb[0].mxu0
    %1602 = vmatprep.mubr.f32.mxu0 0.0
    %1603 = vmatmul.mubr.f32.gmra.mrb[0].mxu0 %v1487
    %v1604 = vpop.f32.mrb[0].mxu0
    %v1605 = vadd.f32 0.0, %v1604
    %v1606 = vpop.f32.mrb[0].mxu0
    %1607 = vmatprep.mubr.f32.mxu0 0.0
    %1608 = vmatmul.mubr.f32.gmra.mrb[0].mxu0 %v1490
    %v1609 = vpop.f32.mrb[0].mxu0
    %v1610 = vadd.f32 0.0, %v1609
    %v1611 = vpop.f32.mrb[0].mxu0
    %1612 = vmatprep.mubr.f32.mxu0 0.0
    %1613 = vmatmul.mubr.f32.gmra.mrb[0].mxu0 %v1493
    %v1614 = vpop.f32.mrb[0].mxu0
    %v1615 = vadd.f32 0.0, %v1614
    %v1616 = vpop.f32.mrb[0].mxu0
    %1617 = vmatprep.mubr.f32.mxu0 0.0
    %1618 = vmatmul.mubr.f32.gmra.mrb[0].mxu0 %v1496
    %v1619 = vpop.f32.mrb[0].mxu0
    %v1620 = vadd.f32 0.0, %v1619
    %v1621 = vpop.f32.mrb[0].mxu0
    %1622 = vmatprep.mubr.f32.mxu0 0.0
    %1623 = vmatmul.mubr.f32.gmra.mrb[0].mxu0 %v1499
    %v1624 = vpop.f32.mrb[0].mxu0
    %v1625 = vadd.f32 0.0, %v1624
    %v1626 = vpop.f32.mrb[0].mxu0
    %1627 = vmatprep.mubr.f32.mxu0 0.0
    %1628 = vmatmul.mubr.f32.gmra.mrb[0].mxu0 %v1502
    %v1629 = vpop.f32.mrb[0].mxu0
    %v1630 = vadd.f32 0.0, %v1629
    %v1631 = vpop.f32.mrb[0].mxu0
    %1632 = vmatprep.mubr.f32.mxu0 0.0
    %1633 = vmatmul.mubr.f32.gmra.mrb[0].mxu0 %v1505
    %v1634 = vpop.f32.mrb[0].mxu0
    %v1635 = vadd.f32 0.0, %v1634
    %v1636 = vpop.f32.mrb[0].mxu0
    %1637 = vmatprep.mubr.f32.mxu0 0.0
    %1638 = vmatmul.mubr.f32.gmra.mrb[0].mxu0 %v1508
    %v1639 = vpop.f32.mrb[0].mxu0
    %v1640 = vadd.f32 0.0, %v1639
    %v1641 = vpop.f32.mrb[0].mxu0
    %1642 = vmatprep.mubr.f32.mxu0 0.0
    %1643 = vmatmul.mubr.f32.gmra.mrb[0].mxu0 %v1511
    %v1644 = vpop.f32.mrb[0].mxu0
    %v1645 = vadd.f32 0.0, %v1644
    %v1646 = vpop.f32.mrb[0].mxu0
    %1647 = vdwg.mxu0
    %v1648 = vadd.f32 %v1452, %v1580
    %v1649 = vadd.f32 %v1453, %v1585
    %v1650 = vadd.f32 %v1454, %v1590
    %v1651 = vadd.f32 %v1455, %v1595
    %v1652 = vadd.f32 %v1456, %v1600
    %v1653 = vadd.f32 %v1457, %v1605
    %v1654 = vadd.f32 %v1458, %v1610
    %v1655 = vadd.f32 %v1459, %v1615
    %v1656 = vadd.f32 %v1460, %v1620
    %v1657 = vadd.f32 %v1461, %v1625
    %v1658 = vadd.f32 %v1462, %v1630
    %v1659 = vadd.f32 %v1463, %v1635
    %v1660 = vadd.f32 %v1464, %v1640
    %v1661 = vadd.f32 %v1465, %v1645
    %1662 = vset.pattern.permute.xlu0 5
    %1663 = vperm.xlu0 %1662, %v342
    %v1664 = vpop.permute.xlu0 %1663
    %1666 = vset.pattern.permute.xlu0 5
    %1667 = vperm.xlu0 %1666, %v343
    %v1668 = vpop.permute.xlu0 %1667
    %1670 = vset.pattern.permute.xlu0 5
    %1671 = vperm.xlu0 %1670, %v344
    %v1672 = vpop.permute.xlu0 %1671
    %1674 = vset.pattern.permute.xlu0 5
    %1675 = vperm.xlu0 %1674, %v345
    %v1676 = vpop.permute.xlu0 %1675
    %1678 = vset.pattern.permute.xlu0 5
    %1679 = vperm.xlu0 %1678, %v346
    %v1680 = vpop.permute.xlu0 %1679
    %1682 = vset.pattern.permute.xlu0 5
    %1683 = vperm.xlu0 %1682, %v347
    %v1684 = vpop.permute.xlu0 %1683
    %1686 = vset.pattern.permute.xlu0 5
    %1687 = vperm.xlu0 %1686, %v348
    %v1688 = vpop.permute.xlu0 %1687
    %1690 = vset.pattern.permute.xlu0 5
    %1691 = vperm.xlu0 %1690, %v349
    %v1692 = vpop.permute.xlu0 %1691
    %1694 = vset.pattern.permute.xlu0 5
    %1695 = vperm.xlu0 %1694, %v350
    %v1696 = vpop.permute.xlu0 %1695
    %1698 = vset.pattern.permute.xlu0 5
    %1699 = vperm.xlu0 %1698, %v351
    %v1700 = vpop.permute.xlu0 %1699
    %1702 = vset.pattern.permute.xlu0 5
    %1703 = vperm.xlu0 %1702, %v352
    %v1704 = vpop.permute.xlu0 %1703
    %1706 = vset.pattern.permute.xlu0 5
    %1707 = vperm.xlu0 %1706, %v353
    %v1708 = vpop.permute.xlu0 %1707
    %1710 = vset.pattern.permute.xlu0 5
    %1711 = vperm.xlu0 %1710, %v354
    %v1712 = vpop.permute.xlu0 %1711
    %1714 = vset.pattern.permute.xlu0 5
    %1715 = vperm.xlu0 %1714, %v355
    %v1716 = vpop.permute.xlu0 %1715
    %v1718 = vmul.f32 %v932, %v1664
    %v1719 = vmul.f32 %v931, %v1668
    %v1720 = vmul.f32 %v930, %v1672
    %v1721 = vmul.f32 %v929, %v1676
    %v1722 = vmul.f32 %v928, %v1680
    %v1723 = vmul.f32 %v927, %v1684
    %v1724 = vmul.f32 %v926, %v1688
    %v1725 = vmul.f32 %v925, %v1692
    %v1726 = vmul.f32 %v924, %v1696
    %v1727 = vmul.f32 %v923, %v1700
    %v1728 = vmul.f32 %v922, %v1704
    %v1729 = vmul.f32 %v921, %v1708
    %v1730 = vmul.f32 %v920, %v1712
    %v1731 = vmul.f32 %v933, %v1716
    %s1732 = scalar_lea.vmem [#allocation7], 160
    %v1733 = vld [vmem:[%s1732] sm:$0xff]
    %v1734 = vld [vmem:[%s1732 + $0x8] sm:$0xff]
    %v1735 = vld [vmem:[%s1732 + $0x10] sm:$0xff]
    %v1736 = vld [vmem:[%s1732 + $0x18] sm:$0xff]
    %v1738 = vsel %vm550, %v1718, 0
    %v1741 = vsel %vm550, %v1719, 0
    %v1744 = vsel %vm550, %v1720, 0
    %v1747 = vsel %vm550, %v1721, 0
    %v1750 = vsel %vm550, %v1722, 0
    %v1753 = vsel %vm550, %v1723, 0
    %v1756 = vsel %vm550, %v1724, 0
    %v1759 = vsel %vm550, %v1725, 0
    %v1762 = vsel %vm550, %v1726, 0
    %v1765 = vsel %vm550, %v1727, 0
    %v1768 = vsel %vm550, %v1728, 0
    %v1771 = vsel %vm550, %v1729, 0
    %v1774 = vsel %vm550, %v1730, 0
    %v1777 = vsel %vm550, %v1731, 0
    %1779 = vmatprep.subr.mxu0 0.0
    %1780 = vmatpush1.msra.mxu0 %v1733
    %1781 = vmatprep.subr.mxu0 0.0
    %1782 = vmatpush1.msra.mxu0 %v1734
    %1783 = vmatprep.subr.mxu0 0.0
    %1784 = vmatpush1.msra.mxu0 %v1735
    %1785 = vmatprep.subr.mxu0 0.0
    %1786 = vmatpush1.msra.mxu0 %v1736
    %1787 = vmatprep.subr.mxu0 0.0
    %1788 = vmatpush1.msra.mxu0 0.0
    %1789 = vmatprep.subr.mxu0 0.0
    %1790 = vmatpush1.msra.mxu0 0.0
    %1791 = vmatprep.subr.mxu0 0.0
    %1792 = vmatpush1.msra.mxu0 0.0
    %1793 = vmatprep.subr.mxu0 0.0
    %1794 = vmatpush1.msra.mxu0 0.0
    %1795 = vmatprep.subr.mxu0 0.0
    %1796 = vmatpush1.msra.mxu0 0.0
    %1797 = vmatprep.subr.mxu0 0.0
    %1798 = vmatpush1.msra.mxu0 0.0
    %1799 = vmatprep.subr.mxu0 0.0
    %1800 = vmatpush1.msra.mxu0 0.0
    %1801 = vmatprep.subr.mxu0 0.0
    %1802 = vmatpush1.msra.mxu0 0.0
    %1803 = vmatprep.subr.mxu0 0.0
    %1804 = vmatpush1.msra.mxu0 0.0
    %1805 = vmatprep.subr.mxu0 0.0
    %1806 = vmatpush1.msra.mxu0 0.0
    %1807 = vmatprep.subr.mxu0 0.0
    %1808 = vmatpush1.msra.mxu0 0.0
    %1809 = vmatprep.subr.mxu0 0.0
    %1810 = vmatpush1.msra.mxu0 0.0
    %1811 = vmatprep.subr.mxu0 0.0
    %1812 = vmatpush1.msra.mxu0 0.0
    %1813 = vmatprep.subr.mxu0 0.0
    %1814 = vmatpush1.msra.mxu0 0.0
    %1815 = vmatprep.subr.mxu0 0.0
    %1816 = vmatpush1.msra.mxu0 0.0
    %1817 = vmatprep.subr.mxu0 0.0
    %1818 = vmatpush1.msra.mxu0 0.0
    %1819 = vmatprep.subr.mxu0 0.0
    %1820 = vmatpush1.msra.mxu0 0.0
    %1821 = vmatprep.subr.mxu0 0.0
    %1822 = vmatpush1.msra.mxu0 0.0
    %1823 = vmatprep.subr.mxu0 0.0
    %1824 = vmatpush1.msra.mxu0 0.0
    %1825 = vmatprep.subr.mxu0 0.0
    %1826 = vmatpush1.msra.mxu0 0.0
    %1827 = vmatprep.subr.mxu0 0.0
    %1828 = vmatpush1.msra.mxu0 0.0
    %1829 = vmatprep.subr.mxu0 0.0
    %1830 = vmatpush1.msra.mxu0 0.0
    %1831 = vmatprep.subr.mxu0 0.0
    %1832 = vmatpush1.msra.mxu0 0.0
    %1833 = vmatprep.subr.mxu0 0.0
    %1834 = vmatpush1.msra.mxu0 0.0
    %1835 = vmatprep.subr.mxu0 0.0
    %1836 = vmatpush1.msra.mxu0 0.0
    %1837 = vmatprep.subr.mxu0 0.0
    %1838 = vmatpush1.msra.mxu0 0.0
    %1839 = vmatprep.subr.mxu0 0.0
    %1840 = vmatpush1.msra.mxu0 0.0
    %1841 = vmatprep.subr.mxu0 0.0
    %1842 = vmatpush1.msra.mxu0 0.0
    %1843 = vmatprep.mubr.f32.mxu0 0.0
    %1844 = vmatmul.mubr.f32.gmra.mrb[0].mxu0 %v1738
    %v1845 = vpop.f32.mrb[0].mxu0
    %v1846 = vadd.f32 0.0, %v1845
    %v1847 = vpop.f32.mrb[0].mxu0
    %1848 = vmatprep.mubr.f32.mxu0 0.0
    %1849 = vmatmul.mubr.f32.gmra.mrb[0].mxu0 %v1741
    %v1850 = vpop.f32.mrb[0].mxu0
    %v1851 = vadd.f32 0.0, %v1850
    %v1852 = vpop.f32.mrb[0].mxu0
    %1853 = vmatprep.mubr.f32.mxu0 0.0
    %1854 = vmatmul.mubr.f32.gmra.mrb[0].mxu0 %v1744
    %v1855 = vpop.f32.mrb[0].mxu0
    %v1856 = vadd.f32 0.0, %v1855
    %v1857 = vpop.f32.mrb[0].mxu0
    %1858 = vmatprep.mubr.f32.mxu0 0.0
    %1859 = vmatmul.mubr.f32.gmra.mrb[0].mxu0 %v1747
    %v1860 = vpop.f32.mrb[0].mxu0
    %v1861 = vadd.f32 0.0, %v1860
    %v1862 = vpop.f32.mrb[0].mxu0
    %1863 = vmatprep.mubr.f32.mxu0 0.0
    %1864 = vmatmul.mubr.f32.gmra.mrb[0].mxu0 %v1750
    %v1865 = vpop.f32.mrb[0].mxu0
    %v1866 = vadd.f32 0.0, %v1865
    %v1867 = vpop.f32.mrb[0].mxu0
    %1868 = vmatprep.mubr.f32.mxu0 0.0
    %1869 = vmatmul.mubr.f32.gmra.mrb[0].mxu0 %v1753
    %v1870 = vpop.f32.mrb[0].mxu0
    %v1871 = vadd.f32 0.0, %v1870
    %v1872 = vpop.f32.mrb[0].mxu0
    %1873 = vmatprep.mubr.f32.mxu0 0.0
    %1874 = vmatmul.mubr.f32.gmra.mrb[0].mxu0 %v1756
    %v1875 = vpop.f32.mrb[0].mxu0
    %v1876 = vadd.f32 0.0, %v1875
    %v1877 = vpop.f32.mrb[0].mxu0
    %1878 = vmatprep.mubr.f32.mxu0 0.0
    %1879 = vmatmul.mubr.f32.gmra.mrb[0].mxu0 %v1759
    %v1880 = vpop.f32.mrb[0].mxu0
    %v1881 = vadd.f32 0.0, %v1880
    %v1882 = vpop.f32.mrb[0].mxu0
    %1883 = vmatprep.mubr.f32.mxu0 0.0
    %1884 = vmatmul.mubr.f32.gmra.mrb[0].mxu0 %v1762
    %v1885 = vpop.f32.mrb[0].mxu0
    %v1886 = vadd.f32 0.0, %v1885
    %v1887 = vpop.f32.mrb[0].mxu0
    %1888 = vmatprep.mubr.f32.mxu0 0.0
    %1889 = vmatmul.mubr.f32.gmra.mrb[0].mxu0 %v1765
    %v1890 = vpop.f32.mrb[0].mxu0
    %v1891 = vadd.f32 0.0, %v1890
    %v1892 = vpop.f32.mrb[0].mxu0
    %1893 = vmatprep.mubr.f32.mxu0 0.0
    %1894 = vmatmul.mubr.f32.gmra.mrb[0].mxu0 %v1768
    %v1895 = vpop.f32.mrb[0].mxu0
    %v1896 = vadd.f32 0.0, %v1895
    %v1897 = vpop.f32.mrb[0].mxu0
    %1898 = vmatprep.mubr.f32.mxu0 0.0
    %1899 = vmatmul.mubr.f32.gmra.mrb[0].mxu0 %v1771
    %v1900 = vpop.f32.mrb[0].mxu0
    %v1901 = vadd.f32 0.0, %v1900
    %v1902 = vpop.f32.mrb[0].mxu0
    %1903 = vmatprep.mubr.f32.mxu0 0.0
    %1904 = vmatmul.mubr.f32.gmra.mrb[0].mxu0 %v1774
    %v1905 = vpop.f32.mrb[0].mxu0
    %v1906 = vadd.f32 0.0, %v1905
    %v1907 = vpop.f32.mrb[0].mxu0
    %1908 = vmatprep.mubr.f32.mxu0 0.0
    %1909 = vmatmul.mubr.f32.gmra.mrb[0].mxu0 %v1777
    %v1910 = vpop.f32.mrb[0].mxu0
    %v1911 = vadd.f32 0.0, %v1910
    %v1912 = vpop.f32.mrb[0].mxu0
    %1913 = vdwg.mxu0
    %v1914 = vadd.f32 %v1648, %v1846
    %v1915 = vadd.f32 %v1649, %v1851
    %v1916 = vadd.f32 %v1650, %v1856
    %v1917 = vadd.f32 %v1651, %v1861
    %v1918 = vadd.f32 %v1652, %v1866
    %v1919 = vadd.f32 %v1653, %v1871
    %v1920 = vadd.f32 %v1654, %v1876
    %v1921 = vadd.f32 %v1655, %v1881
    %v1922 = vadd.f32 %v1656, %v1886
    %v1923 = vadd.f32 %v1657, %v1891
    %v1924 = vadd.f32 %v1658, %v1896
    %v1925 = vadd.f32 %v1659, %v1901
    %v1926 = vadd.f32 %v1660, %v1906
    %v1927 = vadd.f32 %v1661, %v1911
    %1928 = vset.pattern.permute.xlu0 6
    %1929 = vperm.xlu0 %1928, %v342
    %v1930 = vpop.permute.xlu0 %1929
    %1932 = vset.pattern.permute.xlu0 6
    %1933 = vperm.xlu0 %1932, %v343
    %v1934 = vpop.permute.xlu0 %1933
    %1936 = vset.pattern.permute.xlu0 6
    %1937 = vperm.xlu0 %1936, %v344
    %v1938 = vpop.permute.xlu0 %1937
    %1940 = vset.pattern.permute.xlu0 6
    %1941 = vperm.xlu0 %1940, %v345
    %v1942 = vpop.permute.xlu0 %1941
    %1944 = vset.pattern.permute.xlu0 6
    %1945 = vperm.xlu0 %1944, %v346
    %v1946 = vpop.permute.xlu0 %1945
    %1948 = vset.pattern.permute.xlu0 6
    %1949 = vperm.xlu0 %1948, %v347
    %v1950 = vpop.permute.xlu0 %1949
    %1952 = vset.pattern.permute.xlu0 6
    %1953 = vperm.xlu0 %1952, %v348
    %v1954 = vpop.permute.xlu0 %1953
    %1956 = vset.pattern.permute.xlu0 6
    %1957 = vperm.xlu0 %1956, %v349
    %v1958 = vpop.permute.xlu0 %1957
    %1960 = vset.pattern.permute.xlu0 6
    %1961 = vperm.xlu0 %1960, %v350
    %v1962 = vpop.permute.xlu0 %1961
    %1964 = vset.pattern.permute.xlu0 6
    %1965 = vperm.xlu0 %1964, %v351
    %v1966 = vpop.permute.xlu0 %1965
    %1968 = vset.pattern.permute.xlu0 6
    %1969 = vperm.xlu0 %1968, %v352
    %v1970 = vpop.permute.xlu0 %1969
    %1972 = vset.pattern.permute.xlu0 6
    %1973 = vperm.xlu0 %1972, %v353
    %v1974 = vpop.permute.xlu0 %1973
    %1976 = vset.pattern.permute.xlu0 6
    %1977 = vperm.xlu0 %1976, %v354
    %v1978 = vpop.permute.xlu0 %1977
    %1980 = vset.pattern.permute.xlu0 6
    %1981 = vperm.xlu0 %1980, %v355
    %v1982 = vpop.permute.xlu0 %1981
    %v1984 = vmul.f32 %v384, %v1930
    %v1985 = vmul.f32 %v383, %v1934
    %v1986 = vmul.f32 %v382, %v1938
    %v1987 = vmul.f32 %v381, %v1942
    %v1988 = vmul.f32 %v380, %v1946
    %v1989 = vmul.f32 %v379, %v1950
    %v1990 = vmul.f32 %v378, %v1954
    %v1991 = vmul.f32 %v377, %v1958
    %v1992 = vmul.f32 %v376, %v1962
    %v1993 = vmul.f32 %v375, %v1966
    %v1994 = vmul.f32 %v374, %v1970
    %v1995 = vmul.f32 %v373, %v1974
    %v1996 = vmul.f32 %v386, %v1978
    %v1997 = vmul.f32 %v385, %v1982
    %s1998 = scalar_lea.vmem [#allocation7], 192
    %v1999 = vld [vmem:[%s1998] sm:$0xff]
    %v2000 = vld [vmem:[%s1998 + $0x8] sm:$0xff]
    %v2001 = vld [vmem:[%s1998 + $0x10] sm:$0xff]
    %v2002 = vld [vmem:[%s1998 + $0x18] sm:$0xff]
    %v2004 = vsel %vm550, %v1984, 0
    %v2007 = vsel %vm550, %v1985, 0
    %v2010 = vsel %vm550, %v1986, 0
    %v2013 = vsel %vm550, %v1987, 0
    %v2016 = vsel %vm550, %v1988, 0
    %v2019 = vsel %vm550, %v1989, 0
    %v2022 = vsel %vm550, %v1990, 0
    %v2025 = vsel %vm550, %v1991, 0
    %v2028 = vsel %vm550, %v1992, 0
    %v2031 = vsel %vm550, %v1993, 0
    %v2034 = vsel %vm550, %v1994, 0
    %v2037 = vsel %vm550, %v1995, 0
    %v2040 = vsel %vm550, %v1996, 0
    %v2043 = vsel %vm550, %v1997, 0
    %2045 = vmatprep.subr.mxu0 0.0
    %2046 = vmatpush1.msra.mxu0 %v1999
    %2047 = vmatprep.subr.mxu0 0.0
    %2048 = vmatpush1.msra.mxu0 %v2000
    %2049 = vmatprep.subr.mxu0 0.0
    %2050 = vmatpush1.msra.mxu0 %v2001
    %2051 = vmatprep.subr.mxu0 0.0
    %2052 = vmatpush1.msra.mxu0 %v2002
    %2053 = vmatprep.subr.mxu0 0.0
    %2054 = vmatpush1.msra.mxu0 0.0
    %2055 = vmatprep.subr.mxu0 0.0
    %2056 = vmatpush1.msra.mxu0 0.0
    %2057 = vmatprep.subr.mxu0 0.0
    %2058 = vmatpush1.msra.mxu0 0.0
    %2059 = vmatprep.subr.mxu0 0.0
    %2060 = vmatpush1.msra.mxu0 0.0
    %2061 = vmatprep.subr.mxu0 0.0
    %2062 = vmatpush1.msra.mxu0 0.0
    %2063 = vmatprep.subr.mxu0 0.0
    %2064 = vmatpush1.msra.mxu0 0.0
    %2065 = vmatprep.subr.mxu0 0.0
    %2066 = vmatpush1.msra.mxu0 0.0
    %2067 = vmatprep.subr.mxu0 0.0
    %2068 = vmatpush1.msra.mxu0 0.0
    %2069 = vmatprep.subr.mxu0 0.0
    %2070 = vmatpush1.msra.mxu0 0.0
    %2071 = vmatprep.subr.mxu0 0.0
    %2072 = vmatpush1.msra.mxu0 0.0
    %2073 = vmatprep.subr.mxu0 0.0
    %2074 = vmatpush1.msra.mxu0 0.0
    %2075 = vmatprep.subr.mxu0 0.0
    %2076 = vmatpush1.msra.mxu0 0.0
    %2077 = vmatprep.subr.mxu0 0.0
    %2078 = vmatpush1.msra.mxu0 0.0
    %2079 = vmatprep.subr.mxu0 0.0
    %2080 = vmatpush1.msra.mxu0 0.0
    %2081 = vmatprep.subr.mxu0 0.0
    %2082 = vmatpush1.msra.mxu0 0.0
    %2083 = vmatprep.subr.mxu0 0.0
    %2084 = vmatpush1.msra.mxu0 0.0
    %2085 = vmatprep.subr.mxu0 0.0
    %2086 = vmatpush1.msra.mxu0 0.0
    %2087 = vmatprep.subr.mxu0 0.0
    %2088 = vmatpush1.msra.mxu0 0.0
    %2089 = vmatprep.subr.mxu0 0.0
    %2090 = vmatpush1.msra.mxu0 0.0
    %2091 = vmatprep.subr.mxu0 0.0
    %2092 = vmatpush1.msra.mxu0 0.0
    %2093 = vmatprep.subr.mxu0 0.0
    %2094 = vmatpush1.msra.mxu0 0.0
    %2095 = vmatprep.subr.mxu0 0.0
    %2096 = vmatpush1.msra.mxu0 0.0
    %2097 = vmatprep.subr.mxu0 0.0
    %2098 = vmatpush1.msra.mxu0 0.0
    %2099 = vmatprep.subr.mxu0 0.0
    %2100 = vmatpush1.msra.mxu0 0.0
    %2101 = vmatprep.subr.mxu0 0.0
    %2102 = vmatpush1.msra.mxu0 0.0
    %2103 = vmatprep.subr.mxu0 0.0
    %2104 = vmatpush1.msra.mxu0 0.0
    %2105 = vmatprep.subr.mxu0 0.0
    %2106 = vmatpush1.msra.mxu0 0.0
    %2107 = vmatprep.subr.mxu0 0.0
    %2108 = vmatpush1.msra.mxu0 0.0
    %2109 = vmatprep.mubr.f32.mxu0 0.0
    %2110 = vmatmul.mubr.f32.gmra.mrb[0].mxu0 %v2004
    %v2111 = vpop.f32.mrb[0].mxu0
    %v2112 = vadd.f32 0.0, %v2111
    %v2113 = vpop.f32.mrb[0].mxu0
    %2114 = vmatprep.mubr.f32.mxu0 0.0
    %2115 = vmatmul.mubr.f32.gmra.mrb[0].mxu0 %v2007
    %v2116 = vpop.f32.mrb[0].mxu0
    %v2117 = vadd.f32 0.0, %v2116
    %v2118 = vpop.f32.mrb[0].mxu0
    %2119 = vmatprep.mubr.f32.mxu0 0.0
    %2120 = vmatmul.mubr.f32.gmra.mrb[0].mxu0 %v2010
    %v2121 = vpop.f32.mrb[0].mxu0
    %v2122 = vadd.f32 0.0, %v2121
    %v2123 = vpop.f32.mrb[0].mxu0
    %2124 = vmatprep.mubr.f32.mxu0 0.0
    %2125 = vmatmul.mubr.f32.gmra.mrb[0].mxu0 %v2013
    %v2126 = vpop.f32.mrb[0].mxu0
    %v2127 = vadd.f32 0.0, %v2126
    %v2128 = vpop.f32.mrb[0].mxu0
    %2129 = vmatprep.mubr.f32.mxu0 0.0
    %2130 = vmatmul.mubr.f32.gmra.mrb[0].mxu0 %v2016
    %v2131 = vpop.f32.mrb[0].mxu0
    %v2132 = vadd.f32 0.0, %v2131
    %v2133 = vpop.f32.mrb[0].mxu0
    %2134 = vmatprep.mubr.f32.mxu0 0.0
    %2135 = vmatmul.mubr.f32.gmra.mrb[0].mxu0 %v2019
    %v2136 = vpop.f32.mrb[0].mxu0
    %v2137 = vadd.f32 0.0, %v2136
    %v2138 = vpop.f32.mrb[0].mxu0
    %2139 = vmatprep.mubr.f32.mxu0 0.0
    %2140 = vmatmul.mubr.f32.gmra.mrb[0].mxu0 %v2022
    %v2141 = vpop.f32.mrb[0].mxu0
    %v2142 = vadd.f32 0.0, %v2141
    %v2143 = vpop.f32.mrb[0].mxu0
    %2144 = vmatprep.mubr.f32.mxu0 0.0
    %2145 = vmatmul.mubr.f32.gmra.mrb[0].mxu0 %v2025
    %v2146 = vpop.f32.mrb[0].mxu0
    %v2147 = vadd.f32 0.0, %v2146
    %v2148 = vpop.f32.mrb[0].mxu0
    %2149 = vmatprep.mubr.f32.mxu0 0.0
    %2150 = vmatmul.mubr.f32.gmra.mrb[0].mxu0 %v2028
    %v2151 = vpop.f32.mrb[0].mxu0
    %v2152 = vadd.f32 0.0, %v2151
    %v2153 = vpop.f32.mrb[0].mxu0
    %2154 = vmatprep.mubr.f32.mxu0 0.0
    %2155 = vmatmul.mubr.f32.gmra.mrb[0].mxu0 %v2031
    %v2156 = vpop.f32.mrb[0].mxu0
    %v2157 = vadd.f32 0.0, %v2156
    %v2158 = vpop.f32.mrb[0].mxu0
    %2159 = vmatprep.mubr.f32.mxu0 0.0
    %2160 = vmatmul.mubr.f32.gmra.mrb[0].mxu0 %v2034
    %v2161 = vpop.f32.mrb[0].mxu0
    %v2162 = vadd.f32 0.0, %v2161
    %v2163 = vpop.f32.mrb[0].mxu0
    %2164 = vmatprep.mubr.f32.mxu0 0.0
    %2165 = vmatmul.mubr.f32.gmra.mrb[0].mxu0 %v2037
    %v2166 = vpop.f32.mrb[0].mxu0
    %v2167 = vadd.f32 0.0, %v2166
    %v2168 = vpop.f32.mrb[0].mxu0
    %2169 = vmatprep.mubr.f32.mxu0 0.0
    %2170 = vmatmul.mubr.f32.gmra.mrb[0].mxu0 %v2040
    %v2171 = vpop.f32.mrb[0].mxu0
    %v2172 = vadd.f32 0.0, %v2171
    %v2173 = vpop.f32.mrb[0].mxu0
    %2174 = vmatprep.mubr.f32.mxu0 0.0
    %2175 = vmatmul.mubr.f32.gmra.mrb[0].mxu0 %v2043
    %v2176 = vpop.f32.mrb[0].mxu0
    %v2177 = vadd.f32 0.0, %v2176
    %v2178 = vpop.f32.mrb[0].mxu0
    %2179 = vdwg.mxu0
    %v2180 = vadd.f32 %v1914, %v2112
    %v2181 = vadd.f32 %v1915, %v2117
    %v2182 = vadd.f32 %v1916, %v2122
    %v2183 = vadd.f32 %v1917, %v2127
    %v2184 = vadd.f32 %v1918, %v2132
    %v2185 = vadd.f32 %v1919, %v2137
    %v2186 = vadd.f32 %v1920, %v2142
    %v2187 = vadd.f32 %v1921, %v2147
    %v2188 = vadd.f32 %v1922, %v2152
    %v2189 = vadd.f32 %v1923, %v2157
    %v2190 = vadd.f32 %v1924, %v2162
    %v2191 = vadd.f32 %v1925, %v2167
    %v2192 = vadd.f32 %v1926, %v2172
    %v2193 = vadd.f32 %v1927, %v2177
    %2194 = vset.pattern.permute.xlu0 7
    %2195 = vperm.xlu0 %2194, %v342
    %v2196 = vpop.permute.xlu0 %2195
    %2198 = vset.pattern.permute.xlu0 7
    %2199 = vperm.xlu0 %2198, %v343
    %v2200 = vpop.permute.xlu0 %2199
    %2202 = vset.pattern.permute.xlu0 7
    %2203 = vperm.xlu0 %2202, %v344
    %v2204 = vpop.permute.xlu0 %2203
    %2206 = vset.pattern.permute.xlu0 7
    %2207 = vperm.xlu0 %2206, %v345
    %v2208 = vpop.permute.xlu0 %2207
    %2210 = vset.pattern.permute.xlu0 7
    %2211 = vperm.xlu0 %2210, %v346
    %v2212 = vpop.permute.xlu0 %2211
    %2214 = vset.pattern.permute.xlu0 7
    %2215 = vperm.xlu0 %2214, %v347
    %v2216 = vpop.permute.xlu0 %2215
    %2218 = vset.pattern.permute.xlu0 7
    %2219 = vperm.xlu0 %2218, %v348
    %v2220 = vpop.permute.xlu0 %2219
    %2222 = vset.pattern.permute.xlu0 7
    %2223 = vperm.xlu0 %2222, %v349
    %v2224 = vpop.permute.xlu0 %2223
    %2226 = vset.pattern.permute.xlu0 7
    %2227 = vperm.xlu0 %2226, %v350
    %v2228 = vpop.permute.xlu0 %2227
    %2230 = vset.pattern.permute.xlu0 7
    %2231 = vperm.xlu0 %2230, %v351
    %v2232 = vpop.permute.xlu0 %2231
    %2234 = vset.pattern.permute.xlu0 7
    %2235 = vperm.xlu0 %2234, %v352
    %v2236 = vpop.permute.xlu0 %2235
    %2238 = vset.pattern.permute.xlu0 7
    %2239 = vperm.xlu0 %2238, %v353
    %v2240 = vpop.permute.xlu0 %2239
    %2242 = vset.pattern.permute.xlu0 7
    %2243 = vperm.xlu0 %2242, %v354
    %v2244 = vpop.permute.xlu0 %2243
    %2246 = vset.pattern.permute.xlu0 7
    %2247 = vperm.xlu0 %2246, %v355
    %v2248 = vpop.permute.xlu0 %2247
    %v2250 = vmul.f32 %v330, %v2196
    %v2251 = vmul.f32 %v331, %v2200
    %v2252 = vmul.f32 %v332, %v2204
    %v2253 = vmul.f32 %v333, %v2208
    %v2254 = vmul.f32 %v334, %v2212
    %v2255 = vmul.f32 %v335, %v2216
    %v2256 = vmul.f32 %v336, %v2220
    %v2257 = vmul.f32 %v337, %v2224
    %v2258 = vmul.f32 %v338, %v2228
    %v2259 = vmul.f32 %v339, %v2232
    %v2260 = vmul.f32 %v340, %v2236
    %v2261 = vmul.f32 %v341, %v2240
    %v2262 = vmul.f32 %v328, %v2244
    %v2263 = vmul.f32 %v329, %v2248
    %s2264 = scalar_lea.vmem [#allocation7], 224
    %v2265 = vld [vmem:[%s2264] sm:$0xff]
    %v2266 = vld [vmem:[%s2264 + $0x8] sm:$0xff]
    %v2267 = vld [vmem:[%s2264 + $0x10] sm:$0xff]
    %v2268 = vld [vmem:[%s2264 + $0x18] sm:$0xff]
    %v2270 = vsel %vm550, %v2250, 0
    %v2273 = vsel %vm550, %v2251, 0
    %v2276 = vsel %vm550, %v2252, 0
    %v2279 = vsel %vm550, %v2253, 0
    %v2282 = vsel %vm550, %v2254, 0
    %v2285 = vsel %vm550, %v2255, 0
    %v2288 = vsel %vm550, %v2256, 0
    %v2291 = vsel %vm550, %v2257, 0
    %v2294 = vsel %vm550, %v2258, 0
    %v2297 = vsel %vm550, %v2259, 0
    %v2300 = vsel %vm550, %v2260, 0
    %v2303 = vsel %vm550, %v2261, 0
    %v2306 = vsel %vm550, %v2262, 0
    %v2309 = vsel %vm550, %v2263, 0
    %2311 = vmatprep.subr.mxu0 0.0
    %2312 = vmatpush1.msra.mxu0 %v2265
    %2313 = vmatprep.subr.mxu0 0.0
    %2314 = vmatpush1.msra.mxu0 %v2266
    %2315 = vmatprep.subr.mxu0 0.0
    %2316 = vmatpush1.msra.mxu0 %v2267
    %2317 = vmatprep.subr.mxu0 0.0
    %2318 = vmatpush1.msra.mxu0 %v2268
    %2319 = vmatprep.subr.mxu0 0.0
    %2320 = vmatpush1.msra.mxu0 0.0
    %2321 = vmatprep.subr.mxu0 0.0
    %2322 = vmatpush1.msra.mxu0 0.0
    %2323 = vmatprep.subr.mxu0 0.0
    %2324 = vmatpush1.msra.mxu0 0.0
    %2325 = vmatprep.subr.mxu0 0.0
    %2326 = vmatpush1.msra.mxu0 0.0
    %2327 = vmatprep.subr.mxu0 0.0
    %2328 = vmatpush1.msra.mxu0 0.0
    %2329 = vmatprep.subr.mxu0 0.0
    %2330 = vmatpush1.msra.mxu0 0.0
    %2331 = vmatprep.subr.mxu0 0.0
    %2332 = vmatpush1.msra.mxu0 0.0
    %2333 = vmatprep.subr.mxu0 0.0
    %2334 = vmatpush1.msra.mxu0 0.0
    %2335 = vmatprep.subr.mxu0 0.0
    %2336 = vmatpush1.msra.mxu0 0.0
    %2337 = vmatprep.subr.mxu0 0.0
    %2338 = vmatpush1.msra.mxu0 0.0
    %2339 = vmatprep.subr.mxu0 0.0
    %2340 = vmatpush1.msra.mxu0 0.0
    %2341 = vmatprep.subr.mxu0 0.0
    %2342 = vmatpush1.msra.mxu0 0.0
    %2343 = vmatprep.subr.mxu0 0.0
    %2344 = vmatpush1.msra.mxu0 0.0
    %2345 = vmatprep.subr.mxu0 0.0
    %2346 = vmatpush1.msra.mxu0 0.0
    %2347 = vmatprep.subr.mxu0 0.0
    %2348 = vmatpush1.msra.mxu0 0.0
    %2349 = vmatprep.subr.mxu0 0.0
    %2350 = vmatpush1.msra.mxu0 0.0
    %2351 = vmatprep.subr.mxu0 0.0
    %2352 = vmatpush1.msra.mxu0 0.0
    %2353 = vmatprep.subr.mxu0 0.0
    %2354 = vmatpush1.msra.mxu0 0.0
    %2355 = vmatprep.subr.mxu0 0.0
    %2356 = vmatpush1.msra.mxu0 0.0
    %2357 = vmatprep.subr.mxu0 0.0
    %2358 = vmatpush1.msra.mxu0 0.0
    %2359 = vmatprep.subr.mxu0 0.0
    %2360 = vmatpush1.msra.mxu0 0.0
    %2361 = vmatprep.subr.mxu0 0.0
    %2362 = vmatpush1.msra.mxu0 0.0
    %2363 = vmatprep.subr.mxu0 0.0
    %2364 = vmatpush1.msra.mxu0 0.0
    %2365 = vmatprep.subr.mxu0 0.0
    %2366 = vmatpush1.msra.mxu0 0.0
    %2367 = vmatprep.subr.mxu0 0.0
    %2368 = vmatpush1.msra.mxu0 0.0
    %2369 = vmatprep.subr.mxu0 0.0
    %2370 = vmatpush1.msra.mxu0 0.0
    %2371 = vmatprep.subr.mxu0 0.0
    %2372 = vmatpush1.msra.mxu0 0.0
    %2373 = vmatprep.subr.mxu0 0.0
    %2374 = vmatpush1.msra.mxu0 0.0
    %2375 = vmatprep.mubr.f32.mxu0 0.0
    %2376 = vmatmul.mubr.f32.gmra.mrb[0].mxu0 %v2270
    %v2377 = vpop.f32.mrb[0].mxu0
    %v2378 = vadd.f32 0.0, %v2377
    %v2379 = vpop.f32.mrb[0].mxu0
    %2380 = vmatprep.mubr.f32.mxu0 0.0
    %2381 = vmatmul.mubr.f32.gmra.mrb[0].mxu0 %v2273
    %v2382 = vpop.f32.mrb[0].mxu0
    %v2383 = vadd.f32 0.0, %v2382
    %v2384 = vpop.f32.mrb[0].mxu0
    %2385 = vmatprep.mubr.f32.mxu0 0.0
    %2386 = vmatmul.mubr.f32.gmra.mrb[0].mxu0 %v2276
    %v2387 = vpop.f32.mrb[0].mxu0
    %v2388 = vadd.f32 0.0, %v2387
    %v2389 = vpop.f32.mrb[0].mxu0
    %2390 = vmatprep.mubr.f32.mxu0 0.0
    %2391 = vmatmul.mubr.f32.gmra.mrb[0].mxu0 %v2279
    %v2392 = vpop.f32.mrb[0].mxu0
    %v2393 = vadd.f32 0.0, %v2392
    %v2394 = vpop.f32.mrb[0].mxu0
    %2395 = vmatprep.mubr.f32.mxu0 0.0
    %2396 = vmatmul.mubr.f32.gmra.mrb[0].mxu0 %v2282
    %v2397 = vpop.f32.mrb[0].mxu0
    %v2398 = vadd.f32 0.0, %v2397
    %v2399 = vpop.f32.mrb[0].mxu0
    %2400 = vmatprep.mubr.f32.mxu0 0.0
    %2401 = vmatmul.mubr.f32.gmra.mrb[0].mxu0 %v2285
    %v2402 = vpop.f32.mrb[0].mxu0
    %v2403 = vadd.f32 0.0, %v2402
    %v2404 = vpop.f32.mrb[0].mxu0
    %2405 = vmatprep.mubr.f32.mxu0 0.0
    %2406 = vmatmul.mubr.f32.gmra.mrb[0].mxu0 %v2288
    %v2407 = vpop.f32.mrb[0].mxu0
    %v2408 = vadd.f32 0.0, %v2407
    %v2409 = vpop.f32.mrb[0].mxu0
    %2410 = vmatprep.mubr.f32.mxu0 0.0
    %2411 = vmatmul.mubr.f32.gmra.mrb[0].mxu0 %v2291
    %v2412 = vpop.f32.mrb[0].mxu0
    %v2413 = vadd.f32 0.0, %v2412
    %v2414 = vpop.f32.mrb[0].mxu0
    %2415 = vmatprep.mubr.f32.mxu0 0.0
    %2416 = vmatmul.mubr.f32.gmra.mrb[0].mxu0 %v2294
    %v2417 = vpop.f32.mrb[0].mxu0
    %v2418 = vadd.f32 0.0, %v2417
    %v2419 = vpop.f32.mrb[0].mxu0
    %2420 = vmatprep.mubr.f32.mxu0 0.0
    %2421 = vmatmul.mubr.f32.gmra.mrb[0].mxu0 %v2297
    %v2422 = vpop.f32.mrb[0].mxu0
    %v2423 = vadd.f32 0.0, %v2422
    %v2424 = vpop.f32.mrb[0].mxu0
    %2425 = vmatprep.mubr.f32.mxu0 0.0
    %2426 = vmatmul.mubr.f32.gmra.mrb[0].mxu0 %v2300
    %v2427 = vpop.f32.mrb[0].mxu0
    %v2428 = vadd.f32 0.0, %v2427
    %v2429 = vpop.f32.mrb[0].mxu0
    %2430 = vmatprep.mubr.f32.mxu0 0.0
    %2431 = vmatmul.mubr.f32.gmra.mrb[0].mxu0 %v2303
    %v2432 = vpop.f32.mrb[0].mxu0
    %v2433 = vadd.f32 0.0, %v2432
    %v2434 = vpop.f32.mrb[0].mxu0
    %2435 = vmatprep.mubr.f32.mxu0 0.0
    %2436 = vmatmul.mubr.f32.gmra.mrb[0].mxu0 %v2306
    %v2437 = vpop.f32.mrb[0].mxu0
    %v2438 = vadd.f32 0.0, %v2437
    %v2439 = vpop.f32.mrb[0].mxu0
    %2440 = vmatprep.mubr.f32.mxu0 0.0
    %2441 = vmatmul.mubr.f32.gmra.mrb[0].mxu0 %v2309
    %v2442 = vpop.f32.mrb[0].mxu0
    %v2443 = vadd.f32 0.0, %v2442
    %v2444 = vpop.f32.mrb[0].mxu0
    %2445 = vdwg.mxu0
    %v2446 = vadd.f32 %v2180, %v2378
    %v2447 = vadd.f32 %v2181, %v2383
    %v2448 = vadd.f32 %v2182, %v2388
    %v2449 = vadd.f32 %v2183, %v2393
    %v2450 = vadd.f32 %v2184, %v2398
    %v2451 = vadd.f32 %v2185, %v2403
    %v2452 = vadd.f32 %v2186, %v2408
    %v2453 = vadd.f32 %v2187, %v2413
    %v2454 = vadd.f32 %v2188, %v2418
    %v2455 = vadd.f32 %v2189, %v2423
    %v2456 = vadd.f32 %v2190, %v2428
    %v2457 = vadd.f32 %v2191, %v2433
    %v2458 = vadd.f32 %v2192, %v2438
    %v2459 = vadd.f32 %v2193, %v2443
    %2460 = vset.pattern.permute.xlu0 8
    %2461 = vperm.xlu0 %2460, %v342
    %v2462 = vpop.permute.xlu0 %2461
    %2464 = vset.pattern.permute.xlu0 8
    %2465 = vperm.xlu0 %2464, %v343
    %v2466 = vpop.permute.xlu0 %2465
    %2468 = vset.pattern.permute.xlu0 8
    %2469 = vperm.xlu0 %2468, %v344
    %v2470 = vpop.permute.xlu0 %2469
    %2472 = vset.pattern.permute.xlu0 8
    %2473 = vperm.xlu0 %2472, %v345
    %v2474 = vpop.permute.xlu0 %2473
    %2476 = vset.pattern.permute.xlu0 8
    %2477 = vperm.xlu0 %2476, %v346
    %v2478 = vpop.permute.xlu0 %2477
    %2480 = vset.pattern.permute.xlu0 8
    %2481 = vperm.xlu0 %2480, %v347
    %v2482 = vpop.permute.xlu0 %2481
    %2484 = vset.pattern.permute.xlu0 8
    %2485 = vperm.xlu0 %2484, %v348
    %v2486 = vpop.permute.xlu0 %2485
    %2488 = vset.pattern.permute.xlu0 8
    %2489 = vperm.xlu0 %2488, %v349
    %v2490 = vpop.permute.xlu0 %2489
    %2492 = vset.pattern.permute.xlu0 8
    %2493 = vperm.xlu0 %2492, %v350
    %v2494 = vpop.permute.xlu0 %2493
    %2496 = vset.pattern.permute.xlu0 8
    %2497 = vperm.xlu0 %2496, %v351
    %v2498 = vpop.permute.xlu0 %2497
    %2500 = vset.pattern.permute.xlu0 8
    %2501 = vperm.xlu0 %2500, %v352
    %v2502 = vpop.permute.xlu0 %2501
    %2504 = vset.pattern.permute.xlu0 8
    %2505 = vperm.xlu0 %2504, %v353
    %v2506 = vpop.permute.xlu0 %2505
    %2508 = vset.pattern.permute.xlu0 8
    %2509 = vperm.xlu0 %2508, %v354
    %v2510 = vpop.permute.xlu0 %2509
    %2512 = vset.pattern.permute.xlu0 8
    %2513 = vperm.xlu0 %2512, %v355
    %v2514 = vpop.permute.xlu0 %2513
    %v2516 = vmul.f32 %v930, %v2462
    %v2517 = vmul.f32 %v929, %v2466
    %v2518 = vmul.f32 %v928, %v2470
    %v2519 = vmul.f32 %v927, %v2474
    %v2520 = vmul.f32 %v926, %v2478
    %v2521 = vmul.f32 %v925, %v2482
    %v2522 = vmul.f32 %v924, %v2486
    %v2523 = vmul.f32 %v923, %v2490
    %v2524 = vmul.f32 %v922, %v2494
    %v2525 = vmul.f32 %v921, %v2498
    %v2526 = vmul.f32 %v920, %v2502
    %v2527 = vmul.f32 %v933, %v2506
    %v2528 = vmul.f32 %v932, %v2510
    %v2529 = vmul.f32 %v931, %v2514
    %s2530 = scalar_lea.vmem [#allocation7], 256
    %v2531 = vld [vmem:[%s2530] sm:$0xff]
    %v2532 = vld [vmem:[%s2530 + $0x8] sm:$0xff]
    %v2533 = vld [vmem:[%s2530 + $0x10] sm:$0xff]
    %v2534 = vld [vmem:[%s2530 + $0x18] sm:$0xff]
    %v2536 = vsel %vm550, %v2516, 0
    %v2539 = vsel %vm550, %v2517, 0
    %v2542 = vsel %vm550, %v2518, 0
    %v2545 = vsel %vm550, %v2519, 0
    %v2548 = vsel %vm550, %v2520, 0
    %v2551 = vsel %vm550, %v2521, 0
    %v2554 = vsel %vm550, %v2522, 0
    %v2557 = vsel %vm550, %v2523, 0
    %v2560 = vsel %vm550, %v2524, 0
    %v2563 = vsel %vm550, %v2525, 0
    %v2566 = vsel %vm550, %v2526, 0
    %v2569 = vsel %vm550, %v2527, 0
    %v2572 = vsel %vm550, %v2528, 0
    %v2575 = vsel %vm550, %v2529, 0
    %2577 = vmatprep.subr.mxu0 0.0
    %2578 = vmatpush1.msra.mxu0 %v2531
    %2579 = vmatprep.subr.mxu0 0.0
    %2580 = vmatpush1.msra.mxu0 %v2532
    %2581 = vmatprep.subr.mxu0 0.0
    %2582 = vmatpush1.msra.mxu0 %v2533
    %2583 = vmatprep.subr.mxu0 0.0
    %2584 = vmatpush1.msra.mxu0 %v2534
    %2585 = vmatprep.subr.mxu0 0.0
    %2586 = vmatpush1.msra.mxu0 0.0
    %2587 = vmatprep.subr.mxu0 0.0
    %2588 = vmatpush1.msra.mxu0 0.0
    %2589 = vmatprep.subr.mxu0 0.0
    %2590 = vmatpush1.msra.mxu0 0.0
    %2591 = vmatprep.subr.mxu0 0.0
    %2592 = vmatpush1.msra.mxu0 0.0
    %2593 = vmatprep.subr.mxu0 0.0
    %2594 = vmatpush1.msra.mxu0 0.0
    %2595 = vmatprep.subr.mxu0 0.0
    %2596 = vmatpush1.msra.mxu0 0.0
    %2597 = vmatprep.subr.mxu0 0.0
    %2598 = vmatpush1.msra.mxu0 0.0
    %2599 = vmatprep.subr.mxu0 0.0
    %2600 = vmatpush1.msra.mxu0 0.0
    %2601 = vmatprep.subr.mxu0 0.0
    %2602 = vmatpush1.msra.mxu0 0.0
    %2603 = vmatprep.subr.mxu0 0.0
    %2604 = vmatpush1.msra.mxu0 0.0
    %2605 = vmatprep.subr.mxu0 0.0
    %2606 = vmatpush1.msra.mxu0 0.0
    %2607 = vmatprep.subr.mxu0 0.0
    %2608 = vmatpush1.msra.mxu0 0.0
    %2609 = vmatprep.subr.mxu0 0.0
    %2610 = vmatpush1.msra.mxu0 0.0
    %2611 = vmatprep.subr.mxu0 0.0
    %2612 = vmatpush1.msra.mxu0 0.0
    %2613 = vmatprep.subr.mxu0 0.0
    %2614 = vmatpush1.msra.mxu0 0.0
    %2615 = vmatprep.subr.mxu0 0.0
    %2616 = vmatpush1.msra.mxu0 0.0
    %2617 = vmatprep.subr.mxu0 0.0
    %2618 = vmatpush1.msra.mxu0 0.0
    %2619 = vmatprep.subr.mxu0 0.0
    %2620 = vmatpush1.msra.mxu0 0.0
    %2621 = vmatprep.subr.mxu0 0.0
    %2622 = vmatpush1.msra.mxu0 0.0
    %2623 = vmatprep.subr.mxu0 0.0
    %2624 = vmatpush1.msra.mxu0 0.0
    %2625 = vmatprep.subr.mxu0 0.0
    %2626 = vmatpush1.msra.mxu0 0.0
    %2627 = vmatprep.subr.mxu0 0.0
    %2628 = vmatpush1.msra.mxu0 0.0
    %2629 = vmatprep.subr.mxu0 0.0
    %2630 = vmatpush1.msra.mxu0 0.0
    %2631 = vmatprep.subr.mxu0 0.0
    %2632 = vmatpush1.msra.mxu0 0.0
    %2633 = vmatprep.subr.mxu0 0.0
    %2634 = vmatpush1.msra.mxu0 0.0
    %2635 = vmatprep.subr.mxu0 0.0
    %2636 = vmatpush1.msra.mxu0 0.0
    %2637 = vmatprep.subr.mxu0 0.0
    %2638 = vmatpush1.msra.mxu0 0.0
    %2639 = vmatprep.subr.mxu0 0.0
    %2640 = vmatpush1.msra.mxu0 0.0
    %2641 = vmatprep.mubr.f32.mxu0 0.0
    %2642 = vmatmul.mubr.f32.gmra.mrb[0].mxu0 %v2536
    %v2643 = vpop.f32.mrb[0].mxu0
    %v2644 = vadd.f32 0.0, %v2643
    %v2645 = vpop.f32.mrb[0].mxu0
    %2646 = vmatprep.mubr.f32.mxu0 0.0
    %2647 = vmatmul.mubr.f32.gmra.mrb[0].mxu0 %v2539
    %v2648 = vpop.f32.mrb[0].mxu0
    %v2649 = vadd.f32 0.0, %v2648
    %v2650 = vpop.f32.mrb[0].mxu0
    %2651 = vmatprep.mubr.f32.mxu0 0.0
    %2652 = vmatmul.mubr.f32.gmra.mrb[0].mxu0 %v2542
    %v2653 = vpop.f32.mrb[0].mxu0
    %v2654 = vadd.f32 0.0, %v2653
    %v2655 = vpop.f32.mrb[0].mxu0
    %2656 = vmatprep.mubr.f32.mxu0 0.0
    %2657 = vmatmul.mubr.f32.gmra.mrb[0].mxu0 %v2545
    %v2658 = vpop.f32.mrb[0].mxu0
    %v2659 = vadd.f32 0.0, %v2658
    %v2660 = vpop.f32.mrb[0].mxu0
    %2661 = vmatprep.mubr.f32.mxu0 0.0
    %2662 = vmatmul.mubr.f32.gmra.mrb[0].mxu0 %v2548
    %v2663 = vpop.f32.mrb[0].mxu0
    %v2664 = vadd.f32 0.0, %v2663
    %v2665 = vpop.f32.mrb[0].mxu0
    %2666 = vmatprep.mubr.f32.mxu0 0.0
    %2667 = vmatmul.mubr.f32.gmra.mrb[0].mxu0 %v2551
    %v2668 = vpop.f32.mrb[0].mxu0
    %v2669 = vadd.f32 0.0, %v2668
    %v2670 = vpop.f32.mrb[0].mxu0
    %2671 = vmatprep.mubr.f32.mxu0 0.0
    %2672 = vmatmul.mubr.f32.gmra.mrb[0].mxu0 %v2554
    %v2673 = vpop.f32.mrb[0].mxu0
    %v2674 = vadd.f32 0.0, %v2673
    %v2675 = vpop.f32.mrb[0].mxu0
    %2676 = vmatprep.mubr.f32.mxu0 0.0
    %2677 = vmatmul.mubr.f32.gmra.mrb[0].mxu0 %v2557
    %v2678 = vpop.f32.mrb[0].mxu0
    %v2679 = vadd.f32 0.0, %v2678
    %v2680 = vpop.f32.mrb[0].mxu0
    %2681 = vmatprep.mubr.f32.mxu0 0.0
    %2682 = vmatmul.mubr.f32.gmra.mrb[0].mxu0 %v2560
    %v2683 = vpop.f32.mrb[0].mxu0
    %v2684 = vadd.f32 0.0, %v2683
    %v2685 = vpop.f32.mrb[0].mxu0
    %2686 = vmatprep.mubr.f32.mxu0 0.0
    %2687 = vmatmul.mubr.f32.gmra.mrb[0].mxu0 %v2563
    %v2688 = vpop.f32.mrb[0].mxu0
    %v2689 = vadd.f32 0.0, %v2688
    %v2690 = vpop.f32.mrb[0].mxu0
    %2691 = vmatprep.mubr.f32.mxu0 0.0
    %2692 = vmatmul.mubr.f32.gmra.mrb[0].mxu0 %v2566
    %v2693 = vpop.f32.mrb[0].mxu0
    %v2694 = vadd.f32 0.0, %v2693
    %v2695 = vpop.f32.mrb[0].mxu0
    %2696 = vmatprep.mubr.f32.mxu0 0.0
    %2697 = vmatmul.mubr.f32.gmra.mrb[0].mxu0 %v2569
    %v2698 = vpop.f32.mrb[0].mxu0
    %v2699 = vadd.f32 0.0, %v2698
    %v2700 = vpop.f32.mrb[0].mxu0
    %2701 = vmatprep.mubr.f32.mxu0 0.0
    %2702 = vmatmul.mubr.f32.gmra.mrb[0].mxu0 %v2572
    %v2703 = vpop.f32.mrb[0].mxu0
    %v2704 = vadd.f32 0.0, %v2703
    %v2705 = vpop.f32.mrb[0].mxu0
    %2706 = vmatprep.mubr.f32.mxu0 0.0
    %2707 = vmatmul.mubr.f32.gmra.mrb[0].mxu0 %v2575
    %v2708 = vpop.f32.mrb[0].mxu0
    %v2709 = vadd.f32 0.0, %v2708
    %v2710 = vpop.f32.mrb[0].mxu0
    %2711 = vdwg.mxu0
    %v2712 = vadd.f32 %v2446, %v2644
    %v2713 = vadd.f32 %v2447, %v2649
    %v2714 = vadd.f32 %v2448, %v2654
    %v2715 = vadd.f32 %v2449, %v2659
    %v2716 = vadd.f32 %v2450, %v2664
    %v2717 = vadd.f32 %v2451, %v2669
    %v2718 = vadd.f32 %v2452, %v2674
    %v2719 = vadd.f32 %v2453, %v2679
    %v2720 = vadd.f32 %v2454, %v2684
    %v2721 = vadd.f32 %v2455, %v2689
    %v2722 = vadd.f32 %v2456, %v2694
    %v2723 = vadd.f32 %v2457, %v2699
    %v2724 = vadd.f32 %v2458, %v2704
    %v2725 = vadd.f32 %v2459, %v2709
    %v2726 = vld [vmem:[#allocation8] sm:$0x1]
    %v2728 = vlaneseq
    %v2729 = vshrl.u32 %v2728, 7
    %v2730 = vsub.s32 0, %v2729
    %v2731 = vrot.slane %v2726, %v2730
    %v2733 = vadd.f32 %v2712, %v2731
    %v2734 = vadd.f32 %v2713, %v2731
    %v2735 = vadd.f32 %v2714, %v2731
    %v2736 = vadd.f32 %v2715, %v2731
    %v2737 = vadd.f32 %v2716, %v2731
    %v2738 = vadd.f32 %v2717, %v2731
    %v2739 = vadd.f32 %v2718, %v2731
    %v2740 = vadd.f32 %v2719, %v2731
    %v2741 = vadd.f32 %v2720, %v2731
    %v2742 = vadd.f32 %v2721, %v2731
    %v2743 = vadd.f32 %v2722, %v2731
    %v2744 = vadd.f32 %v2723, %v2731
    %v2745 = vadd.f32 %v2724, %v2731
    %v2746 = vadd.f32 %v2725, %v2731
    %v2747 = vmax.f32 %v2733, 0.0
    %v2748 = vmax.f32 %v2734, 0.0
    %v2749 = vmax.f32 %v2735, 0.0
    %v2750 = vmax.f32 %v2736, 0.0
    %v2751 = vmax.f32 %v2737, 0.0
    %v2752 = vmax.f32 %v2738, 0.0
    %v2753 = vmax.f32 %v2739, 0.0
    %v2754 = vmax.f32 %v2740, 0.0
    %v2755 = vmax.f32 %v2741, 0.0
    %v2756 = vmax.f32 %v2742, 0.0
    %v2757 = vmax.f32 %v2743, 0.0
    %v2758 = vmax.f32 %v2744, 0.0
    %v2759 = vmax.f32 %v2745, 0.0
    %v2760 = vmax.f32 %v2746, 0.0
    %v2761 = vld [vmem:[#allocation10] sm:$0xff]
    %v2762 = vld [vmem:[#allocation10 + $0x8] sm:$0xff]
    %v2763 = vld [vmem:[#allocation10 + $0x10] sm:$0xff]
    %v2764 = vld [vmem:[#allocation10 + $0x18] sm:$0xff]
    %v2765 = vld [vmem:[#allocation10 + $0x20] sm:$0xff]
    %v2766 = vld [vmem:[#allocation10 + $0x28] sm:$0xff]
    %v2767 = vld [vmem:[#allocation10 + $0x30] sm:$0xff]
    %v2768 = vld [vmem:[#allocation10 + $0x38] sm:$0xff]
    %s2769 = scalar_lea.vmem [#allocation10], 64
    %v2770 = vld [vmem:[%s2769] sm:$0xff]
    %v2771 = vld [vmem:[%s2769 + $0x8] sm:$0xff]
    %v2772 = vld [vmem:[%s2769 + $0x10] sm:$0xff]
    %v2773 = vld [vmem:[%s2769 + $0x18] sm:$0xff]
    %v2774 = vld [vmem:[%s2769 + $0x20] sm:$0xff]
    %v2775 = vld [vmem:[%s2769 + $0x28] sm:$0xff]
    %v2776 = vld [vmem:[%s2769 + $0x30] sm:$0xff]
    %v2777 = vld [vmem:[%s2769 + $0x38] sm:$0xff]
    %v2779 = vrot.slane %v2747, 2
    %vm2780 = vcmask 523264
    %v2781 = vsel %vm2780, %v2779, 0
    %2783 = vmatprep.subr.mxu0 0.0
    %2784 = vmatpush1.msra.mxu0 %v2770
    %2785 = vmatprep.subr.mxu0 0.0
    %2786 = vmatpush1.msra.mxu0 %v2771
    %2787 = vmatprep.subr.mxu0 0.0
    %2788 = vmatpush1.msra.mxu0 %v2772
    %2789 = vmatprep.subr.mxu0 0.0
    %2790 = vmatpush1.msra.mxu0 %v2773
    %2791 = vmatprep.subr.mxu0 0.0
    %2792 = vmatpush1.msra.mxu0 %v2774
    %2793 = vmatprep.subr.mxu0 0.0
    %2794 = vmatpush1.msra.mxu0 %v2775
    %2795 = vmatprep.subr.mxu0 0.0
    %2796 = vmatpush1.msra.mxu0 %v2776
    %2797 = vmatprep.subr.mxu0 0.0
    %2798 = vmatpush1.msra.mxu0 %v2777
    %2799 = vmatprep.subr.mxu0 0.0
    %2800 = vmatpush1.msra.mxu0 0.0
    %2801 = vmatprep.subr.mxu0 0.0
    %2802 = vmatpush1.msra.mxu0 0.0
    %2803 = vmatprep.subr.mxu0 0.0
    %2804 = vmatpush1.msra.mxu0 0.0
    %2805 = vmatprep.subr.mxu0 0.0
    %2806 = vmatpush1.msra.mxu0 0.0
    %2807 = vmatprep.subr.mxu0 0.0
    %2808 = vmatpush1.msra.mxu0 0.0
    %2809 = vmatprep.subr.mxu0 0.0
    %2810 = vmatpush1.msra.mxu0 0.0
    %2811 = vmatprep.subr.mxu0 0.0
    %2812 = vmatpush1.msra.mxu0 0.0
    %2813 = vmatprep.subr.mxu0 0.0
    %2814 = vmatpush1.msra.mxu0 0.0
    %2815 = vmatprep.subr.mxu0 0.0
    %2816 = vmatpush1.msra.mxu0 0.0
    %2817 = vmatprep.subr.mxu0 0.0
    %2818 = vmatpush1.msra.mxu0 0.0
    %2819 = vmatprep.subr.mxu0 0.0
    %2820 = vmatpush1.msra.mxu0 0.0
    %2821 = vmatprep.subr.mxu0 0.0
    %2822 = vmatpush1.msra.mxu0 0.0
    %2823 = vmatprep.subr.mxu0 0.0
    %2824 = vmatpush1.msra.mxu0 0.0
    %2825 = vmatprep.subr.mxu0 0.0
    %2826 = vmatpush1.msra.mxu0 0.0
    %2827 = vmatprep.subr.mxu0 0.0
    %2828 = vmatpush1.msra.mxu0 0.0
    %2829 = vmatprep.subr.mxu0 0.0
    %2830 = vmatpush1.msra.mxu0 0.0
    %2831 = vmatprep.subr.mxu0 0.0
    %2832 = vmatpush1.msra.mxu0 0.0
    %2833 = vmatprep.subr.mxu0 0.0
    %2834 = vmatpush1.msra.mxu0 0.0
    %2835 = vmatprep.subr.mxu0 0.0
    %2836 = vmatpush1.msra.mxu0 0.0
    %2837 = vmatprep.subr.mxu0 0.0
    %2838 = vmatpush1.msra.mxu0 0.0
    %2839 = vmatprep.subr.mxu0 0.0
    %2840 = vmatpush1.msra.mxu0 0.0
    %2841 = vmatprep.subr.mxu0 0.0
    %2842 = vmatpush1.msra.mxu0 0.0
    %2843 = vmatprep.subr.mxu0 0.0
    %2844 = vmatpush1.msra.mxu0 0.0
    %2845 = vmatprep.subr.mxu0 0.0
    %2846 = vmatpush1.msra.mxu0 0.0
    %2847 = vmatprep.mubr.f32.mxu0 0.0
    %2848 = vmatmul.mubr.f32.gmra.mrb[0].mxu0 %v2781
    %v2849 = vpop.f32.mrb[0].mxu0
    %v2850 = vadd.f32 0.0, %v2849
    %v2851 = vpop.f32.mrb[0].mxu0
    %2852 = vdwg.mxu0
    %v2853 = vsel %vm2780, %v2747, 0
    %2855 = vmatprep.subr.mxu0 0.0
    %2856 = vmatpush1.msra.mxu0 %v2761
    %2857 = vmatprep.subr.mxu0 0.0
    %2858 = vmatpush1.msra.mxu0 %v2762
    %2859 = vmatprep.subr.mxu0 0.0
    %2860 = vmatpush1.msra.mxu0 %v2763
    %2861 = vmatprep.subr.mxu0 0.0
    %2862 = vmatpush1.msra.mxu0 %v2764
    %2863 = vmatprep.subr.mxu0 0.0
    %2864 = vmatpush1.msra.mxu0 %v2765
    %2865 = vmatprep.subr.mxu0 0.0
    %2866 = vmatpush1.msra.mxu0 %v2766
    %2867 = vmatprep.subr.mxu0 0.0
    %2868 = vmatpush1.msra.mxu0 %v2767
    %2869 = vmatprep.subr.mxu0 0.0
    %2870 = vmatpush1.msra.mxu0 %v2768
    %2871 = vmatprep.subr.mxu0 0.0
    %2872 = vmatpush1.msra.mxu0 0.0
    %2873 = vmatprep.subr.mxu0 0.0
    %2874 = vmatpush1.msra.mxu0 0.0
    %2875 = vmatprep.subr.mxu0 0.0
    %2876 = vmatpush1.msra.mxu0 0.0
    %2877 = vmatprep.subr.mxu0 0.0
    %2878 = vmatpush1.msra.mxu0 0.0
    %2879 = vmatprep.subr.mxu0 0.0
    %2880 = vmatpush1.msra.mxu0 0.0
    %2881 = vmatprep.subr.mxu0 0.0
    %2882 = vmatpush1.msra.mxu0 0.0
    %2883 = vmatprep.subr.mxu0 0.0
    %2884 = vmatpush1.msra.mxu0 0.0
    %2885 = vmatprep.subr.mxu0 0.0
    %2886 = vmatpush1.msra.mxu0 0.0
    %2887 = vmatprep.subr.mxu0 0.0
    %2888 = vmatpush1.msra.mxu0 0.0
    %2889 = vmatprep.subr.mxu0 0.0
    %2890 = vmatpush1.msra.mxu0 0.0
    %2891 = vmatprep.subr.mxu0 0.0
    %2892 = vmatpush1.msra.mxu0 0.0
    %2893 = vmatprep.subr.mxu0 0.0
    %2894 = vmatpush1.msra.mxu0 0.0
    %2895 = vmatprep.subr.mxu0 0.0
    %2896 = vmatpush1.msra.mxu0 0.0
    %2897 = vmatprep.subr.mxu0 0.0
    %2898 = vmatpush1.msra.mxu0 0.0
    %2899 = vmatprep.subr.mxu0 0.0
    %2900 = vmatpush1.msra.mxu0 0.0
    %2901 = vmatprep.subr.mxu0 0.0
    %2902 = vmatpush1.msra.mxu0 0.0
    %2903 = vmatprep.subr.mxu0 0.0
    %2904 = vmatpush1.msra.mxu0 0.0
    %2905 = vmatprep.subr.mxu0 0.0
    %2906 = vmatpush1.msra.mxu0 0.0
    %2907 = vmatprep.subr.mxu0 0.0
    %2908 = vmatpush1.msra.mxu0 0.0
    %2909 = vmatprep.subr.mxu0 0.0
    %2910 = vmatpush1.msra.mxu0 0.0
    %2911 = vmatprep.subr.mxu0 0.0
    %2912 = vmatpush1.msra.mxu0 0.0
    %2913 = vmatprep.subr.mxu0 0.0
    %2914 = vmatpush1.msra.mxu0 0.0
    %2915 = vmatprep.subr.mxu0 0.0
    %2916 = vmatpush1.msra.mxu0 0.0
    %2917 = vmatprep.subr.mxu0 0.0
    %2918 = vmatpush1.msra.mxu0 0.0
    %2919 = vmatprep.mubr.f32.mxu0 0.0
    %2920 = vmatmul.mubr.f32.gmra.mrb[0].mxu0 %v2853
    %v2921 = vpop.f32.mrb[0].mxu0
    %v2922 = vadd.f32 %v2850, %v2921
    %v2923 = vpop.f32.mrb[0].mxu0
    %2924 = vdwg.mxu0
    %s2925 = scalar_lea.vmem [#allocation10], 128
    %v2926 = vld [vmem:[%s2925] sm:$0xff]
    %v2927 = vld [vmem:[%s2925 + $0x8] sm:$0xff]
    %v2928 = vld [vmem:[%s2925 + $0x10] sm:$0xff]
    %v2929 = vld [vmem:[%s2925 + $0x18] sm:$0xff]
    %v2930 = vld [vmem:[%s2925 + $0x20] sm:$0xff]
    %v2931 = vld [vmem:[%s2925 + $0x28] sm:$0xff]
    %v2932 = vld [vmem:[%s2925 + $0x30] sm:$0xff]
    %v2933 = vld [vmem:[%s2925 + $0x38] sm:$0xff]
    %v2934 = vrot.slane %v2747, 4
    %v2935 = vsel %vm2780, %v2934, 0
    %2937 = vmatprep.subr.mxu0 0.0
    %2938 = vmatpush1.msra.mxu0 %v2926
    %2939 = vmatprep.subr.mxu0 0.0
    %2940 = vmatpush1.msra.mxu0 %v2927
    %2941 = vmatprep.subr.mxu0 0.0
    %2942 = vmatpush1.msra.mxu0 %v2928
    %2943 = vmatprep.subr.mxu0 0.0
    %2944 = vmatpush1.msra.mxu0 %v2929
    %2945 = vmatprep.subr.mxu0 0.0
    %2946 = vmatpush1.msra.mxu0 %v2930
    %2947 = vmatprep.subr.mxu0 0.0
    %2948 = vmatpush1.msra.mxu0 %v2931
    %2949 = vmatprep.subr.mxu0 0.0
    %2950 = vmatpush1.msra.mxu0 %v2932
    %2951 = vmatprep.subr.mxu0 0.0
    %2952 = vmatpush1.msra.mxu0 %v2933
    %2953 = vmatprep.subr.mxu0 0.0
    %2954 = vmatpush1.msra.mxu0 0.0
    %2955 = vmatprep.subr.mxu0 0.0
    %2956 = vmatpush1.msra.mxu0 0.0
    %2957 = vmatprep.subr.mxu0 0.0
    %2958 = vmatpush1.msra.mxu0 0.0
    %2959 = vmatprep.subr.mxu0 0.0
    %2960 = vmatpush1.msra.mxu0 0.0
    %2961 = vmatprep.subr.mxu0 0.0
    %2962 = vmatpush1.msra.mxu0 0.0
    %2963 = vmatprep.subr.mxu0 0.0
    %2964 = vmatpush1.msra.mxu0 0.0
    %2965 = vmatprep.subr.mxu0 0.0
    %2966 = vmatpush1.msra.mxu0 0.0
    %2967 = vmatprep.subr.mxu0 0.0
    %2968 = vmatpush1.msra.mxu0 0.0
    %2969 = vmatprep.subr.mxu0 0.0
    %2970 = vmatpush1.msra.mxu0 0.0
    %2971 = vmatprep.subr.mxu0 0.0
    %2972 = vmatpush1.msra.mxu0 0.0
    %2973 = vmatprep.subr.mxu0 0.0
    %2974 = vmatpush1.msra.mxu0 0.0
    %2975 = vmatprep.subr.mxu0 0.0
    %2976 = vmatpush1.msra.mxu0 0.0
    %2977 = vmatprep.subr.mxu0 0.0
    %2978 = vmatpush1.msra.mxu0 0.0
    %2979 = vmatprep.subr.mxu0 0.0
    %2980 = vmatpush1.msra.mxu0 0.0
    %2981 = vmatprep.subr.mxu0 0.0
    %2982 = vmatpush1.msra.mxu0 0.0
    %2983 = vmatprep.subr.mxu0 0.0
    %2984 = vmatpush1.msra.mxu0 0.0
    %2985 = vmatprep.subr.mxu0 0.0
    %2986 = vmatpush1.msra.mxu0 0.0
    %2987 = vmatprep.subr.mxu0 0.0
    %2988 = vmatpush1.msra.mxu0 0.0
    %2989 = vmatprep.subr.mxu0 0.0
    %2990 = vmatpush1.msra.mxu0 0.0
    %2991 = vmatprep.subr.mxu0 0.0
    %2992 = vmatpush1.msra.mxu0 0.0
    %2993 = vmatprep.subr.mxu0 0.0
    %2994 = vmatpush1.msra.mxu0 0.0
    %2995 = vmatprep.subr.mxu0 0.0
    %2996 = vmatpush1.msra.mxu0 0.0
    %2997 = vmatprep.subr.mxu0 0.0
    %2998 = vmatpush1.msra.mxu0 0.0
    %2999 = vmatprep.subr.mxu0 0.0
    %3000 = vmatpush1.msra.mxu0 0.0
    %3001 = vmatprep.mubr.f32.mxu0 0.0
    %3002 = vmatmul.mubr.f32.gmra.mrb[0].mxu0 %v2935
    %v3003 = vpop.f32.mrb[0].mxu0
    %v3004 = vadd.f32 0.0, %v3003
    %v3005 = vpop.f32.mrb[0].mxu0
    %3006 = vdwg.mxu0
    %v3007 = vadd.f32 %v2922, %v3004
    %s3008 = scalar_lea.vmem [#allocation10], 192
    %v3009 = vld [vmem:[%s3008] sm:$0xff]
    %v3010 = vld [vmem:[%s3008 + $0x8] sm:$0xff]
    %v3011 = vld [vmem:[%s3008 + $0x10] sm:$0xff]
    %v3012 = vld [vmem:[%s3008 + $0x18] sm:$0xff]
    %v3013 = vld [vmem:[%s3008 + $0x20] sm:$0xff]
    %v3014 = vld [vmem:[%s3008 + $0x28] sm:$0xff]
    %v3015 = vld [vmem:[%s3008 + $0x30] sm:$0xff]
    %v3016 = vld [vmem:[%s3008 + $0x38] sm:$0xff]
    %v3017 = vrot.slane %v2747, 6
    %v3018 = vsel %vm2780, %v3017, 0
    %3020 = vmatprep.subr.mxu0 0.0
    %3021 = vmatpush1.msra.mxu0 %v3009
    %3022 = vmatprep.subr.mxu0 0.0
    %3023 = vmatpush1.msra.mxu0 %v3010
    %3024 = vmatprep.subr.mxu0 0.0
    %3025 = vmatpush1.msra.mxu0 %v3011
    %3026 = vmatprep.subr.mxu0 0.0
    %3027 = vmatpush1.msra.mxu0 %v3012
    %3028 = vmatprep.subr.mxu0 0.0
    %3029 = vmatpush1.msra.mxu0 %v3013
    %3030 = vmatprep.subr.mxu0 0.0
    %3031 = vmatpush1.msra.mxu0 %v3014
    %3032 = vmatprep.subr.mxu0 0.0
    %3033 = vmatpush1.msra.mxu0 %v3015
    %3034 = vmatprep.subr.mxu0 0.0
    %3035 = vmatpush1.msra.mxu0 %v3016
    %3036 = vmatprep.subr.mxu0 0.0
    %3037 = vmatpush1.msra.mxu0 0.0
    %3038 = vmatprep.subr.mxu0 0.0
    %3039 = vmatpush1.msra.mxu0 0.0
    %3040 = vmatprep.subr.mxu0 0.0
    %3041 = vmatpush1.msra.mxu0 0.0
    %3042 = vmatprep.subr.mxu0 0.0
    %3043 = vmatpush1.msra.mxu0 0.0
    %3044 = vmatprep.subr.mxu0 0.0
    %3045 = vmatpush1.msra.mxu0 0.0
    %3046 = vmatprep.subr.mxu0 0.0
    %3047 = vmatpush1.msra.mxu0 0.0
    %3048 = vmatprep.subr.mxu0 0.0
    %3049 = vmatpush1.msra.mxu0 0.0
    %3050 = vmatprep.subr.mxu0 0.0
    %3051 = vmatpush1.msra.mxu0 0.0
    %3052 = vmatprep.subr.mxu0 0.0
    %3053 = vmatpush1.msra.mxu0 0.0
    %3054 = vmatprep.subr.mxu0 0.0
    %3055 = vmatpush1.msra.mxu0 0.0
    %3056 = vmatprep.subr.mxu0 0.0
    %3057 = vmatpush1.msra.mxu0 0.0
    %3058 = vmatprep.subr.mxu0 0.0
    %3059 = vmatpush1.msra.mxu0 0.0
    %3060 = vmatprep.subr.mxu0 0.0
    %3061 = vmatpush1.msra.mxu0 0.0
    %3062 = vmatprep.subr.mxu0 0.0
    %3063 = vmatpush1.msra.mxu0 0.0
    %3064 = vmatprep.subr.mxu0 0.0
    %3065 = vmatpush1.msra.mxu0 0.0
    %3066 = vmatprep.subr.mxu0 0.0
    %3067 = vmatpush1.msra.mxu0 0.0
    %3068 = vmatprep.subr.mxu0 0.0
    %3069 = vmatpush1.msra.mxu0 0.0
    %3070 = vmatprep.subr.mxu0 0.0
    %3071 = vmatpush1.msra.mxu0 0.0
    %3072 = vmatprep.subr.mxu0 0.0
    %3073 = vmatpush1.msra.mxu0 0.0
    %3074 = vmatprep.subr.mxu0 0.0
    %3075 = vmatpush1.msra.mxu0 0.0
    %3076 = vmatprep.subr.mxu0 0.0
    %3077 = vmatpush1.msra.mxu0 0.0
    %3078 = vmatprep.subr.mxu0 0.0
    %3079 = vmatpush1.msra.mxu0 0.0
    %3080 = vmatprep.subr.mxu0 0.0
    %3081 = vmatpush1.msra.mxu0 0.0
    %3082 = vmatprep.subr.mxu0 0.0
    %3083 = vmatpush1.msra.mxu0 0.0
    %3084 = vmatprep.mubr.f32.mxu0 0.0
    %3085 = vmatmul.mubr.f32.gmra.mrb[0].mxu0 %v3018
    %v3086 = vpop.f32.mrb[0].mxu0
    %v3087 = vadd.f32 0.0, %v3086
    %v3088 = vpop.f32.mrb[0].mxu0
    %3089 = vdwg.mxu0
    %v3090 = vadd.f32 %v3007, %v3087
    %s3091 = scalar_lea.vmem [#allocation10], 256
    %v3092 = vld [vmem:[%s3091] sm:$0xff]
    %v3093 = vld [vmem:[%s3091 + $0x8] sm:$0xff]
    %v3094 = vld [vmem:[%s3091 + $0x10] sm:$0xff]
    %v3095 = vld [vmem:[%s3091 + $0x18] sm:$0xff]
    %v3096 = vld [vmem:[%s3091 + $0x20] sm:$0xff]
    %v3097 = vld [vmem:[%s3091 + $0x28] sm:$0xff]
    %v3098 = vld [vmem:[%s3091 + $0x30] sm:$0xff]
    %v3099 = vld [vmem:[%s3091 + $0x38] sm:$0xff]
    %v3101 = vsel %vm2780, %v2748, 0
    %3103 = vmatprep.subr.mxu0 0.0
    %3104 = vmatpush1.msra.mxu0 %v3092
    %3105 = vmatprep.subr.mxu0 0.0
    %3106 = vmatpush1.msra.mxu0 %v3093
    %3107 = vmatprep.subr.mxu0 0.0
    %3108 = vmatpush1.msra.mxu0 %v3094
    %3109 = vmatprep.subr.mxu0 0.0
    %3110 = vmatpush1.msra.mxu0 %v3095
    %3111 = vmatprep.subr.mxu0 0.0
    %3112 = vmatpush1.msra.mxu0 %v3096
    %3113 = vmatprep.subr.mxu0 0.0
    %3114 = vmatpush1.msra.mxu0 %v3097
    %3115 = vmatprep.subr.mxu0 0.0
    %3116 = vmatpush1.msra.mxu0 %v3098
    %3117 = vmatprep.subr.mxu0 0.0
    %3118 = vmatpush1.msra.mxu0 %v3099
    %3119 = vmatprep.subr.mxu0 0.0
    %3120 = vmatpush1.msra.mxu0 0.0
    %3121 = vmatprep.subr.mxu0 0.0
    %3122 = vmatpush1.msra.mxu0 0.0
    %3123 = vmatprep.subr.mxu0 0.0
    %3124 = vmatpush1.msra.mxu0 0.0
    %3125 = vmatprep.subr.mxu0 0.0
    %3126 = vmatpush1.msra.mxu0 0.0
    %3127 = vmatprep.subr.mxu0 0.0
    %3128 = vmatpush1.msra.mxu0 0.0
    %3129 = vmatprep.subr.mxu0 0.0
    %3130 = vmatpush1.msra.mxu0 0.0
    %3131 = vmatprep.subr.mxu0 0.0
    %3132 = vmatpush1.msra.mxu0 0.0
    %3133 = vmatprep.subr.mxu0 0.0
    %3134 = vmatpush1.msra.mxu0 0.0
    %3135 = vmatprep.subr.mxu0 0.0
    %3136 = vmatpush1.msra.mxu0 0.0
    %3137 = vmatprep.subr.mxu0 0.0
    %3138 = vmatpush1.msra.mxu0 0.0
    %3139 = vmatprep.subr.mxu0 0.0
    %3140 = vmatpush1.msra.mxu0 0.0
    %3141 = vmatprep.subr.mxu0 0.0
    %3142 = vmatpush1.msra.mxu0 0.0
    %3143 = vmatprep.subr.mxu0 0.0
    %3144 = vmatpush1.msra.mxu0 0.0
    %3145 = vmatprep.subr.mxu0 0.0
    %3146 = vmatpush1.msra.mxu0 0.0
    %3147 = vmatprep.subr.mxu0 0.0
    %3148 = vmatpush1.msra.mxu0 0.0
    %3149 = vmatprep.subr.mxu0 0.0
    %3150 = vmatpush1.msra.mxu0 0.0
    %3151 = vmatprep.subr.mxu0 0.0
    %3152 = vmatpush1.msra.mxu0 0.0
    %3153 = vmatprep.subr.mxu0 0.0
    %3154 = vmatpush1.msra.mxu0 0.0
    %3155 = vmatprep.subr.mxu0 0.0
    %3156 = vmatpush1.msra.mxu0 0.0
    %3157 = vmatprep.subr.mxu0 0.0
    %3158 = vmatpush1.msra.mxu0 0.0
    %3159 = vmatprep.subr.mxu0 0.0
    %3160 = vmatpush1.msra.mxu0 0.0
    %3161 = vmatprep.subr.mxu0 0.0
    %3162 = vmatpush1.msra.mxu0 0.0
    %3163 = vmatprep.subr.mxu0 0.0
    %3164 = vmatpush1.msra.mxu0 0.0
    %3165 = vmatprep.subr.mxu0 0.0
    %3166 = vmatpush1.msra.mxu0 0.0
    %3167 = vmatprep.mubr.f32.mxu0 0.0
    %3168 = vmatmul.mubr.f32.gmra.mrb[0].mxu0 %v3101
    %v3169 = vpop.f32.mrb[0].mxu0
    %v3170 = vadd.f32 0.0, %v3169
    %v3171 = vpop.f32.mrb[0].mxu0
    %3172 = vdwg.mxu0
    %v3173 = vadd.f32 %v3090, %v3170
    %s3174 = scalar_lea.vmem [#allocation10], 320
    %v3175 = vld [vmem:[%s3174] sm:$0xff]
    %v3176 = vld [vmem:[%s3174 + $0x8] sm:$0xff]
    %v3177 = vld [vmem:[%s3174 + $0x10] sm:$0xff]
    %v3178 = vld [vmem:[%s3174 + $0x18] sm:$0xff]
    %v3179 = vld [vmem:[%s3174 + $0x20] sm:$0xff]
    %v3180 = vld [vmem:[%s3174 + $0x28] sm:$0xff]
    %v3181 = vld [vmem:[%s3174 + $0x30] sm:$0xff]
    %v3182 = vld [vmem:[%s3174 + $0x38] sm:$0xff]
    %v3183 = vrot.slane %v2748, 2
    %v3184 = vsel %vm2780, %v3183, 0
    %3186 = vmatprep.subr.mxu0 0.0
    %3187 = vmatpush1.msra.mxu0 %v3175
    %3188 = vmatprep.subr.mxu0 0.0
    %3189 = vmatpush1.msra.mxu0 %v3176
    %3190 = vmatprep.subr.mxu0 0.0
    %3191 = vmatpush1.msra.mxu0 %v3177
    %3192 = vmatprep.subr.mxu0 0.0
    %3193 = vmatpush1.msra.mxu0 %v3178
    %3194 = vmatprep.subr.mxu0 0.0
    %3195 = vmatpush1.msra.mxu0 %v3179
    %3196 = vmatprep.subr.mxu0 0.0
    %3197 = vmatpush1.msra.mxu0 %v3180
    %3198 = vmatprep.subr.mxu0 0.0
    %3199 = vmatpush1.msra.mxu0 %v3181
    %3200 = vmatprep.subr.mxu0 0.0
    %3201 = vmatpush1.msra.mxu0 %v3182
    %3202 = vmatprep.subr.mxu0 0.0
    %3203 = vmatpush1.msra.mxu0 0.0
    %3204 = vmatprep.subr.mxu0 0.0
    %3205 = vmatpush1.msra.mxu0 0.0
    %3206 = vmatprep.subr.mxu0 0.0
    %3207 = vmatpush1.msra.mxu0 0.0
    %3208 = vmatprep.subr.mxu0 0.0
    %3209 = vmatpush1.msra.mxu0 0.0
    %3210 = vmatprep.subr.mxu0 0.0
    %3211 = vmatpush1.msra.mxu0 0.0
    %3212 = vmatprep.subr.mxu0 0.0
    %3213 = vmatpush1.msra.mxu0 0.0
    %3214 = vmatprep.subr.mxu0 0.0
    %3215 = vmatpush1.msra.mxu0 0.0
    %3216 = vmatprep.subr.mxu0 0.0
    %3217 = vmatpush1.msra.mxu0 0.0
    %3218 = vmatprep.subr.mxu0 0.0
    %3219 = vmatpush1.msra.mxu0 0.0
    %3220 = vmatprep.subr.mxu0 0.0
    %3221 = vmatpush1.msra.mxu0 0.0
    %3222 = vmatprep.subr.mxu0 0.0
    %3223 = vmatpush1.msra.mxu0 0.0
    %3224 = vmatprep.subr.mxu0 0.0
    %3225 = vmatpush1.msra.mxu0 0.0
    %3226 = vmatprep.subr.mxu0 0.0
    %3227 = vmatpush1.msra.mxu0 0.0
    %3228 = vmatprep.subr.mxu0 0.0
    %3229 = vmatpush1.msra.mxu0 0.0
    %3230 = vmatprep.subr.mxu0 0.0
    %3231 = vmatpush1.msra.mxu0 0.0
    %3232 = vmatprep.subr.mxu0 0.0
    %3233 = vmatpush1.msra.mxu0 0.0
    %3234 = vmatprep.subr.mxu0 0.0
    %3235 = vmatpush1.msra.mxu0 0.0
    %3236 = vmatprep.subr.mxu0 0.0
    %3237 = vmatpush1.msra.mxu0 0.0
    %3238 = vmatprep.subr.mxu0 0.0
    %3239 = vmatpush1.msra.mxu0 0.0
    %3240 = vmatprep.subr.mxu0 0.0
    %3241 = vmatpush1.msra.mxu0 0.0
    %3242 = vmatprep.subr.mxu0 0.0
    %3243 = vmatpush1.msra.mxu0 0.0
    %3244 = vmatprep.subr.mxu0 0.0
    %3245 = vmatpush1.msra.mxu0 0.0
    %3246 = vmatprep.subr.mxu0 0.0
    %3247 = vmatpush1.msra.mxu0 0.0
    %3248 = vmatprep.subr.mxu0 0.0
    %3249 = vmatpush1.msra.mxu0 0.0
    %3250 = vmatprep.mubr.f32.mxu0 0.0
    %3251 = vmatmul.mubr.f32.gmra.mrb[0].mxu0 %v3184
    %v3252 = vpop.f32.mrb[0].mxu0
    %v3253 = vadd.f32 0.0, %v3252
    %v3254 = vpop.f32.mrb[0].mxu0
    %3255 = vdwg.mxu0
    %v3256 = vadd.f32 %v3173, %v3253
    %s3257 = scalar_lea.vmem [#allocation10], 384
    %v3258 = vld [vmem:[%s3257] sm:$0xff]
    %v3259 = vld [vmem:[%s3257 + $0x8] sm:$0xff]
    %v3260 = vld [vmem:[%s3257 + $0x10] sm:$0xff]
    %v3261 = vld [vmem:[%s3257 + $0x18] sm:$0xff]
    %v3262 = vld [vmem:[%s3257 + $0x20] sm:$0xff]
    %v3263 = vld [vmem:[%s3257 + $0x28] sm:$0xff]
    %v3264 = vld [vmem:[%s3257 + $0x30] sm:$0xff]
    %v3265 = vld [vmem:[%s3257 + $0x38] sm:$0xff]
    %v3266 = vrot.slane %v2748, 4
    %v3267 = vsel %vm2780, %v3266, 0
    %3269 = vmatprep.subr.mxu0 0.0
    %3270 = vmatpush1.msra.mxu0 %v3258
    %3271 = vmatprep.subr.mxu0 0.0
    %3272 = vmatpush1.msra.mxu0 %v3259
    %3273 = vmatprep.subr.mxu0 0.0
    %3274 = vmatpush1.msra.mxu0 %v3260
    %3275 = vmatprep.subr.mxu0 0.0
    %3276 = vmatpush1.msra.mxu0 %v3261
    %3277 = vmatprep.subr.mxu0 0.0
    %3278 = vmatpush1.msra.mxu0 %v3262
    %3279 = vmatprep.subr.mxu0 0.0
    %3280 = vmatpush1.msra.mxu0 %v3263
    %3281 = vmatprep.subr.mxu0 0.0
    %3282 = vmatpush1.msra.mxu0 %v3264
    %3283 = vmatprep.subr.mxu0 0.0
    %3284 = vmatpush1.msra.mxu0 %v3265
    %3285 = vmatprep.subr.mxu0 0.0
    %3286 = vmatpush1.msra.mxu0 0.0
    %3287 = vmatprep.subr.mxu0 0.0
    %3288 = vmatpush1.msra.mxu0 0.0
    %3289 = vmatprep.subr.mxu0 0.0
    %3290 = vmatpush1.msra.mxu0 0.0
    %3291 = vmatprep.subr.mxu0 0.0
    %3292 = vmatpush1.msra.mxu0 0.0
    %3293 = vmatprep.subr.mxu0 0.0
    %3294 = vmatpush1.msra.mxu0 0.0
    %3295 = vmatprep.subr.mxu0 0.0
    %3296 = vmatpush1.msra.mxu0 0.0
    %3297 = vmatprep.subr.mxu0 0.0
    %3298 = vmatpush1.msra.mxu0 0.0
    %3299 = vmatprep.subr.mxu0 0.0
    %3300 = vmatpush1.msra.mxu0 0.0
    %3301 = vmatprep.subr.mxu0 0.0
    %3302 = vmatpush1.msra.mxu0 0.0
    %3303 = vmatprep.subr.mxu0 0.0
    %3304 = vmatpush1.msra.mxu0 0.0
    %3305 = vmatprep.subr.mxu0 0.0
    %3306 = vmatpush1.msra.mxu0 0.0
    %3307 = vmatprep.subr.mxu0 0.0
    %3308 = vmatpush1.msra.mxu0 0.0
    %3309 = vmatprep.subr.mxu0 0.0
    %3310 = vmatpush1.msra.mxu0 0.0
    %3311 = vmatprep.subr.mxu0 0.0
    %3312 = vmatpush1.msra.mxu0 0.0
    %3313 = vmatprep.subr.mxu0 0.0
    %3314 = vmatpush1.msra.mxu0 0.0
    %3315 = vmatprep.subr.mxu0 0.0
    %3316 = vmatpush1.msra.mxu0 0.0
    %3317 = vmatprep.subr.mxu0 0.0
    %3318 = vmatpush1.msra.mxu0 0.0
    %3319 = vmatprep.subr.mxu0 0.0
    %3320 = vmatpush1.msra.mxu0 0.0
    %3321 = vmatprep.subr.mxu0 0.0
    %3322 = vmatpush1.msra.mxu0 0.0
    %3323 = vmatprep.subr.mxu0 0.0
    %3324 = vmatpush1.msra.mxu0 0.0
    %3325 = vmatprep.subr.mxu0 0.0
    %3326 = vmatpush1.msra.mxu0 0.0
    %3327 = vmatprep.subr.mxu0 0.0
    %3328 = vmatpush1.msra.mxu0 0.0
    %3329 = vmatprep.subr.mxu0 0.0
    %3330 = vmatpush1.msra.mxu0 0.0
    %3331 = vmatprep.subr.mxu0 0.0
    %3332 = vmatpush1.msra.mxu0 0.0
    %3333 = vmatprep.mubr.f32.mxu0 0.0
    %3334 = vmatmul.mubr.f32.gmra.mrb[0].mxu0 %v3267
    %v3335 = vpop.f32.mrb[0].mxu0
    %v3336 = vadd.f32 0.0, %v3335
    %v3337 = vpop.f32.mrb[0].mxu0
    %3338 = vdwg.mxu0
    %v3339 = vadd.f32 %v3256, %v3336
    %s3340 = scalar_lea.vmem [#allocation10], 448
    %v3341 = vld [vmem:[%s3340] sm:$0xff]
    %v3342 = vld [vmem:[%s3340 + $0x8] sm:$0xff]
    %v3343 = vld [vmem:[%s3340 + $0x10] sm:$0xff]
    %v3344 = vld [vmem:[%s3340 + $0x18] sm:$0xff]
    %v3345 = vld [vmem:[%s3340 + $0x20] sm:$0xff]
    %v3346 = vld [vmem:[%s3340 + $0x28] sm:$0xff]
    %v3347 = vld [vmem:[%s3340 + $0x30] sm:$0xff]
    %v3348 = vld [vmem:[%s3340 + $0x38] sm:$0xff]
    %v3349 = vrot.slane %v2748, 6
    %v3350 = vsel %vm2780, %v3349, 0
    %3352 = vmatprep.subr.mxu0 0.0
    %3353 = vmatpush1.msra.mxu0 %v3341
    %3354 = vmatprep.subr.mxu0 0.0
    %3355 = vmatpush1.msra.mxu0 %v3342
    %3356 = vmatprep.subr.mxu0 0.0
    %3357 = vmatpush1.msra.mxu0 %v3343
    %3358 = vmatprep.subr.mxu0 0.0
    %3359 = vmatpush1.msra.mxu0 %v3344
    %3360 = vmatprep.subr.mxu0 0.0
    %3361 = vmatpush1.msra.mxu0 %v3345
    %3362 = vmatprep.subr.mxu0 0.0
    %3363 = vmatpush1.msra.mxu0 %v3346
    %3364 = vmatprep.subr.mxu0 0.0
    %3365 = vmatpush1.msra.mxu0 %v3347
    %3366 = vmatprep.subr.mxu0 0.0
    %3367 = vmatpush1.msra.mxu0 %v3348
    %3368 = vmatprep.subr.mxu0 0.0
    %3369 = vmatpush1.msra.mxu0 0.0
    %3370 = vmatprep.subr.mxu0 0.0
    %3371 = vmatpush1.msra.mxu0 0.0
    %3372 = vmatprep.subr.mxu0 0.0
    %3373 = vmatpush1.msra.mxu0 0.0
    %3374 = vmatprep.subr.mxu0 0.0
    %3375 = vmatpush1.msra.mxu0 0.0
    %3376 = vmatprep.subr.mxu0 0.0
    %3377 = vmatpush1.msra.mxu0 0.0
    %3378 = vmatprep.subr.mxu0 0.0
    %3379 = vmatpush1.msra.mxu0 0.0
    %3380 = vmatprep.subr.mxu0 0.0
    %3381 = vmatpush1.msra.mxu0 0.0
    %3382 = vmatprep.subr.mxu0 0.0
    %3383 = vmatpush1.msra.mxu0 0.0
    %3384 = vmatprep.subr.mxu0 0.0
    %3385 = vmatpush1.msra.mxu0 0.0
    %3386 = vmatprep.subr.mxu0 0.0
    %3387 = vmatpush1.msra.mxu0 0.0
    %3388 = vmatprep.subr.mxu0 0.0
    %3389 = vmatpush1.msra.mxu0 0.0
    %3390 = vmatprep.subr.mxu0 0.0
    %3391 = vmatpush1.msra.mxu0 0.0
    %3392 = vmatprep.subr.mxu0 0.0
    %3393 = vmatpush1.msra.mxu0 0.0
    %3394 = vmatprep.subr.mxu0 0.0
    %3395 = vmatpush1.msra.mxu0 0.0
    %3396 = vmatprep.subr.mxu0 0.0
    %3397 = vmatpush1.msra.mxu0 0.0
    %3398 = vmatprep.subr.mxu0 0.0
    %3399 = vmatpush1.msra.mxu0 0.0
    %3400 = vmatprep.subr.mxu0 0.0
    %3401 = vmatpush1.msra.mxu0 0.0
    %3402 = vmatprep.subr.mxu0 0.0
    %3403 = vmatpush1.msra.mxu0 0.0
    %3404 = vmatprep.subr.mxu0 0.0
    %3405 = vmatpush1.msra.mxu0 0.0
    %3406 = vmatprep.subr.mxu0 0.0
    %3407 = vmatpush1.msra.mxu0 0.0
    %3408 = vmatprep.subr.mxu0 0.0
    %3409 = vmatpush1.msra.mxu0 0.0
    %3410 = vmatprep.subr.mxu0 0.0
    %3411 = vmatpush1.msra.mxu0 0.0
    %3412 = vmatprep.subr.mxu0 0.0
    %3413 = vmatpush1.msra.mxu0 0.0
    %3414 = vmatprep.subr.mxu0 0.0
    %3415 = vmatpush1.msra.mxu0 0.0
    %3416 = vmatprep.mubr.f32.mxu0 0.0
    %3417 = vmatmul.mubr.f32.gmra.mrb[0].mxu0 %v3350
    %v3418 = vpop.f32.mrb[0].mxu0
    %v3419 = vadd.f32 0.0, %v3418
    %v3420 = vpop.f32.mrb[0].mxu0
    %3421 = vdwg.mxu0
    %v3422 = vadd.f32 %v3339, %v3419
    %s3423 = scalar_lea.vmem [#allocation10], 512
    %v3424 = vld [vmem:[%s3423] sm:$0xff]
    %v3425 = vld [vmem:[%s3423 + $0x8] sm:$0xff]
    %v3426 = vld [vmem:[%s3423 + $0x10] sm:$0xff]
    %v3427 = vld [vmem:[%s3423 + $0x18] sm:$0xff]
    %v3428 = vld [vmem:[%s3423 + $0x20] sm:$0xff]
    %v3429 = vld [vmem:[%s3423 + $0x28] sm:$0xff]
    %v3430 = vld [vmem:[%s3423 + $0x30] sm:$0xff]
    %v3431 = vld [vmem:[%s3423 + $0x38] sm:$0xff]
    %v3433 = vsel %vm2780, %v2749, 0
    %3435 = vmatprep.subr.mxu0 0.0
    %3436 = vmatpush1.msra.mxu0 %v3424
    %3437 = vmatprep.subr.mxu0 0.0
    %3438 = vmatpush1.msra.mxu0 %v3425
    %3439 = vmatprep.subr.mxu0 0.0
    %3440 = vmatpush1.msra.mxu0 %v3426
    %3441 = vmatprep.subr.mxu0 0.0
    %3442 = vmatpush1.msra.mxu0 %v3427
    %3443 = vmatprep.subr.mxu0 0.0
    %3444 = vmatpush1.msra.mxu0 %v3428
    %3445 = vmatprep.subr.mxu0 0.0
    %3446 = vmatpush1.msra.mxu0 %v3429
    %3447 = vmatprep.subr.mxu0 0.0
    %3448 = vmatpush1.msra.mxu0 %v3430
    %3449 = vmatprep.subr.mxu0 0.0
    %3450 = vmatpush1.msra.mxu0 %v3431
    %3451 = vmatprep.subr.mxu0 0.0
    %3452 = vmatpush1.msra.mxu0 0.0
    %3453 = vmatprep.subr.mxu0 0.0
    %3454 = vmatpush1.msra.mxu0 0.0
    %3455 = vmatprep.subr.mxu0 0.0
    %3456 = vmatpush1.msra.mxu0 0.0
    %3457 = vmatprep.subr.mxu0 0.0
    %3458 = vmatpush1.msra.mxu0 0.0
    %3459 = vmatprep.subr.mxu0 0.0
    %3460 = vmatpush1.msra.mxu0 0.0
    %3461 = vmatprep.subr.mxu0 0.0
    %3462 = vmatpush1.msra.mxu0 0.0
    %3463 = vmatprep.subr.mxu0 0.0
    %3464 = vmatpush1.msra.mxu0 0.0
    %3465 = vmatprep.subr.mxu0 0.0
    %3466 = vmatpush1.msra.mxu0 0.0
    %3467 = vmatprep.subr.mxu0 0.0
    %3468 = vmatpush1.msra.mxu0 0.0
    %3469 = vmatprep.subr.mxu0 0.0
    %3470 = vmatpush1.msra.mxu0 0.0
    %3471 = vmatprep.subr.mxu0 0.0
    %3472 = vmatpush1.msra.mxu0 0.0
    %3473 = vmatprep.subr.mxu0 0.0
    %3474 = vmatpush1.msra.mxu0 0.0
    %3475 = vmatprep.subr.mxu0 0.0
    %3476 = vmatpush1.msra.mxu0 0.0
    %3477 = vmatprep.subr.mxu0 0.0
    %3478 = vmatpush1.msra.mxu0 0.0
    %3479 = vmatprep.subr.mxu0 0.0
    %3480 = vmatpush1.msra.mxu0 0.0
    %3481 = vmatprep.subr.mxu0 0.0
    %3482 = vmatpush1.msra.mxu0 0.0
    %3483 = vmatprep.subr.mxu0 0.0
    %3484 = vmatpush1.msra.mxu0 0.0
    %3485 = vmatprep.subr.mxu0 0.0
    %3486 = vmatpush1.msra.mxu0 0.0
    %3487 = vmatprep.subr.mxu0 0.0
    %3488 = vmatpush1.msra.mxu0 0.0
    %3489 = vmatprep.subr.mxu0 0.0
    %3490 = vmatpush1.msra.mxu0 0.0
    %3491 = vmatprep.subr.mxu0 0.0
    %3492 = vmatpush1.msra.mxu0 0.0
    %3493 = vmatprep.subr.mxu0 0.0
    %3494 = vmatpush1.msra.mxu0 0.0
    %3495 = vmatprep.subr.mxu0 0.0
    %3496 = vmatpush1.msra.mxu0 0.0
    %3497 = vmatprep.subr.mxu0 0.0
    %3498 = vmatpush1.msra.mxu0 0.0
    %3499 = vmatprep.mubr.f32.mxu0 0.0
    %3500 = vmatmul.mubr.f32.gmra.mrb[0].mxu0 %v3433
    %v3501 = vpop.f32.mrb[0].mxu0
    %v3502 = vadd.f32 0.0, %v3501
    %v3503 = vpop.f32.mrb[0].mxu0
    %3504 = vdwg.mxu0
    %v3505 = vadd.f32 %v3422, %v3502
    %s3506 = scalar_lea.vmem [#allocation10], 576
    %v3507 = vld [vmem:[%s3506] sm:$0xff]
    %v3508 = vld [vmem:[%s3506 + $0x8] sm:$0xff]
    %v3509 = vld [vmem:[%s3506 + $0x10] sm:$0xff]
    %v3510 = vld [vmem:[%s3506 + $0x18] sm:$0xff]
    %v3511 = vld [vmem:[%s3506 + $0x20] sm:$0xff]
    %v3512 = vld [vmem:[%s3506 + $0x28] sm:$0xff]
    %v3513 = vld [vmem:[%s3506 + $0x30] sm:$0xff]
    %v3514 = vld [vmem:[%s3506 + $0x38] sm:$0xff]
    %v3515 = vrot.slane %v2749, 2
    %v3516 = vsel %vm2780, %v3515, 0
    %3518 = vmatprep.subr.mxu0 0.0
    %3519 = vmatpush1.msra.mxu0 %v3507
    %3520 = vmatprep.subr.mxu0 0.0
    %3521 = vmatpush1.msra.mxu0 %v3508
    %3522 = vmatprep.subr.mxu0 0.0
    %3523 = vmatpush1.msra.mxu0 %v3509
    %3524 = vmatprep.subr.mxu0 0.0
    %3525 = vmatpush1.msra.mxu0 %v3510
    %3526 = vmatprep.subr.mxu0 0.0
    %3527 = vmatpush1.msra.mxu0 %v3511
    %3528 = vmatprep.subr.mxu0 0.0
    %3529 = vmatpush1.msra.mxu0 %v3512
    %3530 = vmatprep.subr.mxu0 0.0
    %3531 = vmatpush1.msra.mxu0 %v3513
    %3532 = vmatprep.subr.mxu0 0.0
    %3533 = vmatpush1.msra.mxu0 %v3514
    %3534 = vmatprep.subr.mxu0 0.0
    %3535 = vmatpush1.msra.mxu0 0.0
    %3536 = vmatprep.subr.mxu0 0.0
    %3537 = vmatpush1.msra.mxu0 0.0
    %3538 = vmatprep.subr.mxu0 0.0
    %3539 = vmatpush1.msra.mxu0 0.0
    %3540 = vmatprep.subr.mxu0 0.0
    %3541 = vmatpush1.msra.mxu0 0.0
    %3542 = vmatprep.subr.mxu0 0.0
    %3543 = vmatpush1.msra.mxu0 0.0
    %3544 = vmatprep.subr.mxu0 0.0
    %3545 = vmatpush1.msra.mxu0 0.0
    %3546 = vmatprep.subr.mxu0 0.0
    %3547 = vmatpush1.msra.mxu0 0.0
    %3548 = vmatprep.subr.mxu0 0.0
    %3549 = vmatpush1.msra.mxu0 0.0
    %3550 = vmatprep.subr.mxu0 0.0
    %3551 = vmatpush1.msra.mxu0 0.0
    %3552 = vmatprep.subr.mxu0 0.0
    %3553 = vmatpush1.msra.mxu0 0.0
    %3554 = vmatprep.subr.mxu0 0.0
    %3555 = vmatpush1.msra.mxu0 0.0
    %3556 = vmatprep.subr.mxu0 0.0
    %3557 = vmatpush1.msra.mxu0 0.0
    %3558 = vmatprep.subr.mxu0 0.0
    %3559 = vmatpush1.msra.mxu0 0.0
    %3560 = vmatprep.subr.mxu0 0.0
    %3561 = vmatpush1.msra.mxu0 0.0
    %3562 = vmatprep.subr.mxu0 0.0
    %3563 = vmatpush1.msra.mxu0 0.0
    %3564 = vmatprep.subr.mxu0 0.0
    %3565 = vmatpush1.msra.mxu0 0.0
    %3566 = vmatprep.subr.mxu0 0.0
    %3567 = vmatpush1.msra.mxu0 0.0
    %3568 = vmatprep.subr.mxu0 0.0
    %3569 = vmatpush1.msra.mxu0 0.0
    %3570 = vmatprep.subr.mxu0 0.0
    %3571 = vmatpush1.msra.mxu0 0.0
    %3572 = vmatprep.subr.mxu0 0.0
    %3573 = vmatpush1.msra.mxu0 0.0
    %3574 = vmatprep.subr.mxu0 0.0
    %3575 = vmatpush1.msra.mxu0 0.0
    %3576 = vmatprep.subr.mxu0 0.0
    %3577 = vmatpush1.msra.mxu0 0.0
    %3578 = vmatprep.subr.mxu0 0.0
    %3579 = vmatpush1.msra.mxu0 0.0
    %3580 = vmatprep.subr.mxu0 0.0
    %3581 = vmatpush1.msra.mxu0 0.0
    %3582 = vmatprep.mubr.f32.mxu0 0.0
    %3583 = vmatmul.mubr.f32.gmra.mrb[0].mxu0 %v3516
    %v3584 = vpop.f32.mrb[0].mxu0
    %v3585 = vadd.f32 0.0, %v3584
    %v3586 = vpop.f32.mrb[0].mxu0
    %3587 = vdwg.mxu0
    %v3588 = vadd.f32 %v3505, %v3585
    %s3589 = scalar_lea.vmem [#allocation10], 640
    %v3590 = vld [vmem:[%s3589] sm:$0xff]
    %v3591 = vld [vmem:[%s3589 + $0x8] sm:$0xff]
    %v3592 = vld [vmem:[%s3589 + $0x10] sm:$0xff]
    %v3593 = vld [vmem:[%s3589 + $0x18] sm:$0xff]
    %v3594 = vld [vmem:[%s3589 + $0x20] sm:$0xff]
    %v3595 = vld [vmem:[%s3589 + $0x28] sm:$0xff]
    %v3596 = vld [vmem:[%s3589 + $0x30] sm:$0xff]
    %v3597 = vld [vmem:[%s3589 + $0x38] sm:$0xff]
    %v3598 = vrot.slane %v2749, 4
    %v3599 = vsel %vm2780, %v3598, 0
    %3601 = vmatprep.subr.mxu0 0.0
    %3602 = vmatpush1.msra.mxu0 %v3590
    %3603 = vmatprep.subr.mxu0 0.0
    %3604 = vmatpush1.msra.mxu0 %v3591
    %3605 = vmatprep.subr.mxu0 0.0
    %3606 = vmatpush1.msra.mxu0 %v3592
    %3607 = vmatprep.subr.mxu0 0.0
    %3608 = vmatpush1.msra.mxu0 %v3593
    %3609 = vmatprep.subr.mxu0 0.0
    %3610 = vmatpush1.msra.mxu0 %v3594
    %3611 = vmatprep.subr.mxu0 0.0
    %3612 = vmatpush1.msra.mxu0 %v3595
    %3613 = vmatprep.subr.mxu0 0.0
    %3614 = vmatpush1.msra.mxu0 %v3596
    %3615 = vmatprep.subr.mxu0 0.0
    %3616 = vmatpush1.msra.mxu0 %v3597
    %3617 = vmatprep.subr.mxu0 0.0
    %3618 = vmatpush1.msra.mxu0 0.0
    %3619 = vmatprep.subr.mxu0 0.0
    %3620 = vmatpush1.msra.mxu0 0.0
    %3621 = vmatprep.subr.mxu0 0.0
    %3622 = vmatpush1.msra.mxu0 0.0
    %3623 = vmatprep.subr.mxu0 0.0
    %3624 = vmatpush1.msra.mxu0 0.0
    %3625 = vmatprep.subr.mxu0 0.0
    %3626 = vmatpush1.msra.mxu0 0.0
    %3627 = vmatprep.subr.mxu0 0.0
    %3628 = vmatpush1.msra.mxu0 0.0
    %3629 = vmatprep.subr.mxu0 0.0
    %3630 = vmatpush1.msra.mxu0 0.0
    %3631 = vmatprep.subr.mxu0 0.0
    %3632 = vmatpush1.msra.mxu0 0.0
    %3633 = vmatprep.subr.mxu0 0.0
    %3634 = vmatpush1.msra.mxu0 0.0
    %3635 = vmatprep.subr.mxu0 0.0
    %3636 = vmatpush1.msra.mxu0 0.0
    %3637 = vmatprep.subr.mxu0 0.0
    %3638 = vmatpush1.msra.mxu0 0.0
    %3639 = vmatprep.subr.mxu0 0.0
    %3640 = vmatpush1.msra.mxu0 0.0
    %3641 = vmatprep.subr.mxu0 0.0
    %3642 = vmatpush1.msra.mxu0 0.0
    %3643 = vmatprep.subr.mxu0 0.0
    %3644 = vmatpush1.msra.mxu0 0.0
    %3645 = vmatprep.subr.mxu0 0.0
    %3646 = vmatpush1.msra.mxu0 0.0
    %3647 = vmatprep.subr.mxu0 0.0
    %3648 = vmatpush1.msra.mxu0 0.0
    %3649 = vmatprep.subr.mxu0 0.0
    %3650 = vmatpush1.msra.mxu0 0.0
    %3651 = vmatprep.subr.mxu0 0.0
    %3652 = vmatpush1.msra.mxu0 0.0
    %3653 = vmatprep.subr.mxu0 0.0
    %3654 = vmatpush1.msra.mxu0 0.0
    %3655 = vmatprep.subr.mxu0 0.0
    %3656 = vmatpush1.msra.mxu0 0.0
    %3657 = vmatprep.subr.mxu0 0.0
    %3658 = vmatpush1.msra.mxu0 0.0
    %3659 = vmatprep.subr.mxu0 0.0
    %3660 = vmatpush1.msra.mxu0 0.0
    %3661 = vmatprep.subr.mxu0 0.0
    %3662 = vmatpush1.msra.mxu0 0.0
    %3663 = vmatprep.subr.mxu0 0.0
    %3664 = vmatpush1.msra.mxu0 0.0
    %3665 = vmatprep.mubr.f32.mxu0 0.0
    %3666 = vmatmul.mubr.f32.gmra.mrb[0].mxu0 %v3599
    %v3667 = vpop.f32.mrb[0].mxu0
    %v3668 = vadd.f32 0.0, %v3667
    %v3669 = vpop.f32.mrb[0].mxu0
    %3670 = vdwg.mxu0
    %v3671 = vadd.f32 %v3588, %v3668
    %s3672 = scalar_lea.vmem [#allocation10], 704
    %v3673 = vld [vmem:[%s3672] sm:$0xff]
    %v3674 = vld [vmem:[%s3672 + $0x8] sm:$0xff]
    %v3675 = vld [vmem:[%s3672 + $0x10] sm:$0xff]
    %v3676 = vld [vmem:[%s3672 + $0x18] sm:$0xff]
    %v3677 = vld [vmem:[%s3672 + $0x20] sm:$0xff]
    %v3678 = vld [vmem:[%s3672 + $0x28] sm:$0xff]
    %v3679 = vld [vmem:[%s3672 + $0x30] sm:$0xff]
    %v3680 = vld [vmem:[%s3672 + $0x38] sm:$0xff]
    %v3681 = vrot.slane %v2749, 6
    %v3682 = vsel %vm2780, %v3681, 0
    %3684 = vmatprep.subr.mxu0 0.0
    %3685 = vmatpush1.msra.mxu0 %v3673
    %3686 = vmatprep.subr.mxu0 0.0
    %3687 = vmatpush1.msra.mxu0 %v3674
    %3688 = vmatprep.subr.mxu0 0.0
    %3689 = vmatpush1.msra.mxu0 %v3675
    %3690 = vmatprep.subr.mxu0 0.0
    %3691 = vmatpush1.msra.mxu0 %v3676
    %3692 = vmatprep.subr.mxu0 0.0
    %3693 = vmatpush1.msra.mxu0 %v3677
    %3694 = vmatprep.subr.mxu0 0.0
    %3695 = vmatpush1.msra.mxu0 %v3678
    %3696 = vmatprep.subr.mxu0 0.0
    %3697 = vmatpush1.msra.mxu0 %v3679
    %3698 = vmatprep.subr.mxu0 0.0
    %3699 = vmatpush1.msra.mxu0 %v3680
    %3700 = vmatprep.subr.mxu0 0.0
    %3701 = vmatpush1.msra.mxu0 0.0
    %3702 = vmatprep.subr.mxu0 0.0
    %3703 = vmatpush1.msra.mxu0 0.0
    %3704 = vmatprep.subr.mxu0 0.0
    %3705 = vmatpush1.msra.mxu0 0.0
    %3706 = vmatprep.subr.mxu0 0.0
    %3707 = vmatpush1.msra.mxu0 0.0
    %3708 = vmatprep.subr.mxu0 0.0
    %3709 = vmatpush1.msra.mxu0 0.0
    %3710 = vmatprep.subr.mxu0 0.0
    %3711 = vmatpush1.msra.mxu0 0.0
    %3712 = vmatprep.subr.mxu0 0.0
    %3713 = vmatpush1.msra.mxu0 0.0
    %3714 = vmatprep.subr.mxu0 0.0
    %3715 = vmatpush1.msra.mxu0 0.0
    %3716 = vmatprep.subr.mxu0 0.0
    %3717 = vmatpush1.msra.mxu0 0.0
    %3718 = vmatprep.subr.mxu0 0.0
    %3719 = vmatpush1.msra.mxu0 0.0
    %3720 = vmatprep.subr.mxu0 0.0
    %3721 = vmatpush1.msra.mxu0 0.0
    %3722 = vmatprep.subr.mxu0 0.0
    %3723 = vmatpush1.msra.mxu0 0.0
    %3724 = vmatprep.subr.mxu0 0.0
    %3725 = vmatpush1.msra.mxu0 0.0
    %3726 = vmatprep.subr.mxu0 0.0
    %3727 = vmatpush1.msra.mxu0 0.0
    %3728 = vmatprep.subr.mxu0 0.0
    %3729 = vmatpush1.msra.mxu0 0.0
    %3730 = vmatprep.subr.mxu0 0.0
    %3731 = vmatpush1.msra.mxu0 0.0
    %3732 = vmatprep.subr.mxu0 0.0
    %3733 = vmatpush1.msra.mxu0 0.0
    %3734 = vmatprep.subr.mxu0 0.0
    %3735 = vmatpush1.msra.mxu0 0.0
    %3736 = vmatprep.subr.mxu0 0.0
    %3737 = vmatpush1.msra.mxu0 0.0
    %3738 = vmatprep.subr.mxu0 0.0
    %3739 = vmatpush1.msra.mxu0 0.0
    %3740 = vmatprep.subr.mxu0 0.0
    %3741 = vmatpush1.msra.mxu0 0.0
    %3742 = vmatprep.subr.mxu0 0.0
    %3743 = vmatpush1.msra.mxu0 0.0
    %3744 = vmatprep.subr.mxu0 0.0
    %3745 = vmatpush1.msra.mxu0 0.0
    %3746 = vmatprep.subr.mxu0 0.0
    %3747 = vmatpush1.msra.mxu0 0.0
    %3748 = vmatprep.mubr.f32.mxu0 0.0
    %3749 = vmatmul.mubr.f32.gmra.mrb[0].mxu0 %v3682
    %v3750 = vpop.f32.mrb[0].mxu0
    %v3751 = vadd.f32 0.0, %v3750
    %v3752 = vpop.f32.mrb[0].mxu0
    %3753 = vdwg.mxu0
    %v3754 = vadd.f32 %v3671, %v3751
    %s3755 = scalar_lea.vmem [#allocation10], 768
    %v3756 = vld [vmem:[%s3755] sm:$0xff]
    %v3757 = vld [vmem:[%s3755 + $0x8] sm:$0xff]
    %v3758 = vld [vmem:[%s3755 + $0x10] sm:$0xff]
    %v3759 = vld [vmem:[%s3755 + $0x18] sm:$0xff]
    %v3760 = vld [vmem:[%s3755 + $0x20] sm:$0xff]
    %v3761 = vld [vmem:[%s3755 + $0x28] sm:$0xff]
    %v3762 = vld [vmem:[%s3755 + $0x30] sm:$0xff]
    %v3763 = vld [vmem:[%s3755 + $0x38] sm:$0xff]
    %v3765 = vsel %vm2780, %v2750, 0
    %3767 = vmatprep.subr.mxu0 0.0
    %3768 = vmatpush1.msra.mxu0 %v3756
    %3769 = vmatprep.subr.mxu0 0.0
    %3770 = vmatpush1.msra.mxu0 %v3757
    %3771 = vmatprep.subr.mxu0 0.0
    %3772 = vmatpush1.msra.mxu0 %v3758
    %3773 = vmatprep.subr.mxu0 0.0
    %3774 = vmatpush1.msra.mxu0 %v3759
    %3775 = vmatprep.subr.mxu0 0.0
    %3776 = vmatpush1.msra.mxu0 %v3760
    %3777 = vmatprep.subr.mxu0 0.0
    %3778 = vmatpush1.msra.mxu0 %v3761
    %3779 = vmatprep.subr.mxu0 0.0
    %3780 = vmatpush1.msra.mxu0 %v3762
    %3781 = vmatprep.subr.mxu0 0.0
    %3782 = vmatpush1.msra.mxu0 %v3763
    %3783 = vmatprep.subr.mxu0 0.0
    %3784 = vmatpush1.msra.mxu0 0.0
    %3785 = vmatprep.subr.mxu0 0.0
    %3786 = vmatpush1.msra.mxu0 0.0
    %3787 = vmatprep.subr.mxu0 0.0
    %3788 = vmatpush1.msra.mxu0 0.0
    %3789 = vmatprep.subr.mxu0 0.0
    %3790 = vmatpush1.msra.mxu0 0.0
    %3791 = vmatprep.subr.mxu0 0.0
    %3792 = vmatpush1.msra.mxu0 0.0
    %3793 = vmatprep.subr.mxu0 0.0
    %3794 = vmatpush1.msra.mxu0 0.0
    %3795 = vmatprep.subr.mxu0 0.0
    %3796 = vmatpush1.msra.mxu0 0.0
    %3797 = vmatprep.subr.mxu0 0.0
    %3798 = vmatpush1.msra.mxu0 0.0
    %3799 = vmatprep.subr.mxu0 0.0
    %3800 = vmatpush1.msra.mxu0 0.0
    %3801 = vmatprep.subr.mxu0 0.0
    %3802 = vmatpush1.msra.mxu0 0.0
    %3803 = vmatprep.subr.mxu0 0.0
    %3804 = vmatpush1.msra.mxu0 0.0
    %3805 = vmatprep.subr.mxu0 0.0
    %3806 = vmatpush1.msra.mxu0 0.0
    %3807 = vmatprep.subr.mxu0 0.0
    %3808 = vmatpush1.msra.mxu0 0.0
    %3809 = vmatprep.subr.mxu0 0.0
    %3810 = vmatpush1.msra.mxu0 0.0
    %3811 = vmatprep.subr.mxu0 0.0
    %3812 = vmatpush1.msra.mxu0 0.0
    %3813 = vmatprep.subr.mxu0 0.0
    %3814 = vmatpush1.msra.mxu0 0.0
    %3815 = vmatprep.subr.mxu0 0.0
    %3816 = vmatpush1.msra.mxu0 0.0
    %3817 = vmatprep.subr.mxu0 0.0
    %3818 = vmatpush1.msra.mxu0 0.0
    %3819 = vmatprep.subr.mxu0 0.0
    %3820 = vmatpush1.msra.mxu0 0.0
    %3821 = vmatprep.subr.mxu0 0.0
    %3822 = vmatpush1.msra.mxu0 0.0
    %3823 = vmatprep.subr.mxu0 0.0
    %3824 = vmatpush1.msra.mxu0 0.0
    %3825 = vmatprep.subr.mxu0 0.0
    %3826 = vmatpush1.msra.mxu0 0.0
    %3827 = vmatprep.subr.mxu0 0.0
    %3828 = vmatpush1.msra.mxu0 0.0
    %3829 = vmatprep.subr.mxu0 0.0
    %3830 = vmatpush1.msra.mxu0 0.0
    %3831 = vmatprep.mubr.f32.mxu0 0.0
    %3832 = vmatmul.mubr.f32.gmra.mrb[0].mxu0 %v3765
    %v3833 = vpop.f32.mrb[0].mxu0
    %v3834 = vadd.f32 0.0, %v3833
    %v3835 = vpop.f32.mrb[0].mxu0
    %3836 = vdwg.mxu0
    %v3837 = vadd.f32 %v3754, %v3834
    %s3838 = scalar_lea.vmem [#allocation10], 832
    %v3839 = vld [vmem:[%s3838] sm:$0xff]
    %v3840 = vld [vmem:[%s3838 + $0x8] sm:$0xff]
    %v3841 = vld [vmem:[%s3838 + $0x10] sm:$0xff]
    %v3842 = vld [vmem:[%s3838 + $0x18] sm:$0xff]
    %v3843 = vld [vmem:[%s3838 + $0x20] sm:$0xff]
    %v3844 = vld [vmem:[%s3838 + $0x28] sm:$0xff]
    %v3845 = vld [vmem:[%s3838 + $0x30] sm:$0xff]
    %v3846 = vld [vmem:[%s3838 + $0x38] sm:$0xff]
    %v3847 = vrot.slane %v2750, 2
    %v3848 = vsel %vm2780, %v3847, 0
    %3850 = vmatprep.subr.mxu0 0.0
    %3851 = vmatpush1.msra.mxu0 %v3839
    %3852 = vmatprep.subr.mxu0 0.0
    %3853 = vmatpush1.msra.mxu0 %v3840
    %3854 = vmatprep.subr.mxu0 0.0
    %3855 = vmatpush1.msra.mxu0 %v3841
    %3856 = vmatprep.subr.mxu0 0.0
    %3857 = vmatpush1.msra.mxu0 %v3842
    %3858 = vmatprep.subr.mxu0 0.0
    %3859 = vmatpush1.msra.mxu0 %v3843
    %3860 = vmatprep.subr.mxu0 0.0
    %3861 = vmatpush1.msra.mxu0 %v3844
    %3862 = vmatprep.subr.mxu0 0.0
    %3863 = vmatpush1.msra.mxu0 %v3845
    %3864 = vmatprep.subr.mxu0 0.0
    %3865 = vmatpush1.msra.mxu0 %v3846
    %3866 = vmatprep.subr.mxu0 0.0
    %3867 = vmatpush1.msra.mxu0 0.0
    %3868 = vmatprep.subr.mxu0 0.0
    %3869 = vmatpush1.msra.mxu0 0.0
    %3870 = vmatprep.subr.mxu0 0.0
    %3871 = vmatpush1.msra.mxu0 0.0
    %3872 = vmatprep.subr.mxu0 0.0
    %3873 = vmatpush1.msra.mxu0 0.0
    %3874 = vmatprep.subr.mxu0 0.0
    %3875 = vmatpush1.msra.mxu0 0.0
    %3876 = vmatprep.subr.mxu0 0.0
    %3877 = vmatpush1.msra.mxu0 0.0
    %3878 = vmatprep.subr.mxu0 0.0
    %3879 = vmatpush1.msra.mxu0 0.0
    %3880 = vmatprep.subr.mxu0 0.0
    %3881 = vmatpush1.msra.mxu0 0.0
    %3882 = vmatprep.subr.mxu0 0.0
    %3883 = vmatpush1.msra.mxu0 0.0
    %3884 = vmatprep.subr.mxu0 0.0
    %3885 = vmatpush1.msra.mxu0 0.0
    %3886 = vmatprep.subr.mxu0 0.0
    %3887 = vmatpush1.msra.mxu0 0.0
    %3888 = vmatprep.subr.mxu0 0.0
    %3889 = vmatpush1.msra.mxu0 0.0
    %3890 = vmatprep.subr.mxu0 0.0
    %3891 = vmatpush1.msra.mxu0 0.0
    %3892 = vmatprep.subr.mxu0 0.0
    %3893 = vmatpush1.msra.mxu0 0.0
    %3894 = vmatprep.subr.mxu0 0.0
    %3895 = vmatpush1.msra.mxu0 0.0
    %3896 = vmatprep.subr.mxu0 0.0
    %3897 = vmatpush1.msra.mxu0 0.0
    %3898 = vmatprep.subr.mxu0 0.0
    %3899 = vmatpush1.msra.mxu0 0.0
    %3900 = vmatprep.subr.mxu0 0.0
    %3901 = vmatpush1.msra.mxu0 0.0
    %3902 = vmatprep.subr.mxu0 0.0
    %3903 = vmatpush1.msra.mxu0 0.0
    %3904 = vmatprep.subr.mxu0 0.0
    %3905 = vmatpush1.msra.mxu0 0.0
    %3906 = vmatprep.subr.mxu0 0.0
    %3907 = vmatpush1.msra.mxu0 0.0
    %3908 = vmatprep.subr.mxu0 0.0
    %3909 = vmatpush1.msra.mxu0 0.0
    %3910 = vmatprep.subr.mxu0 0.0
    %3911 = vmatpush1.msra.mxu0 0.0
    %3912 = vmatprep.subr.mxu0 0.0
    %3913 = vmatpush1.msra.mxu0 0.0
    %3914 = vmatprep.mubr.f32.mxu0 0.0
    %3915 = vmatmul.mubr.f32.gmra.mrb[0].mxu0 %v3848
    %v3916 = vpop.f32.mrb[0].mxu0
    %v3917 = vadd.f32 0.0, %v3916
    %v3918 = vpop.f32.mrb[0].mxu0
    %3919 = vdwg.mxu0
    %v3920 = vadd.f32 %v3837, %v3917
    %s3921 = scalar_lea.vmem [#allocation10], 896
    %v3922 = vld [vmem:[%s3921] sm:$0xff]
    %v3923 = vld [vmem:[%s3921 + $0x8] sm:$0xff]
    %v3924 = vld [vmem:[%s3921 + $0x10] sm:$0xff]
    %v3925 = vld [vmem:[%s3921 + $0x18] sm:$0xff]
    %v3926 = vld [vmem:[%s3921 + $0x20] sm:$0xff]
    %v3927 = vld [vmem:[%s3921 + $0x28] sm:$0xff]
    %v3928 = vld [vmem:[%s3921 + $0x30] sm:$0xff]
    %v3929 = vld [vmem:[%s3921 + $0x38] sm:$0xff]
    %v3930 = vrot.slane %v2750, 4
    %v3931 = vsel %vm2780, %v3930, 0
    %3933 = vmatprep.subr.mxu0 0.0
    %3934 = vmatpush1.msra.mxu0 %v3922
    %3935 = vmatprep.subr.mxu0 0.0
    %3936 = vmatpush1.msra.mxu0 %v3923
    %3937 = vmatprep.subr.mxu0 0.0
    %3938 = vmatpush1.msra.mxu0 %v3924
    %3939 = vmatprep.subr.mxu0 0.0
    %3940 = vmatpush1.msra.mxu0 %v3925
    %3941 = vmatprep.subr.mxu0 0.0
    %3942 = vmatpush1.msra.mxu0 %v3926
    %3943 = vmatprep.subr.mxu0 0.0
    %3944 = vmatpush1.msra.mxu0 %v3927
    %3945 = vmatprep.subr.mxu0 0.0
    %3946 = vmatpush1.msra.mxu0 %v3928
    %3947 = vmatprep.subr.mxu0 0.0
    %3948 = vmatpush1.msra.mxu0 %v3929
    %3949 = vmatprep.subr.mxu0 0.0
    %3950 = vmatpush1.msra.mxu0 0.0
    %3951 = vmatprep.subr.mxu0 0.0
    %3952 = vmatpush1.msra.mxu0 0.0
    %3953 = vmatprep.subr.mxu0 0.0
    %3954 = vmatpush1.msra.mxu0 0.0
    %3955 = vmatprep.subr.mxu0 0.0
    %3956 = vmatpush1.msra.mxu0 0.0
    %3957 = vmatprep.subr.mxu0 0.0
    %3958 = vmatpush1.msra.mxu0 0.0
    %3959 = vmatprep.subr.mxu0 0.0
    %3960 = vmatpush1.msra.mxu0 0.0
    %3961 = vmatprep.subr.mxu0 0.0
    %3962 = vmatpush1.msra.mxu0 0.0
    %3963 = vmatprep.subr.mxu0 0.0
    %3964 = vmatpush1.msra.mxu0 0.0
    %3965 = vmatprep.subr.mxu0 0.0
    %3966 = vmatpush1.msra.mxu0 0.0
    %3967 = vmatprep.subr.mxu0 0.0
    %3968 = vmatpush1.msra.mxu0 0.0
    %3969 = vmatprep.subr.mxu0 0.0
    %3970 = vmatpush1.msra.mxu0 0.0
    %3971 = vmatprep.subr.mxu0 0.0
    %3972 = vmatpush1.msra.mxu0 0.0
    %3973 = vmatprep.subr.mxu0 0.0
    %3974 = vmatpush1.msra.mxu0 0.0
    %3975 = vmatprep.subr.mxu0 0.0
    %3976 = vmatpush1.msra.mxu0 0.0
    %3977 = vmatprep.subr.mxu0 0.0
    %3978 = vmatpush1.msra.mxu0 0.0
    %3979 = vmatprep.subr.mxu0 0.0
    %3980 = vmatpush1.msra.mxu0 0.0
    %3981 = vmatprep.subr.mxu0 0.0
    %3982 = vmatpush1.msra.mxu0 0.0
    %3983 = vmatprep.subr.mxu0 0.0
    %3984 = vmatpush1.msra.mxu0 0.0
    %3985 = vmatprep.subr.mxu0 0.0
    %3986 = vmatpush1.msra.mxu0 0.0
    %3987 = vmatprep.subr.mxu0 0.0
    %3988 = vmatpush1.msra.mxu0 0.0
    %3989 = vmatprep.subr.mxu0 0.0
    %3990 = vmatpush1.msra.mxu0 0.0
    %3991 = vmatprep.subr.mxu0 0.0
    %3992 = vmatpush1.msra.mxu0 0.0
    %3993 = vmatprep.subr.mxu0 0.0
    %3994 = vmatpush1.msra.mxu0 0.0
    %3995 = vmatprep.subr.mxu0 0.0
    %3996 = vmatpush1.msra.mxu0 0.0
    %3997 = vmatprep.mubr.f32.mxu0 0.0
    %3998 = vmatmul.mubr.f32.gmra.mrb[0].mxu0 %v3931
    %v3999 = vpop.f32.mrb[0].mxu0
    %v4000 = vadd.f32 0.0, %v3999
    %v4001 = vpop.f32.mrb[0].mxu0
    %4002 = vdwg.mxu0
    %v4003 = vadd.f32 %v3920, %v4000
    %s4004 = scalar_lea.vmem [#allocation10], 960
    %v4005 = vld [vmem:[%s4004] sm:$0xff]
    %v4006 = vld [vmem:[%s4004 + $0x8] sm:$0xff]
    %v4007 = vld [vmem:[%s4004 + $0x10] sm:$0xff]
    %v4008 = vld [vmem:[%s4004 + $0x18] sm:$0xff]
    %v4009 = vld [vmem:[%s4004 + $0x20] sm:$0xff]
    %v4010 = vld [vmem:[%s4004 + $0x28] sm:$0xff]
    %v4011 = vld [vmem:[%s4004 + $0x30] sm:$0xff]
    %v4012 = vld [vmem:[%s4004 + $0x38] sm:$0xff]
    %v4013 = vrot.slane %v2750, 6
    %v4014 = vsel %vm2780, %v4013, 0
    %4016 = vmatprep.subr.mxu0 0.0
    %4017 = vmatpush1.msra.mxu0 %v4005
    %4018 = vmatprep.subr.mxu0 0.0
    %4019 = vmatpush1.msra.mxu0 %v4006
    %4020 = vmatprep.subr.mxu0 0.0
    %4021 = vmatpush1.msra.mxu0 %v4007
    %4022 = vmatprep.subr.mxu0 0.0
    %4023 = vmatpush1.msra.mxu0 %v4008
    %4024 = vmatprep.subr.mxu0 0.0
    %4025 = vmatpush1.msra.mxu0 %v4009
    %4026 = vmatprep.subr.mxu0 0.0
    %4027 = vmatpush1.msra.mxu0 %v4010
    %4028 = vmatprep.subr.mxu0 0.0
    %4029 = vmatpush1.msra.mxu0 %v4011
    %4030 = vmatprep.subr.mxu0 0.0
    %4031 = vmatpush1.msra.mxu0 %v4012
    %4032 = vmatprep.subr.mxu0 0.0
    %4033 = vmatpush1.msra.mxu0 0.0
    %4034 = vmatprep.subr.mxu0 0.0
    %4035 = vmatpush1.msra.mxu0 0.0
    %4036 = vmatprep.subr.mxu0 0.0
    %4037 = vmatpush1.msra.mxu0 0.0
    %4038 = vmatprep.subr.mxu0 0.0
    %4039 = vmatpush1.msra.mxu0 0.0
    %4040 = vmatprep.subr.mxu0 0.0
    %4041 = vmatpush1.msra.mxu0 0.0
    %4042 = vmatprep.subr.mxu0 0.0
    %4043 = vmatpush1.msra.mxu0 0.0
    %4044 = vmatprep.subr.mxu0 0.0
    %4045 = vmatpush1.msra.mxu0 0.0
    %4046 = vmatprep.subr.mxu0 0.0
    %4047 = vmatpush1.msra.mxu0 0.0
    %4048 = vmatprep.subr.mxu0 0.0
    %4049 = vmatpush1.msra.mxu0 0.0
    %4050 = vmatprep.subr.mxu0 0.0
    %4051 = vmatpush1.msra.mxu0 0.0
    %4052 = vmatprep.subr.mxu0 0.0
    %4053 = vmatpush1.msra.mxu0 0.0
    %4054 = vmatprep.subr.mxu0 0.0
    %4055 = vmatpush1.msra.mxu0 0.0
    %4056 = vmatprep.subr.mxu0 0.0
    %4057 = vmatpush1.msra.mxu0 0.0
    %4058 = vmatprep.subr.mxu0 0.0
    %4059 = vmatpush1.msra.mxu0 0.0
    %4060 = vmatprep.subr.mxu0 0.0
    %4061 = vmatpush1.msra.mxu0 0.0
    %4062 = vmatprep.subr.mxu0 0.0
    %4063 = vmatpush1.msra.mxu0 0.0
    %4064 = vmatprep.subr.mxu0 0.0
    %4065 = vmatpush1.msra.mxu0 0.0
    %4066 = vmatprep.subr.mxu0 0.0
    %4067 = vmatpush1.msra.mxu0 0.0
    %4068 = vmatprep.subr.mxu0 0.0
    %4069 = vmatpush1.msra.mxu0 0.0
    %4070 = vmatprep.subr.mxu0 0.0
    %4071 = vmatpush1.msra.mxu0 0.0
    %4072 = vmatprep.subr.mxu0 0.0
    %4073 = vmatpush1.msra.mxu0 0.0
    %4074 = vmatprep.subr.mxu0 0.0
    %4075 = vmatpush1.msra.mxu0 0.0
    %4076 = vmatprep.subr.mxu0 0.0
    %4077 = vmatpush1.msra.mxu0 0.0
    %4078 = vmatprep.subr.mxu0 0.0
    %4079 = vmatpush1.msra.mxu0 0.0
    %4080 = vmatprep.mubr.f32.mxu0 0.0
    %4081 = vmatmul.mubr.f32.gmra.mrb[0].mxu0 %v4014
    %v4082 = vpop.f32.mrb[0].mxu0
    %v4083 = vadd.f32 0.0, %v4082
    %v4084 = vpop.f32.mrb[0].mxu0
    %4085 = vdwg.mxu0
    %v4086 = vadd.f32 %v4003, %v4083
    %s4087 = scalar_lea.vmem [#allocation10], 1024
    %v4088 = vld [vmem:[%s4087] sm:$0xff]
    %v4089 = vld [vmem:[%s4087 + $0x8] sm:$0xff]
    %v4090 = vld [vmem:[%s4087 + $0x10] sm:$0xff]
    %v4091 = vld [vmem:[%s4087 + $0x18] sm:$0xff]
    %v4092 = vld [vmem:[%s4087 + $0x20] sm:$0xff]
    %v4093 = vld [vmem:[%s4087 + $0x28] sm:$0xff]
    %v4094 = vld [vmem:[%s4087 + $0x30] sm:$0xff]
    %v4095 = vld [vmem:[%s4087 + $0x38] sm:$0xff]
    %v4097 = vsel %vm2780, %v2751, 0
    %4099 = vmatprep.subr.mxu0 0.0
    %4100 = vmatpush1.msra.mxu0 %v4088
    %4101 = vmatprep.subr.mxu0 0.0
    %4102 = vmatpush1.msra.mxu0 %v4089
    %4103 = vmatprep.subr.mxu0 0.0
    %4104 = vmatpush1.msra.mxu0 %v4090
    %4105 = vmatprep.subr.mxu0 0.0
    %4106 = vmatpush1.msra.mxu0 %v4091
    %4107 = vmatprep.subr.mxu0 0.0
    %4108 = vmatpush1.msra.mxu0 %v4092
    %4109 = vmatprep.subr.mxu0 0.0
    %4110 = vmatpush1.msra.mxu0 %v4093
    %4111 = vmatprep.subr.mxu0 0.0
    %4112 = vmatpush1.msra.mxu0 %v4094
    %4113 = vmatprep.subr.mxu0 0.0
    %4114 = vmatpush1.msra.mxu0 %v4095
    %4115 = vmatprep.subr.mxu0 0.0
    %4116 = vmatpush1.msra.mxu0 0.0
    %4117 = vmatprep.subr.mxu0 0.0
    %4118 = vmatpush1.msra.mxu0 0.0
    %4119 = vmatprep.subr.mxu0 0.0
    %4120 = vmatpush1.msra.mxu0 0.0
    %4121 = vmatprep.subr.mxu0 0.0
    %4122 = vmatpush1.msra.mxu0 0.0
    %4123 = vmatprep.subr.mxu0 0.0
    %4124 = vmatpush1.msra.mxu0 0.0
    %4125 = vmatprep.subr.mxu0 0.0
    %4126 = vmatpush1.msra.mxu0 0.0
    %4127 = vmatprep.subr.mxu0 0.0
    %4128 = vmatpush1.msra.mxu0 0.0
    %4129 = vmatprep.subr.mxu0 0.0
    %4130 = vmatpush1.msra.mxu0 0.0
    %4131 = vmatprep.subr.mxu0 0.0
    %4132 = vmatpush1.msra.mxu0 0.0
    %4133 = vmatprep.subr.mxu0 0.0
    %4134 = vmatpush1.msra.mxu0 0.0
    %4135 = vmatprep.subr.mxu0 0.0
    %4136 = vmatpush1.msra.mxu0 0.0
    %4137 = vmatprep.subr.mxu0 0.0
    %4138 = vmatpush1.msra.mxu0 0.0
    %4139 = vmatprep.subr.mxu0 0.0
    %4140 = vmatpush1.msra.mxu0 0.0
    %4141 = vmatprep.subr.mxu0 0.0
    %4142 = vmatpush1.msra.mxu0 0.0
    %4143 = vmatprep.subr.mxu0 0.0
    %4144 = vmatpush1.msra.mxu0 0.0
    %4145 = vmatprep.subr.mxu0 0.0
    %4146 = vmatpush1.msra.mxu0 0.0
    %4147 = vmatprep.subr.mxu0 0.0
    %4148 = vmatpush1.msra.mxu0 0.0
    %4149 = vmatprep.subr.mxu0 0.0
    %4150 = vmatpush1.msra.mxu0 0.0
    %4151 = vmatprep.subr.mxu0 0.0
    %4152 = vmatpush1.msra.mxu0 0.0
    %4153 = vmatprep.subr.mxu0 0.0
    %4154 = vmatpush1.msra.mxu0 0.0
    %4155 = vmatprep.subr.mxu0 0.0
    %4156 = vmatpush1.msra.mxu0 0.0
    %4157 = vmatprep.subr.mxu0 0.0
    %4158 = vmatpush1.msra.mxu0 0.0
    %4159 = vmatprep.subr.mxu0 0.0
    %4160 = vmatpush1.msra.mxu0 0.0
    %4161 = vmatprep.subr.mxu0 0.0
    %4162 = vmatpush1.msra.mxu0 0.0
    %4163 = vmatprep.mubr.f32.mxu0 0.0
    %4164 = vmatmul.mubr.f32.gmra.mrb[0].mxu0 %v4097
    %v4165 = vpop.f32.mrb[0].mxu0
    %v4166 = vadd.f32 0.0, %v4165
    %v4167 = vpop.f32.mrb[0].mxu0
    %4168 = vdwg.mxu0
    %v4169 = vadd.f32 %v4086, %v4166
    %s4170 = scalar_lea.vmem [#allocation10], 1088
    %v4171 = vld [vmem:[%s4170] sm:$0xff]
    %v4172 = vld [vmem:[%s4170 + $0x8] sm:$0xff]
    %v4173 = vld [vmem:[%s4170 + $0x10] sm:$0xff]
    %v4174 = vld [vmem:[%s4170 + $0x18] sm:$0xff]
    %v4175 = vld [vmem:[%s4170 + $0x20] sm:$0xff]
    %v4176 = vld [vmem:[%s4170 + $0x28] sm:$0xff]
    %v4177 = vld [vmem:[%s4170 + $0x30] sm:$0xff]
    %v4178 = vld [vmem:[%s4170 + $0x38] sm:$0xff]
    %v4179 = vrot.slane %v2751, 2
    %v4180 = vsel %vm2780, %v4179, 0
    %4182 = vmatprep.subr.mxu0 0.0
    %4183 = vmatpush1.msra.mxu0 %v4171
    %4184 = vmatprep.subr.mxu0 0.0
    %4185 = vmatpush1.msra.mxu0 %v4172
    %4186 = vmatprep.subr.mxu0 0.0
    %4187 = vmatpush1.msra.mxu0 %v4173
    %4188 = vmatprep.subr.mxu0 0.0
    %4189 = vmatpush1.msra.mxu0 %v4174
    %4190 = vmatprep.subr.mxu0 0.0
    %4191 = vmatpush1.msra.mxu0 %v4175
    %4192 = vmatprep.subr.mxu0 0.0
    %4193 = vmatpush1.msra.mxu0 %v4176
    %4194 = vmatprep.subr.mxu0 0.0
    %4195 = vmatpush1.msra.mxu0 %v4177
    %4196 = vmatprep.subr.mxu0 0.0
    %4197 = vmatpush1.msra.mxu0 %v4178
    %4198 = vmatprep.subr.mxu0 0.0
    %4199 = vmatpush1.msra.mxu0 0.0
    %4200 = vmatprep.subr.mxu0 0.0
    %4201 = vmatpush1.msra.mxu0 0.0
    %4202 = vmatprep.subr.mxu0 0.0
    %4203 = vmatpush1.msra.mxu0 0.0
    %4204 = vmatprep.subr.mxu0 0.0
    %4205 = vmatpush1.msra.mxu0 0.0
    %4206 = vmatprep.subr.mxu0 0.0
    %4207 = vmatpush1.msra.mxu0 0.0
    %4208 = vmatprep.subr.mxu0 0.0
    %4209 = vmatpush1.msra.mxu0 0.0
    %4210 = vmatprep.subr.mxu0 0.0
    %4211 = vmatpush1.msra.mxu0 0.0
    %4212 = vmatprep.subr.mxu0 0.0
    %4213 = vmatpush1.msra.mxu0 0.0
    %4214 = vmatprep.subr.mxu0 0.0
    %4215 = vmatpush1.msra.mxu0 0.0
    %4216 = vmatprep.subr.mxu0 0.0
    %4217 = vmatpush1.msra.mxu0 0.0
    %4218 = vmatprep.subr.mxu0 0.0
    %4219 = vmatpush1.msra.mxu0 0.0
    %4220 = vmatprep.subr.mxu0 0.0
    %4221 = vmatpush1.msra.mxu0 0.0
    %4222 = vmatprep.subr.mxu0 0.0
    %4223 = vmatpush1.msra.mxu0 0.0
    %4224 = vmatprep.subr.mxu0 0.0
    %4225 = vmatpush1.msra.mxu0 0.0
    %4226 = vmatprep.subr.mxu0 0.0
    %4227 = vmatpush1.msra.mxu0 0.0
    %4228 = vmatprep.subr.mxu0 0.0
    %4229 = vmatpush1.msra.mxu0 0.0
    %4230 = vmatprep.subr.mxu0 0.0
    %4231 = vmatpush1.msra.mxu0 0.0
    %4232 = vmatprep.subr.mxu0 0.0
    %4233 = vmatpush1.msra.mxu0 0.0
    %4234 = vmatprep.subr.mxu0 0.0
    %4235 = vmatpush1.msra.mxu0 0.0
    %4236 = vmatprep.subr.mxu0 0.0
    %4237 = vmatpush1.msra.mxu0 0.0
    %4238 = vmatprep.subr.mxu0 0.0
    %4239 = vmatpush1.msra.mxu0 0.0
    %4240 = vmatprep.subr.mxu0 0.0
    %4241 = vmatpush1.msra.mxu0 0.0
    %4242 = vmatprep.subr.mxu0 0.0
    %4243 = vmatpush1.msra.mxu0 0.0
    %4244 = vmatprep.subr.mxu0 0.0
    %4245 = vmatpush1.msra.mxu0 0.0
    %4246 = vmatprep.mubr.f32.mxu0 0.0
    %4247 = vmatmul.mubr.f32.gmra.mrb[0].mxu0 %v4180
    %v4248 = vpop.f32.mrb[0].mxu0
    %v4249 = vadd.f32 0.0, %v4248
    %v4250 = vpop.f32.mrb[0].mxu0
    %4251 = vdwg.mxu0
    %v4252 = vadd.f32 %v4169, %v4249
    %s4253 = scalar_lea.vmem [#allocation10], 1152
    %v4254 = vld [vmem:[%s4253] sm:$0xff]
    %v4255 = vld [vmem:[%s4253 + $0x8] sm:$0xff]
    %v4256 = vld [vmem:[%s4253 + $0x10] sm:$0xff]
    %v4257 = vld [vmem:[%s4253 + $0x18] sm:$0xff]
    %v4258 = vld [vmem:[%s4253 + $0x20] sm:$0xff]
    %v4259 = vld [vmem:[%s4253 + $0x28] sm:$0xff]
    %v4260 = vld [vmem:[%s4253 + $0x30] sm:$0xff]
    %v4261 = vld [vmem:[%s4253 + $0x38] sm:$0xff]
    %v4262 = vrot.slane %v2751, 4
    %v4263 = vsel %vm2780, %v4262, 0
    %4265 = vmatprep.subr.mxu0 0.0
    %4266 = vmatpush1.msra.mxu0 %v4254
    %4267 = vmatprep.subr.mxu0 0.0
    %4268 = vmatpush1.msra.mxu0 %v4255
    %4269 = vmatprep.subr.mxu0 0.0
    %4270 = vmatpush1.msra.mxu0 %v4256
    %4271 = vmatprep.subr.mxu0 0.0
    %4272 = vmatpush1.msra.mxu0 %v4257
    %4273 = vmatprep.subr.mxu0 0.0
    %4274 = vmatpush1.msra.mxu0 %v4258
    %4275 = vmatprep.subr.mxu0 0.0
    %4276 = vmatpush1.msra.mxu0 %v4259
    %4277 = vmatprep.subr.mxu0 0.0
    %4278 = vmatpush1.msra.mxu0 %v4260
    %4279 = vmatprep.subr.mxu0 0.0
    %4280 = vmatpush1.msra.mxu0 %v4261
    %4281 = vmatprep.subr.mxu0 0.0
    %4282 = vmatpush1.msra.mxu0 0.0
    %4283 = vmatprep.subr.mxu0 0.0
    %4284 = vmatpush1.msra.mxu0 0.0
    %4285 = vmatprep.subr.mxu0 0.0
    %4286 = vmatpush1.msra.mxu0 0.0
    %4287 = vmatprep.subr.mxu0 0.0
    %4288 = vmatpush1.msra.mxu0 0.0
    %4289 = vmatprep.subr.mxu0 0.0
    %4290 = vmatpush1.msra.mxu0 0.0
    %4291 = vmatprep.subr.mxu0 0.0
    %4292 = vmatpush1.msra.mxu0 0.0
    %4293 = vmatprep.subr.mxu0 0.0
    %4294 = vmatpush1.msra.mxu0 0.0
    %4295 = vmatprep.subr.mxu0 0.0
    %4296 = vmatpush1.msra.mxu0 0.0
    %4297 = vmatprep.subr.mxu0 0.0
    %4298 = vmatpush1.msra.mxu0 0.0
    %4299 = vmatprep.subr.mxu0 0.0
    %4300 = vmatpush1.msra.mxu0 0.0
    %4301 = vmatprep.subr.mxu0 0.0
    %4302 = vmatpush1.msra.mxu0 0.0
    %4303 = vmatprep.subr.mxu0 0.0
    %4304 = vmatpush1.msra.mxu0 0.0
    %4305 = vmatprep.subr.mxu0 0.0
    %4306 = vmatpush1.msra.mxu0 0.0
    %4307 = vmatprep.subr.mxu0 0.0
    %4308 = vmatpush1.msra.mxu0 0.0
    %4309 = vmatprep.subr.mxu0 0.0
    %4310 = vmatpush1.msra.mxu0 0.0
    %4311 = vmatprep.subr.mxu0 0.0
    %4312 = vmatpush1.msra.mxu0 0.0
    %4313 = vmatprep.subr.mxu0 0.0
    %4314 = vmatpush1.msra.mxu0 0.0
    %4315 = vmatprep.subr.mxu0 0.0
    %4316 = vmatpush1.msra.mxu0 0.0
    %4317 = vmatprep.subr.mxu0 0.0
    %4318 = vmatpush1.msra.mxu0 0.0
    %4319 = vmatprep.subr.mxu0 0.0
    %4320 = vmatpush1.msra.mxu0 0.0
    %4321 = vmatprep.subr.mxu0 0.0
    %4322 = vmatpush1.msra.mxu0 0.0
    %4323 = vmatprep.subr.mxu0 0.0
    %4324 = vmatpush1.msra.mxu0 0.0
    %4325 = vmatprep.subr.mxu0 0.0
    %4326 = vmatpush1.msra.mxu0 0.0
    %4327 = vmatprep.subr.mxu0 0.0
    %4328 = vmatpush1.msra.mxu0 0.0
    %4329 = vmatprep.mubr.f32.mxu0 0.0
    %4330 = vmatmul.mubr.f32.gmra.mrb[0].mxu0 %v4263
    %v4331 = vpop.f32.mrb[0].mxu0
    %v4332 = vadd.f32 0.0, %v4331
    %v4333 = vpop.f32.mrb[0].mxu0
    %4334 = vdwg.mxu0
    %v4335 = vadd.f32 %v4252, %v4332
    %s4336 = scalar_lea.vmem [#allocation10], 1216
    %v4337 = vld [vmem:[%s4336] sm:$0xff]
    %v4338 = vld [vmem:[%s4336 + $0x8] sm:$0xff]
    %v4339 = vld [vmem:[%s4336 + $0x10] sm:$0xff]
    %v4340 = vld [vmem:[%s4336 + $0x18] sm:$0xff]
    %v4341 = vld [vmem:[%s4336 + $0x20] sm:$0xff]
    %v4342 = vld [vmem:[%s4336 + $0x28] sm:$0xff]
    %v4343 = vld [vmem:[%s4336 + $0x30] sm:$0xff]
    %v4344 = vld [vmem:[%s4336 + $0x38] sm:$0xff]
    %v4345 = vrot.slane %v2751, 6
    %v4346 = vsel %vm2780, %v4345, 0
    %4348 = vmatprep.subr.mxu0 0.0
    %4349 = vmatpush1.msra.mxu0 %v4337
    %4350 = vmatprep.subr.mxu0 0.0
    %4351 = vmatpush1.msra.mxu0 %v4338
    %4352 = vmatprep.subr.mxu0 0.0
    %4353 = vmatpush1.msra.mxu0 %v4339
    %4354 = vmatprep.subr.mxu0 0.0
    %4355 = vmatpush1.msra.mxu0 %v4340
    %4356 = vmatprep.subr.mxu0 0.0
    %4357 = vmatpush1.msra.mxu0 %v4341
    %4358 = vmatprep.subr.mxu0 0.0
    %4359 = vmatpush1.msra.mxu0 %v4342
    %4360 = vmatprep.subr.mxu0 0.0
    %4361 = vmatpush1.msra.mxu0 %v4343
    %4362 = vmatprep.subr.mxu0 0.0
    %4363 = vmatpush1.msra.mxu0 %v4344
    %4364 = vmatprep.subr.mxu0 0.0
    %4365 = vmatpush1.msra.mxu0 0.0
    %4366 = vmatprep.subr.mxu0 0.0
    %4367 = vmatpush1.msra.mxu0 0.0
    %4368 = vmatprep.subr.mxu0 0.0
    %4369 = vmatpush1.msra.mxu0 0.0
    %4370 = vmatprep.subr.mxu0 0.0
    %4371 = vmatpush1.msra.mxu0 0.0
    %4372 = vmatprep.subr.mxu0 0.0
    %4373 = vmatpush1.msra.mxu0 0.0
    %4374 = vmatprep.subr.mxu0 0.0
    %4375 = vmatpush1.msra.mxu0 0.0
    %4376 = vmatprep.subr.mxu0 0.0
    %4377 = vmatpush1.msra.mxu0 0.0
    %4378 = vmatprep.subr.mxu0 0.0
    %4379 = vmatpush1.msra.mxu0 0.0
    %4380 = vmatprep.subr.mxu0 0.0
    %4381 = vmatpush1.msra.mxu0 0.0
    %4382 = vmatprep.subr.mxu0 0.0
    %4383 = vmatpush1.msra.mxu0 0.0
    %4384 = vmatprep.subr.mxu0 0.0
    %4385 = vmatpush1.msra.mxu0 0.0
    %4386 = vmatprep.subr.mxu0 0.0
    %4387 = vmatpush1.msra.mxu0 0.0
    %4388 = vmatprep.subr.mxu0 0.0
    %4389 = vmatpush1.msra.mxu0 0.0
    %4390 = vmatprep.subr.mxu0 0.0
    %4391 = vmatpush1.msra.mxu0 0.0
    %4392 = vmatprep.subr.mxu0 0.0
    %4393 = vmatpush1.msra.mxu0 0.0
    %4394 = vmatprep.subr.mxu0 0.0
    %4395 = vmatpush1.msra.mxu0 0.0
    %4396 = vmatprep.subr.mxu0 0.0
    %4397 = vmatpush1.msra.mxu0 0.0
    %4398 = vmatprep.subr.mxu0 0.0
    %4399 = vmatpush1.msra.mxu0 0.0
    %4400 = vmatprep.subr.mxu0 0.0
    %4401 = vmatpush1.msra.mxu0 0.0
    %4402 = vmatprep.subr.mxu0 0.0
    %4403 = vmatpush1.msra.mxu0 0.0
    %4404 = vmatprep.subr.mxu0 0.0
    %4405 = vmatpush1.msra.mxu0 0.0
    %4406 = vmatprep.subr.mxu0 0.0
    %4407 = vmatpush1.msra.mxu0 0.0
    %4408 = vmatprep.subr.mxu0 0.0
    %4409 = vmatpush1.msra.mxu0 0.0
    %4410 = vmatprep.subr.mxu0 0.0
    %4411 = vmatpush1.msra.mxu0 0.0
    %4412 = vmatprep.mubr.f32.mxu0 0.0
    %4413 = vmatmul.mubr.f32.gmra.mrb[0].mxu0 %v4346
    %v4414 = vpop.f32.mrb[0].mxu0
    %v4415 = vadd.f32 0.0, %v4414
    %v4416 = vpop.f32.mrb[0].mxu0
    %4417 = vdwg.mxu0
    %v4418 = vadd.f32 %v4335, %v4415
    %s4419 = scalar_lea.vmem [#allocation10], 1280
    %v4420 = vld [vmem:[%s4419] sm:$0xff]
    %v4421 = vld [vmem:[%s4419 + $0x8] sm:$0xff]
    %v4422 = vld [vmem:[%s4419 + $0x10] sm:$0xff]
    %v4423 = vld [vmem:[%s4419 + $0x18] sm:$0xff]
    %v4424 = vld [vmem:[%s4419 + $0x20] sm:$0xff]
    %v4425 = vld [vmem:[%s4419 + $0x28] sm:$0xff]
    %v4426 = vld [vmem:[%s4419 + $0x30] sm:$0xff]
    %v4427 = vld [vmem:[%s4419 + $0x38] sm:$0xff]
    %v4429 = vsel %vm2780, %v2752, 0
    %4431 = vmatprep.subr.mxu0 0.0
    %4432 = vmatpush1.msra.mxu0 %v4420
    %4433 = vmatprep.subr.mxu0 0.0
    %4434 = vmatpush1.msra.mxu0 %v4421
    %4435 = vmatprep.subr.mxu0 0.0
    %4436 = vmatpush1.msra.mxu0 %v4422
    %4437 = vmatprep.subr.mxu0 0.0
    %4438 = vmatpush1.msra.mxu0 %v4423
    %4439 = vmatprep.subr.mxu0 0.0
    %4440 = vmatpush1.msra.mxu0 %v4424
    %4441 = vmatprep.subr.mxu0 0.0
    %4442 = vmatpush1.msra.mxu0 %v4425
    %4443 = vmatprep.subr.mxu0 0.0
    %4444 = vmatpush1.msra.mxu0 %v4426
    %4445 = vmatprep.subr.mxu0 0.0
    %4446 = vmatpush1.msra.mxu0 %v4427
    %4447 = vmatprep.subr.mxu0 0.0
    %4448 = vmatpush1.msra.mxu0 0.0
    %4449 = vmatprep.subr.mxu0 0.0
    %4450 = vmatpush1.msra.mxu0 0.0
    %4451 = vmatprep.subr.mxu0 0.0
    %4452 = vmatpush1.msra.mxu0 0.0
    %4453 = vmatprep.subr.mxu0 0.0
    %4454 = vmatpush1.msra.mxu0 0.0
    %4455 = vmatprep.subr.mxu0 0.0
    %4456 = vmatpush1.msra.mxu0 0.0
    %4457 = vmatprep.subr.mxu0 0.0
    %4458 = vmatpush1.msra.mxu0 0.0
    %4459 = vmatprep.subr.mxu0 0.0
    %4460 = vmatpush1.msra.mxu0 0.0
    %4461 = vmatprep.subr.mxu0 0.0
    %4462 = vmatpush1.msra.mxu0 0.0
    %4463 = vmatprep.subr.mxu0 0.0
    %4464 = vmatpush1.msra.mxu0 0.0
    %4465 = vmatprep.subr.mxu0 0.0
    %4466 = vmatpush1.msra.mxu0 0.0
    %4467 = vmatprep.subr.mxu0 0.0
    %4468 = vmatpush1.msra.mxu0 0.0
    %4469 = vmatprep.subr.mxu0 0.0
    %4470 = vmatpush1.msra.mxu0 0.0
    %4471 = vmatprep.subr.mxu0 0.0
    %4472 = vmatpush1.msra.mxu0 0.0
    %4473 = vmatprep.subr.mxu0 0.0
    %4474 = vmatpush1.msra.mxu0 0.0
    %4475 = vmatprep.subr.mxu0 0.0
    %4476 = vmatpush1.msra.mxu0 0.0
    %4477 = vmatprep.subr.mxu0 0.0
    %4478 = vmatpush1.msra.mxu0 0.0
    %4479 = vmatprep.subr.mxu0 0.0
    %4480 = vmatpush1.msra.mxu0 0.0
    %4481 = vmatprep.subr.mxu0 0.0
    %4482 = vmatpush1.msra.mxu0 0.0
    %4483 = vmatprep.subr.mxu0 0.0
    %4484 = vmatpush1.msra.mxu0 0.0
    %4485 = vmatprep.subr.mxu0 0.0
    %4486 = vmatpush1.msra.mxu0 0.0
    %4487 = vmatprep.subr.mxu0 0.0
    %4488 = vmatpush1.msra.mxu0 0.0
    %4489 = vmatprep.subr.mxu0 0.0
    %4490 = vmatpush1.msra.mxu0 0.0
    %4491 = vmatprep.subr.mxu0 0.0
    %4492 = vmatpush1.msra.mxu0 0.0
    %4493 = vmatprep.subr.mxu0 0.0
    %4494 = vmatpush1.msra.mxu0 0.0
    %4495 = vmatprep.mubr.f32.mxu0 0.0
    %4496 = vmatmul.mubr.f32.gmra.mrb[0].mxu0 %v4429
    %v4497 = vpop.f32.mrb[0].mxu0
    %v4498 = vadd.f32 0.0, %v4497
    %v4499 = vpop.f32.mrb[0].mxu0
    %4500 = vdwg.mxu0
    %v4501 = vadd.f32 %v4418, %v4498
    %s4502 = scalar_lea.vmem [#allocation10], 1344
    %v4503 = vld [vmem:[%s4502] sm:$0xff]
    %v4504 = vld [vmem:[%s4502 + $0x8] sm:$0xff]
    %v4505 = vld [vmem:[%s4502 + $0x10] sm:$0xff]
    %v4506 = vld [vmem:[%s4502 + $0x18] sm:$0xff]
    %v4507 = vld [vmem:[%s4502 + $0x20] sm:$0xff]
    %v4508 = vld [vmem:[%s4502 + $0x28] sm:$0xff]
    %v4509 = vld [vmem:[%s4502 + $0x30] sm:$0xff]
    %v4510 = vld [vmem:[%s4502 + $0x38] sm:$0xff]
    %v4511 = vrot.slane %v2752, 2
    %v4512 = vsel %vm2780, %v4511, 0
    %4514 = vmatprep.subr.mxu0 0.0
    %4515 = vmatpush1.msra.mxu0 %v4503
    %4516 = vmatprep.subr.mxu0 0.0
    %4517 = vmatpush1.msra.mxu0 %v4504
    %4518 = vmatprep.subr.mxu0 0.0
    %4519 = vmatpush1.msra.mxu0 %v4505
    %4520 = vmatprep.subr.mxu0 0.0
    %4521 = vmatpush1.msra.mxu0 %v4506
    %4522 = vmatprep.subr.mxu0 0.0
    %4523 = vmatpush1.msra.mxu0 %v4507
    %4524 = vmatprep.subr.mxu0 0.0
    %4525 = vmatpush1.msra.mxu0 %v4508
    %4526 = vmatprep.subr.mxu0 0.0
    %4527 = vmatpush1.msra.mxu0 %v4509
    %4528 = vmatprep.subr.mxu0 0.0
    %4529 = vmatpush1.msra.mxu0 %v4510
    %4530 = vmatprep.subr.mxu0 0.0
    %4531 = vmatpush1.msra.mxu0 0.0
    %4532 = vmatprep.subr.mxu0 0.0
    %4533 = vmatpush1.msra.mxu0 0.0
    %4534 = vmatprep.subr.mxu0 0.0
    %4535 = vmatpush1.msra.mxu0 0.0
    %4536 = vmatprep.subr.mxu0 0.0
    %4537 = vmatpush1.msra.mxu0 0.0
    %4538 = vmatprep.subr.mxu0 0.0
    %4539 = vmatpush1.msra.mxu0 0.0
    %4540 = vmatprep.subr.mxu0 0.0
    %4541 = vmatpush1.msra.mxu0 0.0
    %4542 = vmatprep.subr.mxu0 0.0
    %4543 = vmatpush1.msra.mxu0 0.0
    %4544 = vmatprep.subr.mxu0 0.0
    %4545 = vmatpush1.msra.mxu0 0.0
    %4546 = vmatprep.subr.mxu0 0.0
    %4547 = vmatpush1.msra.mxu0 0.0
    %4548 = vmatprep.subr.mxu0 0.0
    %4549 = vmatpush1.msra.mxu0 0.0
    %4550 = vmatprep.subr.mxu0 0.0
    %4551 = vmatpush1.msra.mxu0 0.0
    %4552 = vmatprep.subr.mxu0 0.0
    %4553 = vmatpush1.msra.mxu0 0.0
    %4554 = vmatprep.subr.mxu0 0.0
    %4555 = vmatpush1.msra.mxu0 0.0
    %4556 = vmatprep.subr.mxu0 0.0
    %4557 = vmatpush1.msra.mxu0 0.0
    %4558 = vmatprep.subr.mxu0 0.0
    %4559 = vmatpush1.msra.mxu0 0.0
    %4560 = vmatprep.subr.mxu0 0.0
    %4561 = vmatpush1.msra.mxu0 0.0
    %4562 = vmatprep.subr.mxu0 0.0
    %4563 = vmatpush1.msra.mxu0 0.0
    %4564 = vmatprep.subr.mxu0 0.0
    %4565 = vmatpush1.msra.mxu0 0.0
    %4566 = vmatprep.subr.mxu0 0.0
    %4567 = vmatpush1.msra.mxu0 0.0
    %4568 = vmatprep.subr.mxu0 0.0
    %4569 = vmatpush1.msra.mxu0 0.0
    %4570 = vmatprep.subr.mxu0 0.0
    %4571 = vmatpush1.msra.mxu0 0.0
    %4572 = vmatprep.subr.mxu0 0.0
    %4573 = vmatpush1.msra.mxu0 0.0
    %4574 = vmatprep.subr.mxu0 0.0
    %4575 = vmatpush1.msra.mxu0 0.0
    %4576 = vmatprep.subr.mxu0 0.0
    %4577 = vmatpush1.msra.mxu0 0.0
    %4578 = vmatprep.mubr.f32.mxu0 0.0
    %4579 = vmatmul.mubr.f32.gmra.mrb[0].mxu0 %v4512
    %v4580 = vpop.f32.mrb[0].mxu0
    %v4581 = vadd.f32 0.0, %v4580
    %v4582 = vpop.f32.mrb[0].mxu0
    %4583 = vdwg.mxu0
    %v4584 = vadd.f32 %v4501, %v4581
    %s4585 = scalar_lea.vmem [#allocation10], 1408
    %v4586 = vld [vmem:[%s4585] sm:$0xff]
    %v4587 = vld [vmem:[%s4585 + $0x8] sm:$0xff]
    %v4588 = vld [vmem:[%s4585 + $0x10] sm:$0xff]
    %v4589 = vld [vmem:[%s4585 + $0x18] sm:$0xff]
    %v4590 = vld [vmem:[%s4585 + $0x20] sm:$0xff]
    %v4591 = vld [vmem:[%s4585 + $0x28] sm:$0xff]
    %v4592 = vld [vmem:[%s4585 + $0x30] sm:$0xff]
    %v4593 = vld [vmem:[%s4585 + $0x38] sm:$0xff]
    %v4594 = vrot.slane %v2752, 4
    %v4595 = vsel %vm2780, %v4594, 0
    %4597 = vmatprep.subr.mxu0 0.0
    %4598 = vmatpush1.msra.mxu0 %v4586
    %4599 = vmatprep.subr.mxu0 0.0
    %4600 = vmatpush1.msra.mxu0 %v4587
    %4601 = vmatprep.subr.mxu0 0.0
    %4602 = vmatpush1.msra.mxu0 %v4588
    %4603 = vmatprep.subr.mxu0 0.0
    %4604 = vmatpush1.msra.mxu0 %v4589
    %4605 = vmatprep.subr.mxu0 0.0
    %4606 = vmatpush1.msra.mxu0 %v4590
    %4607 = vmatprep.subr.mxu0 0.0
    %4608 = vmatpush1.msra.mxu0 %v4591
    %4609 = vmatprep.subr.mxu0 0.0
    %4610 = vmatpush1.msra.mxu0 %v4592
    %4611 = vmatprep.subr.mxu0 0.0
    %4612 = vmatpush1.msra.mxu0 %v4593
    %4613 = vmatprep.subr.mxu0 0.0
    %4614 = vmatpush1.msra.mxu0 0.0
    %4615 = vmatprep.subr.mxu0 0.0
    %4616 = vmatpush1.msra.mxu0 0.0
    %4617 = vmatprep.subr.mxu0 0.0
    %4618 = vmatpush1.msra.mxu0 0.0
    %4619 = vmatprep.subr.mxu0 0.0
    %4620 = vmatpush1.msra.mxu0 0.0
    %4621 = vmatprep.subr.mxu0 0.0
    %4622 = vmatpush1.msra.mxu0 0.0
    %4623 = vmatprep.subr.mxu0 0.0
    %4624 = vmatpush1.msra.mxu0 0.0
    %4625 = vmatprep.subr.mxu0 0.0
    %4626 = vmatpush1.msra.mxu0 0.0
    %4627 = vmatprep.subr.mxu0 0.0
    %4628 = vmatpush1.msra.mxu0 0.0
    %4629 = vmatprep.subr.mxu0 0.0
    %4630 = vmatpush1.msra.mxu0 0.0
    %4631 = vmatprep.subr.mxu0 0.0
    %4632 = vmatpush1.msra.mxu0 0.0
    %4633 = vmatprep.subr.mxu0 0.0
    %4634 = vmatpush1.msra.mxu0 0.0
    %4635 = vmatprep.subr.mxu0 0.0
    %4636 = vmatpush1.msra.mxu0 0.0
    %4637 = vmatprep.subr.mxu0 0.0
    %4638 = vmatpush1.msra.mxu0 0.0
    %4639 = vmatprep.subr.mxu0 0.0
    %4640 = vmatpush1.msra.mxu0 0.0
    %4641 = vmatprep.subr.mxu0 0.0
    %4642 = vmatpush1.msra.mxu0 0.0
    %4643 = vmatprep.subr.mxu0 0.0
    %4644 = vmatpush1.msra.mxu0 0.0
    %4645 = vmatprep.subr.mxu0 0.0
    %4646 = vmatpush1.msra.mxu0 0.0
    %4647 = vmatprep.subr.mxu0 0.0
    %4648 = vmatpush1.msra.mxu0 0.0
    %4649 = vmatprep.subr.mxu0 0.0
    %4650 = vmatpush1.msra.mxu0 0.0
    %4651 = vmatprep.subr.mxu0 0.0
    %4652 = vmatpush1.msra.mxu0 0.0
    %4653 = vmatprep.subr.mxu0 0.0
    %4654 = vmatpush1.msra.mxu0 0.0
    %4655 = vmatprep.subr.mxu0 0.0
    %4656 = vmatpush1.msra.mxu0 0.0
    %4657 = vmatprep.subr.mxu0 0.0
    %4658 = vmatpush1.msra.mxu0 0.0
    %4659 = vmatprep.subr.mxu0 0.0
    %4660 = vmatpush1.msra.mxu0 0.0
    %4661 = vmatprep.mubr.f32.mxu0 0.0
    %4662 = vmatmul.mubr.f32.gmra.mrb[0].mxu0 %v4595
    %v4663 = vpop.f32.mrb[0].mxu0
    %v4664 = vadd.f32 0.0, %v4663
    %v4665 = vpop.f32.mrb[0].mxu0
    %4666 = vdwg.mxu0
    %v4667 = vadd.f32 %v4584, %v4664
    %s4668 = scalar_lea.vmem [#allocation10], 1472
    %v4669 = vld [vmem:[%s4668] sm:$0xff]
    %v4670 = vld [vmem:[%s4668 + $0x8] sm:$0xff]
    %v4671 = vld [vmem:[%s4668 + $0x10] sm:$0xff]
    %v4672 = vld [vmem:[%s4668 + $0x18] sm:$0xff]
    %v4673 = vld [vmem:[%s4668 + $0x20] sm:$0xff]
    %v4674 = vld [vmem:[%s4668 + $0x28] sm:$0xff]
    %v4675 = vld [vmem:[%s4668 + $0x30] sm:$0xff]
    %v4676 = vld [vmem:[%s4668 + $0x38] sm:$0xff]
    %v4677 = vrot.slane %v2752, 6
    %v4678 = vsel %vm2780, %v4677, 0
    %4680 = vmatprep.subr.mxu0 0.0
    %4681 = vmatpush1.msra.mxu0 %v4669
    %4682 = vmatprep.subr.mxu0 0.0
    %4683 = vmatpush1.msra.mxu0 %v4670
    %4684 = vmatprep.subr.mxu0 0.0
    %4685 = vmatpush1.msra.mxu0 %v4671
    %4686 = vmatprep.subr.mxu0 0.0
    %4687 = vmatpush1.msra.mxu0 %v4672
    %4688 = vmatprep.subr.mxu0 0.0
    %4689 = vmatpush1.msra.mxu0 %v4673
    %4690 = vmatprep.subr.mxu0 0.0
    %4691 = vmatpush1.msra.mxu0 %v4674
    %4692 = vmatprep.subr.mxu0 0.0
    %4693 = vmatpush1.msra.mxu0 %v4675
    %4694 = vmatprep.subr.mxu0 0.0
    %4695 = vmatpush1.msra.mxu0 %v4676
    %4696 = vmatprep.subr.mxu0 0.0
    %4697 = vmatpush1.msra.mxu0 0.0
    %4698 = vmatprep.subr.mxu0 0.0
    %4699 = vmatpush1.msra.mxu0 0.0
    %4700 = vmatprep.subr.mxu0 0.0
    %4701 = vmatpush1.msra.mxu0 0.0
    %4702 = vmatprep.subr.mxu0 0.0
    %4703 = vmatpush1.msra.mxu0 0.0
    %4704 = vmatprep.subr.mxu0 0.0
    %4705 = vmatpush1.msra.mxu0 0.0
    %4706 = vmatprep.subr.mxu0 0.0
    %4707 = vmatpush1.msra.mxu0 0.0
    %4708 = vmatprep.subr.mxu0 0.0
    %4709 = vmatpush1.msra.mxu0 0.0
    %4710 = vmatprep.subr.mxu0 0.0
    %4711 = vmatpush1.msra.mxu0 0.0
    %4712 = vmatprep.subr.mxu0 0.0
    %4713 = vmatpush1.msra.mxu0 0.0
    %4714 = vmatprep.subr.mxu0 0.0
    %4715 = vmatpush1.msra.mxu0 0.0
    %4716 = vmatprep.subr.mxu0 0.0
    %4717 = vmatpush1.msra.mxu0 0.0
    %4718 = vmatprep.subr.mxu0 0.0
    %4719 = vmatpush1.msra.mxu0 0.0
    %4720 = vmatprep.subr.mxu0 0.0
    %4721 = vmatpush1.msra.mxu0 0.0
    %4722 = vmatprep.subr.mxu0 0.0
    %4723 = vmatpush1.msra.mxu0 0.0
    %4724 = vmatprep.subr.mxu0 0.0
    %4725 = vmatpush1.msra.mxu0 0.0
    %4726 = vmatprep.subr.mxu0 0.0
    %4727 = vmatpush1.msra.mxu0 0.0
    %4728 = vmatprep.subr.mxu0 0.0
    %4729 = vmatpush1.msra.mxu0 0.0
    %4730 = vmatprep.subr.mxu0 0.0
    %4731 = vmatpush1.msra.mxu0 0.0
    %4732 = vmatprep.subr.mxu0 0.0
    %4733 = vmatpush1.msra.mxu0 0.0
    %4734 = vmatprep.subr.mxu0 0.0
    %4735 = vmatpush1.msra.mxu0 0.0
    %4736 = vmatprep.subr.mxu0 0.0
    %4737 = vmatpush1.msra.mxu0 0.0
    %4738 = vmatprep.subr.mxu0 0.0
    %4739 = vmatpush1.msra.mxu0 0.0
    %4740 = vmatprep.subr.mxu0 0.0
    %4741 = vmatpush1.msra.mxu0 0.0
    %4742 = vmatprep.subr.mxu0 0.0
    %4743 = vmatpush1.msra.mxu0 0.0
    %4744 = vmatprep.mubr.f32.mxu0 0.0
    %4745 = vmatmul.mubr.f32.gmra.mrb[0].mxu0 %v4678
    %v4746 = vpop.f32.mrb[0].mxu0
    %v4747 = vadd.f32 0.0, %v4746
    %v4748 = vpop.f32.mrb[0].mxu0
    %4749 = vdwg.mxu0
    %v4750 = vadd.f32 %v4667, %v4747
    %s4751 = scalar_lea.vmem [#allocation10], 1536
    %v4752 = vld [vmem:[%s4751] sm:$0xff]
    %v4753 = vld [vmem:[%s4751 + $0x8] sm:$0xff]
    %v4754 = vld [vmem:[%s4751 + $0x10] sm:$0xff]
    %v4755 = vld [vmem:[%s4751 + $0x18] sm:$0xff]
    %v4756 = vld [vmem:[%s4751 + $0x20] sm:$0xff]
    %v4757 = vld [vmem:[%s4751 + $0x28] sm:$0xff]
    %v4758 = vld [vmem:[%s4751 + $0x30] sm:$0xff]
    %v4759 = vld [vmem:[%s4751 + $0x38] sm:$0xff]
    %v4761 = vsel %vm2780, %v2753, 0
    %4763 = vmatprep.subr.mxu0 0.0
    %4764 = vmatpush1.msra.mxu0 %v4752
    %4765 = vmatprep.subr.mxu0 0.0
    %4766 = vmatpush1.msra.mxu0 %v4753
    %4767 = vmatprep.subr.mxu0 0.0
    %4768 = vmatpush1.msra.mxu0 %v4754
    %4769 = vmatprep.subr.mxu0 0.0
    %4770 = vmatpush1.msra.mxu0 %v4755
    %4771 = vmatprep.subr.mxu0 0.0
    %4772 = vmatpush1.msra.mxu0 %v4756
    %4773 = vmatprep.subr.mxu0 0.0
    %4774 = vmatpush1.msra.mxu0 %v4757
    %4775 = vmatprep.subr.mxu0 0.0
    %4776 = vmatpush1.msra.mxu0 %v4758
    %4777 = vmatprep.subr.mxu0 0.0
    %4778 = vmatpush1.msra.mxu0 %v4759
    %4779 = vmatprep.subr.mxu0 0.0
    %4780 = vmatpush1.msra.mxu0 0.0
    %4781 = vmatprep.subr.mxu0 0.0
    %4782 = vmatpush1.msra.mxu0 0.0
    %4783 = vmatprep.subr.mxu0 0.0
    %4784 = vmatpush1.msra.mxu0 0.0
    %4785 = vmatprep.subr.mxu0 0.0
    %4786 = vmatpush1.msra.mxu0 0.0
    %4787 = vmatprep.subr.mxu0 0.0
    %4788 = vmatpush1.msra.mxu0 0.0
    %4789 = vmatprep.subr.mxu0 0.0
    %4790 = vmatpush1.msra.mxu0 0.0
    %4791 = vmatprep.subr.mxu0 0.0
    %4792 = vmatpush1.msra.mxu0 0.0
    %4793 = vmatprep.subr.mxu0 0.0
    %4794 = vmatpush1.msra.mxu0 0.0
    %4795 = vmatprep.subr.mxu0 0.0
    %4796 = vmatpush1.msra.mxu0 0.0
    %4797 = vmatprep.subr.mxu0 0.0
    %4798 = vmatpush1.msra.mxu0 0.0
    %4799 = vmatprep.subr.mxu0 0.0
    %4800 = vmatpush1.msra.mxu0 0.0
    %4801 = vmatprep.subr.mxu0 0.0
    %4802 = vmatpush1.msra.mxu0 0.0
    %4803 = vmatprep.subr.mxu0 0.0
    %4804 = vmatpush1.msra.mxu0 0.0
    %4805 = vmatprep.subr.mxu0 0.0
    %4806 = vmatpush1.msra.mxu0 0.0
    %4807 = vmatprep.subr.mxu0 0.0
    %4808 = vmatpush1.msra.mxu0 0.0
    %4809 = vmatprep.subr.mxu0 0.0
    %4810 = vmatpush1.msra.mxu0 0.0
    %4811 = vmatprep.subr.mxu0 0.0
    %4812 = vmatpush1.msra.mxu0 0.0
    %4813 = vmatprep.subr.mxu0 0.0
    %4814 = vmatpush1.msra.mxu0 0.0
    %4815 = vmatprep.subr.mxu0 0.0
    %4816 = vmatpush1.msra.mxu0 0.0
    %4817 = vmatprep.subr.mxu0 0.0
    %4818 = vmatpush1.msra.mxu0 0.0
    %4819 = vmatprep.subr.mxu0 0.0
    %4820 = vmatpush1.msra.mxu0 0.0
    %4821 = vmatprep.subr.mxu0 0.0
    %4822 = vmatpush1.msra.mxu0 0.0
    %4823 = vmatprep.subr.mxu0 0.0
    %4824 = vmatpush1.msra.mxu0 0.0
    %4825 = vmatprep.subr.mxu0 0.0
    %4826 = vmatpush1.msra.mxu0 0.0
    %4827 = vmatprep.mubr.f32.mxu0 0.0
    %4828 = vmatmul.mubr.f32.gmra.mrb[0].mxu0 %v4761
    %v4829 = vpop.f32.mrb[0].mxu0
    %v4830 = vadd.f32 0.0, %v4829
    %v4831 = vpop.f32.mrb[0].mxu0
    %4832 = vdwg.mxu0
    %v4833 = vadd.f32 %v4750, %v4830
    %s4834 = scalar_lea.vmem [#allocation10], 1600
    %v4835 = vld [vmem:[%s4834] sm:$0xff]
    %v4836 = vld [vmem:[%s4834 + $0x8] sm:$0xff]
    %v4837 = vld [vmem:[%s4834 + $0x10] sm:$0xff]
    %v4838 = vld [vmem:[%s4834 + $0x18] sm:$0xff]
    %v4839 = vld [vmem:[%s4834 + $0x20] sm:$0xff]
    %v4840 = vld [vmem:[%s4834 + $0x28] sm:$0xff]
    %v4841 = vld [vmem:[%s4834 + $0x30] sm:$0xff]
    %v4842 = vld [vmem:[%s4834 + $0x38] sm:$0xff]
    %v4843 = vrot.slane %v2753, 2
    %v4844 = vsel %vm2780, %v4843, 0
    %4846 = vmatprep.subr.mxu0 0.0
    %4847 = vmatpush1.msra.mxu0 %v4835
    %4848 = vmatprep.subr.mxu0 0.0
    %4849 = vmatpush1.msra.mxu0 %v4836
    %4850 = vmatprep.subr.mxu0 0.0
    %4851 = vmatpush1.msra.mxu0 %v4837
    %4852 = vmatprep.subr.mxu0 0.0
    %4853 = vmatpush1.msra.mxu0 %v4838
    %4854 = vmatprep.subr.mxu0 0.0
    %4855 = vmatpush1.msra.mxu0 %v4839
    %4856 = vmatprep.subr.mxu0 0.0
    %4857 = vmatpush1.msra.mxu0 %v4840
    %4858 = vmatprep.subr.mxu0 0.0
    %4859 = vmatpush1.msra.mxu0 %v4841
    %4860 = vmatprep.subr.mxu0 0.0
    %4861 = vmatpush1.msra.mxu0 %v4842
    %4862 = vmatprep.subr.mxu0 0.0
    %4863 = vmatpush1.msra.mxu0 0.0
    %4864 = vmatprep.subr.mxu0 0.0
    %4865 = vmatpush1.msra.mxu0 0.0
    %4866 = vmatprep.subr.mxu0 0.0
    %4867 = vmatpush1.msra.mxu0 0.0
    %4868 = vmatprep.subr.mxu0 0.0
    %4869 = vmatpush1.msra.mxu0 0.0
    %4870 = vmatprep.subr.mxu0 0.0
    %4871 = vmatpush1.msra.mxu0 0.0
    %4872 = vmatprep.subr.mxu0 0.0
    %4873 = vmatpush1.msra.mxu0 0.0
    %4874 = vmatprep.subr.mxu0 0.0
    %4875 = vmatpush1.msra.mxu0 0.0
    %4876 = vmatprep.subr.mxu0 0.0
    %4877 = vmatpush1.msra.mxu0 0.0
    %4878 = vmatprep.subr.mxu0 0.0
    %4879 = vmatpush1.msra.mxu0 0.0
    %4880 = vmatprep.subr.mxu0 0.0
    %4881 = vmatpush1.msra.mxu0 0.0
    %4882 = vmatprep.subr.mxu0 0.0
    %4883 = vmatpush1.msra.mxu0 0.0
    %4884 = vmatprep.subr.mxu0 0.0
    %4885 = vmatpush1.msra.mxu0 0.0
    %4886 = vmatprep.subr.mxu0 0.0
    %4887 = vmatpush1.msra.mxu0 0.0
    %4888 = vmatprep.subr.mxu0 0.0
    %4889 = vmatpush1.msra.mxu0 0.0
    %4890 = vmatprep.subr.mxu0 0.0
    %4891 = vmatpush1.msra.mxu0 0.0
    %4892 = vmatprep.subr.mxu0 0.0
    %4893 = vmatpush1.msra.mxu0 0.0
    %4894 = vmatprep.subr.mxu0 0.0
    %4895 = vmatpush1.msra.mxu0 0.0
    %4896 = vmatprep.subr.mxu0 0.0
    %4897 = vmatpush1.msra.mxu0 0.0
    %4898 = vmatprep.subr.mxu0 0.0
    %4899 = vmatpush1.msra.mxu0 0.0
    %4900 = vmatprep.subr.mxu0 0.0
    %4901 = vmatpush1.msra.mxu0 0.0
    %4902 = vmatprep.subr.mxu0 0.0
    %4903 = vmatpush1.msra.mxu0 0.0
    %4904 = vmatprep.subr.mxu0 0.0
    %4905 = vmatpush1.msra.mxu0 0.0
    %4906 = vmatprep.subr.mxu0 0.0
    %4907 = vmatpush1.msra.mxu0 0.0
    %4908 = vmatprep.subr.mxu0 0.0
    %4909 = vmatpush1.msra.mxu0 0.0
    %4910 = vmatprep.mubr.f32.mxu0 0.0
    %4911 = vmatmul.mubr.f32.gmra.mrb[0].mxu0 %v4844
    %v4912 = vpop.f32.mrb[0].mxu0
    %v4913 = vadd.f32 0.0, %v4912
    %v4914 = vpop.f32.mrb[0].mxu0
    %4915 = vdwg.mxu0
    %v4916 = vadd.f32 %v4833, %v4913
    %s4917 = scalar_lea.vmem [#allocation10], 1664
    %v4918 = vld [vmem:[%s4917] sm:$0xff]
    %v4919 = vld [vmem:[%s4917 + $0x8] sm:$0xff]
    %v4920 = vld [vmem:[%s4917 + $0x10] sm:$0xff]
    %v4921 = vld [vmem:[%s4917 + $0x18] sm:$0xff]
    %v4922 = vld [vmem:[%s4917 + $0x20] sm:$0xff]
    %v4923 = vld [vmem:[%s4917 + $0x28] sm:$0xff]
    %v4924 = vld [vmem:[%s4917 + $0x30] sm:$0xff]
    %v4925 = vld [vmem:[%s4917 + $0x38] sm:$0xff]
    %v4926 = vrot.slane %v2753, 4
    %v4927 = vsel %vm2780, %v4926, 0
    %4929 = vmatprep.subr.mxu0 0.0
    %4930 = vmatpush1.msra.mxu0 %v4918
    %4931 = vmatprep.subr.mxu0 0.0
    %4932 = vmatpush1.msra.mxu0 %v4919
    %4933 = vmatprep.subr.mxu0 0.0
    %4934 = vmatpush1.msra.mxu0 %v4920
    %4935 = vmatprep.subr.mxu0 0.0
    %4936 = vmatpush1.msra.mxu0 %v4921
    %4937 = vmatprep.subr.mxu0 0.0
    %4938 = vmatpush1.msra.mxu0 %v4922
    %4939 = vmatprep.subr.mxu0 0.0
    %4940 = vmatpush1.msra.mxu0 %v4923
    %4941 = vmatprep.subr.mxu0 0.0
    %4942 = vmatpush1.msra.mxu0 %v4924
    %4943 = vmatprep.subr.mxu0 0.0
    %4944 = vmatpush1.msra.mxu0 %v4925
    %4945 = vmatprep.subr.mxu0 0.0
    %4946 = vmatpush1.msra.mxu0 0.0
    %4947 = vmatprep.subr.mxu0 0.0
    %4948 = vmatpush1.msra.mxu0 0.0
    %4949 = vmatprep.subr.mxu0 0.0
    %4950 = vmatpush1.msra.mxu0 0.0
    %4951 = vmatprep.subr.mxu0 0.0
    %4952 = vmatpush1.msra.mxu0 0.0
    %4953 = vmatprep.subr.mxu0 0.0
    %4954 = vmatpush1.msra.mxu0 0.0
    %4955 = vmatprep.subr.mxu0 0.0
    %4956 = vmatpush1.msra.mxu0 0.0
    %4957 = vmatprep.subr.mxu0 0.0
    %4958 = vmatpush1.msra.mxu0 0.0
    %4959 = vmatprep.subr.mxu0 0.0
    %4960 = vmatpush1.msra.mxu0 0.0
    %4961 = vmatprep.subr.mxu0 0.0
    %4962 = vmatpush1.msra.mxu0 0.0
    %4963 = vmatprep.subr.mxu0 0.0
    %4964 = vmatpush1.msra.mxu0 0.0
    %4965 = vmatprep.subr.mxu0 0.0
    %4966 = vmatpush1.msra.mxu0 0.0
    %4967 = vmatprep.subr.mxu0 0.0
    %4968 = vmatpush1.msra.mxu0 0.0
    %4969 = vmatprep.subr.mxu0 0.0
    %4970 = vmatpush1.msra.mxu0 0.0
    %4971 = vmatprep.subr.mxu0 0.0
    %4972 = vmatpush1.msra.mxu0 0.0
    %4973 = vmatprep.subr.mxu0 0.0
    %4974 = vmatpush1.msra.mxu0 0.0
    %4975 = vmatprep.subr.mxu0 0.0
    %4976 = vmatpush1.msra.mxu0 0.0
    %4977 = vmatprep.subr.mxu0 0.0
    %4978 = vmatpush1.msra.mxu0 0.0
    %4979 = vmatprep.subr.mxu0 0.0
    %4980 = vmatpush1.msra.mxu0 0.0
    %4981 = vmatprep.subr.mxu0 0.0
    %4982 = vmatpush1.msra.mxu0 0.0
    %4983 = vmatprep.subr.mxu0 0.0
    %4984 = vmatpush1.msra.mxu0 0.0
    %4985 = vmatprep.subr.mxu0 0.0
    %4986 = vmatpush1.msra.mxu0 0.0
    %4987 = vmatprep.subr.mxu0 0.0
    %4988 = vmatpush1.msra.mxu0 0.0
    %4989 = vmatprep.subr.mxu0 0.0
    %4990 = vmatpush1.msra.mxu0 0.0
    %4991 = vmatprep.subr.mxu0 0.0
    %4992 = vmatpush1.msra.mxu0 0.0
    %4993 = vmatprep.mubr.f32.mxu0 0.0
    %4994 = vmatmul.mubr.f32.gmra.mrb[0].mxu0 %v4927
    %v4995 = vpop.f32.mrb[0].mxu0
    %v4996 = vadd.f32 0.0, %v4995
    %v4997 = vpop.f32.mrb[0].mxu0
    %4998 = vdwg.mxu0
    %v4999 = vadd.f32 %v4916, %v4996
    %s5000 = scalar_lea.vmem [#allocation10], 1728
    %v5001 = vld [vmem:[%s5000] sm:$0xff]
    %v5002 = vld [vmem:[%s5000 + $0x8] sm:$0xff]
    %v5003 = vld [vmem:[%s5000 + $0x10] sm:$0xff]
    %v5004 = vld [vmem:[%s5000 + $0x18] sm:$0xff]
    %v5005 = vld [vmem:[%s5000 + $0x20] sm:$0xff]
    %v5006 = vld [vmem:[%s5000 + $0x28] sm:$0xff]
    %v5007 = vld [vmem:[%s5000 + $0x30] sm:$0xff]
    %v5008 = vld [vmem:[%s5000 + $0x38] sm:$0xff]
    %v5009 = vrot.slane %v2753, 6
    %v5010 = vsel %vm2780, %v5009, 0
    %5012 = vmatprep.subr.mxu0 0.0
    %5013 = vmatpush1.msra.mxu0 %v5001
    %5014 = vmatprep.subr.mxu0 0.0
    %5015 = vmatpush1.msra.mxu0 %v5002
    %5016 = vmatprep.subr.mxu0 0.0
    %5017 = vmatpush1.msra.mxu0 %v5003
    %5018 = vmatprep.subr.mxu0 0.0
    %5019 = vmatpush1.msra.mxu0 %v5004
    %5020 = vmatprep.subr.mxu0 0.0
    %5021 = vmatpush1.msra.mxu0 %v5005
    %5022 = vmatprep.subr.mxu0 0.0
    %5023 = vmatpush1.msra.mxu0 %v5006
    %5024 = vmatprep.subr.mxu0 0.0
    %5025 = vmatpush1.msra.mxu0 %v5007
    %5026 = vmatprep.subr.mxu0 0.0
    %5027 = vmatpush1.msra.mxu0 %v5008
    %5028 = vmatprep.subr.mxu0 0.0
    %5029 = vmatpush1.msra.mxu0 0.0
    %5030 = vmatprep.subr.mxu0 0.0
    %5031 = vmatpush1.msra.mxu0 0.0
    %5032 = vmatprep.subr.mxu0 0.0
    %5033 = vmatpush1.msra.mxu0 0.0
    %5034 = vmatprep.subr.mxu0 0.0
    %5035 = vmatpush1.msra.mxu0 0.0
    %5036 = vmatprep.subr.mxu0 0.0
    %5037 = vmatpush1.msra.mxu0 0.0
    %5038 = vmatprep.subr.mxu0 0.0
    %5039 = vmatpush1.msra.mxu0 0.0
    %5040 = vmatprep.subr.mxu0 0.0
    %5041 = vmatpush1.msra.mxu0 0.0
    %5042 = vmatprep.subr.mxu0 0.0
    %5043 = vmatpush1.msra.mxu0 0.0
    %5044 = vmatprep.subr.mxu0 0.0
    %5045 = vmatpush1.msra.mxu0 0.0
    %5046 = vmatprep.subr.mxu0 0.0
    %5047 = vmatpush1.msra.mxu0 0.0
    %5048 = vmatprep.subr.mxu0 0.0
    %5049 = vmatpush1.msra.mxu0 0.0
    %5050 = vmatprep.subr.mxu0 0.0
    %5051 = vmatpush1.msra.mxu0 0.0
    %5052 = vmatprep.subr.mxu0 0.0
    %5053 = vmatpush1.msra.mxu0 0.0
    %5054 = vmatprep.subr.mxu0 0.0
    %5055 = vmatpush1.msra.mxu0 0.0
    %5056 = vmatprep.subr.mxu0 0.0
    %5057 = vmatpush1.msra.mxu0 0.0
    %5058 = vmatprep.subr.mxu0 0.0
    %5059 = vmatpush1.msra.mxu0 0.0
    %5060 = vmatprep.subr.mxu0 0.0
    %5061 = vmatpush1.msra.mxu0 0.0
    %5062 = vmatprep.subr.mxu0 0.0
    %5063 = vmatpush1.msra.mxu0 0.0
    %5064 = vmatprep.subr.mxu0 0.0
    %5065 = vmatpush1.msra.mxu0 0.0
    %5066 = vmatprep.subr.mxu0 0.0
    %5067 = vmatpush1.msra.mxu0 0.0
    %5068 = vmatprep.subr.mxu0 0.0
    %5069 = vmatpush1.msra.mxu0 0.0
    %5070 = vmatprep.subr.mxu0 0.0
    %5071 = vmatpush1.msra.mxu0 0.0
    %5072 = vmatprep.subr.mxu0 0.0
    %5073 = vmatpush1.msra.mxu0 0.0
    %5074 = vmatprep.subr.mxu0 0.0
    %5075 = vmatpush1.msra.mxu0 0.0
    %5076 = vmatprep.mubr.f32.mxu0 0.0
    %5077 = vmatmul.mubr.f32.gmra.mrb[0].mxu0 %v5010
    %v5078 = vpop.f32.mrb[0].mxu0
    %v5079 = vadd.f32 0.0, %v5078
    %v5080 = vpop.f32.mrb[0].mxu0
    %5081 = vdwg.mxu0
    %v5082 = vadd.f32 %v4999, %v5079
    %s5083 = scalar_lea.vmem [#allocation10], 1792
    %v5084 = vld [vmem:[%s5083] sm:$0xff]
    %v5085 = vld [vmem:[%s5083 + $0x8] sm:$0xff]
    %v5086 = vld [vmem:[%s5083 + $0x10] sm:$0xff]
    %v5087 = vld [vmem:[%s5083 + $0x18] sm:$0xff]
    %v5088 = vld [vmem:[%s5083 + $0x20] sm:$0xff]
    %v5089 = vld [vmem:[%s5083 + $0x28] sm:$0xff]
    %v5090 = vld [vmem:[%s5083 + $0x30] sm:$0xff]
    %v5091 = vld [vmem:[%s5083 + $0x38] sm:$0xff]
    %v5093 = vsel %vm2780, %v2754, 0
    %5095 = vmatprep.subr.mxu0 0.0
    %5096 = vmatpush1.msra.mxu0 %v5084
    %5097 = vmatprep.subr.mxu0 0.0
    %5098 = vmatpush1.msra.mxu0 %v5085
    %5099 = vmatprep.subr.mxu0 0.0
    %5100 = vmatpush1.msra.mxu0 %v5086
    %5101 = vmatprep.subr.mxu0 0.0
    %5102 = vmatpush1.msra.mxu0 %v5087
    %5103 = vmatprep.subr.mxu0 0.0
    %5104 = vmatpush1.msra.mxu0 %v5088
    %5105 = vmatprep.subr.mxu0 0.0
    %5106 = vmatpush1.msra.mxu0 %v5089
    %5107 = vmatprep.subr.mxu0 0.0
    %5108 = vmatpush1.msra.mxu0 %v5090
    %5109 = vmatprep.subr.mxu0 0.0
    %5110 = vmatpush1.msra.mxu0 %v5091
    %5111 = vmatprep.subr.mxu0 0.0
    %5112 = vmatpush1.msra.mxu0 0.0
    %5113 = vmatprep.subr.mxu0 0.0
    %5114 = vmatpush1.msra.mxu0 0.0
    %5115 = vmatprep.subr.mxu0 0.0
    %5116 = vmatpush1.msra.mxu0 0.0
    %5117 = vmatprep.subr.mxu0 0.0
    %5118 = vmatpush1.msra.mxu0 0.0
    %5119 = vmatprep.subr.mxu0 0.0
    %5120 = vmatpush1.msra.mxu0 0.0
    %5121 = vmatprep.subr.mxu0 0.0
    %5122 = vmatpush1.msra.mxu0 0.0
    %5123 = vmatprep.subr.mxu0 0.0
    %5124 = vmatpush1.msra.mxu0 0.0
    %5125 = vmatprep.subr.mxu0 0.0
    %5126 = vmatpush1.msra.mxu0 0.0
    %5127 = vmatprep.subr.mxu0 0.0
    %5128 = vmatpush1.msra.mxu0 0.0
    %5129 = vmatprep.subr.mxu0 0.0
    %5130 = vmatpush1.msra.mxu0 0.0
    %5131 = vmatprep.subr.mxu0 0.0
    %5132 = vmatpush1.msra.mxu0 0.0
    %5133 = vmatprep.subr.mxu0 0.0
    %5134 = vmatpush1.msra.mxu0 0.0
    %5135 = vmatprep.subr.mxu0 0.0
    %5136 = vmatpush1.msra.mxu0 0.0
    %5137 = vmatprep.subr.mxu0 0.0
    %5138 = vmatpush1.msra.mxu0 0.0
    %5139 = vmatprep.subr.mxu0 0.0
    %5140 = vmatpush1.msra.mxu0 0.0
    %5141 = vmatprep.subr.mxu0 0.0
    %5142 = vmatpush1.msra.mxu0 0.0
    %5143 = vmatprep.subr.mxu0 0.0
    %5144 = vmatpush1.msra.mxu0 0.0
    %5145 = vmatprep.subr.mxu0 0.0
    %5146 = vmatpush1.msra.mxu0 0.0
    %5147 = vmatprep.subr.mxu0 0.0
    %5148 = vmatpush1.msra.mxu0 0.0
    %5149 = vmatprep.subr.mxu0 0.0
    %5150 = vmatpush1.msra.mxu0 0.0
    %5151 = vmatprep.subr.mxu0 0.0
    %5152 = vmatpush1.msra.mxu0 0.0
    %5153 = vmatprep.subr.mxu0 0.0
    %5154 = vmatpush1.msra.mxu0 0.0
    %5155 = vmatprep.subr.mxu0 0.0
    %5156 = vmatpush1.msra.mxu0 0.0
    %5157 = vmatprep.subr.mxu0 0.0
    %5158 = vmatpush1.msra.mxu0 0.0
    %5159 = vmatprep.mubr.f32.mxu0 0.0
    %5160 = vmatmul.mubr.f32.gmra.mrb[0].mxu0 %v5093
    %v5161 = vpop.f32.mrb[0].mxu0
    %v5162 = vadd.f32 0.0, %v5161
    %v5163 = vpop.f32.mrb[0].mxu0
    %5164 = vdwg.mxu0
    %v5165 = vadd.f32 %v5082, %v5162
    %s5166 = scalar_lea.vmem [#allocation10], 1856
    %v5167 = vld [vmem:[%s5166] sm:$0xff]
    %v5168 = vld [vmem:[%s5166 + $0x8] sm:$0xff]
    %v5169 = vld [vmem:[%s5166 + $0x10] sm:$0xff]
    %v5170 = vld [vmem:[%s5166 + $0x18] sm:$0xff]
    %v5171 = vld [vmem:[%s5166 + $0x20] sm:$0xff]
    %v5172 = vld [vmem:[%s5166 + $0x28] sm:$0xff]
    %v5173 = vld [vmem:[%s5166 + $0x30] sm:$0xff]
    %v5174 = vld [vmem:[%s5166 + $0x38] sm:$0xff]
    %v5175 = vrot.slane %v2754, 2
    %v5176 = vsel %vm2780, %v5175, 0
    %5178 = vmatprep.subr.mxu0 0.0
    %5179 = vmatpush1.msra.mxu0 %v5167
    %5180 = vmatprep.subr.mxu0 0.0
    %5181 = vmatpush1.msra.mxu0 %v5168
    %5182 = vmatprep.subr.mxu0 0.0
    %5183 = vmatpush1.msra.mxu0 %v5169
    %5184 = vmatprep.subr.mxu0 0.0
    %5185 = vmatpush1.msra.mxu0 %v5170
    %5186 = vmatprep.subr.mxu0 0.0
    %5187 = vmatpush1.msra.mxu0 %v5171
    %5188 = vmatprep.subr.mxu0 0.0
    %5189 = vmatpush1.msra.mxu0 %v5172
    %5190 = vmatprep.subr.mxu0 0.0
    %5191 = vmatpush1.msra.mxu0 %v5173
    %5192 = vmatprep.subr.mxu0 0.0
    %5193 = vmatpush1.msra.mxu0 %v5174
    %5194 = vmatprep.subr.mxu0 0.0
    %5195 = vmatpush1.msra.mxu0 0.0
    %5196 = vmatprep.subr.mxu0 0.0
    %5197 = vmatpush1.msra.mxu0 0.0
    %5198 = vmatprep.subr.mxu0 0.0
    %5199 = vmatpush1.msra.mxu0 0.0
    %5200 = vmatprep.subr.mxu0 0.0
    %5201 = vmatpush1.msra.mxu0 0.0
    %5202 = vmatprep.subr.mxu0 0.0
    %5203 = vmatpush1.msra.mxu0 0.0
    %5204 = vmatprep.subr.mxu0 0.0
    %5205 = vmatpush1.msra.mxu0 0.0
    %5206 = vmatprep.subr.mxu0 0.0
    %5207 = vmatpush1.msra.mxu0 0.0
    %5208 = vmatprep.subr.mxu0 0.0
    %5209 = vmatpush1.msra.mxu0 0.0
    %5210 = vmatprep.subr.mxu0 0.0
    %5211 = vmatpush1.msra.mxu0 0.0
    %5212 = vmatprep.subr.mxu0 0.0
    %5213 = vmatpush1.msra.mxu0 0.0
    %5214 = vmatprep.subr.mxu0 0.0
    %5215 = vmatpush1.msra.mxu0 0.0
    %5216 = vmatprep.subr.mxu0 0.0
    %5217 = vmatpush1.msra.mxu0 0.0
    %5218 = vmatprep.subr.mxu0 0.0
    %5219 = vmatpush1.msra.mxu0 0.0
    %5220 = vmatprep.subr.mxu0 0.0
    %5221 = vmatpush1.msra.mxu0 0.0
    %5222 = vmatprep.subr.mxu0 0.0
    %5223 = vmatpush1.msra.mxu0 0.0
    %5224 = vmatprep.subr.mxu0 0.0
    %5225 = vmatpush1.msra.mxu0 0.0
    %5226 = vmatprep.subr.mxu0 0.0
    %5227 = vmatpush1.msra.mxu0 0.0
    %5228 = vmatprep.subr.mxu0 0.0
    %5229 = vmatpush1.msra.mxu0 0.0
    %5230 = vmatprep.subr.mxu0 0.0
    %5231 = vmatpush1.msra.mxu0 0.0
    %5232 = vmatprep.subr.mxu0 0.0
    %5233 = vmatpush1.msra.mxu0 0.0
    %5234 = vmatprep.subr.mxu0 0.0
    %5235 = vmatpush1.msra.mxu0 0.0
    %5236 = vmatprep.subr.mxu0 0.0
    %5237 = vmatpush1.msra.mxu0 0.0
    %5238 = vmatprep.subr.mxu0 0.0
    %5239 = vmatpush1.msra.mxu0 0.0
    %5240 = vmatprep.subr.mxu0 0.0
    %5241 = vmatpush1.msra.mxu0 0.0
    %5242 = vmatprep.mubr.f32.mxu0 0.0
    %5243 = vmatmul.mubr.f32.gmra.mrb[0].mxu0 %v5176
    %v5244 = vpop.f32.mrb[0].mxu0
    %v5245 = vadd.f32 0.0, %v5244
    %v5246 = vpop.f32.mrb[0].mxu0
    %5247 = vdwg.mxu0
    %v5248 = vadd.f32 %v5165, %v5245
    %s5249 = scalar_lea.vmem [#allocation10], 1920
    %v5250 = vld [vmem:[%s5249] sm:$0xff]
    %v5251 = vld [vmem:[%s5249 + $0x8] sm:$0xff]
    %v5252 = vld [vmem:[%s5249 + $0x10] sm:$0xff]
    %v5253 = vld [vmem:[%s5249 + $0x18] sm:$0xff]
    %v5254 = vld [vmem:[%s5249 + $0x20] sm:$0xff]
    %v5255 = vld [vmem:[%s5249 + $0x28] sm:$0xff]
    %v5256 = vld [vmem:[%s5249 + $0x30] sm:$0xff]
    %v5257 = vld [vmem:[%s5249 + $0x38] sm:$0xff]
    %v5258 = vrot.slane %v2754, 4
    %v5259 = vsel %vm2780, %v5258, 0
    %5261 = vmatprep.subr.mxu0 0.0
    %5262 = vmatpush1.msra.mxu0 %v5250
    %5263 = vmatprep.subr.mxu0 0.0
    %5264 = vmatpush1.msra.mxu0 %v5251
    %5265 = vmatprep.subr.mxu0 0.0
    %5266 = vmatpush1.msra.mxu0 %v5252
    %5267 = vmatprep.subr.mxu0 0.0
    %5268 = vmatpush1.msra.mxu0 %v5253
    %5269 = vmatprep.subr.mxu0 0.0
    %5270 = vmatpush1.msra.mxu0 %v5254
    %5271 = vmatprep.subr.mxu0 0.0
    %5272 = vmatpush1.msra.mxu0 %v5255
    %5273 = vmatprep.subr.mxu0 0.0
    %5274 = vmatpush1.msra.mxu0 %v5256
    %5275 = vmatprep.subr.mxu0 0.0
    %5276 = vmatpush1.msra.mxu0 %v5257
    %5277 = vmatprep.subr.mxu0 0.0
    %5278 = vmatpush1.msra.mxu0 0.0
    %5279 = vmatprep.subr.mxu0 0.0
    %5280 = vmatpush1.msra.mxu0 0.0
    %5281 = vmatprep.subr.mxu0 0.0
    %5282 = vmatpush1.msra.mxu0 0.0
    %5283 = vmatprep.subr.mxu0 0.0
    %5284 = vmatpush1.msra.mxu0 0.0
    %5285 = vmatprep.subr.mxu0 0.0
    %5286 = vmatpush1.msra.mxu0 0.0
    %5287 = vmatprep.subr.mxu0 0.0
    %5288 = vmatpush1.msra.mxu0 0.0
    %5289 = vmatprep.subr.mxu0 0.0
    %5290 = vmatpush1.msra.mxu0 0.0
    %5291 = vmatprep.subr.mxu0 0.0
    %5292 = vmatpush1.msra.mxu0 0.0
    %5293 = vmatprep.subr.mxu0 0.0
    %5294 = vmatpush1.msra.mxu0 0.0
    %5295 = vmatprep.subr.mxu0 0.0
    %5296 = vmatpush1.msra.mxu0 0.0
    %5297 = vmatprep.subr.mxu0 0.0
    %5298 = vmatpush1.msra.mxu0 0.0
    %5299 = vmatprep.subr.mxu0 0.0
    %5300 = vmatpush1.msra.mxu0 0.0
    %5301 = vmatprep.subr.mxu0 0.0
    %5302 = vmatpush1.msra.mxu0 0.0
    %5303 = vmatprep.subr.mxu0 0.0
    %5304 = vmatpush1.msra.mxu0 0.0
    %5305 = vmatprep.subr.mxu0 0.0
    %5306 = vmatpush1.msra.mxu0 0.0
    %5307 = vmatprep.subr.mxu0 0.0
    %5308 = vmatpush1.msra.mxu0 0.0
    %5309 = vmatprep.subr.mxu0 0.0
    %5310 = vmatpush1.msra.mxu0 0.0
    %5311 = vmatprep.subr.mxu0 0.0
    %5312 = vmatpush1.msra.mxu0 0.0
    %5313 = vmatprep.subr.mxu0 0.0
    %5314 = vmatpush1.msra.mxu0 0.0
    %5315 = vmatprep.subr.mxu0 0.0
    %5316 = vmatpush1.msra.mxu0 0.0
    %5317 = vmatprep.subr.mxu0 0.0
    %5318 = vmatpush1.msra.mxu0 0.0
    %5319 = vmatprep.subr.mxu0 0.0
    %5320 = vmatpush1.msra.mxu0 0.0
    %5321 = vmatprep.subr.mxu0 0.0
    %5322 = vmatpush1.msra.mxu0 0.0
    %5323 = vmatprep.subr.mxu0 0.0
    %5324 = vmatpush1.msra.mxu0 0.0
    %5325 = vmatprep.mubr.f32.mxu0 0.0
    %5326 = vmatmul.mubr.f32.gmra.mrb[0].mxu0 %v5259
    %v5327 = vpop.f32.mrb[0].mxu0
    %v5328 = vadd.f32 0.0, %v5327
    %v5329 = vpop.f32.mrb[0].mxu0
    %5330 = vdwg.mxu0
    %v5331 = vadd.f32 %v5248, %v5328
    %s5332 = scalar_lea.vmem [#allocation10], 1984
    %v5333 = vld [vmem:[%s5332] sm:$0xff]
    %v5334 = vld [vmem:[%s5332 + $0x8] sm:$0xff]
    %v5335 = vld [vmem:[%s5332 + $0x10] sm:$0xff]
    %v5336 = vld [vmem:[%s5332 + $0x18] sm:$0xff]
    %v5337 = vld [vmem:[%s5332 + $0x20] sm:$0xff]
    %v5338 = vld [vmem:[%s5332 + $0x28] sm:$0xff]
    %v5339 = vld [vmem:[%s5332 + $0x30] sm:$0xff]
    %v5340 = vld [vmem:[%s5332 + $0x38] sm:$0xff]
    %v5341 = vrot.slane %v2754, 6
    %v5342 = vsel %vm2780, %v5341, 0
    %5344 = vmatprep.subr.mxu0 0.0
    %5345 = vmatpush1.msra.mxu0 %v5333
    %5346 = vmatprep.subr.mxu0 0.0
    %5347 = vmatpush1.msra.mxu0 %v5334
    %5348 = vmatprep.subr.mxu0 0.0
    %5349 = vmatpush1.msra.mxu0 %v5335
    %5350 = vmatprep.subr.mxu0 0.0
    %5351 = vmatpush1.msra.mxu0 %v5336
    %5352 = vmatprep.subr.mxu0 0.0
    %5353 = vmatpush1.msra.mxu0 %v5337
    %5354 = vmatprep.subr.mxu0 0.0
    %5355 = vmatpush1.msra.mxu0 %v5338
    %5356 = vmatprep.subr.mxu0 0.0
    %5357 = vmatpush1.msra.mxu0 %v5339
    %5358 = vmatprep.subr.mxu0 0.0
    %5359 = vmatpush1.msra.mxu0 %v5340
    %5360 = vmatprep.subr.mxu0 0.0
    %5361 = vmatpush1.msra.mxu0 0.0
    %5362 = vmatprep.subr.mxu0 0.0
    %5363 = vmatpush1.msra.mxu0 0.0
    %5364 = vmatprep.subr.mxu0 0.0
    %5365 = vmatpush1.msra.mxu0 0.0
    %5366 = vmatprep.subr.mxu0 0.0
    %5367 = vmatpush1.msra.mxu0 0.0
    %5368 = vmatprep.subr.mxu0 0.0
    %5369 = vmatpush1.msra.mxu0 0.0
    %5370 = vmatprep.subr.mxu0 0.0
    %5371 = vmatpush1.msra.mxu0 0.0
    %5372 = vmatprep.subr.mxu0 0.0
    %5373 = vmatpush1.msra.mxu0 0.0
    %5374 = vmatprep.subr.mxu0 0.0
    %5375 = vmatpush1.msra.mxu0 0.0
    %5376 = vmatprep.subr.mxu0 0.0
    %5377 = vmatpush1.msra.mxu0 0.0
    %5378 = vmatprep.subr.mxu0 0.0
    %5379 = vmatpush1.msra.mxu0 0.0
    %5380 = vmatprep.subr.mxu0 0.0
    %5381 = vmatpush1.msra.mxu0 0.0
    %5382 = vmatprep.subr.mxu0 0.0
    %5383 = vmatpush1.msra.mxu0 0.0
    %5384 = vmatprep.subr.mxu0 0.0
    %5385 = vmatpush1.msra.mxu0 0.0
    %5386 = vmatprep.subr.mxu0 0.0
    %5387 = vmatpush1.msra.mxu0 0.0
    %5388 = vmatprep.subr.mxu0 0.0
    %5389 = vmatpush1.msra.mxu0 0.0
    %5390 = vmatprep.subr.mxu0 0.0
    %5391 = vmatpush1.msra.mxu0 0.0
    %5392 = vmatprep.subr.mxu0 0.0
    %5393 = vmatpush1.msra.mxu0 0.0
    %5394 = vmatprep.subr.mxu0 0.0
    %5395 = vmatpush1.msra.mxu0 0.0
    %5396 = vmatprep.subr.mxu0 0.0
    %5397 = vmatpush1.msra.mxu0 0.0
    %5398 = vmatprep.subr.mxu0 0.0
    %5399 = vmatpush1.msra.mxu0 0.0
    %5400 = vmatprep.subr.mxu0 0.0
    %5401 = vmatpush1.msra.mxu0 0.0
    %5402 = vmatprep.subr.mxu0 0.0
    %5403 = vmatpush1.msra.mxu0 0.0
    %5404 = vmatprep.subr.mxu0 0.0
    %5405 = vmatpush1.msra.mxu0 0.0
    %5406 = vmatprep.subr.mxu0 0.0
    %5407 = vmatpush1.msra.mxu0 0.0
    %5408 = vmatprep.mubr.f32.mxu0 0.0
    %5409 = vmatmul.mubr.f32.gmra.mrb[0].mxu0 %v5342
    %v5410 = vpop.f32.mrb[0].mxu0
    %v5411 = vadd.f32 0.0, %v5410
    %v5412 = vpop.f32.mrb[0].mxu0
    %5413 = vdwg.mxu0
    %v5414 = vadd.f32 %v5331, %v5411
    %s5415 = scalar_lea.vmem [#allocation10], 2048
    %v5416 = vld [vmem:[%s5415] sm:$0xff]
    %v5417 = vld [vmem:[%s5415 + $0x8] sm:$0xff]
    %v5418 = vld [vmem:[%s5415 + $0x10] sm:$0xff]
    %v5419 = vld [vmem:[%s5415 + $0x18] sm:$0xff]
    %v5420 = vld [vmem:[%s5415 + $0x20] sm:$0xff]
    %v5421 = vld [vmem:[%s5415 + $0x28] sm:$0xff]
    %v5422 = vld [vmem:[%s5415 + $0x30] sm:$0xff]
    %v5423 = vld [vmem:[%s5415 + $0x38] sm:$0xff]
    %v5425 = vsel %vm2780, %v2755, 0
    %5427 = vmatprep.subr.mxu0 0.0
    %5428 = vmatpush1.msra.mxu0 %v5416
    %5429 = vmatprep.subr.mxu0 0.0
    %5430 = vmatpush1.msra.mxu0 %v5417
    %5431 = vmatprep.subr.mxu0 0.0
    %5432 = vmatpush1.msra.mxu0 %v5418
    %5433 = vmatprep.subr.mxu0 0.0
    %5434 = vmatpush1.msra.mxu0 %v5419
    %5435 = vmatprep.subr.mxu0 0.0
    %5436 = vmatpush1.msra.mxu0 %v5420
    %5437 = vmatprep.subr.mxu0 0.0
    %5438 = vmatpush1.msra.mxu0 %v5421
    %5439 = vmatprep.subr.mxu0 0.0
    %5440 = vmatpush1.msra.mxu0 %v5422
    %5441 = vmatprep.subr.mxu0 0.0
    %5442 = vmatpush1.msra.mxu0 %v5423
    %5443 = vmatprep.subr.mxu0 0.0
    %5444 = vmatpush1.msra.mxu0 0.0
    %5445 = vmatprep.subr.mxu0 0.0
    %5446 = vmatpush1.msra.mxu0 0.0
    %5447 = vmatprep.subr.mxu0 0.0
    %5448 = vmatpush1.msra.mxu0 0.0
    %5449 = vmatprep.subr.mxu0 0.0
    %5450 = vmatpush1.msra.mxu0 0.0
    %5451 = vmatprep.subr.mxu0 0.0
    %5452 = vmatpush1.msra.mxu0 0.0
    %5453 = vmatprep.subr.mxu0 0.0
    %5454 = vmatpush1.msra.mxu0 0.0
    %5455 = vmatprep.subr.mxu0 0.0
    %5456 = vmatpush1.msra.mxu0 0.0
    %5457 = vmatprep.subr.mxu0 0.0
    %5458 = vmatpush1.msra.mxu0 0.0
    %5459 = vmatprep.subr.mxu0 0.0
    %5460 = vmatpush1.msra.mxu0 0.0
    %5461 = vmatprep.subr.mxu0 0.0
    %5462 = vmatpush1.msra.mxu0 0.0
    %5463 = vmatprep.subr.mxu0 0.0
    %5464 = vmatpush1.msra.mxu0 0.0
    %5465 = vmatprep.subr.mxu0 0.0
    %5466 = vmatpush1.msra.mxu0 0.0
    %5467 = vmatprep.subr.mxu0 0.0
    %5468 = vmatpush1.msra.mxu0 0.0
    %5469 = vmatprep.subr.mxu0 0.0
    %5470 = vmatpush1.msra.mxu0 0.0
    %5471 = vmatprep.subr.mxu0 0.0
    %5472 = vmatpush1.msra.mxu0 0.0
    %5473 = vmatprep.subr.mxu0 0.0
    %5474 = vmatpush1.msra.mxu0 0.0
    %5475 = vmatprep.subr.mxu0 0.0
    %5476 = vmatpush1.msra.mxu0 0.0
    %5477 = vmatprep.subr.mxu0 0.0
    %5478 = vmatpush1.msra.mxu0 0.0
    %5479 = vmatprep.subr.mxu0 0.0
    %5480 = vmatpush1.msra.mxu0 0.0
    %5481 = vmatprep.subr.mxu0 0.0
    %5482 = vmatpush1.msra.mxu0 0.0
    %5483 = vmatprep.subr.mxu0 0.0
    %5484 = vmatpush1.msra.mxu0 0.0
    %5485 = vmatprep.subr.mxu0 0.0
    %5486 = vmatpush1.msra.mxu0 0.0
    %5487 = vmatprep.subr.mxu0 0.0
    %5488 = vmatpush1.msra.mxu0 0.0
    %5489 = vmatprep.subr.mxu0 0.0
    %5490 = vmatpush1.msra.mxu0 0.0
    %5491 = vmatprep.mubr.f32.mxu0 0.0
    %5492 = vmatmul.mubr.f32.gmra.mrb[0].mxu0 %v5425
    %v5493 = vpop.f32.mrb[0].mxu0
    %v5494 = vadd.f32 0.0, %v5493
    %v5495 = vpop.f32.mrb[0].mxu0
    %5496 = vdwg.mxu0
    %v5497 = vadd.f32 %v5414, %v5494
    %s5498 = scalar_lea.vmem [#allocation10], 2112
    %v5499 = vld [vmem:[%s5498] sm:$0xff]
    %v5500 = vld [vmem:[%s5498 + $0x8] sm:$0xff]
    %v5501 = vld [vmem:[%s5498 + $0x10] sm:$0xff]
    %v5502 = vld [vmem:[%s5498 + $0x18] sm:$0xff]
    %v5503 = vld [vmem:[%s5498 + $0x20] sm:$0xff]
    %v5504 = vld [vmem:[%s5498 + $0x28] sm:$0xff]
    %v5505 = vld [vmem:[%s5498 + $0x30] sm:$0xff]
    %v5506 = vld [vmem:[%s5498 + $0x38] sm:$0xff]
    %v5507 = vrot.slane %v2755, 2
    %v5508 = vsel %vm2780, %v5507, 0
    %5510 = vmatprep.subr.mxu0 0.0
    %5511 = vmatpush1.msra.mxu0 %v5499
    %5512 = vmatprep.subr.mxu0 0.0
    %5513 = vmatpush1.msra.mxu0 %v5500
    %5514 = vmatprep.subr.mxu0 0.0
    %5515 = vmatpush1.msra.mxu0 %v5501
    %5516 = vmatprep.subr.mxu0 0.0
    %5517 = vmatpush1.msra.mxu0 %v5502
    %5518 = vmatprep.subr.mxu0 0.0
    %5519 = vmatpush1.msra.mxu0 %v5503
    %5520 = vmatprep.subr.mxu0 0.0
    %5521 = vmatpush1.msra.mxu0 %v5504
    %5522 = vmatprep.subr.mxu0 0.0
    %5523 = vmatpush1.msra.mxu0 %v5505
    %5524 = vmatprep.subr.mxu0 0.0
    %5525 = vmatpush1.msra.mxu0 %v5506
    %5526 = vmatprep.subr.mxu0 0.0
    %5527 = vmatpush1.msra.mxu0 0.0
    %5528 = vmatprep.subr.mxu0 0.0
    %5529 = vmatpush1.msra.mxu0 0.0
    %5530 = vmatprep.subr.mxu0 0.0
    %5531 = vmatpush1.msra.mxu0 0.0
    %5532 = vmatprep.subr.mxu0 0.0
    %5533 = vmatpush1.msra.mxu0 0.0
    %5534 = vmatprep.subr.mxu0 0.0
    %5535 = vmatpush1.msra.mxu0 0.0
    %5536 = vmatprep.subr.mxu0 0.0
    %5537 = vmatpush1.msra.mxu0 0.0
    %5538 = vmatprep.subr.mxu0 0.0
    %5539 = vmatpush1.msra.mxu0 0.0
    %5540 = vmatprep.subr.mxu0 0.0
    %5541 = vmatpush1.msra.mxu0 0.0
    %5542 = vmatprep.subr.mxu0 0.0
    %5543 = vmatpush1.msra.mxu0 0.0
    %5544 = vmatprep.subr.mxu0 0.0
    %5545 = vmatpush1.msra.mxu0 0.0
    %5546 = vmatprep.subr.mxu0 0.0
    %5547 = vmatpush1.msra.mxu0 0.0
    %5548 = vmatprep.subr.mxu0 0.0
    %5549 = vmatpush1.msra.mxu0 0.0
    %5550 = vmatprep.subr.mxu0 0.0
    %5551 = vmatpush1.msra.mxu0 0.0
    %5552 = vmatprep.subr.mxu0 0.0
    %5553 = vmatpush1.msra.mxu0 0.0
    %5554 = vmatprep.subr.mxu0 0.0
    %5555 = vmatpush1.msra.mxu0 0.0
    %5556 = vmatprep.subr.mxu0 0.0
    %5557 = vmatpush1.msra.mxu0 0.0
    %5558 = vmatprep.subr.mxu0 0.0
    %5559 = vmatpush1.msra.mxu0 0.0
    %5560 = vmatprep.subr.mxu0 0.0
    %5561 = vmatpush1.msra.mxu0 0.0
    %5562 = vmatprep.subr.mxu0 0.0
    %5563 = vmatpush1.msra.mxu0 0.0
    %5564 = vmatprep.subr.mxu0 0.0
    %5565 = vmatpush1.msra.mxu0 0.0
    %5566 = vmatprep.subr.mxu0 0.0
    %5567 = vmatpush1.msra.mxu0 0.0
    %5568 = vmatprep.subr.mxu0 0.0
    %5569 = vmatpush1.msra.mxu0 0.0
    %5570 = vmatprep.subr.mxu0 0.0
    %5571 = vmatpush1.msra.mxu0 0.0
    %5572 = vmatprep.subr.mxu0 0.0
    %5573 = vmatpush1.msra.mxu0 0.0
    %5574 = vmatprep.mubr.f32.mxu0 0.0
    %5575 = vmatmul.mubr.f32.gmra.mrb[0].mxu0 %v5508
    %v5576 = vpop.f32.mrb[0].mxu0
    %v5577 = vadd.f32 0.0, %v5576
    %v5578 = vpop.f32.mrb[0].mxu0
    %5579 = vdwg.mxu0
    %v5580 = vadd.f32 %v5497, %v5577
    %s5581 = scalar_lea.vmem [#allocation10], 2176
    %v5582 = vld [vmem:[%s5581] sm:$0xff]
    %v5583 = vld [vmem:[%s5581 + $0x8] sm:$0xff]
    %v5584 = vld [vmem:[%s5581 + $0x10] sm:$0xff]
    %v5585 = vld [vmem:[%s5581 + $0x18] sm:$0xff]
    %v5586 = vld [vmem:[%s5581 + $0x20] sm:$0xff]
    %v5587 = vld [vmem:[%s5581 + $0x28] sm:$0xff]
    %v5588 = vld [vmem:[%s5581 + $0x30] sm:$0xff]
    %v5589 = vld [vmem:[%s5581 + $0x38] sm:$0xff]
    %v5590 = vrot.slane %v2755, 4
    %v5591 = vsel %vm2780, %v5590, 0
    %5593 = vmatprep.subr.mxu0 0.0
    %5594 = vmatpush1.msra.mxu0 %v5582
    %5595 = vmatprep.subr.mxu0 0.0
    %5596 = vmatpush1.msra.mxu0 %v5583
    %5597 = vmatprep.subr.mxu0 0.0
    %5598 = vmatpush1.msra.mxu0 %v5584
    %5599 = vmatprep.subr.mxu0 0.0
    %5600 = vmatpush1.msra.mxu0 %v5585
    %5601 = vmatprep.subr.mxu0 0.0
    %5602 = vmatpush1.msra.mxu0 %v5586
    %5603 = vmatprep.subr.mxu0 0.0
    %5604 = vmatpush1.msra.mxu0 %v5587
    %5605 = vmatprep.subr.mxu0 0.0
    %5606 = vmatpush1.msra.mxu0 %v5588
    %5607 = vmatprep.subr.mxu0 0.0
    %5608 = vmatpush1.msra.mxu0 %v5589
    %5609 = vmatprep.subr.mxu0 0.0
    %5610 = vmatpush1.msra.mxu0 0.0
    %5611 = vmatprep.subr.mxu0 0.0
    %5612 = vmatpush1.msra.mxu0 0.0
    %5613 = vmatprep.subr.mxu0 0.0
    %5614 = vmatpush1.msra.mxu0 0.0
    %5615 = vmatprep.subr.mxu0 0.0
    %5616 = vmatpush1.msra.mxu0 0.0
    %5617 = vmatprep.subr.mxu0 0.0
    %5618 = vmatpush1.msra.mxu0 0.0
    %5619 = vmatprep.subr.mxu0 0.0
    %5620 = vmatpush1.msra.mxu0 0.0
    %5621 = vmatprep.subr.mxu0 0.0
    %5622 = vmatpush1.msra.mxu0 0.0
    %5623 = vmatprep.subr.mxu0 0.0
    %5624 = vmatpush1.msra.mxu0 0.0
    %5625 = vmatprep.subr.mxu0 0.0
    %5626 = vmatpush1.msra.mxu0 0.0
    %5627 = vmatprep.subr.mxu0 0.0
    %5628 = vmatpush1.msra.mxu0 0.0
    %5629 = vmatprep.subr.mxu0 0.0
    %5630 = vmatpush1.msra.mxu0 0.0
    %5631 = vmatprep.subr.mxu0 0.0
    %5632 = vmatpush1.msra.mxu0 0.0
    %5633 = vmatprep.subr.mxu0 0.0
    %5634 = vmatpush1.msra.mxu0 0.0
    %5635 = vmatprep.subr.mxu0 0.0
    %5636 = vmatpush1.msra.mxu0 0.0
    %5637 = vmatprep.subr.mxu0 0.0
    %5638 = vmatpush1.msra.mxu0 0.0
    %5639 = vmatprep.subr.mxu0 0.0
    %5640 = vmatpush1.msra.mxu0 0.0
    %5641 = vmatprep.subr.mxu0 0.0
    %5642 = vmatpush1.msra.mxu0 0.0
    %5643 = vmatprep.subr.mxu0 0.0
    %5644 = vmatpush1.msra.mxu0 0.0
    %5645 = vmatprep.subr.mxu0 0.0
    %5646 = vmatpush1.msra.mxu0 0.0
    %5647 = vmatprep.subr.mxu0 0.0
    %5648 = vmatpush1.msra.mxu0 0.0
    %5649 = vmatprep.subr.mxu0 0.0
    %5650 = vmatpush1.msra.mxu0 0.0
    %5651 = vmatprep.subr.mxu0 0.0
    %5652 = vmatpush1.msra.mxu0 0.0
    %5653 = vmatprep.subr.mxu0 0.0
    %5654 = vmatpush1.msra.mxu0 0.0
    %5655 = vmatprep.subr.mxu0 0.0
    %5656 = vmatpush1.msra.mxu0 0.0
    %5657 = vmatprep.mubr.f32.mxu0 0.0
    %5658 = vmatmul.mubr.f32.gmra.mrb[0].mxu0 %v5591
    %v5659 = vpop.f32.mrb[0].mxu0
    %v5660 = vadd.f32 0.0, %v5659
    %v5661 = vpop.f32.mrb[0].mxu0
    %5662 = vdwg.mxu0
    %v5663 = vadd.f32 %v5580, %v5660
    %s5664 = scalar_lea.vmem [#allocation10], 2240
    %v5665 = vld [vmem:[%s5664] sm:$0xff]
    %v5666 = vld [vmem:[%s5664 + $0x8] sm:$0xff]
    %v5667 = vld [vmem:[%s5664 + $0x10] sm:$0xff]
    %v5668 = vld [vmem:[%s5664 + $0x18] sm:$0xff]
    %v5669 = vld [vmem:[%s5664 + $0x20] sm:$0xff]
    %v5670 = vld [vmem:[%s5664 + $0x28] sm:$0xff]
    %v5671 = vld [vmem:[%s5664 + $0x30] sm:$0xff]
    %v5672 = vld [vmem:[%s5664 + $0x38] sm:$0xff]
    %v5673 = vrot.slane %v2755, 6
    %v5674 = vsel %vm2780, %v5673, 0
    %5676 = vmatprep.subr.mxu0 0.0
    %5677 = vmatpush1.msra.mxu0 %v5665
    %5678 = vmatprep.subr.mxu0 0.0
    %5679 = vmatpush1.msra.mxu0 %v5666
    %5680 = vmatprep.subr.mxu0 0.0
    %5681 = vmatpush1.msra.mxu0 %v5667
    %5682 = vmatprep.subr.mxu0 0.0
    %5683 = vmatpush1.msra.mxu0 %v5668
    %5684 = vmatprep.subr.mxu0 0.0
    %5685 = vmatpush1.msra.mxu0 %v5669
    %5686 = vmatprep.subr.mxu0 0.0
    %5687 = vmatpush1.msra.mxu0 %v5670
    %5688 = vmatprep.subr.mxu0 0.0
    %5689 = vmatpush1.msra.mxu0 %v5671
    %5690 = vmatprep.subr.mxu0 0.0
    %5691 = vmatpush1.msra.mxu0 %v5672
    %5692 = vmatprep.subr.mxu0 0.0
    %5693 = vmatpush1.msra.mxu0 0.0
    %5694 = vmatprep.subr.mxu0 0.0
    %5695 = vmatpush1.msra.mxu0 0.0
    %5696 = vmatprep.subr.mxu0 0.0
    %5697 = vmatpush1.msra.mxu0 0.0
    %5698 = vmatprep.subr.mxu0 0.0
    %5699 = vmatpush1.msra.mxu0 0.0
    %5700 = vmatprep.subr.mxu0 0.0
    %5701 = vmatpush1.msra.mxu0 0.0
    %5702 = vmatprep.subr.mxu0 0.0
    %5703 = vmatpush1.msra.mxu0 0.0
    %5704 = vmatprep.subr.mxu0 0.0
    %5705 = vmatpush1.msra.mxu0 0.0
    %5706 = vmatprep.subr.mxu0 0.0
    %5707 = vmatpush1.msra.mxu0 0.0
    %5708 = vmatprep.subr.mxu0 0.0
    %5709 = vmatpush1.msra.mxu0 0.0
    %5710 = vmatprep.subr.mxu0 0.0
    %5711 = vmatpush1.msra.mxu0 0.0
    %5712 = vmatprep.subr.mxu0 0.0
    %5713 = vmatpush1.msra.mxu0 0.0
    %5714 = vmatprep.subr.mxu0 0.0
    %5715 = vmatpush1.msra.mxu0 0.0
    %5716 = vmatprep.subr.mxu0 0.0
    %5717 = vmatpush1.msra.mxu0 0.0
    %5718 = vmatprep.subr.mxu0 0.0
    %5719 = vmatpush1.msra.mxu0 0.0
    %5720 = vmatprep.subr.mxu0 0.0
    %5721 = vmatpush1.msra.mxu0 0.0
    %5722 = vmatprep.subr.mxu0 0.0
    %5723 = vmatpush1.msra.mxu0 0.0
    %5724 = vmatprep.subr.mxu0 0.0
    %5725 = vmatpush1.msra.mxu0 0.0
    %5726 = vmatprep.subr.mxu0 0.0
    %5727 = vmatpush1.msra.mxu0 0.0
    %5728 = vmatprep.subr.mxu0 0.0
    %5729 = vmatpush1.msra.mxu0 0.0
    %5730 = vmatprep.subr.mxu0 0.0
    %5731 = vmatpush1.msra.mxu0 0.0
    %5732 = vmatprep.subr.mxu0 0.0
    %5733 = vmatpush1.msra.mxu0 0.0
    %5734 = vmatprep.subr.mxu0 0.0
    %5735 = vmatpush1.msra.mxu0 0.0
    %5736 = vmatprep.subr.mxu0 0.0
    %5737 = vmatpush1.msra.mxu0 0.0
    %5738 = vmatprep.subr.mxu0 0.0
    %5739 = vmatpush1.msra.mxu0 0.0
    %5740 = vmatprep.mubr.f32.mxu0 0.0
    %5741 = vmatmul.mubr.f32.gmra.mrb[0].mxu0 %v5674
    %v5742 = vpop.f32.mrb[0].mxu0
    %v5743 = vadd.f32 0.0, %v5742
    %v5744 = vpop.f32.mrb[0].mxu0
    %5745 = vdwg.mxu0
    %v5746 = vadd.f32 %v5663, %v5743
    %s5747 = scalar_lea.vmem [#allocation10], 2304
    %v5748 = vld [vmem:[%s5747] sm:$0xff]
    %v5749 = vld [vmem:[%s5747 + $0x8] sm:$0xff]
    %v5750 = vld [vmem:[%s5747 + $0x10] sm:$0xff]
    %v5751 = vld [vmem:[%s5747 + $0x18] sm:$0xff]
    %v5752 = vld [vmem:[%s5747 + $0x20] sm:$0xff]
    %v5753 = vld [vmem:[%s5747 + $0x28] sm:$0xff]
    %v5754 = vld [vmem:[%s5747 + $0x30] sm:$0xff]
    %v5755 = vld [vmem:[%s5747 + $0x38] sm:$0xff]
    %v5757 = vsel %vm2780, %v2756, 0
    %5759 = vmatprep.subr.mxu0 0.0
    %5760 = vmatpush1.msra.mxu0 %v5748
    %5761 = vmatprep.subr.mxu0 0.0
    %5762 = vmatpush1.msra.mxu0 %v5749
    %5763 = vmatprep.subr.mxu0 0.0
    %5764 = vmatpush1.msra.mxu0 %v5750
    %5765 = vmatprep.subr.mxu0 0.0
    %5766 = vmatpush1.msra.mxu0 %v5751
    %5767 = vmatprep.subr.mxu0 0.0
    %5768 = vmatpush1.msra.mxu0 %v5752
    %5769 = vmatprep.subr.mxu0 0.0
    %5770 = vmatpush1.msra.mxu0 %v5753
    %5771 = vmatprep.subr.mxu0 0.0
    %5772 = vmatpush1.msra.mxu0 %v5754
    %5773 = vmatprep.subr.mxu0 0.0
    %5774 = vmatpush1.msra.mxu0 %v5755
    %5775 = vmatprep.subr.mxu0 0.0
    %5776 = vmatpush1.msra.mxu0 0.0
    %5777 = vmatprep.subr.mxu0 0.0
    %5778 = vmatpush1.msra.mxu0 0.0
    %5779 = vmatprep.subr.mxu0 0.0
    %5780 = vmatpush1.msra.mxu0 0.0
    %5781 = vmatprep.subr.mxu0 0.0
    %5782 = vmatpush1.msra.mxu0 0.0
    %5783 = vmatprep.subr.mxu0 0.0
    %5784 = vmatpush1.msra.mxu0 0.0
    %5785 = vmatprep.subr.mxu0 0.0
    %5786 = vmatpush1.msra.mxu0 0.0
    %5787 = vmatprep.subr.mxu0 0.0
    %5788 = vmatpush1.msra.mxu0 0.0
    %5789 = vmatprep.subr.mxu0 0.0
    %5790 = vmatpush1.msra.mxu0 0.0
    %5791 = vmatprep.subr.mxu0 0.0
    %5792 = vmatpush1.msra.mxu0 0.0
    %5793 = vmatprep.subr.mxu0 0.0
    %5794 = vmatpush1.msra.mxu0 0.0
    %5795 = vmatprep.subr.mxu0 0.0
    %5796 = vmatpush1.msra.mxu0 0.0
    %5797 = vmatprep.subr.mxu0 0.0
    %5798 = vmatpush1.msra.mxu0 0.0
    %5799 = vmatprep.subr.mxu0 0.0
    %5800 = vmatpush1.msra.mxu0 0.0
    %5801 = vmatprep.subr.mxu0 0.0
    %5802 = vmatpush1.msra.mxu0 0.0
    %5803 = vmatprep.subr.mxu0 0.0
    %5804 = vmatpush1.msra.mxu0 0.0
    %5805 = vmatprep.subr.mxu0 0.0
    %5806 = vmatpush1.msra.mxu0 0.0
    %5807 = vmatprep.subr.mxu0 0.0
    %5808 = vmatpush1.msra.mxu0 0.0
    %5809 = vmatprep.subr.mxu0 0.0
    %5810 = vmatpush1.msra.mxu0 0.0
    %5811 = vmatprep.subr.mxu0 0.0
    %5812 = vmatpush1.msra.mxu0 0.0
    %5813 = vmatprep.subr.mxu0 0.0
    %5814 = vmatpush1.msra.mxu0 0.0
    %5815 = vmatprep.subr.mxu0 0.0
    %5816 = vmatpush1.msra.mxu0 0.0
    %5817 = vmatprep.subr.mxu0 0.0
    %5818 = vmatpush1.msra.mxu0 0.0
    %5819 = vmatprep.subr.mxu0 0.0
    %5820 = vmatpush1.msra.mxu0 0.0
    %5821 = vmatprep.subr.mxu0 0.0
    %5822 = vmatpush1.msra.mxu0 0.0
    %5823 = vmatprep.mubr.f32.mxu0 0.0
    %5824 = vmatmul.mubr.f32.gmra.mrb[0].mxu0 %v5757
    %v5825 = vpop.f32.mrb[0].mxu0
    %v5826 = vadd.f32 0.0, %v5825
    %v5827 = vpop.f32.mrb[0].mxu0
    %5828 = vdwg.mxu0
    %v5829 = vadd.f32 %v5746, %v5826
    %s5830 = scalar_lea.vmem [#allocation10], 2368
    %v5831 = vld [vmem:[%s5830] sm:$0xff]
    %v5832 = vld [vmem:[%s5830 + $0x8] sm:$0xff]
    %v5833 = vld [vmem:[%s5830 + $0x10] sm:$0xff]
    %v5834 = vld [vmem:[%s5830 + $0x18] sm:$0xff]
    %v5835 = vld [vmem:[%s5830 + $0x20] sm:$0xff]
    %v5836 = vld [vmem:[%s5830 + $0x28] sm:$0xff]
    %v5837 = vld [vmem:[%s5830 + $0x30] sm:$0xff]
    %v5838 = vld [vmem:[%s5830 + $0x38] sm:$0xff]
    %v5839 = vrot.slane %v2756, 2
    %v5840 = vsel %vm2780, %v5839, 0
    %5842 = vmatprep.subr.mxu0 0.0
    %5843 = vmatpush1.msra.mxu0 %v5831
    %5844 = vmatprep.subr.mxu0 0.0
    %5845 = vmatpush1.msra.mxu0 %v5832
    %5846 = vmatprep.subr.mxu0 0.0
    %5847 = vmatpush1.msra.mxu0 %v5833
    %5848 = vmatprep.subr.mxu0 0.0
    %5849 = vmatpush1.msra.mxu0 %v5834
    %5850 = vmatprep.subr.mxu0 0.0
    %5851 = vmatpush1.msra.mxu0 %v5835
    %5852 = vmatprep.subr.mxu0 0.0
    %5853 = vmatpush1.msra.mxu0 %v5836
    %5854 = vmatprep.subr.mxu0 0.0
    %5855 = vmatpush1.msra.mxu0 %v5837
    %5856 = vmatprep.subr.mxu0 0.0
    %5857 = vmatpush1.msra.mxu0 %v5838
    %5858 = vmatprep.subr.mxu0 0.0
    %5859 = vmatpush1.msra.mxu0 0.0
    %5860 = vmatprep.subr.mxu0 0.0
    %5861 = vmatpush1.msra.mxu0 0.0
    %5862 = vmatprep.subr.mxu0 0.0
    %5863 = vmatpush1.msra.mxu0 0.0
    %5864 = vmatprep.subr.mxu0 0.0
    %5865 = vmatpush1.msra.mxu0 0.0
    %5866 = vmatprep.subr.mxu0 0.0
    %5867 = vmatpush1.msra.mxu0 0.0
    %5868 = vmatprep.subr.mxu0 0.0
    %5869 = vmatpush1.msra.mxu0 0.0
    %5870 = vmatprep.subr.mxu0 0.0
    %5871 = vmatpush1.msra.mxu0 0.0
    %5872 = vmatprep.subr.mxu0 0.0
    %5873 = vmatpush1.msra.mxu0 0.0
    %5874 = vmatprep.subr.mxu0 0.0
    %5875 = vmatpush1.msra.mxu0 0.0
    %5876 = vmatprep.subr.mxu0 0.0
    %5877 = vmatpush1.msra.mxu0 0.0
    %5878 = vmatprep.subr.mxu0 0.0
    %5879 = vmatpush1.msra.mxu0 0.0
    %5880 = vmatprep.subr.mxu0 0.0
    %5881 = vmatpush1.msra.mxu0 0.0
    %5882 = vmatprep.subr.mxu0 0.0
    %5883 = vmatpush1.msra.mxu0 0.0
    %5884 = vmatprep.subr.mxu0 0.0
    %5885 = vmatpush1.msra.mxu0 0.0
    %5886 = vmatprep.subr.mxu0 0.0
    %5887 = vmatpush1.msra.mxu0 0.0
    %5888 = vmatprep.subr.mxu0 0.0
    %5889 = vmatpush1.msra.mxu0 0.0
    %5890 = vmatprep.subr.mxu0 0.0
    %5891 = vmatpush1.msra.mxu0 0.0
    %5892 = vmatprep.subr.mxu0 0.0
    %5893 = vmatpush1.msra.mxu0 0.0
    %5894 = vmatprep.subr.mxu0 0.0
    %5895 = vmatpush1.msra.mxu0 0.0
    %5896 = vmatprep.subr.mxu0 0.0
    %5897 = vmatpush1.msra.mxu0 0.0
    %5898 = vmatprep.subr.mxu0 0.0
    %5899 = vmatpush1.msra.mxu0 0.0
    %5900 = vmatprep.subr.mxu0 0.0
    %5901 = vmatpush1.msra.mxu0 0.0
    %5902 = vmatprep.subr.mxu0 0.0
    %5903 = vmatpush1.msra.mxu0 0.0
    %5904 = vmatprep.subr.mxu0 0.0
    %5905 = vmatpush1.msra.mxu0 0.0
    %5906 = vmatprep.mubr.f32.mxu0 0.0
    %5907 = vmatmul.mubr.f32.gmra.mrb[0].mxu0 %v5840
    %v5908 = vpop.f32.mrb[0].mxu0
    %v5909 = vadd.f32 0.0, %v5908
    %v5910 = vpop.f32.mrb[0].mxu0
    %5911 = vdwg.mxu0
    %v5912 = vadd.f32 %v5829, %v5909
    %s5913 = scalar_lea.vmem [#allocation10], 2432
    %v5914 = vld [vmem:[%s5913] sm:$0xff]
    %v5915 = vld [vmem:[%s5913 + $0x8] sm:$0xff]
    %v5916 = vld [vmem:[%s5913 + $0x10] sm:$0xff]
    %v5917 = vld [vmem:[%s5913 + $0x18] sm:$0xff]
    %v5918 = vld [vmem:[%s5913 + $0x20] sm:$0xff]
    %v5919 = vld [vmem:[%s5913 + $0x28] sm:$0xff]
    %v5920 = vld [vmem:[%s5913 + $0x30] sm:$0xff]
    %v5921 = vld [vmem:[%s5913 + $0x38] sm:$0xff]
    %v5922 = vrot.slane %v2756, 4
    %v5923 = vsel %vm2780, %v5922, 0
    %5925 = vmatprep.subr.mxu0 0.0
    %5926 = vmatpush1.msra.mxu0 %v5914
    %5927 = vmatprep.subr.mxu0 0.0
    %5928 = vmatpush1.msra.mxu0 %v5915
    %5929 = vmatprep.subr.mxu0 0.0
    %5930 = vmatpush1.msra.mxu0 %v5916
    %5931 = vmatprep.subr.mxu0 0.0
    %5932 = vmatpush1.msra.mxu0 %v5917
    %5933 = vmatprep.subr.mxu0 0.0
    %5934 = vmatpush1.msra.mxu0 %v5918
    %5935 = vmatprep.subr.mxu0 0.0
    %5936 = vmatpush1.msra.mxu0 %v5919
    %5937 = vmatprep.subr.mxu0 0.0
    %5938 = vmatpush1.msra.mxu0 %v5920
    %5939 = vmatprep.subr.mxu0 0.0
    %5940 = vmatpush1.msra.mxu0 %v5921
    %5941 = vmatprep.subr.mxu0 0.0
    %5942 = vmatpush1.msra.mxu0 0.0
    %5943 = vmatprep.subr.mxu0 0.0
    %5944 = vmatpush1.msra.mxu0 0.0
    %5945 = vmatprep.subr.mxu0 0.0
    %5946 = vmatpush1.msra.mxu0 0.0
    %5947 = vmatprep.subr.mxu0 0.0
    %5948 = vmatpush1.msra.mxu0 0.0
    %5949 = vmatprep.subr.mxu0 0.0
    %5950 = vmatpush1.msra.mxu0 0.0
    %5951 = vmatprep.subr.mxu0 0.0
    %5952 = vmatpush1.msra.mxu0 0.0
    %5953 = vmatprep.subr.mxu0 0.0
    %5954 = vmatpush1.msra.mxu0 0.0
    %5955 = vmatprep.subr.mxu0 0.0
    %5956 = vmatpush1.msra.mxu0 0.0
    %5957 = vmatprep.subr.mxu0 0.0
    %5958 = vmatpush1.msra.mxu0 0.0
    %5959 = vmatprep.subr.mxu0 0.0
    %5960 = vmatpush1.msra.mxu0 0.0
    %5961 = vmatprep.subr.mxu0 0.0
    %5962 = vmatpush1.msra.mxu0 0.0
    %5963 = vmatprep.subr.mxu0 0.0
    %5964 = vmatpush1.msra.mxu0 0.0
    %5965 = vmatprep.subr.mxu0 0.0
    %5966 = vmatpush1.msra.mxu0 0.0
    %5967 = vmatprep.subr.mxu0 0.0
    %5968 = vmatpush1.msra.mxu0 0.0
    %5969 = vmatprep.subr.mxu0 0.0
    %5970 = vmatpush1.msra.mxu0 0.0
    %5971 = vmatprep.subr.mxu0 0.0
    %5972 = vmatpush1.msra.mxu0 0.0
    %5973 = vmatprep.subr.mxu0 0.0
    %5974 = vmatpush1.msra.mxu0 0.0
    %5975 = vmatprep.subr.mxu0 0.0
    %5976 = vmatpush1.msra.mxu0 0.0
    %5977 = vmatprep.subr.mxu0 0.0
    %5978 = vmatpush1.msra.mxu0 0.0
    %5979 = vmatprep.subr.mxu0 0.0
    %5980 = vmatpush1.msra.mxu0 0.0
    %5981 = vmatprep.subr.mxu0 0.0
    %5982 = vmatpush1.msra.mxu0 0.0
    %5983 = vmatprep.subr.mxu0 0.0
    %5984 = vmatpush1.msra.mxu0 0.0
    %5985 = vmatprep.subr.mxu0 0.0
    %5986 = vmatpush1.msra.mxu0 0.0
    %5987 = vmatprep.subr.mxu0 0.0
    %5988 = vmatpush1.msra.mxu0 0.0
    %5989 = vmatprep.mubr.f32.mxu0 0.0
    %5990 = vmatmul.mubr.f32.gmra.mrb[0].mxu0 %v5923
    %v5991 = vpop.f32.mrb[0].mxu0
    %v5992 = vadd.f32 0.0, %v5991
    %v5993 = vpop.f32.mrb[0].mxu0
    %5994 = vdwg.mxu0
    %v5995 = vadd.f32 %v5912, %v5992
    %s5996 = scalar_lea.vmem [#allocation10], 2496
    %v5997 = vld [vmem:[%s5996] sm:$0xff]
    %v5998 = vld [vmem:[%s5996 + $0x8] sm:$0xff]
    %v5999 = vld [vmem:[%s5996 + $0x10] sm:$0xff]
    %v6000 = vld [vmem:[%s5996 + $0x18] sm:$0xff]
    %v6001 = vld [vmem:[%s5996 + $0x20] sm:$0xff]
    %v6002 = vld [vmem:[%s5996 + $0x28] sm:$0xff]
    %v6003 = vld [vmem:[%s5996 + $0x30] sm:$0xff]
    %v6004 = vld [vmem:[%s5996 + $0x38] sm:$0xff]
    %v6005 = vrot.slane %v2756, 6
    %v6006 = vsel %vm2780, %v6005, 0
    %6008 = vmatprep.subr.mxu0 0.0
    %6009 = vmatpush1.msra.mxu0 %v5997
    %6010 = vmatprep.subr.mxu0 0.0
    %6011 = vmatpush1.msra.mxu0 %v5998
    %6012 = vmatprep.subr.mxu0 0.0
    %6013 = vmatpush1.msra.mxu0 %v5999
    %6014 = vmatprep.subr.mxu0 0.0
    %6015 = vmatpush1.msra.mxu0 %v6000
    %6016 = vmatprep.subr.mxu0 0.0
    %6017 = vmatpush1.msra.mxu0 %v6001
    %6018 = vmatprep.subr.mxu0 0.0
    %6019 = vmatpush1.msra.mxu0 %v6002
    %6020 = vmatprep.subr.mxu0 0.0
    %6021 = vmatpush1.msra.mxu0 %v6003
    %6022 = vmatprep.subr.mxu0 0.0
    %6023 = vmatpush1.msra.mxu0 %v6004
    %6024 = vmatprep.subr.mxu0 0.0
    %6025 = vmatpush1.msra.mxu0 0.0
    %6026 = vmatprep.subr.mxu0 0.0
    %6027 = vmatpush1.msra.mxu0 0.0
    %6028 = vmatprep.subr.mxu0 0.0
    %6029 = vmatpush1.msra.mxu0 0.0
    %6030 = vmatprep.subr.mxu0 0.0
    %6031 = vmatpush1.msra.mxu0 0.0
    %6032 = vmatprep.subr.mxu0 0.0
    %6033 = vmatpush1.msra.mxu0 0.0
    %6034 = vmatprep.subr.mxu0 0.0
    %6035 = vmatpush1.msra.mxu0 0.0
    %6036 = vmatprep.subr.mxu0 0.0
    %6037 = vmatpush1.msra.mxu0 0.0
    %6038 = vmatprep.subr.mxu0 0.0
    %6039 = vmatpush1.msra.mxu0 0.0
    %6040 = vmatprep.subr.mxu0 0.0
    %6041 = vmatpush1.msra.mxu0 0.0
    %6042 = vmatprep.subr.mxu0 0.0
    %6043 = vmatpush1.msra.mxu0 0.0
    %6044 = vmatprep.subr.mxu0 0.0
    %6045 = vmatpush1.msra.mxu0 0.0
    %6046 = vmatprep.subr.mxu0 0.0
    %6047 = vmatpush1.msra.mxu0 0.0
    %6048 = vmatprep.subr.mxu0 0.0
    %6049 = vmatpush1.msra.mxu0 0.0
    %6050 = vmatprep.subr.mxu0 0.0
    %6051 = vmatpush1.msra.mxu0 0.0
    %6052 = vmatprep.subr.mxu0 0.0
    %6053 = vmatpush1.msra.mxu0 0.0
    %6054 = vmatprep.subr.mxu0 0.0
    %6055 = vmatpush1.msra.mxu0 0.0
    %6056 = vmatprep.subr.mxu0 0.0
    %6057 = vmatpush1.msra.mxu0 0.0
    %6058 = vmatprep.subr.mxu0 0.0
    %6059 = vmatpush1.msra.mxu0 0.0
    %6060 = vmatprep.subr.mxu0 0.0
    %6061 = vmatpush1.msra.mxu0 0.0
    %6062 = vmatprep.subr.mxu0 0.0
    %6063 = vmatpush1.msra.mxu0 0.0
    %6064 = vmatprep.subr.mxu0 0.0
    %6065 = vmatpush1.msra.mxu0 0.0
    %6066 = vmatprep.subr.mxu0 0.0
    %6067 = vmatpush1.msra.mxu0 0.0
    %6068 = vmatprep.subr.mxu0 0.0
    %6069 = vmatpush1.msra.mxu0 0.0
    %6070 = vmatprep.subr.mxu0 0.0
    %6071 = vmatpush1.msra.mxu0 0.0
    %6072 = vmatprep.mubr.f32.mxu0 0.0
    %6073 = vmatmul.mubr.f32.gmra.mrb[0].mxu0 %v6006
    %v6074 = vpop.f32.mrb[0].mxu0
    %v6075 = vadd.f32 0.0, %v6074
    %v6076 = vpop.f32.mrb[0].mxu0
    %6077 = vdwg.mxu0
    %v6078 = vadd.f32 %v5995, %v6075
    %s6079 = scalar_lea.vmem [#allocation10], 2560
    %v6080 = vld [vmem:[%s6079] sm:$0xff]
    %v6081 = vld [vmem:[%s6079 + $0x8] sm:$0xff]
    %v6082 = vld [vmem:[%s6079 + $0x10] sm:$0xff]
    %v6083 = vld [vmem:[%s6079 + $0x18] sm:$0xff]
    %v6084 = vld [vmem:[%s6079 + $0x20] sm:$0xff]
    %v6085 = vld [vmem:[%s6079 + $0x28] sm:$0xff]
    %v6086 = vld [vmem:[%s6079 + $0x30] sm:$0xff]
    %v6087 = vld [vmem:[%s6079 + $0x38] sm:$0xff]
    %v6089 = vsel %vm2780, %v2757, 0
    %6091 = vmatprep.subr.mxu0 0.0
    %6092 = vmatpush1.msra.mxu0 %v6080
    %6093 = vmatprep.subr.mxu0 0.0
    %6094 = vmatpush1.msra.mxu0 %v6081
    %6095 = vmatprep.subr.mxu0 0.0
    %6096 = vmatpush1.msra.mxu0 %v6082
    %6097 = vmatprep.subr.mxu0 0.0
    %6098 = vmatpush1.msra.mxu0 %v6083
    %6099 = vmatprep.subr.mxu0 0.0
    %6100 = vmatpush1.msra.mxu0 %v6084
    %6101 = vmatprep.subr.mxu0 0.0
    %6102 = vmatpush1.msra.mxu0 %v6085
    %6103 = vmatprep.subr.mxu0 0.0
    %6104 = vmatpush1.msra.mxu0 %v6086
    %6105 = vmatprep.subr.mxu0 0.0
    %6106 = vmatpush1.msra.mxu0 %v6087
    %6107 = vmatprep.subr.mxu0 0.0
    %6108 = vmatpush1.msra.mxu0 0.0
    %6109 = vmatprep.subr.mxu0 0.0
    %6110 = vmatpush1.msra.mxu0 0.0
    %6111 = vmatprep.subr.mxu0 0.0
    %6112 = vmatpush1.msra.mxu0 0.0
    %6113 = vmatprep.subr.mxu0 0.0
    %6114 = vmatpush1.msra.mxu0 0.0
    %6115 = vmatprep.subr.mxu0 0.0
    %6116 = vmatpush1.msra.mxu0 0.0
    %6117 = vmatprep.subr.mxu0 0.0
    %6118 = vmatpush1.msra.mxu0 0.0
    %6119 = vmatprep.subr.mxu0 0.0
    %6120 = vmatpush1.msra.mxu0 0.0
    %6121 = vmatprep.subr.mxu0 0.0
    %6122 = vmatpush1.msra.mxu0 0.0
    %6123 = vmatprep.subr.mxu0 0.0
    %6124 = vmatpush1.msra.mxu0 0.0
    %6125 = vmatprep.subr.mxu0 0.0
    %6126 = vmatpush1.msra.mxu0 0.0
    %6127 = vmatprep.subr.mxu0 0.0
    %6128 = vmatpush1.msra.mxu0 0.0
    %6129 = vmatprep.subr.mxu0 0.0
    %6130 = vmatpush1.msra.mxu0 0.0
    %6131 = vmatprep.subr.mxu0 0.0
    %6132 = vmatpush1.msra.mxu0 0.0
    %6133 = vmatprep.subr.mxu0 0.0
    %6134 = vmatpush1.msra.mxu0 0.0
    %6135 = vmatprep.subr.mxu0 0.0
    %6136 = vmatpush1.msra.mxu0 0.0
    %6137 = vmatprep.subr.mxu0 0.0
    %6138 = vmatpush1.msra.mxu0 0.0
    %6139 = vmatprep.subr.mxu0 0.0
    %6140 = vmatpush1.msra.mxu0 0.0
    %6141 = vmatprep.subr.mxu0 0.0
    %6142 = vmatpush1.msra.mxu0 0.0
    %6143 = vmatprep.subr.mxu0 0.0
    %6144 = vmatpush1.msra.mxu0 0.0
    %6145 = vmatprep.subr.mxu0 0.0
    %6146 = vmatpush1.msra.mxu0 0.0
    %6147 = vmatprep.subr.mxu0 0.0
    %6148 = vmatpush1.msra.mxu0 0.0
    %6149 = vmatprep.subr.mxu0 0.0
    %6150 = vmatpush1.msra.mxu0 0.0
    %6151 = vmatprep.subr.mxu0 0.0
    %6152 = vmatpush1.msra.mxu0 0.0
    %6153 = vmatprep.subr.mxu0 0.0
    %6154 = vmatpush1.msra.mxu0 0.0
    %6155 = vmatprep.mubr.f32.mxu0 0.0
    %6156 = vmatmul.mubr.f32.gmra.mrb[0].mxu0 %v6089
    %v6157 = vpop.f32.mrb[0].mxu0
    %v6158 = vadd.f32 0.0, %v6157
    %v6159 = vpop.f32.mrb[0].mxu0
    %6160 = vdwg.mxu0
    %v6161 = vadd.f32 %v6078, %v6158
    %s6162 = scalar_lea.vmem [#allocation10], 2624
    %v6163 = vld [vmem:[%s6162] sm:$0xff]
    %v6164 = vld [vmem:[%s6162 + $0x8] sm:$0xff]
    %v6165 = vld [vmem:[%s6162 + $0x10] sm:$0xff]
    %v6166 = vld [vmem:[%s6162 + $0x18] sm:$0xff]
    %v6167 = vld [vmem:[%s6162 + $0x20] sm:$0xff]
    %v6168 = vld [vmem:[%s6162 + $0x28] sm:$0xff]
    %v6169 = vld [vmem:[%s6162 + $0x30] sm:$0xff]
    %v6170 = vld [vmem:[%s6162 + $0x38] sm:$0xff]
    %v6171 = vrot.slane %v2757, 2
    %v6172 = vsel %vm2780, %v6171, 0
    %6174 = vmatprep.subr.mxu0 0.0
    %6175 = vmatpush1.msra.mxu0 %v6163
    %6176 = vmatprep.subr.mxu0 0.0
    %6177 = vmatpush1.msra.mxu0 %v6164
    %6178 = vmatprep.subr.mxu0 0.0
    %6179 = vmatpush1.msra.mxu0 %v6165
    %6180 = vmatprep.subr.mxu0 0.0
    %6181 = vmatpush1.msra.mxu0 %v6166
    %6182 = vmatprep.subr.mxu0 0.0
    %6183 = vmatpush1.msra.mxu0 %v6167
    %6184 = vmatprep.subr.mxu0 0.0
    %6185 = vmatpush1.msra.mxu0 %v6168
    %6186 = vmatprep.subr.mxu0 0.0
    %6187 = vmatpush1.msra.mxu0 %v6169
    %6188 = vmatprep.subr.mxu0 0.0
    %6189 = vmatpush1.msra.mxu0 %v6170
    %6190 = vmatprep.subr.mxu0 0.0
    %6191 = vmatpush1.msra.mxu0 0.0
    %6192 = vmatprep.subr.mxu0 0.0
    %6193 = vmatpush1.msra.mxu0 0.0
    %6194 = vmatprep.subr.mxu0 0.0
    %6195 = vmatpush1.msra.mxu0 0.0
    %6196 = vmatprep.subr.mxu0 0.0
    %6197 = vmatpush1.msra.mxu0 0.0
    %6198 = vmatprep.subr.mxu0 0.0
    %6199 = vmatpush1.msra.mxu0 0.0
    %6200 = vmatprep.subr.mxu0 0.0
    %6201 = vmatpush1.msra.mxu0 0.0
    %6202 = vmatprep.subr.mxu0 0.0
    %6203 = vmatpush1.msra.mxu0 0.0
    %6204 = vmatprep.subr.mxu0 0.0
    %6205 = vmatpush1.msra.mxu0 0.0
    %6206 = vmatprep.subr.mxu0 0.0
    %6207 = vmatpush1.msra.mxu0 0.0
    %6208 = vmatprep.subr.mxu0 0.0
    %6209 = vmatpush1.msra.mxu0 0.0
    %6210 = vmatprep.subr.mxu0 0.0
    %6211 = vmatpush1.msra.mxu0 0.0
    %6212 = vmatprep.subr.mxu0 0.0
    %6213 = vmatpush1.msra.mxu0 0.0
    %6214 = vmatprep.subr.mxu0 0.0
    %6215 = vmatpush1.msra.mxu0 0.0
    %6216 = vmatprep.subr.mxu0 0.0
    %6217 = vmatpush1.msra.mxu0 0.0
    %6218 = vmatprep.subr.mxu0 0.0
    %6219 = vmatpush1.msra.mxu0 0.0
    %6220 = vmatprep.subr.mxu0 0.0
    %6221 = vmatpush1.msra.mxu0 0.0
    %6222 = vmatprep.subr.mxu0 0.0
    %6223 = vmatpush1.msra.mxu0 0.0
    %6224 = vmatprep.subr.mxu0 0.0
    %6225 = vmatpush1.msra.mxu0 0.0
    %6226 = vmatprep.subr.mxu0 0.0
    %6227 = vmatpush1.msra.mxu0 0.0
    %6228 = vmatprep.subr.mxu0 0.0
    %6229 = vmatpush1.msra.mxu0 0.0
    %6230 = vmatprep.subr.mxu0 0.0
    %6231 = vmatpush1.msra.mxu0 0.0
    %6232 = vmatprep.subr.mxu0 0.0
    %6233 = vmatpush1.msra.mxu0 0.0
    %6234 = vmatprep.subr.mxu0 0.0
    %6235 = vmatpush1.msra.mxu0 0.0
    %6236 = vmatprep.subr.mxu0 0.0
    %6237 = vmatpush1.msra.mxu0 0.0
    %6238 = vmatprep.mubr.f32.mxu0 0.0
    %6239 = vmatmul.mubr.f32.gmra.mrb[0].mxu0 %v6172
    %v6240 = vpop.f32.mrb[0].mxu0
    %v6241 = vadd.f32 0.0, %v6240
    %v6242 = vpop.f32.mrb[0].mxu0
    %6243 = vdwg.mxu0
    %v6244 = vadd.f32 %v6161, %v6241
    %s6245 = scalar_lea.vmem [#allocation10], 2688
    %v6246 = vld [vmem:[%s6245] sm:$0xff]
    %v6247 = vld [vmem:[%s6245 + $0x8] sm:$0xff]
    %v6248 = vld [vmem:[%s6245 + $0x10] sm:$0xff]
    %v6249 = vld [vmem:[%s6245 + $0x18] sm:$0xff]
    %v6250 = vld [vmem:[%s6245 + $0x20] sm:$0xff]
    %v6251 = vld [vmem:[%s6245 + $0x28] sm:$0xff]
    %v6252 = vld [vmem:[%s6245 + $0x30] sm:$0xff]
    %v6253 = vld [vmem:[%s6245 + $0x38] sm:$0xff]
    %v6254 = vrot.slane %v2757, 4
    %v6255 = vsel %vm2780, %v6254, 0
    %6257 = vmatprep.subr.mxu0 0.0
    %6258 = vmatpush1.msra.mxu0 %v6246
    %6259 = vmatprep.subr.mxu0 0.0
    %6260 = vmatpush1.msra.mxu0 %v6247
    %6261 = vmatprep.subr.mxu0 0.0
    %6262 = vmatpush1.msra.mxu0 %v6248
    %6263 = vmatprep.subr.mxu0 0.0
    %6264 = vmatpush1.msra.mxu0 %v6249
    %6265 = vmatprep.subr.mxu0 0.0
    %6266 = vmatpush1.msra.mxu0 %v6250
    %6267 = vmatprep.subr.mxu0 0.0
    %6268 = vmatpush1.msra.mxu0 %v6251
    %6269 = vmatprep.subr.mxu0 0.0
    %6270 = vmatpush1.msra.mxu0 %v6252
    %6271 = vmatprep.subr.mxu0 0.0
    %6272 = vmatpush1.msra.mxu0 %v6253
    %6273 = vmatprep.subr.mxu0 0.0
    %6274 = vmatpush1.msra.mxu0 0.0
    %6275 = vmatprep.subr.mxu0 0.0
    %6276 = vmatpush1.msra.mxu0 0.0
    %6277 = vmatprep.subr.mxu0 0.0
    %6278 = vmatpush1.msra.mxu0 0.0
    %6279 = vmatprep.subr.mxu0 0.0
    %6280 = vmatpush1.msra.mxu0 0.0
    %6281 = vmatprep.subr.mxu0 0.0
    %6282 = vmatpush1.msra.mxu0 0.0
    %6283 = vmatprep.subr.mxu0 0.0
    %6284 = vmatpush1.msra.mxu0 0.0
    %6285 = vmatprep.subr.mxu0 0.0
    %6286 = vmatpush1.msra.mxu0 0.0
    %6287 = vmatprep.subr.mxu0 0.0
    %6288 = vmatpush1.msra.mxu0 0.0
    %6289 = vmatprep.subr.mxu0 0.0
    %6290 = vmatpush1.msra.mxu0 0.0
    %6291 = vmatprep.subr.mxu0 0.0
    %6292 = vmatpush1.msra.mxu0 0.0
    %6293 = vmatprep.subr.mxu0 0.0
    %6294 = vmatpush1.msra.mxu0 0.0
    %6295 = vmatprep.subr.mxu0 0.0
    %6296 = vmatpush1.msra.mxu0 0.0
    %6297 = vmatprep.subr.mxu0 0.0
    %6298 = vmatpush1.msra.mxu0 0.0
    %6299 = vmatprep.subr.mxu0 0.0
    %6300 = vmatpush1.msra.mxu0 0.0
    %6301 = vmatprep.subr.mxu0 0.0
    %6302 = vmatpush1.msra.mxu0 0.0
    %6303 = vmatprep.subr.mxu0 0.0
    %6304 = vmatpush1.msra.mxu0 0.0
    %6305 = vmatprep.subr.mxu0 0.0
    %6306 = vmatpush1.msra.mxu0 0.0
    %6307 = vmatprep.subr.mxu0 0.0
    %6308 = vmatpush1.msra.mxu0 0.0
    %6309 = vmatprep.subr.mxu0 0.0
    %6310 = vmatpush1.msra.mxu0 0.0
    %6311 = vmatprep.subr.mxu0 0.0
    %6312 = vmatpush1.msra.mxu0 0.0
    %6313 = vmatprep.subr.mxu0 0.0
    %6314 = vmatpush1.msra.mxu0 0.0
    %6315 = vmatprep.subr.mxu0 0.0
    %6316 = vmatpush1.msra.mxu0 0.0
    %6317 = vmatprep.subr.mxu0 0.0
    %6318 = vmatpush1.msra.mxu0 0.0
    %6319 = vmatprep.subr.mxu0 0.0
    %6320 = vmatpush1.msra.mxu0 0.0
    %6321 = vmatprep.mubr.f32.mxu0 0.0
    %6322 = vmatmul.mubr.f32.gmra.mrb[0].mxu0 %v6255
    %v6323 = vpop.f32.mrb[0].mxu0
    %v6324 = vadd.f32 0.0, %v6323
    %v6325 = vpop.f32.mrb[0].mxu0
    %6326 = vdwg.mxu0
    %v6327 = vadd.f32 %v6244, %v6324
    %s6328 = scalar_lea.vmem [#allocation10], 2752
    %v6329 = vld [vmem:[%s6328] sm:$0xff]
    %v6330 = vld [vmem:[%s6328 + $0x8] sm:$0xff]
    %v6331 = vld [vmem:[%s6328 + $0x10] sm:$0xff]
    %v6332 = vld [vmem:[%s6328 + $0x18] sm:$0xff]
    %v6333 = vld [vmem:[%s6328 + $0x20] sm:$0xff]
    %v6334 = vld [vmem:[%s6328 + $0x28] sm:$0xff]
    %v6335 = vld [vmem:[%s6328 + $0x30] sm:$0xff]
    %v6336 = vld [vmem:[%s6328 + $0x38] sm:$0xff]
    %v6337 = vrot.slane %v2757, 6
    %v6338 = vsel %vm2780, %v6337, 0
    %6340 = vmatprep.subr.mxu0 0.0
    %6341 = vmatpush1.msra.mxu0 %v6329
    %6342 = vmatprep.subr.mxu0 0.0
    %6343 = vmatpush1.msra.mxu0 %v6330
    %6344 = vmatprep.subr.mxu0 0.0
    %6345 = vmatpush1.msra.mxu0 %v6331
    %6346 = vmatprep.subr.mxu0 0.0
    %6347 = vmatpush1.msra.mxu0 %v6332
    %6348 = vmatprep.subr.mxu0 0.0
    %6349 = vmatpush1.msra.mxu0 %v6333
    %6350 = vmatprep.subr.mxu0 0.0
    %6351 = vmatpush1.msra.mxu0 %v6334
    %6352 = vmatprep.subr.mxu0 0.0
    %6353 = vmatpush1.msra.mxu0 %v6335
    %6354 = vmatprep.subr.mxu0 0.0
    %6355 = vmatpush1.msra.mxu0 %v6336
    %6356 = vmatprep.subr.mxu0 0.0
    %6357 = vmatpush1.msra.mxu0 0.0
    %6358 = vmatprep.subr.mxu0 0.0
    %6359 = vmatpush1.msra.mxu0 0.0
    %6360 = vmatprep.subr.mxu0 0.0
    %6361 = vmatpush1.msra.mxu0 0.0
    %6362 = vmatprep.subr.mxu0 0.0
    %6363 = vmatpush1.msra.mxu0 0.0
    %6364 = vmatprep.subr.mxu0 0.0
    %6365 = vmatpush1.msra.mxu0 0.0
    %6366 = vmatprep.subr.mxu0 0.0
    %6367 = vmatpush1.msra.mxu0 0.0
    %6368 = vmatprep.subr.mxu0 0.0
    %6369 = vmatpush1.msra.mxu0 0.0
    %6370 = vmatprep.subr.mxu0 0.0
    %6371 = vmatpush1.msra.mxu0 0.0
    %6372 = vmatprep.subr.mxu0 0.0
    %6373 = vmatpush1.msra.mxu0 0.0
    %6374 = vmatprep.subr.mxu0 0.0
    %6375 = vmatpush1.msra.mxu0 0.0
    %6376 = vmatprep.subr.mxu0 0.0
    %6377 = vmatpush1.msra.mxu0 0.0
    %6378 = vmatprep.subr.mxu0 0.0
    %6379 = vmatpush1.msra.mxu0 0.0
    %6380 = vmatprep.subr.mxu0 0.0
    %6381 = vmatpush1.msra.mxu0 0.0
    %6382 = vmatprep.subr.mxu0 0.0
    %6383 = vmatpush1.msra.mxu0 0.0
    %6384 = vmatprep.subr.mxu0 0.0
    %6385 = vmatpush1.msra.mxu0 0.0
    %6386 = vmatprep.subr.mxu0 0.0
    %6387 = vmatpush1.msra.mxu0 0.0
    %6388 = vmatprep.subr.mxu0 0.0
    %6389 = vmatpush1.msra.mxu0 0.0
    %6390 = vmatprep.subr.mxu0 0.0
    %6391 = vmatpush1.msra.mxu0 0.0
    %6392 = vmatprep.subr.mxu0 0.0
    %6393 = vmatpush1.msra.mxu0 0.0
    %6394 = vmatprep.subr.mxu0 0.0
    %6395 = vmatpush1.msra.mxu0 0.0
    %6396 = vmatprep.subr.mxu0 0.0
    %6397 = vmatpush1.msra.mxu0 0.0
    %6398 = vmatprep.subr.mxu0 0.0
    %6399 = vmatpush1.msra.mxu0 0.0
    %6400 = vmatprep.subr.mxu0 0.0
    %6401 = vmatpush1.msra.mxu0 0.0
    %6402 = vmatprep.subr.mxu0 0.0
    %6403 = vmatpush1.msra.mxu0 0.0
    %6404 = vmatprep.mubr.f32.mxu0 0.0
    %6405 = vmatmul.mubr.f32.gmra.mrb[0].mxu0 %v6338
    %v6406 = vpop.f32.mrb[0].mxu0
    %v6407 = vadd.f32 0.0, %v6406
    %v6408 = vpop.f32.mrb[0].mxu0
    %6409 = vdwg.mxu0
    %v6410 = vadd.f32 %v6327, %v6407
    %s6411 = scalar_lea.vmem [#allocation10], 2816
    %v6412 = vld [vmem:[%s6411] sm:$0xff]
    %v6413 = vld [vmem:[%s6411 + $0x8] sm:$0xff]
    %v6414 = vld [vmem:[%s6411 + $0x10] sm:$0xff]
    %v6415 = vld [vmem:[%s6411 + $0x18] sm:$0xff]
    %v6416 = vld [vmem:[%s6411 + $0x20] sm:$0xff]
    %v6417 = vld [vmem:[%s6411 + $0x28] sm:$0xff]
    %v6418 = vld [vmem:[%s6411 + $0x30] sm:$0xff]
    %v6419 = vld [vmem:[%s6411 + $0x38] sm:$0xff]
    %v6421 = vsel %vm2780, %v2758, 0
    %6423 = vmatprep.subr.mxu0 0.0
    %6424 = vmatpush1.msra.mxu0 %v6412
    %6425 = vmatprep.subr.mxu0 0.0
    %6426 = vmatpush1.msra.mxu0 %v6413
    %6427 = vmatprep.subr.mxu0 0.0
    %6428 = vmatpush1.msra.mxu0 %v6414
    %6429 = vmatprep.subr.mxu0 0.0
    %6430 = vmatpush1.msra.mxu0 %v6415
    %6431 = vmatprep.subr.mxu0 0.0
    %6432 = vmatpush1.msra.mxu0 %v6416
    %6433 = vmatprep.subr.mxu0 0.0
    %6434 = vmatpush1.msra.mxu0 %v6417
    %6435 = vmatprep.subr.mxu0 0.0
    %6436 = vmatpush1.msra.mxu0 %v6418
    %6437 = vmatprep.subr.mxu0 0.0
    %6438 = vmatpush1.msra.mxu0 %v6419
    %6439 = vmatprep.subr.mxu0 0.0
    %6440 = vmatpush1.msra.mxu0 0.0
    %6441 = vmatprep.subr.mxu0 0.0
    %6442 = vmatpush1.msra.mxu0 0.0
    %6443 = vmatprep.subr.mxu0 0.0
    %6444 = vmatpush1.msra.mxu0 0.0
    %6445 = vmatprep.subr.mxu0 0.0
    %6446 = vmatpush1.msra.mxu0 0.0
    %6447 = vmatprep.subr.mxu0 0.0
    %6448 = vmatpush1.msra.mxu0 0.0
    %6449 = vmatprep.subr.mxu0 0.0
    %6450 = vmatpush1.msra.mxu0 0.0
    %6451 = vmatprep.subr.mxu0 0.0
    %6452 = vmatpush1.msra.mxu0 0.0
    %6453 = vmatprep.subr.mxu0 0.0
    %6454 = vmatpush1.msra.mxu0 0.0
    %6455 = vmatprep.subr.mxu0 0.0
    %6456 = vmatpush1.msra.mxu0 0.0
    %6457 = vmatprep.subr.mxu0 0.0
    %6458 = vmatpush1.msra.mxu0 0.0
    %6459 = vmatprep.subr.mxu0 0.0
    %6460 = vmatpush1.msra.mxu0 0.0
    %6461 = vmatprep.subr.mxu0 0.0
    %6462 = vmatpush1.msra.mxu0 0.0
    %6463 = vmatprep.subr.mxu0 0.0
    %6464 = vmatpush1.msra.mxu0 0.0
    %6465 = vmatprep.subr.mxu0 0.0
    %6466 = vmatpush1.msra.mxu0 0.0
    %6467 = vmatprep.subr.mxu0 0.0
    %6468 = vmatpush1.msra.mxu0 0.0
    %6469 = vmatprep.subr.mxu0 0.0
    %6470 = vmatpush1.msra.mxu0 0.0
    %6471 = vmatprep.subr.mxu0 0.0
    %6472 = vmatpush1.msra.mxu0 0.0
    %6473 = vmatprep.subr.mxu0 0.0
    %6474 = vmatpush1.msra.mxu0 0.0
    %6475 = vmatprep.subr.mxu0 0.0
    %6476 = vmatpush1.msra.mxu0 0.0
    %6477 = vmatprep.subr.mxu0 0.0
    %6478 = vmatpush1.msra.mxu0 0.0
    %6479 = vmatprep.subr.mxu0 0.0
    %6480 = vmatpush1.msra.mxu0 0.0
    %6481 = vmatprep.subr.mxu0 0.0
    %6482 = vmatpush1.msra.mxu0 0.0
    %6483 = vmatprep.subr.mxu0 0.0
    %6484 = vmatpush1.msra.mxu0 0.0
    %6485 = vmatprep.subr.mxu0 0.0
    %6486 = vmatpush1.msra.mxu0 0.0
    %6487 = vmatprep.mubr.f32.mxu0 0.0
    %6488 = vmatmul.mubr.f32.gmra.mrb[0].mxu0 %v6421
    %v6489 = vpop.f32.mrb[0].mxu0
    %v6490 = vadd.f32 0.0, %v6489
    %v6491 = vpop.f32.mrb[0].mxu0
    %6492 = vdwg.mxu0
    %v6493 = vadd.f32 %v6410, %v6490
    %s6494 = scalar_lea.vmem [#allocation10], 2880
    %v6495 = vld [vmem:[%s6494] sm:$0xff]
    %v6496 = vld [vmem:[%s6494 + $0x8] sm:$0xff]
    %v6497 = vld [vmem:[%s6494 + $0x10] sm:$0xff]
    %v6498 = vld [vmem:[%s6494 + $0x18] sm:$0xff]
    %v6499 = vld [vmem:[%s6494 + $0x20] sm:$0xff]
    %v6500 = vld [vmem:[%s6494 + $0x28] sm:$0xff]
    %v6501 = vld [vmem:[%s6494 + $0x30] sm:$0xff]
    %v6502 = vld [vmem:[%s6494 + $0x38] sm:$0xff]
    %v6503 = vrot.slane %v2758, 2
    %v6504 = vsel %vm2780, %v6503, 0
    %6506 = vmatprep.subr.mxu0 0.0
    %6507 = vmatpush1.msra.mxu0 %v6495
    %6508 = vmatprep.subr.mxu0 0.0
    %6509 = vmatpush1.msra.mxu0 %v6496
    %6510 = vmatprep.subr.mxu0 0.0
    %6511 = vmatpush1.msra.mxu0 %v6497
    %6512 = vmatprep.subr.mxu0 0.0
    %6513 = vmatpush1.msra.mxu0 %v6498
    %6514 = vmatprep.subr.mxu0 0.0
    %6515 = vmatpush1.msra.mxu0 %v6499
    %6516 = vmatprep.subr.mxu0 0.0
    %6517 = vmatpush1.msra.mxu0 %v6500
    %6518 = vmatprep.subr.mxu0 0.0
    %6519 = vmatpush1.msra.mxu0 %v6501
    %6520 = vmatprep.subr.mxu0 0.0
    %6521 = vmatpush1.msra.mxu0 %v6502
    %6522 = vmatprep.subr.mxu0 0.0
    %6523 = vmatpush1.msra.mxu0 0.0
    %6524 = vmatprep.subr.mxu0 0.0
    %6525 = vmatpush1.msra.mxu0 0.0
    %6526 = vmatprep.subr.mxu0 0.0
    %6527 = vmatpush1.msra.mxu0 0.0
    %6528 = vmatprep.subr.mxu0 0.0
    %6529 = vmatpush1.msra.mxu0 0.0
    %6530 = vmatprep.subr.mxu0 0.0
    %6531 = vmatpush1.msra.mxu0 0.0
    %6532 = vmatprep.subr.mxu0 0.0
    %6533 = vmatpush1.msra.mxu0 0.0
    %6534 = vmatprep.subr.mxu0 0.0
    %6535 = vmatpush1.msra.mxu0 0.0
    %6536 = vmatprep.subr.mxu0 0.0
    %6537 = vmatpush1.msra.mxu0 0.0
    %6538 = vmatprep.subr.mxu0 0.0
    %6539 = vmatpush1.msra.mxu0 0.0
    %6540 = vmatprep.subr.mxu0 0.0
    %6541 = vmatpush1.msra.mxu0 0.0
    %6542 = vmatprep.subr.mxu0 0.0
    %6543 = vmatpush1.msra.mxu0 0.0
    %6544 = vmatprep.subr.mxu0 0.0
    %6545 = vmatpush1.msra.mxu0 0.0
    %6546 = vmatprep.subr.mxu0 0.0
    %6547 = vmatpush1.msra.mxu0 0.0
    %6548 = vmatprep.subr.mxu0 0.0
    %6549 = vmatpush1.msra.mxu0 0.0
    %6550 = vmatprep.subr.mxu0 0.0
    %6551 = vmatpush1.msra.mxu0 0.0
    %6552 = vmatprep.subr.mxu0 0.0
    %6553 = vmatpush1.msra.mxu0 0.0
    %6554 = vmatprep.subr.mxu0 0.0
    %6555 = vmatpush1.msra.mxu0 0.0
    %6556 = vmatprep.subr.mxu0 0.0
    %6557 = vmatpush1.msra.mxu0 0.0
    %6558 = vmatprep.subr.mxu0 0.0
    %6559 = vmatpush1.msra.mxu0 0.0
    %6560 = vmatprep.subr.mxu0 0.0
    %6561 = vmatpush1.msra.mxu0 0.0
    %6562 = vmatprep.subr.mxu0 0.0
    %6563 = vmatpush1.msra.mxu0 0.0
    %6564 = vmatprep.subr.mxu0 0.0
    %6565 = vmatpush1.msra.mxu0 0.0
    %6566 = vmatprep.subr.mxu0 0.0
    %6567 = vmatpush1.msra.mxu0 0.0
    %6568 = vmatprep.subr.mxu0 0.0
    %6569 = vmatpush1.msra.mxu0 0.0
    %6570 = vmatprep.mubr.f32.mxu0 0.0
    %6571 = vmatmul.mubr.f32.gmra.mrb[0].mxu0 %v6504
    %v6572 = vpop.f32.mrb[0].mxu0
    %v6573 = vadd.f32 0.0, %v6572
    %v6574 = vpop.f32.mrb[0].mxu0
    %6575 = vdwg.mxu0
    %v6576 = vadd.f32 %v6493, %v6573
    %s6577 = scalar_lea.vmem [#allocation10], 2944
    %v6578 = vld [vmem:[%s6577] sm:$0xff]
    %v6579 = vld [vmem:[%s6577 + $0x8] sm:$0xff]
    %v6580 = vld [vmem:[%s6577 + $0x10] sm:$0xff]
    %v6581 = vld [vmem:[%s6577 + $0x18] sm:$0xff]
    %v6582 = vld [vmem:[%s6577 + $0x20] sm:$0xff]
    %v6583 = vld [vmem:[%s6577 + $0x28] sm:$0xff]
    %v6584 = vld [vmem:[%s6577 + $0x30] sm:$0xff]
    %v6585 = vld [vmem:[%s6577 + $0x38] sm:$0xff]
    %v6586 = vrot.slane %v2758, 4
    %v6587 = vsel %vm2780, %v6586, 0
    %6589 = vmatprep.subr.mxu0 0.0
    %6590 = vmatpush1.msra.mxu0 %v6578
    %6591 = vmatprep.subr.mxu0 0.0
    %6592 = vmatpush1.msra.mxu0 %v6579
    %6593 = vmatprep.subr.mxu0 0.0
    %6594 = vmatpush1.msra.mxu0 %v6580
    %6595 = vmatprep.subr.mxu0 0.0
    %6596 = vmatpush1.msra.mxu0 %v6581
    %6597 = vmatprep.subr.mxu0 0.0
    %6598 = vmatpush1.msra.mxu0 %v6582
    %6599 = vmatprep.subr.mxu0 0.0
    %6600 = vmatpush1.msra.mxu0 %v6583
    %6601 = vmatprep.subr.mxu0 0.0
    %6602 = vmatpush1.msra.mxu0 %v6584
    %6603 = vmatprep.subr.mxu0 0.0
    %6604 = vmatpush1.msra.mxu0 %v6585
    %6605 = vmatprep.subr.mxu0 0.0
    %6606 = vmatpush1.msra.mxu0 0.0
    %6607 = vmatprep.subr.mxu0 0.0
    %6608 = vmatpush1.msra.mxu0 0.0
    %6609 = vmatprep.subr.mxu0 0.0
    %6610 = vmatpush1.msra.mxu0 0.0
    %6611 = vmatprep.subr.mxu0 0.0
    %6612 = vmatpush1.msra.mxu0 0.0
    %6613 = vmatprep.subr.mxu0 0.0
    %6614 = vmatpush1.msra.mxu0 0.0
    %6615 = vmatprep.subr.mxu0 0.0
    %6616 = vmatpush1.msra.mxu0 0.0
    %6617 = vmatprep.subr.mxu0 0.0
    %6618 = vmatpush1.msra.mxu0 0.0
    %6619 = vmatprep.subr.mxu0 0.0
    %6620 = vmatpush1.msra.mxu0 0.0
    %6621 = vmatprep.subr.mxu0 0.0
    %6622 = vmatpush1.msra.mxu0 0.0
    %6623 = vmatprep.subr.mxu0 0.0
    %6624 = vmatpush1.msra.mxu0 0.0
    %6625 = vmatprep.subr.mxu0 0.0
    %6626 = vmatpush1.msra.mxu0 0.0
    %6627 = vmatprep.subr.mxu0 0.0
    %6628 = vmatpush1.msra.mxu0 0.0
    %6629 = vmatprep.subr.mxu0 0.0
    %6630 = vmatpush1.msra.mxu0 0.0
    %6631 = vmatprep.subr.mxu0 0.0
    %6632 = vmatpush1.msra.mxu0 0.0
    %6633 = vmatprep.subr.mxu0 0.0
    %6634 = vmatpush1.msra.mxu0 0.0
    %6635 = vmatprep.subr.mxu0 0.0
    %6636 = vmatpush1.msra.mxu0 0.0
    %6637 = vmatprep.subr.mxu0 0.0
    %6638 = vmatpush1.msra.mxu0 0.0
    %6639 = vmatprep.subr.mxu0 0.0
    %6640 = vmatpush1.msra.mxu0 0.0
    %6641 = vmatprep.subr.mxu0 0.0
    %6642 = vmatpush1.msra.mxu0 0.0
    %6643 = vmatprep.subr.mxu0 0.0
    %6644 = vmatpush1.msra.mxu0 0.0
    %6645 = vmatprep.subr.mxu0 0.0
    %6646 = vmatpush1.msra.mxu0 0.0
    %6647 = vmatprep.subr.mxu0 0.0
    %6648 = vmatpush1.msra.mxu0 0.0
    %6649 = vmatprep.subr.mxu0 0.0
    %6650 = vmatpush1.msra.mxu0 0.0
    %6651 = vmatprep.subr.mxu0 0.0
    %6652 = vmatpush1.msra.mxu0 0.0
    %6653 = vmatprep.mubr.f32.mxu0 0.0
    %6654 = vmatmul.mubr.f32.gmra.mrb[0].mxu0 %v6587
    %v6655 = vpop.f32.mrb[0].mxu0
    %v6656 = vadd.f32 0.0, %v6655
    %v6657 = vpop.f32.mrb[0].mxu0
    %6658 = vdwg.mxu0
    %v6659 = vadd.f32 %v6576, %v6656
    %s6660 = scalar_lea.vmem [#allocation10], 3008
    %v6661 = vld [vmem:[%s6660] sm:$0xff]
    %v6662 = vld [vmem:[%s6660 + $0x8] sm:$0xff]
    %v6663 = vld [vmem:[%s6660 + $0x10] sm:$0xff]
    %v6664 = vld [vmem:[%s6660 + $0x18] sm:$0xff]
    %v6665 = vld [vmem:[%s6660 + $0x20] sm:$0xff]
    %v6666 = vld [vmem:[%s6660 + $0x28] sm:$0xff]
    %v6667 = vld [vmem:[%s6660 + $0x30] sm:$0xff]
    %v6668 = vld [vmem:[%s6660 + $0x38] sm:$0xff]
    %v6669 = vrot.slane %v2758, 6
    %v6670 = vsel %vm2780, %v6669, 0
    %6672 = vmatprep.subr.mxu0 0.0
    %6673 = vmatpush1.msra.mxu0 %v6661
    %6674 = vmatprep.subr.mxu0 0.0
    %6675 = vmatpush1.msra.mxu0 %v6662
    %6676 = vmatprep.subr.mxu0 0.0
    %6677 = vmatpush1.msra.mxu0 %v6663
    %6678 = vmatprep.subr.mxu0 0.0
    %6679 = vmatpush1.msra.mxu0 %v6664
    %6680 = vmatprep.subr.mxu0 0.0
    %6681 = vmatpush1.msra.mxu0 %v6665
    %6682 = vmatprep.subr.mxu0 0.0
    %6683 = vmatpush1.msra.mxu0 %v6666
    %6684 = vmatprep.subr.mxu0 0.0
    %6685 = vmatpush1.msra.mxu0 %v6667
    %6686 = vmatprep.subr.mxu0 0.0
    %6687 = vmatpush1.msra.mxu0 %v6668
    %6688 = vmatprep.subr.mxu0 0.0
    %6689 = vmatpush1.msra.mxu0 0.0
    %6690 = vmatprep.subr.mxu0 0.0
    %6691 = vmatpush1.msra.mxu0 0.0
    %6692 = vmatprep.subr.mxu0 0.0
    %6693 = vmatpush1.msra.mxu0 0.0
    %6694 = vmatprep.subr.mxu0 0.0
    %6695 = vmatpush1.msra.mxu0 0.0
    %6696 = vmatprep.subr.mxu0 0.0
    %6697 = vmatpush1.msra.mxu0 0.0
    %6698 = vmatprep.subr.mxu0 0.0
    %6699 = vmatpush1.msra.mxu0 0.0
    %6700 = vmatprep.subr.mxu0 0.0
    %6701 = vmatpush1.msra.mxu0 0.0
    %6702 = vmatprep.subr.mxu0 0.0
    %6703 = vmatpush1.msra.mxu0 0.0
    %6704 = vmatprep.subr.mxu0 0.0
    %6705 = vmatpush1.msra.mxu0 0.0
    %6706 = vmatprep.subr.mxu0 0.0
    %6707 = vmatpush1.msra.mxu0 0.0
    %6708 = vmatprep.subr.mxu0 0.0
    %6709 = vmatpush1.msra.mxu0 0.0
    %6710 = vmatprep.subr.mxu0 0.0
    %6711 = vmatpush1.msra.mxu0 0.0
    %6712 = vmatprep.subr.mxu0 0.0
    %6713 = vmatpush1.msra.mxu0 0.0
    %6714 = vmatprep.subr.mxu0 0.0
    %6715 = vmatpush1.msra.mxu0 0.0
    %6716 = vmatprep.subr.mxu0 0.0
    %6717 = vmatpush1.msra.mxu0 0.0
    %6718 = vmatprep.subr.mxu0 0.0
    %6719 = vmatpush1.msra.mxu0 0.0
    %6720 = vmatprep.subr.mxu0 0.0
    %6721 = vmatpush1.msra.mxu0 0.0
    %6722 = vmatprep.subr.mxu0 0.0
    %6723 = vmatpush1.msra.mxu0 0.0
    %6724 = vmatprep.subr.mxu0 0.0
    %6725 = vmatpush1.msra.mxu0 0.0
    %6726 = vmatprep.subr.mxu0 0.0
    %6727 = vmatpush1.msra.mxu0 0.0
    %6728 = vmatprep.subr.mxu0 0.0
    %6729 = vmatpush1.msra.mxu0 0.0
    %6730 = vmatprep.subr.mxu0 0.0
    %6731 = vmatpush1.msra.mxu0 0.0
    %6732 = vmatprep.subr.mxu0 0.0
    %6733 = vmatpush1.msra.mxu0 0.0
    %6734 = vmatprep.subr.mxu0 0.0
    %6735 = vmatpush1.msra.mxu0 0.0
    %6736 = vmatprep.mubr.f32.mxu0 0.0
    %6737 = vmatmul.mubr.f32.gmra.mrb[0].mxu0 %v6670
    %v6738 = vpop.f32.mrb[0].mxu0
    %v6739 = vadd.f32 0.0, %v6738
    %v6740 = vpop.f32.mrb[0].mxu0
    %6741 = vdwg.mxu0
    %v6742 = vadd.f32 %v6659, %v6739
    %s6743 = scalar_lea.vmem [#allocation10], 3072
    %v6744 = vld [vmem:[%s6743] sm:$0xff]
    %v6745 = vld [vmem:[%s6743 + $0x8] sm:$0xff]
    %v6746 = vld [vmem:[%s6743 + $0x10] sm:$0xff]
    %v6747 = vld [vmem:[%s6743 + $0x18] sm:$0xff]
    %v6748 = vld [vmem:[%s6743 + $0x20] sm:$0xff]
    %v6749 = vld [vmem:[%s6743 + $0x28] sm:$0xff]
    %v6750 = vld [vmem:[%s6743 + $0x30] sm:$0xff]
    %v6751 = vld [vmem:[%s6743 + $0x38] sm:$0xff]
    %v6753 = vsel %vm2780, %v2759, 0
    %6755 = vmatprep.subr.mxu0 0.0
    %6756 = vmatpush1.msra.mxu0 %v6744
    %6757 = vmatprep.subr.mxu0 0.0
    %6758 = vmatpush1.msra.mxu0 %v6745
    %6759 = vmatprep.subr.mxu0 0.0
    %6760 = vmatpush1.msra.mxu0 %v6746
    %6761 = vmatprep.subr.mxu0 0.0
    %6762 = vmatpush1.msra.mxu0 %v6747
    %6763 = vmatprep.subr.mxu0 0.0
    %6764 = vmatpush1.msra.mxu0 %v6748
    %6765 = vmatprep.subr.mxu0 0.0
    %6766 = vmatpush1.msra.mxu0 %v6749
    %6767 = vmatprep.subr.mxu0 0.0
    %6768 = vmatpush1.msra.mxu0 %v6750
    %6769 = vmatprep.subr.mxu0 0.0
    %6770 = vmatpush1.msra.mxu0 %v6751
    %6771 = vmatprep.subr.mxu0 0.0
    %6772 = vmatpush1.msra.mxu0 0.0
    %6773 = vmatprep.subr.mxu0 0.0
    %6774 = vmatpush1.msra.mxu0 0.0
    %6775 = vmatprep.subr.mxu0 0.0
    %6776 = vmatpush1.msra.mxu0 0.0
    %6777 = vmatprep.subr.mxu0 0.0
    %6778 = vmatpush1.msra.mxu0 0.0
    %6779 = vmatprep.subr.mxu0 0.0
    %6780 = vmatpush1.msra.mxu0 0.0
    %6781 = vmatprep.subr.mxu0 0.0
    %6782 = vmatpush1.msra.mxu0 0.0
    %6783 = vmatprep.subr.mxu0 0.0
    %6784 = vmatpush1.msra.mxu0 0.0
    %6785 = vmatprep.subr.mxu0 0.0
    %6786 = vmatpush1.msra.mxu0 0.0
    %6787 = vmatprep.subr.mxu0 0.0
    %6788 = vmatpush1.msra.mxu0 0.0
    %6789 = vmatprep.subr.mxu0 0.0
    %6790 = vmatpush1.msra.mxu0 0.0
    %6791 = vmatprep.subr.mxu0 0.0
    %6792 = vmatpush1.msra.mxu0 0.0
    %6793 = vmatprep.subr.mxu0 0.0
    %6794 = vmatpush1.msra.mxu0 0.0
    %6795 = vmatprep.subr.mxu0 0.0
    %6796 = vmatpush1.msra.mxu0 0.0
    %6797 = vmatprep.subr.mxu0 0.0
    %6798 = vmatpush1.msra.mxu0 0.0
    %6799 = vmatprep.subr.mxu0 0.0
    %6800 = vmatpush1.msra.mxu0 0.0
    %6801 = vmatprep.subr.mxu0 0.0
    %6802 = vmatpush1.msra.mxu0 0.0
    %6803 = vmatprep.subr.mxu0 0.0
    %6804 = vmatpush1.msra.mxu0 0.0
    %6805 = vmatprep.subr.mxu0 0.0
    %6806 = vmatpush1.msra.mxu0 0.0
    %6807 = vmatprep.subr.mxu0 0.0
    %6808 = vmatpush1.msra.mxu0 0.0
    %6809 = vmatprep.subr.mxu0 0.0
    %6810 = vmatpush1.msra.mxu0 0.0
    %6811 = vmatprep.subr.mxu0 0.0
    %6812 = vmatpush1.msra.mxu0 0.0
    %6813 = vmatprep.subr.mxu0 0.0
    %6814 = vmatpush1.msra.mxu0 0.0
    %6815 = vmatprep.subr.mxu0 0.0
    %6816 = vmatpush1.msra.mxu0 0.0
    %6817 = vmatprep.subr.mxu0 0.0
    %6818 = vmatpush1.msra.mxu0 0.0
    %6819 = vmatprep.mubr.f32.mxu0 0.0
    %6820 = vmatmul.mubr.f32.gmra.mrb[0].mxu0 %v6753
    %v6821 = vpop.f32.mrb[0].mxu0
    %v6822 = vadd.f32 0.0, %v6821
    %v6823 = vpop.f32.mrb[0].mxu0
    %6824 = vdwg.mxu0
    %v6825 = vadd.f32 %v6742, %v6822
    %s6826 = scalar_lea.vmem [#allocation10], 3136
    %v6827 = vld [vmem:[%s6826] sm:$0xff]
    %v6828 = vld [vmem:[%s6826 + $0x8] sm:$0xff]
    %v6829 = vld [vmem:[%s6826 + $0x10] sm:$0xff]
    %v6830 = vld [vmem:[%s6826 + $0x18] sm:$0xff]
    %v6831 = vld [vmem:[%s6826 + $0x20] sm:$0xff]
    %v6832 = vld [vmem:[%s6826 + $0x28] sm:$0xff]
    %v6833 = vld [vmem:[%s6826 + $0x30] sm:$0xff]
    %v6834 = vld [vmem:[%s6826 + $0x38] sm:$0xff]
    %v6835 = vrot.slane %v2759, 2
    %v6836 = vsel %vm2780, %v6835, 0
    %6838 = vmatprep.subr.mxu0 0.0
    %6839 = vmatpush1.msra.mxu0 %v6827
    %6840 = vmatprep.subr.mxu0 0.0
    %6841 = vmatpush1.msra.mxu0 %v6828
    %6842 = vmatprep.subr.mxu0 0.0
    %6843 = vmatpush1.msra.mxu0 %v6829
    %6844 = vmatprep.subr.mxu0 0.0
    %6845 = vmatpush1.msra.mxu0 %v6830
    %6846 = vmatprep.subr.mxu0 0.0
    %6847 = vmatpush1.msra.mxu0 %v6831
    %6848 = vmatprep.subr.mxu0 0.0
    %6849 = vmatpush1.msra.mxu0 %v6832
    %6850 = vmatprep.subr.mxu0 0.0
    %6851 = vmatpush1.msra.mxu0 %v6833
    %6852 = vmatprep.subr.mxu0 0.0
    %6853 = vmatpush1.msra.mxu0 %v6834
    %6854 = vmatprep.subr.mxu0 0.0
    %6855 = vmatpush1.msra.mxu0 0.0
    %6856 = vmatprep.subr.mxu0 0.0
    %6857 = vmatpush1.msra.mxu0 0.0
    %6858 = vmatprep.subr.mxu0 0.0
    %6859 = vmatpush1.msra.mxu0 0.0
    %6860 = vmatprep.subr.mxu0 0.0
    %6861 = vmatpush1.msra.mxu0 0.0
    %6862 = vmatprep.subr.mxu0 0.0
    %6863 = vmatpush1.msra.mxu0 0.0
    %6864 = vmatprep.subr.mxu0 0.0
    %6865 = vmatpush1.msra.mxu0 0.0
    %6866 = vmatprep.subr.mxu0 0.0
    %6867 = vmatpush1.msra.mxu0 0.0
    %6868 = vmatprep.subr.mxu0 0.0
    %6869 = vmatpush1.msra.mxu0 0.0
    %6870 = vmatprep.subr.mxu0 0.0
    %6871 = vmatpush1.msra.mxu0 0.0
    %6872 = vmatprep.subr.mxu0 0.0
    %6873 = vmatpush1.msra.mxu0 0.0
    %6874 = vmatprep.subr.mxu0 0.0
    %6875 = vmatpush1.msra.mxu0 0.0
    %6876 = vmatprep.subr.mxu0 0.0
    %6877 = vmatpush1.msra.mxu0 0.0
    %6878 = vmatprep.subr.mxu0 0.0
    %6879 = vmatpush1.msra.mxu0 0.0
    %6880 = vmatprep.subr.mxu0 0.0
    %6881 = vmatpush1.msra.mxu0 0.0
    %6882 = vmatprep.subr.mxu0 0.0
    %6883 = vmatpush1.msra.mxu0 0.0
    %6884 = vmatprep.subr.mxu0 0.0
    %6885 = vmatpush1.msra.mxu0 0.0
    %6886 = vmatprep.subr.mxu0 0.0
    %6887 = vmatpush1.msra.mxu0 0.0
    %6888 = vmatprep.subr.mxu0 0.0
    %6889 = vmatpush1.msra.mxu0 0.0
    %6890 = vmatprep.subr.mxu0 0.0
    %6891 = vmatpush1.msra.mxu0 0.0
    %6892 = vmatprep.subr.mxu0 0.0
    %6893 = vmatpush1.msra.mxu0 0.0
    %6894 = vmatprep.subr.mxu0 0.0
    %6895 = vmatpush1.msra.mxu0 0.0
    %6896 = vmatprep.subr.mxu0 0.0
    %6897 = vmatpush1.msra.mxu0 0.0
    %6898 = vmatprep.subr.mxu0 0.0
    %6899 = vmatpush1.msra.mxu0 0.0
    %6900 = vmatprep.subr.mxu0 0.0
    %6901 = vmatpush1.msra.mxu0 0.0
    %6902 = vmatprep.mubr.f32.mxu0 0.0
    %6903 = vmatmul.mubr.f32.gmra.mrb[0].mxu0 %v6836
    %v6904 = vpop.f32.mrb[0].mxu0
    %v6905 = vadd.f32 0.0, %v6904
    %v6906 = vpop.f32.mrb[0].mxu0
    %6907 = vdwg.mxu0
    %v6908 = vadd.f32 %v6825, %v6905
    %s6909 = scalar_lea.vmem [#allocation10], 3200
    %v6910 = vld [vmem:[%s6909] sm:$0xff]
    %v6911 = vld [vmem:[%s6909 + $0x8] sm:$0xff]
    %v6912 = vld [vmem:[%s6909 + $0x10] sm:$0xff]
    %v6913 = vld [vmem:[%s6909 + $0x18] sm:$0xff]
    %v6914 = vld [vmem:[%s6909 + $0x20] sm:$0xff]
    %v6915 = vld [vmem:[%s6909 + $0x28] sm:$0xff]
    %v6916 = vld [vmem:[%s6909 + $0x30] sm:$0xff]
    %v6917 = vld [vmem:[%s6909 + $0x38] sm:$0xff]
    %v6918 = vrot.slane %v2759, 4
    %v6919 = vsel %vm2780, %v6918, 0
    %6921 = vmatprep.subr.mxu0 0.0
    %6922 = vmatpush1.msra.mxu0 %v6910
    %6923 = vmatprep.subr.mxu0 0.0
    %6924 = vmatpush1.msra.mxu0 %v6911
    %6925 = vmatprep.subr.mxu0 0.0
    %6926 = vmatpush1.msra.mxu0 %v6912
    %6927 = vmatprep.subr.mxu0 0.0
    %6928 = vmatpush1.msra.mxu0 %v6913
    %6929 = vmatprep.subr.mxu0 0.0
    %6930 = vmatpush1.msra.mxu0 %v6914
    %6931 = vmatprep.subr.mxu0 0.0
    %6932 = vmatpush1.msra.mxu0 %v6915
    %6933 = vmatprep.subr.mxu0 0.0
    %6934 = vmatpush1.msra.mxu0 %v6916
    %6935 = vmatprep.subr.mxu0 0.0
    %6936 = vmatpush1.msra.mxu0 %v6917
    %6937 = vmatprep.subr.mxu0 0.0
    %6938 = vmatpush1.msra.mxu0 0.0
    %6939 = vmatprep.subr.mxu0 0.0
    %6940 = vmatpush1.msra.mxu0 0.0
    %6941 = vmatprep.subr.mxu0 0.0
    %6942 = vmatpush1.msra.mxu0 0.0
    %6943 = vmatprep.subr.mxu0 0.0
    %6944 = vmatpush1.msra.mxu0 0.0
    %6945 = vmatprep.subr.mxu0 0.0
    %6946 = vmatpush1.msra.mxu0 0.0
    %6947 = vmatprep.subr.mxu0 0.0
    %6948 = vmatpush1.msra.mxu0 0.0
    %6949 = vmatprep.subr.mxu0 0.0
    %6950 = vmatpush1.msra.mxu0 0.0
    %6951 = vmatprep.subr.mxu0 0.0
    %6952 = vmatpush1.msra.mxu0 0.0
    %6953 = vmatprep.subr.mxu0 0.0
    %6954 = vmatpush1.msra.mxu0 0.0
    %6955 = vmatprep.subr.mxu0 0.0
    %6956 = vmatpush1.msra.mxu0 0.0
    %6957 = vmatprep.subr.mxu0 0.0
    %6958 = vmatpush1.msra.mxu0 0.0
    %6959 = vmatprep.subr.mxu0 0.0
    %6960 = vmatpush1.msra.mxu0 0.0
    %6961 = vmatprep.subr.mxu0 0.0
    %6962 = vmatpush1.msra.mxu0 0.0
    %6963 = vmatprep.subr.mxu0 0.0
    %6964 = vmatpush1.msra.mxu0 0.0
    %6965 = vmatprep.subr.mxu0 0.0
    %6966 = vmatpush1.msra.mxu0 0.0
    %6967 = vmatprep.subr.mxu0 0.0
    %6968 = vmatpush1.msra.mxu0 0.0
    %6969 = vmatprep.subr.mxu0 0.0
    %6970 = vmatpush1.msra.mxu0 0.0
    %6971 = vmatprep.subr.mxu0 0.0
    %6972 = vmatpush1.msra.mxu0 0.0
    %6973 = vmatprep.subr.mxu0 0.0
    %6974 = vmatpush1.msra.mxu0 0.0
    %6975 = vmatprep.subr.mxu0 0.0
    %6976 = vmatpush1.msra.mxu0 0.0
    %6977 = vmatprep.subr.mxu0 0.0
    %6978 = vmatpush1.msra.mxu0 0.0
    %6979 = vmatprep.subr.mxu0 0.0
    %6980 = vmatpush1.msra.mxu0 0.0
    %6981 = vmatprep.subr.mxu0 0.0
    %6982 = vmatpush1.msra.mxu0 0.0
    %6983 = vmatprep.subr.mxu0 0.0
    %6984 = vmatpush1.msra.mxu0 0.0
    %6985 = vmatprep.mubr.f32.mxu0 0.0
    %6986 = vmatmul.mubr.f32.gmra.mrb[0].mxu0 %v6919
    %v6987 = vpop.f32.mrb[0].mxu0
    %v6988 = vadd.f32 0.0, %v6987
    %v6989 = vpop.f32.mrb[0].mxu0
    %6990 = vdwg.mxu0
    %v6991 = vadd.f32 %v6908, %v6988
    %s6992 = scalar_lea.vmem [#allocation10], 3264
    %v6993 = vld [vmem:[%s6992] sm:$0xff]
    %v6994 = vld [vmem:[%s6992 + $0x8] sm:$0xff]
    %v6995 = vld [vmem:[%s6992 + $0x10] sm:$0xff]
    %v6996 = vld [vmem:[%s6992 + $0x18] sm:$0xff]
    %v6997 = vld [vmem:[%s6992 + $0x20] sm:$0xff]
    %v6998 = vld [vmem:[%s6992 + $0x28] sm:$0xff]
    %v6999 = vld [vmem:[%s6992 + $0x30] sm:$0xff]
    %v7000 = vld [vmem:[%s6992 + $0x38] sm:$0xff]
    %v7001 = vrot.slane %v2759, 6
    %v7002 = vsel %vm2780, %v7001, 0
    %7004 = vmatprep.subr.mxu0 0.0
    %7005 = vmatpush1.msra.mxu0 %v6993
    %7006 = vmatprep.subr.mxu0 0.0
    %7007 = vmatpush1.msra.mxu0 %v6994
    %7008 = vmatprep.subr.mxu0 0.0
    %7009 = vmatpush1.msra.mxu0 %v6995
    %7010 = vmatprep.subr.mxu0 0.0
    %7011 = vmatpush1.msra.mxu0 %v6996
    %7012 = vmatprep.subr.mxu0 0.0
    %7013 = vmatpush1.msra.mxu0 %v6997
    %7014 = vmatprep.subr.mxu0 0.0
    %7015 = vmatpush1.msra.mxu0 %v6998
    %7016 = vmatprep.subr.mxu0 0.0
    %7017 = vmatpush1.msra.mxu0 %v6999
    %7018 = vmatprep.subr.mxu0 0.0
    %7019 = vmatpush1.msra.mxu0 %v7000
    %7020 = vmatprep.subr.mxu0 0.0
    %7021 = vmatpush1.msra.mxu0 0.0
    %7022 = vmatprep.subr.mxu0 0.0
    %7023 = vmatpush1.msra.mxu0 0.0
    %7024 = vmatprep.subr.mxu0 0.0
    %7025 = vmatpush1.msra.mxu0 0.0
    %7026 = vmatprep.subr.mxu0 0.0
    %7027 = vmatpush1.msra.mxu0 0.0
    %7028 = vmatprep.subr.mxu0 0.0
    %7029 = vmatpush1.msra.mxu0 0.0
    %7030 = vmatprep.subr.mxu0 0.0
    %7031 = vmatpush1.msra.mxu0 0.0
    %7032 = vmatprep.subr.mxu0 0.0
    %7033 = vmatpush1.msra.mxu0 0.0
    %7034 = vmatprep.subr.mxu0 0.0
    %7035 = vmatpush1.msra.mxu0 0.0
    %7036 = vmatprep.subr.mxu0 0.0
    %7037 = vmatpush1.msra.mxu0 0.0
    %7038 = vmatprep.subr.mxu0 0.0
    %7039 = vmatpush1.msra.mxu0 0.0
    %7040 = vmatprep.subr.mxu0 0.0
    %7041 = vmatpush1.msra.mxu0 0.0
    %7042 = vmatprep.subr.mxu0 0.0
    %7043 = vmatpush1.msra.mxu0 0.0
    %7044 = vmatprep.subr.mxu0 0.0
    %7045 = vmatpush1.msra.mxu0 0.0
    %7046 = vmatprep.subr.mxu0 0.0
    %7047 = vmatpush1.msra.mxu0 0.0
    %7048 = vmatprep.subr.mxu0 0.0
    %7049 = vmatpush1.msra.mxu0 0.0
    %7050 = vmatprep.subr.mxu0 0.0
    %7051 = vmatpush1.msra.mxu0 0.0
    %7052 = vmatprep.subr.mxu0 0.0
    %7053 = vmatpush1.msra.mxu0 0.0
    %7054 = vmatprep.subr.mxu0 0.0
    %7055 = vmatpush1.msra.mxu0 0.0
    %7056 = vmatprep.subr.mxu0 0.0
    %7057 = vmatpush1.msra.mxu0 0.0
    %7058 = vmatprep.subr.mxu0 0.0
    %7059 = vmatpush1.msra.mxu0 0.0
    %7060 = vmatprep.subr.mxu0 0.0
    %7061 = vmatpush1.msra.mxu0 0.0
    %7062 = vmatprep.subr.mxu0 0.0
    %7063 = vmatpush1.msra.mxu0 0.0
    %7064 = vmatprep.subr.mxu0 0.0
    %7065 = vmatpush1.msra.mxu0 0.0
    %7066 = vmatprep.subr.mxu0 0.0
    %7067 = vmatpush1.msra.mxu0 0.0
    %7068 = vmatprep.mubr.f32.mxu0 0.0
    %7069 = vmatmul.mubr.f32.gmra.mrb[0].mxu0 %v7002
    %v7070 = vpop.f32.mrb[0].mxu0
    %v7071 = vadd.f32 0.0, %v7070
    %v7072 = vpop.f32.mrb[0].mxu0
    %7073 = vdwg.mxu0
    %v7074 = vadd.f32 %v6991, %v7071
    %s7075 = scalar_lea.vmem [#allocation10], 3328
    %v7076 = vld [vmem:[%s7075] sm:$0xff]
    %v7077 = vld [vmem:[%s7075 + $0x8] sm:$0xff]
    %v7078 = vld [vmem:[%s7075 + $0x10] sm:$0xff]
    %v7079 = vld [vmem:[%s7075 + $0x18] sm:$0xff]
    %v7080 = vld [vmem:[%s7075 + $0x20] sm:$0xff]
    %v7081 = vld [vmem:[%s7075 + $0x28] sm:$0xff]
    %v7082 = vld [vmem:[%s7075 + $0x30] sm:$0xff]
    %v7083 = vld [vmem:[%s7075 + $0x38] sm:$0xff]
    %v7085 = vsel %vm2780, %v2760, 0
    %7087 = vmatprep.subr.mxu0 0.0
    %7088 = vmatpush1.msra.mxu0 %v7076
    %7089 = vmatprep.subr.mxu0 0.0
    %7090 = vmatpush1.msra.mxu0 %v7077
    %7091 = vmatprep.subr.mxu0 0.0
    %7092 = vmatpush1.msra.mxu0 %v7078
    %7093 = vmatprep.subr.mxu0 0.0
    %7094 = vmatpush1.msra.mxu0 %v7079
    %7095 = vmatprep.subr.mxu0 0.0
    %7096 = vmatpush1.msra.mxu0 %v7080
    %7097 = vmatprep.subr.mxu0 0.0
    %7098 = vmatpush1.msra.mxu0 %v7081
    %7099 = vmatprep.subr.mxu0 0.0
    %7100 = vmatpush1.msra.mxu0 %v7082
    %7101 = vmatprep.subr.mxu0 0.0
    %7102 = vmatpush1.msra.mxu0 %v7083
    %7103 = vmatprep.subr.mxu0 0.0
    %7104 = vmatpush1.msra.mxu0 0.0
    %7105 = vmatprep.subr.mxu0 0.0
    %7106 = vmatpush1.msra.mxu0 0.0
    %7107 = vmatprep.subr.mxu0 0.0
    %7108 = vmatpush1.msra.mxu0 0.0
    %7109 = vmatprep.subr.mxu0 0.0
    %7110 = vmatpush1.msra.mxu0 0.0
    %7111 = vmatprep.subr.mxu0 0.0
    %7112 = vmatpush1.msra.mxu0 0.0
    %7113 = vmatprep.subr.mxu0 0.0
    %7114 = vmatpush1.msra.mxu0 0.0
    %7115 = vmatprep.subr.mxu0 0.0
    %7116 = vmatpush1.msra.mxu0 0.0
    %7117 = vmatprep.subr.mxu0 0.0
    %7118 = vmatpush1.msra.mxu0 0.0
    %7119 = vmatprep.subr.mxu0 0.0
    %7120 = vmatpush1.msra.mxu0 0.0
    %7121 = vmatprep.subr.mxu0 0.0
    %7122 = vmatpush1.msra.mxu0 0.0
    %7123 = vmatprep.subr.mxu0 0.0
    %7124 = vmatpush1.msra.mxu0 0.0
    %7125 = vmatprep.subr.mxu0 0.0
    %7126 = vmatpush1.msra.mxu0 0.0
    %7127 = vmatprep.subr.mxu0 0.0
    %7128 = vmatpush1.msra.mxu0 0.0
    %7129 = vmatprep.subr.mxu0 0.0
    %7130 = vmatpush1.msra.mxu0 0.0
    %7131 = vmatprep.subr.mxu0 0.0
    %7132 = vmatpush1.msra.mxu0 0.0
    %7133 = vmatprep.subr.mxu0 0.0
    %7134 = vmatpush1.msra.mxu0 0.0
    %7135 = vmatprep.subr.mxu0 0.0
    %7136 = vmatpush1.msra.mxu0 0.0
    %7137 = vmatprep.subr.mxu0 0.0
    %7138 = vmatpush1.msra.mxu0 0.0
    %7139 = vmatprep.subr.mxu0 0.0
    %7140 = vmatpush1.msra.mxu0 0.0
    %7141 = vmatprep.subr.mxu0 0.0
    %7142 = vmatpush1.msra.mxu0 0.0
    %7143 = vmatprep.subr.mxu0 0.0
    %7144 = vmatpush1.msra.mxu0 0.0
    %7145 = vmatprep.subr.mxu0 0.0
    %7146 = vmatpush1.msra.mxu0 0.0
    %7147 = vmatprep.subr.mxu0 0.0
    %7148 = vmatpush1.msra.mxu0 0.0
    %7149 = vmatprep.subr.mxu0 0.0
    %7150 = vmatpush1.msra.mxu0 0.0
    %7151 = vmatprep.mubr.f32.mxu0 0.0
    %7152 = vmatmul.mubr.f32.gmra.mrb[0].mxu0 %v7085
    %v7153 = vpop.f32.mrb[0].mxu0
    %v7154 = vadd.f32 0.0, %v7153
    %v7155 = vpop.f32.mrb[0].mxu0
    %7156 = vdwg.mxu0
    %v7157 = vadd.f32 %v7074, %v7154
    %s7158 = scalar_lea.vmem [#allocation10], 3392
    %v7159 = vld [vmem:[%s7158] sm:$0xff]
    %v7160 = vld [vmem:[%s7158 + $0x8] sm:$0xff]
    %v7161 = vld [vmem:[%s7158 + $0x10] sm:$0xff]
    %v7162 = vld [vmem:[%s7158 + $0x18] sm:$0xff]
    %v7163 = vld [vmem:[%s7158 + $0x20] sm:$0xff]
    %v7164 = vld [vmem:[%s7158 + $0x28] sm:$0xff]
    %v7165 = vld [vmem:[%s7158 + $0x30] sm:$0xff]
    %v7166 = vld [vmem:[%s7158 + $0x38] sm:$0xff]
    %v7167 = vrot.slane %v2760, 2
    %v7168 = vsel %vm2780, %v7167, 0
    %7170 = vmatprep.subr.mxu0 0.0
    %7171 = vmatpush1.msra.mxu0 %v7159
    %7172 = vmatprep.subr.mxu0 0.0
    %7173 = vmatpush1.msra.mxu0 %v7160
    %7174 = vmatprep.subr.mxu0 0.0
    %7175 = vmatpush1.msra.mxu0 %v7161
    %7176 = vmatprep.subr.mxu0 0.0
    %7177 = vmatpush1.msra.mxu0 %v7162
    %7178 = vmatprep.subr.mxu0 0.0
    %7179 = vmatpush1.msra.mxu0 %v7163
    %7180 = vmatprep.subr.mxu0 0.0
    %7181 = vmatpush1.msra.mxu0 %v7164
    %7182 = vmatprep.subr.mxu0 0.0
    %7183 = vmatpush1.msra.mxu0 %v7165
    %7184 = vmatprep.subr.mxu0 0.0
    %7185 = vmatpush1.msra.mxu0 %v7166
    %7186 = vmatprep.subr.mxu0 0.0
    %7187 = vmatpush1.msra.mxu0 0.0
    %7188 = vmatprep.subr.mxu0 0.0
    %7189 = vmatpush1.msra.mxu0 0.0
    %7190 = vmatprep.subr.mxu0 0.0
    %7191 = vmatpush1.msra.mxu0 0.0
    %7192 = vmatprep.subr.mxu0 0.0
    %7193 = vmatpush1.msra.mxu0 0.0
    %7194 = vmatprep.subr.mxu0 0.0
    %7195 = vmatpush1.msra.mxu0 0.0
    %7196 = vmatprep.subr.mxu0 0.0
    %7197 = vmatpush1.msra.mxu0 0.0
    %7198 = vmatprep.subr.mxu0 0.0
    %7199 = vmatpush1.msra.mxu0 0.0
    %7200 = vmatprep.subr.mxu0 0.0
    %7201 = vmatpush1.msra.mxu0 0.0
    %7202 = vmatprep.subr.mxu0 0.0
    %7203 = vmatpush1.msra.mxu0 0.0
    %7204 = vmatprep.subr.mxu0 0.0
    %7205 = vmatpush1.msra.mxu0 0.0
    %7206 = vmatprep.subr.mxu0 0.0
    %7207 = vmatpush1.msra.mxu0 0.0
    %7208 = vmatprep.subr.mxu0 0.0
    %7209 = vmatpush1.msra.mxu0 0.0
    %7210 = vmatprep.subr.mxu0 0.0
    %7211 = vmatpush1.msra.mxu0 0.0
    %7212 = vmatprep.subr.mxu0 0.0
    %7213 = vmatpush1.msra.mxu0 0.0
    %7214 = vmatprep.subr.mxu0 0.0
    %7215 = vmatpush1.msra.mxu0 0.0
    %7216 = vmatprep.subr.mxu0 0.0
    %7217 = vmatpush1.msra.mxu0 0.0
    %7218 = vmatprep.subr.mxu0 0.0
    %7219 = vmatpush1.msra.mxu0 0.0
    %7220 = vmatprep.subr.mxu0 0.0
    %7221 = vmatpush1.msra.mxu0 0.0
    %7222 = vmatprep.subr.mxu0 0.0
    %7223 = vmatpush1.msra.mxu0 0.0
    %7224 = vmatprep.subr.mxu0 0.0
    %7225 = vmatpush1.msra.mxu0 0.0
    %7226 = vmatprep.subr.mxu0 0.0
    %7227 = vmatpush1.msra.mxu0 0.0
    %7228 = vmatprep.subr.mxu0 0.0
    %7229 = vmatpush1.msra.mxu0 0.0
    %7230 = vmatprep.subr.mxu0 0.0
    %7231 = vmatpush1.msra.mxu0 0.0
    %7232 = vmatprep.subr.mxu0 0.0
    %7233 = vmatpush1.msra.mxu0 0.0
    %7234 = vmatprep.mubr.f32.mxu0 0.0
    %7235 = vmatmul.mubr.f32.gmra.mrb[0].mxu0 %v7168
    %v7236 = vpop.f32.mrb[0].mxu0
    %v7237 = vadd.f32 0.0, %v7236
    %v7238 = vpop.f32.mrb[0].mxu0
    %7239 = vdwg.mxu0
    %v7240 = vadd.f32 %v7157, %v7237
    %s7241 = scalar_lea.vmem [#allocation10], 3456
    %v7242 = vld [vmem:[%s7241] sm:$0xff]
    %v7243 = vld [vmem:[%s7241 + $0x8] sm:$0xff]
    %v7244 = vld [vmem:[%s7241 + $0x10] sm:$0xff]
    %v7245 = vld [vmem:[%s7241 + $0x18] sm:$0xff]
    %v7246 = vld [vmem:[%s7241 + $0x20] sm:$0xff]
    %v7247 = vld [vmem:[%s7241 + $0x28] sm:$0xff]
    %v7248 = vld [vmem:[%s7241 + $0x30] sm:$0xff]
    %v7249 = vld [vmem:[%s7241 + $0x38] sm:$0xff]
    %v7250 = vrot.slane %v2760, 4
    %v7251 = vsel %vm2780, %v7250, 0
    %7253 = vmatprep.subr.mxu0 0.0
    %7254 = vmatpush1.msra.mxu0 %v7242
    %7255 = vmatprep.subr.mxu0 0.0
    %7256 = vmatpush1.msra.mxu0 %v7243
    %7257 = vmatprep.subr.mxu0 0.0
    %7258 = vmatpush1.msra.mxu0 %v7244
    %7259 = vmatprep.subr.mxu0 0.0
    %7260 = vmatpush1.msra.mxu0 %v7245
    %7261 = vmatprep.subr.mxu0 0.0
    %7262 = vmatpush1.msra.mxu0 %v7246
    %7263 = vmatprep.subr.mxu0 0.0
    %7264 = vmatpush1.msra.mxu0 %v7247
    %7265 = vmatprep.subr.mxu0 0.0
    %7266 = vmatpush1.msra.mxu0 %v7248
    %7267 = vmatprep.subr.mxu0 0.0
    %7268 = vmatpush1.msra.mxu0 %v7249
    %7269 = vmatprep.subr.mxu0 0.0
    %7270 = vmatpush1.msra.mxu0 0.0
    %7271 = vmatprep.subr.mxu0 0.0
    %7272 = vmatpush1.msra.mxu0 0.0
    %7273 = vmatprep.subr.mxu0 0.0
    %7274 = vmatpush1.msra.mxu0 0.0
    %7275 = vmatprep.subr.mxu0 0.0
    %7276 = vmatpush1.msra.mxu0 0.0
    %7277 = vmatprep.subr.mxu0 0.0
    %7278 = vmatpush1.msra.mxu0 0.0
    %7279 = vmatprep.subr.mxu0 0.0
    %7280 = vmatpush1.msra.mxu0 0.0
    %7281 = vmatprep.subr.mxu0 0.0
    %7282 = vmatpush1.msra.mxu0 0.0
    %7283 = vmatprep.subr.mxu0 0.0
    %7284 = vmatpush1.msra.mxu0 0.0
    %7285 = vmatprep.subr.mxu0 0.0
    %7286 = vmatpush1.msra.mxu0 0.0
    %7287 = vmatprep.subr.mxu0 0.0
    %7288 = vmatpush1.msra.mxu0 0.0
    %7289 = vmatprep.subr.mxu0 0.0
    %7290 = vmatpush1.msra.mxu0 0.0
    %7291 = vmatprep.subr.mxu0 0.0
    %7292 = vmatpush1.msra.mxu0 0.0
    %7293 = vmatprep.subr.mxu0 0.0
    %7294 = vmatpush1.msra.mxu0 0.0
    %7295 = vmatprep.subr.mxu0 0.0
    %7296 = vmatpush1.msra.mxu0 0.0
    %7297 = vmatprep.subr.mxu0 0.0
    %7298 = vmatpush1.msra.mxu0 0.0
    %7299 = vmatprep.subr.mxu0 0.0
    %7300 = vmatpush1.msra.mxu0 0.0
    %7301 = vmatprep.subr.mxu0 0.0
    %7302 = vmatpush1.msra.mxu0 0.0
    %7303 = vmatprep.subr.mxu0 0.0
    %7304 = vmatpush1.msra.mxu0 0.0
    %7305 = vmatprep.subr.mxu0 0.0
    %7306 = vmatpush1.msra.mxu0 0.0
    %7307 = vmatprep.subr.mxu0 0.0
    %7308 = vmatpush1.msra.mxu0 0.0
    %7309 = vmatprep.subr.mxu0 0.0
    %7310 = vmatpush1.msra.mxu0 0.0
    %7311 = vmatprep.subr.mxu0 0.0
    %7312 = vmatpush1.msra.mxu0 0.0
    %7313 = vmatprep.subr.mxu0 0.0
    %7314 = vmatpush1.msra.mxu0 0.0
    %7315 = vmatprep.subr.mxu0 0.0
    %7316 = vmatpush1.msra.mxu0 0.0
    %7317 = vmatprep.mubr.f32.mxu0 0.0
    %7318 = vmatmul.mubr.f32.gmra.mrb[0].mxu0 %v7251
    %v7319 = vpop.f32.mrb[0].mxu0
    %v7320 = vadd.f32 0.0, %v7319
    %v7321 = vpop.f32.mrb[0].mxu0
    %7322 = vdwg.mxu0
    %v7323 = vadd.f32 %v7240, %v7320
    %s7324 = scalar_lea.vmem [#allocation10], 3520
    %v7325 = vld [vmem:[%s7324] sm:$0xff]
    %v7326 = vld [vmem:[%s7324 + $0x8] sm:$0xff]
    %v7327 = vld [vmem:[%s7324 + $0x10] sm:$0xff]
    %v7328 = vld [vmem:[%s7324 + $0x18] sm:$0xff]
    %v7329 = vld [vmem:[%s7324 + $0x20] sm:$0xff]
    %v7330 = vld [vmem:[%s7324 + $0x28] sm:$0xff]
    %v7331 = vld [vmem:[%s7324 + $0x30] sm:$0xff]
    %v7332 = vld [vmem:[%s7324 + $0x38] sm:$0xff]
    %v7333 = vrot.slane %v2760, 6
    %v7334 = vsel %vm2780, %v7333, 0
    %7336 = vmatprep.subr.mxu0 0.0
    %7337 = vmatpush1.msra.mxu0 %v7325
    %7338 = vmatprep.subr.mxu0 0.0
    %7339 = vmatpush1.msra.mxu0 %v7326
    %7340 = vmatprep.subr.mxu0 0.0
    %7341 = vmatpush1.msra.mxu0 %v7327
    %7342 = vmatprep.subr.mxu0 0.0
    %7343 = vmatpush1.msra.mxu0 %v7328
    %7344 = vmatprep.subr.mxu0 0.0
    %7345 = vmatpush1.msra.mxu0 %v7329
    %7346 = vmatprep.subr.mxu0 0.0
    %7347 = vmatpush1.msra.mxu0 %v7330
    %7348 = vmatprep.subr.mxu0 0.0
    %7349 = vmatpush1.msra.mxu0 %v7331
    %7350 = vmatprep.subr.mxu0 0.0
    %7351 = vmatpush1.msra.mxu0 %v7332
    %7352 = vmatprep.subr.mxu0 0.0
    %7353 = vmatpush1.msra.mxu0 0.0
    %7354 = vmatprep.subr.mxu0 0.0
    %7355 = vmatpush1.msra.mxu0 0.0
    %7356 = vmatprep.subr.mxu0 0.0
    %7357 = vmatpush1.msra.mxu0 0.0
    %7358 = vmatprep.subr.mxu0 0.0
    %7359 = vmatpush1.msra.mxu0 0.0
    %7360 = vmatprep.subr.mxu0 0.0
    %7361 = vmatpush1.msra.mxu0 0.0
    %7362 = vmatprep.subr.mxu0 0.0
    %7363 = vmatpush1.msra.mxu0 0.0
    %7364 = vmatprep.subr.mxu0 0.0
    %7365 = vmatpush1.msra.mxu0 0.0
    %7366 = vmatprep.subr.mxu0 0.0
    %7367 = vmatpush1.msra.mxu0 0.0
    %7368 = vmatprep.subr.mxu0 0.0
    %7369 = vmatpush1.msra.mxu0 0.0
    %7370 = vmatprep.subr.mxu0 0.0
    %7371 = vmatpush1.msra.mxu0 0.0
    %7372 = vmatprep.subr.mxu0 0.0
    %7373 = vmatpush1.msra.mxu0 0.0
    %7374 = vmatprep.subr.mxu0 0.0
    %7375 = vmatpush1.msra.mxu0 0.0
    %7376 = vmatprep.subr.mxu0 0.0
    %7377 = vmatpush1.msra.mxu0 0.0
    %7378 = vmatprep.subr.mxu0 0.0
    %7379 = vmatpush1.msra.mxu0 0.0
    %7380 = vmatprep.subr.mxu0 0.0
    %7381 = vmatpush1.msra.mxu0 0.0
    %7382 = vmatprep.subr.mxu0 0.0
    %7383 = vmatpush1.msra.mxu0 0.0
    %7384 = vmatprep.subr.mxu0 0.0
    %7385 = vmatpush1.msra.mxu0 0.0
    %7386 = vmatprep.subr.mxu0 0.0
    %7387 = vmatpush1.msra.mxu0 0.0
    %7388 = vmatprep.subr.mxu0 0.0
    %7389 = vmatpush1.msra.mxu0 0.0
    %7390 = vmatprep.subr.mxu0 0.0
    %7391 = vmatpush1.msra.mxu0 0.0
    %7392 = vmatprep.subr.mxu0 0.0
    %7393 = vmatpush1.msra.mxu0 0.0
    %7394 = vmatprep.subr.mxu0 0.0
    %7395 = vmatpush1.msra.mxu0 0.0
    %7396 = vmatprep.subr.mxu0 0.0
    %7397 = vmatpush1.msra.mxu0 0.0
    %7398 = vmatprep.subr.mxu0 0.0
    %7399 = vmatpush1.msra.mxu0 0.0
    %7400 = vmatprep.mubr.f32.mxu0 0.0
    %7401 = vmatmul.mubr.f32.gmra.mrb[0].mxu0 %v7334
    %v7402 = vpop.f32.mrb[0].mxu0
    %v7403 = vadd.f32 0.0, %v7402
    %v7404 = vpop.f32.mrb[0].mxu0
    %7405 = vdwg.mxu0
    %v7406 = vadd.f32 %v7323, %v7403
    %v7407 = vld [vmem:[#allocation11] sm:$0x1]
    %v7409 = vlaneseq
    %v7410 = vshrl.u32 %v7409, 7
    %v7411 = vsub.s32 0, %v7410
    %v7412 = vrot.slane %v7407, %v7411
    %v7414 = vadd.f32 %v7406, %v7412
    %v7415 = vmax.f32 %v7414, 0.0
    %v7416 = vld [vmem:[%s8] sm:$0xff]
    %v7417 = vld [vmem:[%s8 + $0x8] sm:$0xff]
    %v7418 = vld [vmem:[%s8 + $0x10] sm:$0xff]
    %v7419 = vld [vmem:[%s8 + $0x18] sm:$0xff]
    %v7420 = vld [vmem:[%s8 + $0x20] sm:$0xff]
    %v7421 = vld [vmem:[%s8 + $0x28] sm:$0xff]
    %v7422 = vld [vmem:[%s8 + $0x30] sm:$0xff]
    %v7423 = vld [vmem:[%s8 + $0x38] sm:$0xff]
    %v7424 = vld [vmem:[%s8 + $0x40] sm:$0xff]
    %v7425 = vld [vmem:[%s8 + $0x48] sm:$0xff]
    %v7426 = vld [vmem:[%s8 + $0x50] sm:$0xff]
    %v7427 = vld [vmem:[%s8 + $0x58] sm:$0xff]
    %v7428 = vld [vmem:[%s8 + $0x60] sm:$0xff]
    %v7429 = vld [vmem:[%s8 + $0x68] sm:$0xff]
    %v7430 = vld [vmem:[%s8 + $0x70] sm:$0xff]
    %v7431 = vld [vmem:[%s8 + $0x78] sm:$0xff]
    %v7432 = vld [vmem:[#allocation13] sm:$0x1]
    %v7434 = vlaneseq
    %v7435 = vshrl.u32 %v7434, 7
    %v7436 = vsub.s32 0, %v7435
    %v7437 = vrot.slane %v7432, %v7436
    %7439 = vmatprep.subr.mxu0 0.0
    %7440 = vmatpush1.msra.mxu0 %v7416
    %7441 = vmatprep.subr.mxu0 0.0
    %7442 = vmatpush1.msra.mxu0 %v7417
    %7443 = vmatprep.subr.mxu0 0.0
    %7444 = vmatpush1.msra.mxu0 %v7418
    %7445 = vmatprep.subr.mxu0 0.0
    %7446 = vmatpush1.msra.mxu0 %v7419
    %7447 = vmatprep.subr.mxu0 0.0
    %7448 = vmatpush1.msra.mxu0 %v7420
    %7449 = vmatprep.subr.mxu0 0.0
    %7450 = vmatpush1.msra.mxu0 %v7421
    %7451 = vmatprep.subr.mxu0 0.0
    %7452 = vmatpush1.msra.mxu0 %v7422
    %7453 = vmatprep.subr.mxu0 0.0
    %7454 = vmatpush1.msra.mxu0 %v7423
    %7455 = vmatprep.subr.mxu0 0.0
    %7456 = vmatpush1.msra.mxu0 %v7424
    %7457 = vmatprep.subr.mxu0 0.0
    %7458 = vmatpush1.msra.mxu0 %v7425
    %7459 = vmatprep.subr.mxu0 0.0
    %7460 = vmatpush1.msra.mxu0 %v7426
    %7461 = vmatprep.subr.mxu0 0.0
    %7462 = vmatpush1.msra.mxu0 %v7427
    %7463 = vmatprep.subr.mxu0 0.0
    %7464 = vmatpush1.msra.mxu0 %v7428
    %7465 = vmatprep.subr.mxu0 0.0
    %7466 = vmatpush1.msra.mxu0 %v7429
    %7467 = vmatprep.subr.mxu0 0.0
    %7468 = vmatpush1.msra.mxu0 %v7430
    %7469 = vmatprep.subr.mxu0 0.0
    %7470 = vmatpush1.msra.mxu0 %v7431
    %7471 = vmatprep.subr.mxu0 0.0
    %7472 = vmatpush1.msra.mxu0 0.0
    %7473 = vmatprep.subr.mxu0 0.0
    %7474 = vmatpush1.msra.mxu0 0.0
    %7475 = vmatprep.subr.mxu0 0.0
    %7476 = vmatpush1.msra.mxu0 0.0
    %7477 = vmatprep.subr.mxu0 0.0
    %7478 = vmatpush1.msra.mxu0 0.0
    %7479 = vmatprep.subr.mxu0 0.0
    %7480 = vmatpush1.msra.mxu0 0.0
    %7481 = vmatprep.subr.mxu0 0.0
    %7482 = vmatpush1.msra.mxu0 0.0
    %7483 = vmatprep.subr.mxu0 0.0
    %7484 = vmatpush1.msra.mxu0 0.0
    %7485 = vmatprep.subr.mxu0 0.0
    %7486 = vmatpush1.msra.mxu0 0.0
    %7487 = vmatprep.subr.mxu0 0.0
    %7488 = vmatpush1.msra.mxu0 0.0
    %7489 = vmatprep.subr.mxu0 0.0
    %7490 = vmatpush1.msra.mxu0 0.0
    %7491 = vmatprep.subr.mxu0 0.0
    %7492 = vmatpush1.msra.mxu0 0.0
    %7493 = vmatprep.subr.mxu0 0.0
    %7494 = vmatpush1.msra.mxu0 0.0
    %7495 = vmatprep.subr.mxu0 0.0
    %7496 = vmatpush1.msra.mxu0 0.0
    %7497 = vmatprep.subr.mxu0 0.0
    %7498 = vmatpush1.msra.mxu0 0.0
    %7499 = vmatprep.subr.mxu0 0.0
    %7500 = vmatpush1.msra.mxu0 0.0
    %7501 = vmatprep.subr.mxu0 0.0
    %7502 = vmatpush1.msra.mxu0 0.0
    %7503 = vmatprep.mubr.f32.mxu0 0.0
    %7504 = vmatmul.mubr.f32.gmra.mrb[0].mxu0 %v7415
    %v7505 = vpop.f32.mrb[0].mxu0
    %v7506 = vadd.f32 %v7437, %v7505
    %v7507 = vpop.f32.mrb[0].mxu0
    %7508 = vdwg.mxu0
    %vm7509 = vcmask 451584
    %7510 = vst.msk [vmem:[#allocation14] sm:$0x3] %vm7509, %v7506
    // Predicated region
    $region70: #{generator_forward.1} parent=1 // pred_check
      _
    $region71: #{generator_forward.1} parent=1 // pred_check_branch
      %7512 = sbr.rel (0) target = $region73
    $region72: #{generator_forward.1} parent=1 // pred_region
      %s7514 = ssub.s32 32, 32
      %7515 = vsyncadd [#allocation4], %s7514
      %s7517 = sshll.u32 [#allocation14], 4
      %s7518 = int_to_ptr.vmem [resolvable:$true] %s7517
      %7520 = dma.vmem_to_hbm [thread:$0]  %s7518, 32, %s10, [#allocation4]
    $region73: #{generator_forward.1} parent=1 // pred_fallthru
      _
    // Predicated region
    $region74: #{generator_forward.1} parent=1 // pred_check
      _
    $region75: #{generator_forward.1} parent=1 // pred_check_branch
      %7522 = sbr.rel (0) target = $region77
    $region76: #{generator_forward.1} parent=1 // pred_region
      %7523 = dma.done [#allocation4], 32
    $region77: #{generator_forward.1} parent=1 // pred_fallthru
      _
    %7524 = vsyncpa [#allocation3], 1
    %7525 = vsyncpa [#allocation6], 1
    %7526 = vsyncpa [#allocation9], 1
    %7527 = vsyncpa [#allocation12], 1
    %7528 = vsyncpa [#allocation4], 1

</llo_original>
